<compile_context>
chip_gen: v7x
topology: tpu7x:2x2x1
jax: 0.10.0
libtpu: 0.0.40
codegen_flags: <defaults>
</compile_context>

<pallas_src>
import math
from functools import partial

import numpy as np
import jax
import jax.numpy as jnp
from jax.experimental import pallas as pl
from jax.experimental.pallas import tpu as pltpu

CFG = dict(vocab_size=256, hidden_size=32, n_layers=2, n_heads=4,
           intermediate_size=64, rms_eps=1e-6, rope_base=10000.0)

LANE = 128


def _full_spec(shape):
    """BlockSpec covering the whole array (block == full dims, grid=(1,))."""
    n = len(shape)
    return pl.BlockSpec(shape, lambda i, n=n: (0,) * n)


# ----------------------- fused Llama backbone kernel -------------------------

def _backbone_kernel(x_ref, wq_ref, wk_ref, wv_ref, wo_ref,
                     wg_ref, wu_ref, wd_ref, ln1_ref, ln2_ref, fln_ref,
                     cos_ref, sin_ref, rot_ref, bias_ref, o_ref,
                     *, n_layers, n_heads, eps):
    f32 = jnp.float32
    bf16 = jnp.bfloat16
    RS, H = x_ref.shape
    head_dim = wq_ref.shape[-1]
    scale = 1.0 / math.sqrt(head_dim)

    x = x_ref[...].astype(f32)              # residual stream kept in f32 in-kernel
    c = cos_ref[...]                        # (RS, hd) f32
    s = sin_ref[...]
    rot = rot_ref[...]                      # (hd, hd) rotate_half as a matmul
    bias = bias_ref[...]                    # (RS, RS) block-diag causal additive mask

    def rmsnorm(v, w):                      # v f32 (RS,H), w bf16 (1,H)
        var = jnp.mean(v * v, axis=-1, keepdims=True)
        return (v * jax.lax.rsqrt(var + eps)).astype(bf16) * w

    for l in range(n_layers):
        # ------------------------- self-attention ---------------------------
        xn = rmsnorm(x, ln1_ref[l])                                   # (RS,H) bf16
        attn = jnp.zeros((RS, H), f32)
        for h in range(n_heads):
            i = l * n_heads + h
            q = jnp.dot(xn, wq_ref[i], preferred_element_type=f32)   # (RS,hd)
            k = jnp.dot(xn, wk_ref[i], preferred_element_type=f32)
            v = jnp.dot(xn, wv_ref[i], preferred_element_type=f32)
            # RoPE: rotate_half(q) == q @ rot (constant matrix) — no lane slicing
            qr = q * c + jnp.dot(q, rot, preferred_element_type=f32) * s
            kr = k * c + jnp.dot(k, rot, preferred_element_type=f32) * s
            sc = jax.lax.dot_general(qr, kr, (((1,), (1,)), ((), ())),
                                     preferred_element_type=f32) * scale
            sc = sc + bias                                            # (RS,RS)
            m = jnp.max(sc, axis=-1, keepdims=True)
            p = jnp.exp(sc - m)
            p = p / jnp.sum(p, axis=-1, keepdims=True)
            ctx = jnp.dot(p.astype(bf16), v.astype(bf16),
                          preferred_element_type=f32)                 # (RS,hd)
            attn = attn + jnp.dot(ctx.astype(bf16), wo_ref[i],
                                  preferred_element_type=f32)         # (RS,H)
        x = x + attn

        # --------------------------- SwiGLU MLP ------------------------------
        hn = rmsnorm(x, ln2_ref[l])                                   # (RS,H) bf16
        gate = jnp.dot(hn, wg_ref[l], preferred_element_type=f32)     # (RS,I)
        up = jnp.dot(hn, wu_ref[l], preferred_element_type=f32)
        act = gate / (1.0 + jnp.exp(-gate)) * up                      # SiLU(g)*u
        x = x + jnp.dot(act.astype(bf16), wd_ref[l],
                        preferred_element_type=f32)                   # (RS,H)

    # final RMSNorm fused into the same kernel
    var = jnp.mean(x * x, axis=-1, keepdims=True)
    o_ref[...] = (x * jax.lax.rsqrt(var + eps)).astype(bf16) * fln_ref[...]


def pallas_backbone(x2d, lw, fln, cos8, sin8, rot, bias, cfg):
    """One pallas_call for all decoder layers + final norm (toy sizes: fully resident).
    # TODO(synk): at realistic H/S re-tile this (flash attention over S, streamed
    # weight matmuls over K/N grid axes) instead of a single grid=(1,) resident block.
    """
    RS, H = x2d.shape
    nl, nh = cfg['n_layers'], cfg['n_heads']
    hd = H // nh
    I = cfg['intermediate_size']
    kernel = partial(_backbone_kernel, n_layers=nl, n_heads=nh, eps=cfg['rms_eps'])
    return pl.pallas_call(
        kernel,
        out_shape=jax.ShapeDtypeStruct((RS, H), jnp.bfloat16),
        grid=(1,),
        in_specs=[_full_spec((RS, H)),
                  _full_spec((nl * nh, H, hd)),
                  _full_spec((nl * nh, H, hd)),
                  _full_spec((nl * nh, H, hd)),
                  _full_spec((nl * nh, hd, H)),
                  _full_spec((nl, H, I)),
                  _full_spec((nl, H, I)),
                  _full_spec((nl, I, H)),
                  _full_spec((nl, 1, H)),
                  _full_spec((nl, 1, H)),
                  _full_spec((1, H)),
                  _full_spec((RS, hd)),
                  _full_spec((RS, hd)),
                  _full_spec((hd, hd)),
                  _full_spec((RS, RS))],
        out_specs=_full_spec((RS, H)),
        compiler_params=pltpu.CompilerParams(
            dimension_semantics=("arbitrary",),
            vmem_limit_bytes=32 * 1024 * 1024),
    )(x2d, lw['wq'], lw['wk'], lw['wv'], lw['wo'],
      lw['wg'], lw['wu'], lw['wd'], lw['ln1'], lw['ln2'],
      fln, cos8, sin8, rot, bias)


# ----------------- fused LM-head + shifted CE + per-seq sum ------------------

def _zeroshot_score_kernel(h_ref, wt_ref, tgt_ref, sel_ref, out_ref,
                           m_sc, l_sc, t_sc):
    # h_ref  : (rs_tile, H)        bf16  final hidden states (rows of this block)
    # wt_ref : (H, Vt)             bf16  lm_head slab for this vocab tile
    # tgt_ref: (rs_tile, 1)        int32 shifted next-token target; -1 = no target
    # sel_ref: (rows_tile, rs_tile)f32   sel[r,i]=1 iff token-row i is in sequence r
    # out_ref: (rows_tile, 128)    f32   per-sequence score broadcast over lanes
    # m/l/t  : (rs_tile, 1)        f32   online-LSE / target-logit accumulators
    vi = pl.program_id(1)
    nv = pl.num_programs(1)
    rs_tile = h_ref.shape[0]
    Vt = wt_ref.shape[1]

    @pl.when(vi == 0)
    def _init():
        m_sc[...] = jnp.full_like(m_sc, -jnp.inf)
        l_sc[...] = jnp.zeros_like(l_sc)
        t_sc[...] = jnp.zeros_like(t_sc)

    # LM-head projection for this vocab slab (f32 MXU accumulation)
    logits = jnp.dot(h_ref[...], wt_ref[...],
                     preferred_element_type=jnp.float32)              # (rs, Vt)

    # online log-sum-exp across vocab tiles — all 2D, reductions on the lane axis
    m_old = m_sc[...]
    m_new = jnp.maximum(m_old, jnp.max(logits, axis=-1, keepdims=True))
    l_sc[...] = (l_sc[...] * jnp.exp(m_old - m_new)
                 + jnp.sum(jnp.exp(logits - m_new), axis=-1, keepdims=True))
    m_sc[...] = m_new

    # target-logit extraction: 2D lane-iota vs tile-local target index
    # (the -1 "no target" sentinel never matches -> contributes 0)
    local = tgt_ref[...] - vi * Vt                                    # (rs,1) int32
    col = jax.lax.broadcasted_iota(jnp.int32, (rs_tile, Vt), 1)
    t_sc[...] += jnp.sum(jnp.where(col == local, logits, 0.0),
                         axis=-1, keepdims=True)

    @pl.when(vi == nv - 1)
    def _finalize():
        lse = m_sc[...] + jnp.log(l_sc[...])                          # (rs,1)
        valid = (tgt_ref[...] >= 0).astype(jnp.float32)
        neg_ce = valid * (t_sc[...] - lse)                            # (rs,1)
        # per-sequence SUM of -CE (matches torch reduction='none' + sum) via a tiny
        # selection matmul; broadcast over 128 lanes so the store is lane-dense.
        neg_b = jnp.broadcast_to(neg_ce, (rs_tile, out_ref.shape[1]))
        out_ref[...] = jnp.dot(sel_ref[...], neg_b,
                               preferred_element_type=jnp.float32)


def pallas_zeroshot_score(h2d, lm_head_t, tgt, R, S):
    RS, H = h2d.shape
    V = lm_head_t.shape[1]
    assert RS == R * S

    # >=2 row blocks (shards the "parallel" rows axis across v7x's 2 TensorCores)
    # whenever the tile stays 8-sublane aligned; single block at toy R=6.
    rows_tile = R // 2 if (R % 16 == 0) else R
    rs_tile = rows_tile * S

    # vocab tile: widest of {512,256,128} dividing V whose working set
    # (double-buffered bf16 weight slab + f32 logits + resident h + f32 scratches)
    # stays under ~24 MiB -> fits v7x (64 MiB physical / 32 MiB scoped) and v5e once
    # vmem_limit_bytes below raises its 16 MiB scoped default; 256 fills the full
    # 256-wide MXU on v6e/v7x and is still fine on v5e's 128-wide MXU.
    # NOTE: V is never padded here, so no masked vocab columns enter the LSE.
    Vt = V
    budget = 24 * 1024 * 1024
    for cand in (512, 256, 128):
        if V % cand == 0:
            need = (2 * H * cand * 2 + rs_tile * cand * 4
                    + rs_tile * H * 2 + 3 * rs_tile * 4)
            if need <= budget:
                Vt = cand
                break

    # block-local per-sequence selection matrix (same for every row block)
    sel = (jnp.arange(rs_tile, dtype=jnp.int32)[None, :] // S
           == jnp.arange(rows_tile, dtype=jnp.int32)[:, None]).astype(jnp.float32)

    out = pl.pallas_call(
        _zeroshot_score_kernel,
        out_shape=jax.ShapeDtypeStruct((R, LANE), jnp.float32),
        # vocab axis LAST (innermost) — required for the scratch accumulators
        grid=(R // rows_tile, V // Vt),
        in_specs=[pl.BlockSpec((rs_tile, H), lambda ri, vi: (ri, 0)),
                  pl.BlockSpec((H, Vt), lambda ri, vi: (0, vi)),
                  pl.BlockSpec((rs_tile, 1), lambda ri, vi: (ri, 0)),
                  pl.BlockSpec((rows_tile, rs_tile), lambda ri, vi: (0, 0))],
        out_specs=pl.BlockSpec((rows_tile, LANE), lambda ri, vi: (ri, 0)),
        scratch_shapes=[pltpu.VMEM((rs_tile, 1), jnp.float32),
                        pltpu.VMEM((rs_tile, 1), jnp.float32),
                        pltpu.VMEM((rs_tile, 1), jnp.float32)],
        compiler_params=pltpu.CompilerParams(
            dimension_semantics=("parallel", "arbitrary"),
            vmem_limit_bytes=32 * 1024 * 1024),
    )(h2d, lm_head_t, tgt, sel)
    return out[:, 0]                                # (R,) per-sequence log-prob


# --------------------------- glue (tables, forward) ---------------------------

def rope_tables(R, S, head_dim, base):
    inv = 1.0 / (base ** (jnp.arange(0, head_dim, 2, dtype=jnp.float32) / head_dim))
    pos = jnp.arange(S, dtype=jnp.float32)
    freqs = jnp.outer(pos, inv)                          # (S, hd/2)
    emb = jnp.concatenate([freqs, freqs], axis=-1)       # (S, hd)
    cos = jnp.tile(jnp.cos(emb), (R, 1))                 # (R*S, hd)
    sin = jnp.tile(jnp.sin(emb), (R, 1))
    # rotate_half as a constant matmul: (x @ rot)[:, i] = -x[:, i+hd/2]  (i <  hd/2)
    #                                                   =  x[:, i-hd/2]  (i >= hd/2)
    hd2 = head_dim // 2
    rot = np.zeros((head_dim, head_dim), np.float32)
    rot[hd2:, :hd2] = -np.eye(hd2, dtype=np.float32)
    rot[:hd2, hd2:] = np.eye(hd2, dtype=np.float32)
    return cos, sin, jnp.asarray(rot)


def block_causal_bias(R, S):
    """Additive mask over flattened (R*S) token rows: 0 within-sequence causal,
    -1e30 elsewhere (sequences never attend to each other)."""
    pos = jnp.arange(R * S, dtype=jnp.int32)
    same = (pos[:, None] // S) == (pos[None, :] // S)
    causal = pos[None, :] <= pos[:, None]
    return jnp.where(same & causal, 0.0, -1e30).astype(jnp.float32)


def forward(params, input_ids, labels, classification_labels, cfg):
    """Mirrors LlamaForZeroShotSequenceClassification.forward (return_dict path)."""
    B, L, S = input_ids.shape                 # batch, n_labels, seq_len
    R = B * L
    H = cfg['hidden_size']
    ids2 = input_ids.reshape(R, S)
    lab2 = labels.reshape(R, S)

    x = params['embed'][ids2].reshape(R * S, H)                        # (RS,H) bf16
    cos8, sin8, rot = rope_tables(R, S, H // cfg['n_heads'], cfg['rope_base'])
    bias = block_causal_bias(R, S)

    # single fused Pallas kernel: all decoder layers + final RMSNorm
    h = pallas_backbone(x, params['layers'], params['final_norm'],
                        cos8, sin8, rot, bias, cfg)                    # (RS,H) bf16

    # shifted next-token targets; -1 marks the target-less final position and doubles
    # as the validity mask inside the score kernel (no separate mask input)
    tgt = jnp.concatenate([lab2[:, 1:], jnp.full((R, 1), -1, jnp.int32)],
                          axis=1).reshape(R * S, 1)

    # fused Pallas kernel: vocab-tiled lm_head + online-softmax CE + per-seq SUM
    log_probs = pallas_zeroshot_score(h, params['lm_head_t'], tgt, R, S)  # (R,)
    logits = log_probs.reshape(B, L)                                   # (B, n_labels)

    # classification CrossEntropyLoss (mean over batch) — tiny, done in glue
    logz = jax.nn.log_softmax(logits, axis=-1)
    loss = -jnp.mean(jnp.take_along_axis(
        logz, classification_labels[:, None], axis=-1)[:, 0])
    return loss, logits
    # TODO(synk): past_key_values / use_cache / attention_mask / output_attentions /
    # generate() have no Pallas equivalent here and are omitted.


# --------------------------- parameter init ----------------------------------

def init_params(key, cfg, dtype=jnp.bfloat16):
    V, H, I = cfg['vocab_size'], cfg['hidden_size'], cfg['intermediate_size']
    nl, nh = cfg['n_layers'], cfg['n_heads']
    hd = H // nh

    def nrm(k, shape):
        return (0.02 * jax.random.normal(k, shape, jnp.float32)).astype(dtype)

    keys = jax.random.split(key, 9)
    return {
        'embed': nrm(keys[0], (V, H)),
        'lm_head_t': nrm(keys[1], (H, V)),
        'final_norm': jnp.ones((1, H), dtype),
        'layers': {
            # per-head projections stacked on a leading (layer*head) axis so the fused
            # kernel indexes them on the leading ref dim (no in-kernel lane slicing)
            'wq': nrm(keys[2], (nl * nh, H, hd)),
            'wk': nrm(keys[3], (nl * nh, H, hd)),
            'wv': nrm(keys[4], (nl * nh, H, hd)),
            'wo': nrm(keys[5], (nl * nh, hd, H)),
            'wg': nrm(keys[6], (nl, H, I)),
            'wu': nrm(keys[7], (nl, H, I)),
            'wd': nrm(keys[8], (nl, I, H)),
            'ln1': jnp.ones((nl, 1, H), dtype),
            'ln2': jnp.ones((nl, 1, H), dtype),
        },
    }


# --------------------------------- main ---------------------------------------

if __name__ == "__main__":
    key = jax.random.PRNGKey(0)
    kp, kid, kcls = jax.random.split(key, 3)

    B, L, S = 2, 3, 8   # batch, n_labels (candidate verbalizations), seq_len
    params = init_params(kp, CFG)

    input_ids = jax.random.randint(kid, (B, L, S), 0, CFG['vocab_size'],
                                   dtype=jnp.int32)
    labels = input_ids                                   # LM labels = token ids
    classification_labels = jax.random.randint(kcls, (B,), 0, L, dtype=jnp.int32)

    fwd = jax.jit(partial(forward, cfg=CFG))
    loss, logits = fwd(params, input_ids, labels, classification_labels)
    jax.block_until_ready((loss, logits))

    assert logits.shape == (B, L) and logits.dtype == jnp.float32
    assert loss.shape == () and loss.dtype == jnp.float32
    assert bool(jnp.isfinite(loss)) and bool(jnp.all(jnp.isfinite(logits)))
    print("KERNEL_OK")
</pallas_src>

<mosaic_0001>
module attributes {stable_mosaic.version = 11 : i64} {
  func.func @_zeroshot_score_kernel(%arg0: i32, %arg1: i32, %arg2: memref<48x32xbf16, #tpu.memory_space<vmem>>, %arg3: memref<32x256xbf16, #tpu.memory_space<vmem>>, %arg4: memref<48x1xi32, #tpu.memory_space<vmem>>, %arg5: memref<6x48xf32, #tpu.memory_space<vmem>>, %arg6: memref<6x128xf32, #tpu.memory_space<vmem>>, %arg7: memref<48x1xf32, #tpu.memory_space<vmem>>, %arg8: memref<48x1xf32, #tpu.memory_space<vmem>>, %arg9: memref<48x1xf32, #tpu.memory_space<vmem>>) attributes {dimension_semantics = [#tpu.dimension_semantics<parallel>, #tpu.dimension_semantics<arbitrary>], iteration_bounds = array<i64: 1, 1>, scalar_prefetch = 0 : i64, scratch_operands = 3 : i64, tpu.core_type = #tpu.core_type<tc>, window_params = [{transform_indices = @transform_0, window_bounds = array<i64: 48, 32>}, {transform_indices = @transform_1, window_bounds = array<i64: 32, 256>}, {transform_indices = @transform_2, window_bounds = array<i64: 48, 1>}, {pipeline_mode = #tpu.pipeline_mode<synchronous>, transform_indices = @transform_3, window_bounds = array<i64: 6, 48>}, {transform_indices = @transform_4, window_bounds = array<i64: 6, 128>}]} {
    %c0_i32 = arith.constant 0 : i32
    %0 = arith.cmpi eq, %arg1, %c0_i32 : i32
    %1 = arith.extui %0 : i1 to i32
    %c0_i32_0 = arith.constant 0 : i32
    %2 = arith.cmpi ne, %1, %c0_i32_0 : i32
    scf.if %2 {
      %cst_24 = arith.constant 0xFF800000 : f32
      %39 = vector.broadcast %cst_24 : f32 to vector<48x1xf32>
      %c0_25 = arith.constant 0 : index
      %c0_26 = arith.constant 0 : index
      %40 = vector.load %arg7[%c0_25, %c0_26] : memref<48x1xf32, #tpu.memory_space<vmem>>, vector<48x1xf32>
      tpu.vector_store %arg7[%c0_25, %c0_26], %39 {strides = array<i32>} : memref<48x1xf32, #tpu.memory_space<vmem>>, vector<48x1xf32>,
      %cst_27 = arith.constant 0.000000e+00 : f32
      %41 = vector.broadcast %cst_27 : f32 to vector<48x1xf32>
      %c0_28 = arith.constant 0 : index
      %c0_29 = arith.constant 0 : index
      %42 = vector.load %arg8[%c0_28, %c0_29] : memref<48x1xf32, #tpu.memory_space<vmem>>, vector<48x1xf32>
      tpu.vector_store %arg8[%c0_28, %c0_29], %41 {strides = array<i32>} : memref<48x1xf32, #tpu.memory_space<vmem>>, vector<48x1xf32>,
      %cst_30 = arith.constant 0.000000e+00 : f32
      %43 = vector.broadcast %cst_30 : f32 to vector<48x1xf32>
      %c0_31 = arith.constant 0 : index
      %c0_32 = arith.constant 0 : index
      %44 = vector.load %arg9[%c0_31, %c0_32] : memref<48x1xf32, #tpu.memory_space<vmem>>, vector<48x1xf32>
      tpu.vector_store %arg9[%c0_31, %c0_32], %43 {strides = array<i32>} : memref<48x1xf32, #tpu.memory_space<vmem>>, vector<48x1xf32>,
    } else {
    }
    %c0 = arith.constant 0 : index
    %c0_1 = arith.constant 0 : index
    %3 = vector.load %arg2[%c0, %c0_1] : memref<48x32xbf16, #tpu.memory_space<vmem>>, vector<48x32xbf16>
    %c0_2 = arith.constant 0 : index
    %c0_3 = arith.constant 0 : index
    %4 = vector.load %arg3[%c0_2, %c0_3] : memref<32x256xbf16, #tpu.memory_space<vmem>>, vector<32x256xbf16>
    %cst = arith.constant dense<0.000000e+00> : vector<48x256xf32>
    %5 = tpu.matmul %3, %4, %cst {dimension_numbers = #tpu.dot_dimension_numbers<[1], [0], [0], [1], [0, 0, 1, 1], [], []>} : vector<48x32xbf16>, vector<32x256xbf16>, vector<48x256xf32> -> vector<48x256xf32>
    %c0_4 = arith.constant 0 : index
    %c0_5 = arith.constant 0 : index
    %6 = vector.load %arg7[%c0_4, %c0_5] : memref<48x1xf32, #tpu.memory_space<vmem>>, vector<48x1xf32>
    %cst_6 = arith.constant dense<0xFF800000> : vector<48xf32>
    %7 = vector.multi_reduction <maximumf>, %5, %cst_6 [1] : vector<48x256xf32> to vector<48xf32>
    %8 = vector.shape_cast %7 : vector<48xf32> to vector<48x1xf32>
    %9 = arith.maximumf %6, %8 : vector<48x1xf32>
    %c0_7 = arith.constant 0 : index
    %c0_8 = arith.constant 0 : index
    %10 = vector.load %arg8[%c0_7, %c0_8] : memref<48x1xf32, #tpu.memory_space<vmem>>, vector<48x1xf32>
    %11 = arith.subf %6, %9 : vector<48x1xf32>
    %12 = math.exp %11 : vector<48x1xf32>
    %13 = arith.mulf %10, %12 : vector<48x1xf32>
    %14 = vector.broadcast %9 : vector<48x1xf32> to vector<48x256xf32>
    %15 = arith.subf %5, %14 : vector<48x256xf32>
    %16 = math.exp %15 : vector<48x256xf32>
    %cst_9 = arith.constant dense<0.000000e+00> : vector<48xf32>
    %17 = vector.multi_reduction <add>, %16, %cst_9 [1] : vector<48x256xf32> to vector<48xf32>
    %18 = vector.shape_cast %17 : vector<48xf32> to vector<48x1xf32>
    %19 = arith.addf %13, %18 : vector<48x1xf32>
    %c0_10 = arith.constant 0 : index
    %c0_11 = arith.constant 0 : index
    %20 = vector.load %arg8[%c0_10, %c0_11] : memref<48x1xf32, #tpu.memory_space<vmem>>, vector<48x1xf32>
    tpu.vector_store %arg8[%c0_10, %c0_11], %19 {strides = array<i32>} : memref<48x1xf32, #tpu.memory_space<vmem>>, vector<48x1xf32>,
    %c0_12 = arith.constant 0 : index
    %c0_13 = arith.constant 0 : index
    %21 = vector.load %arg7[%c0_12, %c0_13] : memref<48x1xf32, #tpu.memory_space<vmem>>, vector<48x1xf32>
    tpu.vector_store %arg7[%c0_12, %c0_13], %9 {strides = array<i32>} : memref<48x1xf32, #tpu.memory_space<vmem>>, vector<48x1xf32>,
    %c0_14 = arith.constant 0 : index
    %c0_15 = arith.constant 0 : index
    %22 = vector.load %arg4[%c0_14, %c0_15] : memref<48x1xi32, #tpu.memory_space<vmem>>, vector<48x1xi32>
    %c256_i32 = arith.constant 256 : i32
    %23 = arith.muli %arg1, %c256_i32 : i32
    %24 = vector.broadcast %23 : i32 to vector<48x1xi32>
    %25 = arith.subi %22, %24 : vector<48x1xi32>
    %26 = tpu.iota {dimensions = array<i32: 1>} : vector<48x256xi32>
    %c0_16 = arith.constant 0 : index
    %c0_17 = arith.constant 0 : index
    %27 = vector.load %arg9[%c0_16, %c0_17] : memref<48x1xf32, #tpu.memory_space<vmem>>, vector<48x1xf32>
    %28 = vector.broadcast %25 : vector<48x1xi32> to vector<48x256xi32>
    %29 = arith.cmpi eq, %26, %28 : vector<48x256xi32>
    %cst_18 = arith.constant 0.000000e+00 : f32
    %30 = vector.broadcast %cst_18 : f32 to vector<48x256xf32>
    %31 = arith.select %29, %5, %30 : vector<48x256xi1>, vector<48x256xf32>
    %cst_19 = arith.constant dense<0.000000e+00> : vector<48xf32>
    %32 = vector.multi_reduction <add>, %31, %cst_19 [1] : vector<48x256xf32> to vector<48xf32>
    %33 = vector.shape_cast %32 : vector<48xf32> to vector<48x1xf32>
    %34 = arith.addf %27, %33 : vector<48x1xf32>
    %c0_20 = arith.constant 0 : index
    %c0_21 = arith.constant 0 : index
    %35 = vector.load %arg9[%c0_20, %c0_21] : memref<48x1xf32, #tpu.memory_space<vmem>>, vector<48x1xf32>
    tpu.vector_store %arg9[%c0_20, %c0_21], %34 {strides = array<i32>} : memref<48x1xf32, #tpu.memory_space<vmem>>, vector<48x1xf32>,
    %c0_i32_22 = arith.constant 0 : i32
    %36 = arith.cmpi eq, %arg1, %c0_i32_22 : i32
    %37 = arith.extui %36 : i1 to i32
    %c0_i32_23 = arith.constant 0 : i32
    %38 = arith.cmpi ne, %37, %c0_i32_23 : i32
    scf.if %38 {
      %c0_24 = arith.constant 0 : index
      %c0_25 = arith.constant 0 : index
      %39 = vector.load %arg7[%c0_24, %c0_25] : memref<48x1xf32, #tpu.memory_space<vmem>>, vector<48x1xf32>
      %c0_26 = arith.constant 0 : index
      %c0_27 = arith.constant 0 : index
      %40 = vector.load %arg8[%c0_26, %c0_27] : memref<48x1xf32, #tpu.memory_space<vmem>>, vector<48x1xf32>
      %41 = math.log %40 : vector<48x1xf32>
      %42 = arith.addf %39, %41 : vector<48x1xf32>
      %c0_28 = arith.constant 0 : index
      %c0_29 = arith.constant 0 : index
      %43 = vector.load %arg4[%c0_28, %c0_29] : memref<48x1xi32, #tpu.memory_space<vmem>>, vector<48x1xi32>
      %c0_i32_30 = arith.constant 0 : i32
      %44 = vector.broadcast %c0_i32_30 : i32 to vector<48x1xi32>
      %45 = arith.cmpi sge, %43, %44 : vector<48x1xi32>
      %46 = arith.extui %45 : vector<48x1xi1> to vector<48x1xi32>
      %47 = arith.sitofp %46 : vector<48x1xi32> to vector<48x1xf32>
      %c0_31 = arith.constant 0 : index
      %c0_32 = arith.constant 0 : index
      %48 = vector.load %arg9[%c0_31, %c0_32] : memref<48x1xf32, #tpu.memory_space<vmem>>, vector<48x1xf32>
      %49 = arith.subf %48, %42 : vector<48x1xf32>
      %50 = arith.mulf %47, %49 : vector<48x1xf32>
      %51 = vector.shape_cast %50 : vector<48x1xf32> to vector<48x1xf32>
      %52 = vector.broadcast %51 : vector<48x1xf32> to vector<48x128xf32>
      %c0_33 = arith.constant 0 : index
      %c0_34 = arith.constant 0 : index
      %53 = vector.load %arg5[%c0_33, %c0_34] : memref<6x48xf32, #tpu.memory_space<vmem>>, vector<6x48xf32>
      %cst_35 = arith.constant dense<0.000000e+00> : vector<6x128xf32>
      %54 = tpu.matmul %53, %52, %cst_35 {dimension_numbers = #tpu.dot_dimension_numbers<[1], [0], [0], [1], [0, 0, 1, 1], [], []>} : vector<6x48xf32>, vector<48x128xf32>, vector<6x128xf32> -> vector<6x128xf32>
      %c0_36 = arith.constant 0 : index
      %c0_37 = arith.constant 0 : index
      %55 = vector.load %arg6[%c0_36, %c0_37] : memref<6x128xf32, #tpu.memory_space<vmem>>, vector<6x128xf32>
      tpu.vector_store %arg6[%c0_36, %c0_37], %54 {strides = array<i32>} : memref<6x128xf32, #tpu.memory_space<vmem>>, vector<6x128xf32>,
    } else {
    }
    return
  }
  func.func @transform_0(%arg0: i32, %arg1: i32) -> (i32, i32) {
    %c0_i32 = arith.constant 0 : i32
    %c0_i32_0 = arith.constant 0 : i32
    return %arg0, %c0_i32 : i32, i32
  }
  func.func @transform_1(%arg0: i32, %arg1: i32) -> (i32, i32) {
    %c0_i32 = arith.constant 0 : i32
    %c0_i32_0 = arith.constant 0 : i32
    return %c0_i32, %arg1 : i32, i32
  }
  func.func @transform_2(%arg0: i32, %arg1: i32) -> (i32, i32) {
    %c0_i32 = arith.constant 0 : i32
    %c0_i32_0 = arith.constant 0 : i32
    return %arg0, %c0_i32 : i32, i32
  }
  func.func @transform_3(%arg0: i32, %arg1: i32) -> (i32, i32) {
    %c0_i32 = arith.constant 0 : i32
    %c0_i32_0 = arith.constant 0 : i32
    %c0_i32_1 = arith.constant 0 : i32
    return %c0_i32, %c0_i32_0 : i32, i32
  }
  func.func @transform_4(%arg0: i32, %arg1: i32) -> (i32, i32) {
    %c0_i32 = arith.constant 0 : i32
    %c0_i32_0 = arith.constant 0 : i32
    return %arg0, %c0_i32 : i32, i32
  }
}

module attributes {stable_mosaic.version = 11 : i64} {
  func.func @_backbone_kernel(%arg0: i32, %arg1: memref<48x32xbf16, #tpu.memory_space<vmem>>, %arg2: memref<8x32x8xbf16, #tpu.memory_space<vmem>>, %arg3: memref<8x32x8xbf16, #tpu.memory_space<vmem>>, %arg4: memref<8x32x8xbf16, #tpu.memory_space<vmem>>, %arg5: memref<8x8x32xbf16, #tpu.memory_space<vmem>>, %arg6: memref<2x32x64xbf16, #tpu.memory_space<vmem>>, %arg7: memref<2x32x64xbf16, #tpu.memory_space<vmem>>, %arg8: memref<2x64x32xbf16, #tpu.memory_space<vmem>>, %arg9: memref<2x1x32xbf16, #tpu.memory_space<vmem>>, %arg10: memref<2x1x32xbf16, #tpu.memory_space<vmem>>, %arg11: memref<1x32xbf16, #tpu.memory_space<vmem>>, %arg12: memref<48x8xf32, #tpu.memory_space<vmem>>, %arg13: memref<48x8xf32, #tpu.memory_space<vmem>>, %arg14: memref<8x8xf32, #tpu.memory_space<vmem>>, %arg15: memref<48x48xf32, #tpu.memory_space<vmem>>, %arg16: memref<48x32xbf16, #tpu.memory_space<vmem>>) attributes {dimension_semantics = [#tpu.dimension_semantics<arbitrary>], iteration_bounds = array<i64: 1>, scalar_prefetch = 0 : i64, scratch_operands = 0 : i64, tpu.core_type = #tpu.core_type<tc>, window_params = [{pipeline_mode = #tpu.pipeline_mode<synchronous>, transform_indices = @transform_0, window_bounds = array<i64: 48, 32>}, {pipeline_mode = #tpu.pipeline_mode<synchronous>, transform_indices = @transform_1, window_bounds = array<i64: 8, 32, 8>}, {pipeline_mode = #tpu.pipeline_mode<synchronous>, transform_indices = @transform_2, window_bounds = array<i64: 8, 32, 8>}, {pipeline_mode = #tpu.pipeline_mode<synchronous>, transform_indices = @transform_3, window_bounds = array<i64: 8, 32, 8>}, {pipeline_mode = #tpu.pipeline_mode<synchronous>, transform_indices = @transform_4, window_bounds = array<i64: 8, 8, 32>}, {pipeline_mode = #tpu.pipeline_mode<synchronous>, transform_indices = @transform_5, window_bounds = array<i64: 2, 32, 64>}, {pipeline_mode = #tpu.pipeline_mode<synchronous>, transform_indices = @transform_6, window_bounds = array<i64: 2, 32, 64>}, {pipeline_mode = #tpu.pipeline_mode<synchronous>, transform_indices = @transform_7, window_bounds = array<i64: 2, 64, 32>}, {pipeline_mode = #tpu.pipeline_mode<synchronous>, transform_indices = @transform_8, window_bounds = array<i64: 2, 1, 32>}, {pipeline_mode = #tpu.pipeline_mode<synchronous>, transform_indices = @transform_9, window_bounds = array<i64: 2, 1, 32>}, {pipeline_mode = #tpu.pipeline_mode<synchronous>, transform_indices = @transform_10, window_bounds = array<i64: 1, 32>}, {pipeline_mode = #tpu.pipeline_mode<synchronous>, transform_indices = @transform_11, window_bounds = array<i64: 48, 8>}, {pipeline_mode = #tpu.pipeline_mode<synchronous>, transform_indices = @transform_12, window_bounds = array<i64: 48, 8>}, {pipeline_mode = #tpu.pipeline_mode<synchronous>, transform_indices = @transform_13, window_bounds = array<i64: 8, 8>}, {pipeline_mode = #tpu.pipeline_mode<synchronous>, transform_indices = @transform_14, window_bounds = array<i64: 48, 48>}, {pipeline_mode = #tpu.pipeline_mode<synchronous>, transform_indices = @transform_15, window_bounds = array<i64: 48, 32>}]} {
    %c0 = arith.constant 0 : index
    %c0_0 = arith.constant 0 : index
    %0 = vector.load %arg1[%c0, %c0_0] : memref<48x32xbf16, #tpu.memory_space<vmem>>, vector<48x32xbf16>
    %1 = arith.extf %0 : vector<48x32xbf16> to vector<48x32xf32>
    %c0_1 = arith.constant 0 : index
    %c0_2 = arith.constant 0 : index
    %2 = vector.load %arg12[%c0_1, %c0_2] : memref<48x8xf32, #tpu.memory_space<vmem>>, vector<48x8xf32>
    %c0_3 = arith.constant 0 : index
    %c0_4 = arith.constant 0 : index
    %3 = vector.load %arg13[%c0_3, %c0_4] : memref<48x8xf32, #tpu.memory_space<vmem>>, vector<48x8xf32>
    %c0_5 = arith.constant 0 : index
    %c0_6 = arith.constant 0 : index
    %4 = vector.load %arg14[%c0_5, %c0_6] : memref<8x8xf32, #tpu.memory_space<vmem>>, vector<8x8xf32>
    %c0_7 = arith.constant 0 : index
    %c0_8 = arith.constant 0 : index
    %5 = vector.load %arg15[%c0_7, %c0_8] : memref<48x48xf32, #tpu.memory_space<vmem>>, vector<48x48xf32>
    %c0_9 = arith.constant 0 : index
    %c0_10 = arith.constant 0 : index
    %c0_11 = arith.constant 0 : index
    %6 = vector.load %arg9[%c0_9, %c0_10, %c0_11] : memref<2x1x32xbf16, #tpu.memory_space<vmem>>, vector<1x1x32xbf16>
    %7 = vector.shape_cast %6 : vector<1x1x32xbf16> to vector<1x32xbf16>
    %8 = arith.mulf %1, %1 : vector<48x32xf32>
    %cst = arith.constant dense<0.000000e+00> : vector<48xf32>
    %9 = vector.multi_reduction <add>, %8, %cst [1] : vector<48x32xf32> to vector<48xf32>
    %10 = vector.shape_cast %9 : vector<48xf32> to vector<48x1xf32>
    %cst_12 = arith.constant 3.200000e+01 : f32
    %11 = vector.broadcast %cst_12 : f32 to vector<48x1xf32>
    %12 = arith.divf %10, %11 : vector<48x1xf32>
    %cst_13 = arith.constant 9.99999997E-7 : f32
    %13 = vector.broadcast %cst_13 : f32 to vector<48x1xf32>
    %14 = arith.addf %12, %13 : vector<48x1xf32>
    %15 = math.rsqrt %14 : vector<48x1xf32>
    %16 = vector.broadcast %15 : vector<48x1xf32> to vector<48x32xf32>
    %17 = arith.mulf %1, %16 : vector<48x32xf32>
    %18 = arith.truncf %17 : vector<48x32xf32> to vector<48x32xbf16>
    %19 = vector.broadcast %7 : vector<1x32xbf16> to vector<48x32xbf16>
    %20 = arith.mulf %18, %19 : vector<48x32xbf16>
    %cst_14 = arith.constant 0.000000e+00 : f32
    %21 = vector.broadcast %cst_14 : f32 to vector<48x32xf32>
    %c0_15 = arith.constant 0 : index
    %c0_16 = arith.constant 0 : index
    %c0_17 = arith.constant 0 : index
    %22 = vector.load %arg2[%c0_15, %c0_16, %c0_17] : memref<8x32x8xbf16, #tpu.memory_space<vmem>>, vector<1x32x8xbf16>
    %23 = vector.shape_cast %22 : vector<1x32x8xbf16> to vector<32x8xbf16>
    %cst_18 = arith.constant dense<0.000000e+00> : vector<48x8xf32>
    %24 = tpu.matmul %20, %23, %cst_18 {dimension_numbers = #tpu.dot_dimension_numbers<[1], [0], [0], [1], [0, 0, 1, 1], [], []>} : vector<48x32xbf16>, vector<32x8xbf16>, vector<48x8xf32> -> vector<48x8xf32>
    %c0_19 = arith.constant 0 : index
    %c0_20 = arith.constant 0 : index
    %c0_21 = arith.constant 0 : index
    %25 = vector.load %arg3[%c0_19, %c0_20, %c0_21] : memref<8x32x8xbf16, #tpu.memory_space<vmem>>, vector<1x32x8xbf16>
    %26 = vector.shape_cast %25 : vector<1x32x8xbf16> to vector<32x8xbf16>
    %cst_22 = arith.constant dense<0.000000e+00> : vector<48x8xf32>
    %27 = tpu.matmul %20, %26, %cst_22 {dimension_numbers = #tpu.dot_dimension_numbers<[1], [0], [0], [1], [0, 0, 1, 1], [], []>} : vector<48x32xbf16>, vector<32x8xbf16>, vector<48x8xf32> -> vector<48x8xf32>
    %c0_23 = arith.constant 0 : index
    %c0_24 = arith.constant 0 : index
    %c0_25 = arith.constant 0 : index
    %28 = vector.load %arg4[%c0_23, %c0_24, %c0_25] : memref<8x32x8xbf16, #tpu.memory_space<vmem>>, vector<1x32x8xbf16>
    %29 = vector.shape_cast %28 : vector<1x32x8xbf16> to vector<32x8xbf16>
    %cst_26 = arith.constant dense<0.000000e+00> : vector<48x8xf32>
    %30 = tpu.matmul %20, %29, %cst_26 {dimension_numbers = #tpu.dot_dimension_numbers<[1], [0], [0], [1], [0, 0, 1, 1], [], []>} : vector<48x32xbf16>, vector<32x8xbf16>, vector<48x8xf32> -> vector<48x8xf32>
    %31 = arith.mulf %24, %2 : vector<48x8xf32>
    %cst_27 = arith.constant dense<0.000000e+00> : vector<48x8xf32>
    %32 = tpu.matmul %24, %4, %cst_27 {dimension_numbers = #tpu.dot_dimension_numbers<[1], [0], [0], [1], [0, 0, 1, 1], [], []>} : vector<48x8xf32>, vector<8x8xf32>, vector<48x8xf32> -> vector<48x8xf32>
    %33 = arith.mulf %32, %3 : vector<48x8xf32>
    %34 = arith.addf %31, %33 : vector<48x8xf32>
    %35 = arith.mulf %27, %2 : vector<48x8xf32>
    %cst_28 = arith.constant dense<0.000000e+00> : vector<48x8xf32>
    %36 = tpu.matmul %27, %4, %cst_28 {dimension_numbers = #tpu.dot_dimension_numbers<[1], [0], [0], [1], [0, 0, 1, 1], [], []>} : vector<48x8xf32>, vector<8x8xf32>, vector<48x8xf32> -> vector<48x8xf32>
    %37 = arith.mulf %36, %3 : vector<48x8xf32>
    %38 = arith.addf %35, %37 : vector<48x8xf32>
    %cst_29 = arith.constant dense<0.000000e+00> : vector<48x48xf32>
    %39 = tpu.matmul %34, %38, %cst_29 {dimension_numbers = #tpu.dot_dimension_numbers<[1], [1], [0], [0], [0, 0, 1, 0], [], []>} : vector<48x8xf32>, vector<48x8xf32>, vector<48x48xf32> -> vector<48x48xf32>
    %cst_30 = arith.constant 0.353553385 : f32
    %40 = vector.broadcast %cst_30 : f32 to vector<48x48xf32>
    %41 = arith.mulf %39, %40 : vector<48x48xf32>
    %42 = arith.addf %41, %5 : vector<48x48xf32>
    %cst_31 = arith.constant dense<0xFF800000> : vector<48xf32>
    %43 = vector.multi_reduction <maximumf>, %42, %cst_31 [1] : vector<48x48xf32> to vector<48xf32>
    %44 = vector.shape_cast %43 : vector<48xf32> to vector<48x1xf32>
    %45 = vector.broadcast %44 : vector<48x1xf32> to vector<48x48xf32>
    %46 = arith.subf %42, %45 : vector<48x48xf32>
    %47 = math.exp %46 : vector<48x48xf32>
    %cst_32 = arith.constant dense<0.000000e+00> : vector<48xf32>
    %48 = vector.multi_reduction <add>, %47, %cst_32 [1] : vector<48x48xf32> to vector<48xf32>
    %49 = vector.shape_cast %48 : vector<48xf32> to vector<48x1xf32>
    %50 = vector.broadcast %49 : vector<48x1xf32> to vector<48x48xf32>
    %51 = arith.divf %47, %50 : vector<48x48xf32>
    %52 = arith.truncf %51 : vector<48x48xf32> to vector<48x48xbf16>
    %53 = arith.truncf %30 : vector<48x8xf32> to vector<48x8xbf16>
    %cst_33 = arith.constant dense<0.000000e+00> : vector<48x8xf32>
    %54 = tpu.matmul %52, %53, %cst_33 {dimension_numbers = #tpu.dot_dimension_numbers<[1], [0], [0], [1], [0, 0, 1, 1], [], []>} : vector<48x48xbf16>, vector<48x8xbf16>, vector<48x8xf32> -> vector<48x8xf32>
    %55 = arith.truncf %54 : vector<48x8xf32> to vector<48x8xbf16>
    %c0_34 = arith.constant 0 : index
    %c0_35 = arith.constant 0 : index
    %c0_36 = arith.constant 0 : index
    %56 = vector.load %arg5[%c0_34, %c0_35, %c0_36] : memref<8x8x32xbf16, #tpu.memory_space<vmem>>, vector<1x8x32xbf16>
    %57 = vector.shape_cast %56 : vector<1x8x32xbf16> to vector<8x32xbf16>
    %cst_37 = arith.constant dense<0.000000e+00> : vector<48x32xf32>
    %58 = tpu.matmul %55, %57, %cst_37 {dimension_numbers = #tpu.dot_dimension_numbers<[1], [0], [0], [1], [0, 0, 1, 1], [], []>} : vector<48x8xbf16>, vector<8x32xbf16>, vector<48x32xf32> -> vector<48x32xf32>
    %59 = arith.addf %21, %58 : vector<48x32xf32>
    %c1 = arith.constant 1 : index
    %c0_38 = arith.constant 0 : index
    %c0_39 = arith.constant 0 : index
    %60 = vector.load %arg2[%c1, %c0_38, %c0_39] : memref<8x32x8xbf16, #tpu.memory_space<vmem>>, vector<1x32x8xbf16>
    %61 = vector.shape_cast %60 : vector<1x32x8xbf16> to vector<32x8xbf16>
    %cst_40 = arith.constant dense<0.000000e+00> : vector<48x8xf32>
    %62 = tpu.matmul %20, %61, %cst_40 {dimension_numbers = #tpu.dot_dimension_numbers<[1], [0], [0], [1], [0, 0, 1, 1], [], []>} : vector<48x32xbf16>, vector<32x8xbf16>, vector<48x8xf32> -> vector<48x8xf32>
    %c1_41 = arith.constant 1 : index
    %c0_42 = arith.constant 0 : index
    %c0_43 = arith.constant 0 : index
    %63 = vector.load %arg3[%c1_41, %c0_42, %c0_43] : memref<8x32x8xbf16, #tpu.memory_space<vmem>>, vector<1x32x8xbf16>
    %64 = vector.shape_cast %63 : vector<1x32x8xbf16> to vector<32x8xbf16>
    %cst_44 = arith.constant dense<0.000000e+00> : vector<48x8xf32>
    %65 = tpu.matmul %20, %64, %cst_44 {dimension_numbers = #tpu.dot_dimension_numbers<[1], [0], [0], [1], [0, 0, 1, 1], [], []>} : vector<48x32xbf16>, vector<32x8xbf16>, vector<48x8xf32> -> vector<48x8xf32>
    %c1_45 = arith.constant 1 : index
    %c0_46 = arith.constant 0 : index
    %c0_47 = arith.constant 0 : index
    %66 = vector.load %arg4[%c1_45, %c0_46, %c0_47] : memref<8x32x8xbf16, #tpu.memory_space<vmem>>, vector<1x32x8xbf16>
    %67 = vector.shape_cast %66 : vector<1x32x8xbf16> to vector<32x8xbf16>
    %cst_48 = arith.constant dense<0.000000e+00> : vector<48x8xf32>
    %68 = tpu.matmul %20, %67, %cst_48 {dimension_numbers = #tpu.dot_dimension_numbers<[1], [0], [0], [1], [0, 0, 1, 1], [], []>} : vector<48x32xbf16>, vector<32x8xbf16>, vector<48x8xf32> -> vector<48x8xf32>
    %69 = arith.mulf %62, %2 : vector<48x8xf32>
    %cst_49 = arith.constant dense<0.000000e+00> : vector<48x8xf32>
    %70 = tpu.matmul %62, %4, %cst_49 {dimension_numbers = #tpu.dot_dimension_numbers<[1], [0], [0], [1], [0, 0, 1, 1], [], []>} : vector<48x8xf32>, vector<8x8xf32>, vector<48x8xf32> -> vector<48x8xf32>
    %71 = arith.mulf %70, %3 : vector<48x8xf32>
    %72 = arith.addf %69, %71 : vector<48x8xf32>
    %73 = arith.mulf %65, %2 : vector<48x8xf32>
    %cst_50 = arith.constant dense<0.000000e+00> : vector<48x8xf32>
    %74 = tpu.matmul %65, %4, %cst_50 {dimension_numbers = #tpu.dot_dimension_numbers<[1], [0], [0], [1], [0, 0, 1, 1], [], []>} : vector<48x8xf32>, vector<8x8xf32>, vector<48x8xf32> -> vector<48x8xf32>
    %75 = arith.mulf %74, %3 : vector<48x8xf32>
    %76 = arith.addf %73, %75 : vector<48x8xf32>
    %cst_51 = arith.constant dense<0.000000e+00> : vector<48x48xf32>
    %77 = tpu.matmul %72, %76, %cst_51 {dimension_numbers = #tpu.dot_dimension_numbers<[1], [1], [0], [0], [0, 0, 1, 0], [], []>} : vector<48x8xf32>, vector<48x8xf32>, vector<48x48xf32> -> vector<48x48xf32>
    %cst_52 = arith.constant 0.353553385 : f32
    %78 = vector.broadcast %cst_52 : f32 to vector<48x48xf32>
    %79 = arith.mulf %77, %78 : vector<48x48xf32>
    %80 = arith.addf %79, %5 : vector<48x48xf32>
    %cst_53 = arith.constant dense<0xFF800000> : vector<48xf32>
    %81 = vector.multi_reduction <maximumf>, %80, %cst_53 [1] : vector<48x48xf32> to vector<48xf32>
    %82 = vector.shape_cast %81 : vector<48xf32> to vector<48x1xf32>
    %83 = vector.broadcast %82 : vector<48x1xf32> to vector<48x48xf32>
    %84 = arith.subf %80, %83 : vector<48x48xf32>
    %85 = math.exp %84 : vector<48x48xf32>
    %cst_54 = arith.constant dense<0.000000e+00> : vector<48xf32>
    %86 = vector.multi_reduction <add>, %85, %cst_54 [1] : vector<48x48xf32> to vector<48xf32>
    %87 = vector.shape_cast %86 : vector<48xf32> to vector<48x1xf32>
    %88 = vector.broadcast %87 : vector<48x1xf32> to vector<48x48xf32>
    %89 = arith.divf %85, %88 : vector<48x48xf32>
    %90 = arith.truncf %89 : vector<48x48xf32> to vector<48x48xbf16>
    %91 = arith.truncf %68 : vector<48x8xf32> to vector<48x8xbf16>
    %cst_55 = arith.constant dense<0.000000e+00> : vector<48x8xf32>
    %92 = tpu.matmul %90, %91, %cst_55 {dimension_numbers = #tpu.dot_dimension_numbers<[1], [0], [0], [1], [0, 0, 1, 1], [], []>} : vector<48x48xbf16>, vector<48x8xbf16>, vector<48x8xf32> -> vector<48x8xf32>
    %93 = arith.truncf %92 : vector<48x8xf32> to vector<48x8xbf16>
    %c1_56 = arith.constant 1 : index
    %c0_57 = arith.constant 0 : index
    %c0_58 = arith.constant 0 : index
    %94 = vector.load %arg5[%c1_56, %c0_57, %c0_58] : memref<8x8x32xbf16, #tpu.memory_space<vmem>>, vector<1x8x32xbf16>
    %95 = vector.shape_cast %94 : vector<1x8x32xbf16> to vector<8x32xbf16>
    %cst_59 = arith.constant dense<0.000000e+00> : vector<48x32xf32>
    %96 = tpu.matmul %93, %95, %cst_59 {dimension_numbers = #tpu.dot_dimension_numbers<[1], [0], [0], [1], [0, 0, 1, 1], [], []>} : vector<48x8xbf16>, vector<8x32xbf16>, vector<48x32xf32> -> vector<48x32xf32>
    %97 = arith.addf %59, %96 : vector<48x32xf32>
    %c2 = arith.constant 2 : index
    %c0_60 = arith.constant 0 : index
    %c0_61 = arith.constant 0 : index
    %98 = vector.load %arg2[%c2, %c0_60, %c0_61] : memref<8x32x8xbf16, #tpu.memory_space<vmem>>, vector<1x32x8xbf16>
    %99 = vector.shape_cast %98 : vector<1x32x8xbf16> to vector<32x8xbf16>
    %cst_62 = arith.constant dense<0.000000e+00> : vector<48x8xf32>
    %100 = tpu.matmul %20, %99, %cst_62 {dimension_numbers = #tpu.dot_dimension_numbers<[1], [0], [0], [1], [0, 0, 1, 1], [], []>} : vector<48x32xbf16>, vector<32x8xbf16>, vector<48x8xf32> -> vector<48x8xf32>
    %c2_63 = arith.constant 2 : index
    %c0_64 = arith.constant 0 : index
    %c0_65 = arith.constant 0 : index
    %101 = vector.load %arg3[%c2_63, %c0_64, %c0_65] : memref<8x32x8xbf16, #tpu.memory_space<vmem>>, vector<1x32x8xbf16>
    %102 = vector.shape_cast %101 : vector<1x32x8xbf16> to vector<32x8xbf16>
    %cst_66 = arith.constant dense<0.000000e+00> : vector<48x8xf32>
    %103 = tpu.matmul %20, %102, %cst_66 {dimension_numbers = #tpu.dot_dimension_numbers<[1], [0], [0], [1], [0, 0, 1, 1], [], []>} : vector<48x32xbf16>, vector<32x8xbf16>, vector<48x8xf32> -> vector<48x8xf32>
    %c2_67 = arith.constant 2 : index
    %c0_68 = arith.constant 0 : index
    %c0_69 = arith.constant 0 : index
    %104 = vector.load %arg4[%c2_67, %c0_68, %c0_69] : memref<8x32x8xbf16, #tpu.memory_space<vmem>>, vector<1x32x8xbf16>
    %105 = vector.shape_cast %104 : vector<1x32x8xbf16> to vector<32x8xbf16>
    %cst_70 = arith.constant dense<0.000000e+00> : vector<48x8xf32>
    %106 = tpu.matmul %20, %105, %cst_70 {dimension_numbers = #tpu.dot_dimension_numbers<[1], [0], [0], [1], [0, 0, 1, 1], [], []>} : vector<48x32xbf16>, vector<32x8xbf16>, vector<48x8xf32> -> vector<48x8xf32>
    %107 = arith.mulf %100, %2 : vector<48x8xf32>
    %cst_71 = arith.constant dense<0.000000e+00> : vector<48x8xf32>
    %108 = tpu.matmul %100, %4, %cst_71 {dimension_numbers = #tpu.dot_dimension_numbers<[1], [0], [0], [1], [0, 0, 1, 1], [], []>} : vector<48x8xf32>, vector<8x8xf32>, vector<48x8xf32> -> vector<48x8xf32>
    %109 = arith.mulf %108, %3 : vector<48x8xf32>
    %110 = arith.addf %107, %109 : vector<48x8xf32>
    %111 = arith.mulf %103, %2 : vector<48x8xf32>
    %cst_72 = arith.constant dense<0.000000e+00> : vector<48x8xf32>
    %112 = tpu.matmul %103, %4, %cst_72 {dimension_numbers = #tpu.dot_dimension_numbers<[1], [0], [0], [1], [0, 0, 1, 1], [], []>} : vector<48x8xf32>, vector<8x8xf32>, vector<48x8xf32> -> vector<48x8xf32>
    %113 = arith.mulf %112, %3 : vector<48x8xf32>
    %114 = arith.addf %111, %113 : vector<48x8xf32>
    %cst_73 = arith.constant dense<0.000000e+00> : vector<48x48xf32>
    %115 = tpu.matmul %110, %114, %cst_73 {dimension_numbers = #tpu.dot_dimension_numbers<[1], [1], [0], [0], [0, 0, 1, 0], [], []>} : vector<48x8xf32>, vector<48x8xf32>, vector<48x48xf32> -> vector<48x48xf32>
    %cst_74 = arith.constant 0.353553385 : f32
    %116 = vector.broadcast %cst_74 : f32 to vector<48x48xf32>
    %117 = arith.mulf %115, %116 : vector<48x48xf32>
    %118 = arith.addf %117, %5 : vector<48x48xf32>
    %cst_75 = arith.constant dense<0xFF800000> : vector<48xf32>
    %119 = vector.multi_reduction <maximumf>, %118, %cst_75 [1] : vector<48x48xf32> to vector<48xf32>
    %120 = vector.shape_cast %119 : vector<48xf32> to vector<48x1xf32>
    %121 = vector.broadcast %120 : vector<48x1xf32> to vector<48x48xf32>
    %122 = arith.subf %118, %121 : vector<48x48xf32>
    %123 = math.exp %122 : vector<48x48xf32>
    %cst_76 = arith.constant dense<0.000000e+00> : vector<48xf32>
    %124 = vector.multi_reduction <add>, %123, %cst_76 [1] : vector<48x48xf32> to vector<48xf32>
    %125 = vector.shape_cast %124 : vector<48xf32> to vector<48x1xf32>
    %126 = vector.broadcast %125 : vector<48x1xf32> to vector<48x48xf32>
    %127 = arith.divf %123, %126 : vector<48x48xf32>
    %128 = arith.truncf %127 : vector<48x48xf32> to vector<48x48xbf16>
    %129 = arith.truncf %106 : vector<48x8xf32> to vector<48x8xbf16>
    %cst_77 = arith.constant dense<0.000000e+00> : vector<48x8xf32>
    %130 = tpu.matmul %128, %129, %cst_77 {dimension_numbers = #tpu.dot_dimension_numbers<[1], [0], [0], [1], [0, 0, 1, 1], [], []>} : vector<48x48xbf16>, vector<48x8xbf16>, vector<48x8xf32> -> vector<48x8xf32>
    %131 = arith.truncf %130 : vector<48x8xf32> to vector<48x8xbf16>
    %c2_78 = arith.constant 2 : index
    %c0_79 = arith.constant 0 : index
    %c0_80 = arith.constant 0 : index
    %132 = vector.load %arg5[%c2_78, %c0_79, %c0_80] : memref<8x8x32xbf16, #tpu.memory_space<vmem>>, vector<1x8x32xbf16>
    %133 = vector.shape_cast %132 : vector<1x8x32xbf16> to vector<8x32xbf16>
    %cst_81 = arith.constant dense<0.000000e+00> : vector<48x32xf32>
    %134 = tpu.matmul %131, %133, %cst_81 {dimension_numbers = #tpu.dot_dimension_numbers<[1], [0], [0], [1], [0, 0, 1, 1], [], []>} : vector<48x8xbf16>, vector<8x32xbf16>, vector<48x32xf32> -> vector<48x32xf32>
    %135 = arith.addf %97, %134 : vector<48x32xf32>
    %c3 = arith.constant 3 : index
    %c0_82 = arith.constant 0 : index
    %c0_83 = arith.constant 0 : index
    %136 = vector.load %arg2[%c3, %c0_82, %c0_83] : memref<8x32x8xbf16, #tpu.memory_space<vmem>>, vector<1x32x8xbf16>
    %137 = vector.shape_cast %136 : vector<1x32x8xbf16> to vector<32x8xbf16>
    %cst_84 = arith.constant dense<0.000000e+00> : vector<48x8xf32>
    %138 = tpu.matmul %20, %137, %cst_84 {dimension_numbers = #tpu.dot_dimension_numbers<[1], [0], [0], [1], [0, 0, 1, 1], [], []>} : vector<48x32xbf16>, vector<32x8xbf16>, vector<48x8xf32> -> vector<48x8xf32>
    %c3_85 = arith.constant 3 : index
    %c0_86 = arith.constant 0 : index
    %c0_87 = arith.constant 0 : index
    %139 = vector.load %arg3[%c3_85, %c0_86, %c0_87] : memref<8x32x8xbf16, #tpu.memory_space<vmem>>, vector<1x32x8xbf16>
    %140 = vector.shape_cast %139 : vector<1x32x8xbf16> to vector<32x8xbf16>
    %cst_88 = arith.constant dense<0.000000e+00> : vector<48x8xf32>
    %141 = tpu.matmul %20, %140, %cst_88 {dimension_numbers = #tpu.dot_dimension_numbers<[1], [0], [0], [1], [0, 0, 1, 1], [], []>} : vector<48x32xbf16>, vector<32x8xbf16>, vector<48x8xf32> -> vector<48x8xf32>
    %c3_89 = arith.constant 3 : index
    %c0_90 = arith.constant 0 : index
    %c0_91 = arith.constant 0 : index
    %142 = vector.load %arg4[%c3_89, %c0_90, %c0_91] : memref<8x32x8xbf16, #tpu.memory_space<vmem>>, vector<1x32x8xbf16>
    %143 = vector.shape_cast %142 : vector<1x32x8xbf16> to vector<32x8xbf16>
    %cst_92 = arith.constant dense<0.000000e+00> : vector<48x8xf32>
    %144 = tpu.matmul %20, %143, %cst_92 {dimension_numbers = #tpu.dot_dimension_numbers<[1], [0], [0], [1], [0, 0, 1, 1], [], []>} : vector<48x32xbf16>, vector<32x8xbf16>, vector<48x8xf32> -> vector<48x8xf32>
    %145 = arith.mulf %138, %2 : vector<48x8xf32>
    %cst_93 = arith.constant dense<0.000000e+00> : vector<48x8xf32>
    %146 = tpu.matmul %138, %4, %cst_93 {dimension_numbers = #tpu.dot_dimension_numbers<[1], [0], [0], [1], [0, 0, 1, 1], [], []>} : vector<48x8xf32>, vector<8x8xf32>, vector<48x8xf32> -> vector<48x8xf32>
    %147 = arith.mulf %146, %3 : vector<48x8xf32>
    %148 = arith.addf %145, %147 : vector<48x8xf32>
    %149 = arith.mulf %141, %2 : vector<48x8xf32>
    %cst_94 = arith.constant dense<0.000000e+00> : vector<48x8xf32>
    %150 = tpu.matmul %141, %4, %cst_94 {dimension_numbers = #tpu.dot_dimension_numbers<[1], [0], [0], [1], [0, 0, 1, 1], [], []>} : vector<48x8xf32>, vector<8x8xf32>, vector<48x8xf32> -> vector<48x8xf32>
    %151 = arith.mulf %150, %3 : vector<48x8xf32>
    %152 = arith.addf %149, %151 : vector<48x8xf32>
    %cst_95 = arith.constant dense<0.000000e+00> : vector<48x48xf32>
    %153 = tpu.matmul %148, %152, %cst_95 {dimension_numbers = #tpu.dot_dimension_numbers<[1], [1], [0], [0], [0, 0, 1, 0], [], []>} : vector<48x8xf32>, vector<48x8xf32>, vector<48x48xf32> -> vector<48x48xf32>
    %cst_96 = arith.constant 0.353553385 : f32
    %154 = vector.broadcast %cst_96 : f32 to vector<48x48xf32>
    %155 = arith.mulf %153, %154 : vector<48x48xf32>
    %156 = arith.addf %155, %5 : vector<48x48xf32>
    %cst_97 = arith.constant dense<0xFF800000> : vector<48xf32>
    %157 = vector.multi_reduction <maximumf>, %156, %cst_97 [1] : vector<48x48xf32> to vector<48xf32>
    %158 = vector.shape_cast %157 : vector<48xf32> to vector<48x1xf32>
    %159 = vector.broadcast %158 : vector<48x1xf32> to vector<48x48xf32>
    %160 = arith.subf %156, %159 : vector<48x48xf32>
    %161 = math.exp %160 : vector<48x48xf32>
    %cst_98 = arith.constant dense<0.000000e+00> : vector<48xf32>
    %162 = vector.multi_reduction <add>, %161, %cst_98 [1] : vector<48x48xf32> to vector<48xf32>
    %163 = vector.shape_cast %162 : vector<48xf32> to vector<48x1xf32>
    %164 = vector.broadcast %163 : vector<48x1xf32> to vector<48x48xf32>
    %165 = arith.divf %161, %164 : vector<48x48xf32>
    %166 = arith.truncf %165 : vector<48x48xf32> to vector<48x48xbf16>
    %167 = arith.truncf %144 : vector<48x8xf32> to vector<48x8xbf16>
    %cst_99 = arith.constant dense<0.000000e+00> : vector<48x8xf32>
    %168 = tpu.matmul %166, %167, %cst_99 {dimension_numbers = #tpu.dot_dimension_numbers<[1], [0], [0], [1], [0, 0, 1, 1], [], []>} : vector<48x48xbf16>, vector<48x8xbf16>, vector<48x8xf32> -> vector<48x8xf32>
    %169 = arith.truncf %168 : vector<48x8xf32> to vector<48x8xbf16>
    %c3_100 = arith.constant 3 : index
    %c0_101 = arith.constant 0 : index
    %c0_102 = arith.constant 0 : index
    %170 = vector.load %arg5[%c3_100, %c0_101, %c0_102] : memref<8x8x32xbf16, #tpu.memory_space<vmem>>, vector<1x8x32xbf16>
    %171 = vector.shape_cast %170 : vector<1x8x32xbf16> to vector<8x32xbf16>
    %cst_103 = arith.constant dense<0.000000e+00> : vector<48x32xf32>
    %172 = tpu.matmul %169, %171, %cst_103 {dimension_numbers = #tpu.dot_dimension_numbers<[1], [0], [0], [1], [0, 0, 1, 1], [], []>} : vector<48x8xbf16>, vector<8x32xbf16>, vector<48x32xf32> -> vector<48x32xf32>
    %173 = arith.addf %135, %172 : vector<48x32xf32>
    %174 = arith.addf %1, %173 : vector<48x32xf32>
    %c0_104 = arith.constant 0 : index
    %c0_105 = arith.constant 0 : index
    %c0_106 = arith.constant 0 : index
    %175 = vector.load %arg10[%c0_104, %c0_105, %c0_106] : memref<2x1x32xbf16, #tpu.memory_space<vmem>>, vector<1x1x32xbf16>
    %176 = vector.shape_cast %175 : vector<1x1x32xbf16> to vector<1x32xbf16>
    %177 = arith.mulf %174, %174 : vector<48x32xf32>
    %cst_107 = arith.constant dense<0.000000e+00> : vector<48xf32>
    %178 = vector.multi_reduction <add>, %177, %cst_107 [1] : vector<48x32xf32> to vector<48xf32>
    %179 = vector.shape_cast %178 : vector<48xf32> to vector<48x1xf32>
    %cst_108 = arith.constant 3.200000e+01 : f32
    %180 = vector.broadcast %cst_108 : f32 to vector<48x1xf32>
    %181 = arith.divf %179, %180 : vector<48x1xf32>
    %cst_109 = arith.constant 9.99999997E-7 : f32
    %182 = vector.broadcast %cst_109 : f32 to vector<48x1xf32>
    %183 = arith.addf %181, %182 : vector<48x1xf32>
    %184 = math.rsqrt %183 : vector<48x1xf32>
    %185 = vector.broadcast %184 : vector<48x1xf32> to vector<48x32xf32>
    %186 = arith.mulf %174, %185 : vector<48x32xf32>
    %187 = arith.truncf %186 : vector<48x32xf32> to vector<48x32xbf16>
    %188 = vector.broadcast %176 : vector<1x32xbf16> to vector<48x32xbf16>
    %189 = arith.mulf %187, %188 : vector<48x32xbf16>
    %c0_110 = arith.constant 0 : index
    %c0_111 = arith.constant 0 : index
    %c0_112 = arith.constant 0 : index
    %190 = vector.load %arg6[%c0_110, %c0_111, %c0_112] : memref<2x32x64xbf16, #tpu.memory_space<vmem>>, vector<1x32x64xbf16>
    %191 = vector.shape_cast %190 : vector<1x32x64xbf16> to vector<32x64xbf16>
    %cst_113 = arith.constant dense<0.000000e+00> : vector<48x64xf32>
    %192 = tpu.matmul %189, %191, %cst_113 {dimension_numbers = #tpu.dot_dimension_numbers<[1], [0], [0], [1], [0, 0, 1, 1], [], []>} : vector<48x32xbf16>, vector<32x64xbf16>, vector<48x64xf32> -> vector<48x64xf32>
    %c0_114 = arith.constant 0 : index
    %c0_115 = arith.constant 0 : index
    %c0_116 = arith.constant 0 : index
    %193 = vector.load %arg7[%c0_114, %c0_115, %c0_116] : memref<2x32x64xbf16, #tpu.memory_space<vmem>>, vector<1x32x64xbf16>
    %194 = vector.shape_cast %193 : vector<1x32x64xbf16> to vector<32x64xbf16>
    %cst_117 = arith.constant dense<0.000000e+00> : vector<48x64xf32>
    %195 = tpu.matmul %189, %194, %cst_117 {dimension_numbers = #tpu.dot_dimension_numbers<[1], [0], [0], [1], [0, 0, 1, 1], [], []>} : vector<48x32xbf16>, vector<32x64xbf16>, vector<48x64xf32> -> vector<48x64xf32>
    %cst_118 = arith.constant 0.000000e+00 : f32
    %196 = vector.broadcast %cst_118 : f32 to vector<48x64xf32>
    %197 = arith.subf %196, %192 : vector<48x64xf32>
    %198 = math.exp %197 : vector<48x64xf32>
    %cst_119 = arith.constant 1.000000e+00 : f32
    %199 = vector.broadcast %cst_119 : f32 to vector<48x64xf32>
    %200 = arith.addf %199, %198 : vector<48x64xf32>
    %201 = arith.divf %192, %200 : vector<48x64xf32>
    %202 = arith.mulf %201, %195 : vector<48x64xf32>
    %203 = arith.truncf %202 : vector<48x64xf32> to vector<48x64xbf16>
    %c0_120 = arith.constant 0 : index
    %c0_121 = arith.constant 0 : index
    %c0_122 = arith.constant 0 : index
    %204 = vector.load %arg8[%c0_120, %c0_121, %c0_122] : memref<2x64x32xbf16, #tpu.memory_space<vmem>>, vector<1x64x32xbf16>
    %205 = vector.shape_cast %204 : vector<1x64x32xbf16> to vector<64x32xbf16>
    %cst_123 = arith.constant dense<0.000000e+00> : vector<48x32xf32>
    %206 = tpu.matmul %203, %205, %cst_123 {dimension_numbers = #tpu.dot_dimension_numbers<[1], [0], [0], [1], [0, 0, 1, 1], [], []>} : vector<48x64xbf16>, vector<64x32xbf16>, vector<48x32xf32> -> vector<48x32xf32>
    %207 = arith.addf %174, %206 : vector<48x32xf32>
    %c1_124 = arith.constant 1 : index
    %c0_125 = arith.constant 0 : index
    %c0_126 = arith.constant 0 : index
    %208 = vector.load %arg9[%c1_124, %c0_125, %c0_126] : memref<2x1x32xbf16, #tpu.memory_space<vmem>>, vector<1x1x32xbf16>
    %209 = vector.shape_cast %208 : vector<1x1x32xbf16> to vector<1x32xbf16>
    %210 = arith.mulf %207, %207 : vector<48x32xf32>
    %cst_127 = arith.constant dense<0.000000e+00> : vector<48xf32>
    %211 = vector.multi_reduction <add>, %210, %cst_127 [1] : vector<48x32xf32> to vector<48xf32>
    %212 = vector.shape_cast %211 : vector<48xf32> to vector<48x1xf32>
    %cst_128 = arith.constant 3.200000e+01 : f32
    %213 = vector.broadcast %cst_128 : f32 to vector<48x1xf32>
    %214 = arith.divf %212, %213 : vector<48x1xf32>
    %cst_129 = arith.constant 9.99999997E-7 : f32
    %215 = vector.broadcast %cst_129 : f32 to vector<48x1xf32>
    %216 = arith.addf %214, %215 : vector<48x1xf32>
    %217 = math.rsqrt %216 : vector<48x1xf32>
    %218 = vector.broadcast %217 : vector<48x1xf32> to vector<48x32xf32>
    %219 = arith.mulf %207, %218 : vector<48x32xf32>
    %220 = arith.truncf %219 : vector<48x32xf32> to vector<48x32xbf16>
    %221 = vector.broadcast %209 : vector<1x32xbf16> to vector<48x32xbf16>
    %222 = arith.mulf %220, %221 : vector<48x32xbf16>
    %cst_130 = arith.constant 0.000000e+00 : f32
    %223 = vector.broadcast %cst_130 : f32 to vector<48x32xf32>
    %c4 = arith.constant 4 : index
    %c0_131 = arith.constant 0 : index
    %c0_132 = arith.constant 0 : index
    %224 = vector.load %arg2[%c4, %c0_131, %c0_132] : memref<8x32x8xbf16, #tpu.memory_space<vmem>>, vector<1x32x8xbf16>
    %225 = vector.shape_cast %224 : vector<1x32x8xbf16> to vector<32x8xbf16>
    %cst_133 = arith.constant dense<0.000000e+00> : vector<48x8xf32>
    %226 = tpu.matmul %222, %225, %cst_133 {dimension_numbers = #tpu.dot_dimension_numbers<[1], [0], [0], [1], [0, 0, 1, 1], [], []>} : vector<48x32xbf16>, vector<32x8xbf16>, vector<48x8xf32> -> vector<48x8xf32>
    %c4_134 = arith.constant 4 : index
    %c0_135 = arith.constant 0 : index
    %c0_136 = arith.constant 0 : index
    %227 = vector.load %arg3[%c4_134, %c0_135, %c0_136] : memref<8x32x8xbf16, #tpu.memory_space<vmem>>, vector<1x32x8xbf16>
    %228 = vector.shape_cast %227 : vector<1x32x8xbf16> to vector<32x8xbf16>
    %cst_137 = arith.constant dense<0.000000e+00> : vector<48x8xf32>
    %229 = tpu.matmul %222, %228, %cst_137 {dimension_numbers = #tpu.dot_dimension_numbers<[1], [0], [0], [1], [0, 0, 1, 1], [], []>} : vector<48x32xbf16>, vector<32x8xbf16>, vector<48x8xf32> -> vector<48x8xf32>
    %c4_138 = arith.constant 4 : index
    %c0_139 = arith.constant 0 : index
    %c0_140 = arith.constant 0 : index
    %230 = vector.load %arg4[%c4_138, %c0_139, %c0_140] : memref<8x32x8xbf16, #tpu.memory_space<vmem>>, vector<1x32x8xbf16>
    %231 = vector.shape_cast %230 : vector<1x32x8xbf16> to vector<32x8xbf16>
    %cst_141 = arith.constant dense<0.000000e+00> : vector<48x8xf32>
    %232 = tpu.matmul %222, %231, %cst_141 {dimension_numbers = #tpu.dot_dimension_numbers<[1], [0], [0], [1], [0, 0, 1, 1], [], []>} : vector<48x32xbf16>, vector<32x8xbf16>, vector<48x8xf32> -> vector<48x8xf32>
    %233 = arith.mulf %226, %2 : vector<48x8xf32>
    %cst_142 = arith.constant dense<0.000000e+00> : vector<48x8xf32>
    %234 = tpu.matmul %226, %4, %cst_142 {dimension_numbers = #tpu.dot_dimension_numbers<[1], [0], [0], [1], [0, 0, 1, 1], [], []>} : vector<48x8xf32>, vector<8x8xf32>, vector<48x8xf32> -> vector<48x8xf32>
    %235 = arith.mulf %234, %3 : vector<48x8xf32>
    %236 = arith.addf %233, %235 : vector<48x8xf32>
    %237 = arith.mulf %229, %2 : vector<48x8xf32>
    %cst_143 = arith.constant dense<0.000000e+00> : vector<48x8xf32>
    %238 = tpu.matmul %229, %4, %cst_143 {dimension_numbers = #tpu.dot_dimension_numbers<[1], [0], [0], [1], [0, 0, 1, 1], [], []>} : vector<48x8xf32>, vector<8x8xf32>, vector<48x8xf32> -> vector<48x8xf32>
    %239 = arith.mulf %238, %3 : vector<48x8xf32>
    %240 = arith.addf %237, %239 : vector<48x8xf32>
    %cst_144 = arith.constant dense<0.000000e+00> : vector<48x48xf32>
    %241 = tpu.matmul %236, %240, %cst_144 {dimension_numbers = #tpu.dot_dimension_numbers<[1], [1], [0], [0], [0, 0, 1, 0], [], []>} : vector<48x8xf32>, vector<48x8xf32>, vector<48x48xf32> -> vector<48x48xf32>
    %cst_145 = arith.constant 0.353553385 : f32
    %242 = vector.broadcast %cst_145 : f32 to vector<48x48xf32>
    %243 = arith.mulf %241, %242 : vector<48x48xf32>
    %244 = arith.addf %243, %5 : vector<48x48xf32>
    %cst_146 = arith.constant dense<0xFF800000> : vector<48xf32>
    %245 = vector.multi_reduction <maximumf>, %244, %cst_146 [1] : vector<48x48xf32> to vector<48xf32>
    %246 = vector.shape_cast %245 : vector<48xf32> to vector<48x1xf32>
    %247 = vector.broadcast %246 : vector<48x1xf32> to vector<48x48xf32>
    %248 = arith.subf %244, %247 : vector<48x48xf32>
    %249 = math.exp %248 : vector<48x48xf32>
    %cst_147 = arith.constant dense<0.000000e+00> : vector<48xf32>
    %250 = vector.multi_reduction <add>, %249, %cst_147 [1] : vector<48x48xf32> to vector<48xf32>
    %251 = vector.shape_cast %250 : vector<48xf32> to vector<48x1xf32>
    %252 = vector.broadcast %251 : vector<48x1xf32> to vector<48x48xf32>
    %253 = arith.divf %249, %252 : vector<48x48xf32>
    %254 = arith.truncf %253 : vector<48x48xf32> to vector<48x48xbf16>
    %255 = arith.truncf %232 : vector<48x8xf32> to vector<48x8xbf16>
    %cst_148 = arith.constant dense<0.000000e+00> : vector<48x8xf32>
    %256 = tpu.matmul %254, %255, %cst_148 {dimension_numbers = #tpu.dot_dimension_numbers<[1], [0], [0], [1], [0, 0, 1, 1], [], []>} : vector<48x48xbf16>, vector<48x8xbf16>, vector<48x8xf32> -> vector<48x8xf32>
    %257 = arith.truncf %256 : vector<48x8xf32> to vector<48x8xbf16>
    %c4_149 = arith.constant 4 : index
    %c0_150 = arith.constant 0 : index
    %c0_151 = arith.constant 0 : index
    %258 = vector.load %arg5[%c4_149, %c0_150, %c0_151] : memref<8x8x32xbf16, #tpu.memory_space<vmem>>, vector<1x8x32xbf16>
    %259 = vector.shape_cast %258 : vector<1x8x32xbf16> to vector<8x32xbf16>
    %cst_152 = arith.constant dense<0.000000e+00> : vector<48x32xf32>
    %260 = tpu.matmul %257, %259, %cst_152 {dimension_numbers = #tpu.dot_dimension_numbers<[1], [0], [0], [1], [0, 0, 1, 1], [], []>} : vector<48x8xbf16>, vector<8x32xbf16>, vector<48x32xf32> -> vector<48x32xf32>
    %261 = arith.addf %223, %260 : vector<48x32xf32>
    %c5 = arith.constant 5 : index
    %c0_153 = arith.constant 0 : index
    %c0_154 = arith.constant 0 : index
    %262 = vector.load %arg2[%c5, %c0_153, %c0_154] : memref<8x32x8xbf16, #tpu.memory_space<vmem>>, vector<1x32x8xbf16>
    %263 = vector.shape_cast %262 : vector<1x32x8xbf16> to vector<32x8xbf16>
    %cst_155 = arith.constant dense<0.000000e+00> : vector<48x8xf32>
    %264 = tpu.matmul %222, %263, %cst_155 {dimension_numbers = #tpu.dot_dimension_numbers<[1], [0], [0], [1], [0, 0, 1, 1], [], []>} : vector<48x32xbf16>, vector<32x8xbf16>, vector<48x8xf32> -> vector<48x8xf32>
    %c5_156 = arith.constant 5 : index
    %c0_157 = arith.constant 0 : index
    %c0_158 = arith.constant 0 : index
    %265 = vector.load %arg3[%c5_156, %c0_157, %c0_158] : memref<8x32x8xbf16, #tpu.memory_space<vmem>>, vector<1x32x8xbf16>
    %266 = vector.shape_cast %265 : vector<1x32x8xbf16> to vector<32x8xbf16>
    %cst_159 = arith.constant dense<0.000000e+00> : vector<48x8xf32>
    %267 = tpu.matmul %222, %266, %cst_159 {dimension_numbers = #tpu.dot_dimension_numbers<[1], [0], [0], [1], [0, 0, 1, 1], [], []>} : vector<48x32xbf16>, vector<32x8xbf16>, vector<48x8xf32> -> vector<48x8xf32>
    %c5_160 = arith.constant 5 : index
    %c0_161 = arith.constant 0 : index
    %c0_162 = arith.constant 0 : index
    %268 = vector.load %arg4[%c5_160, %c0_161, %c0_162] : memref<8x32x8xbf16, #tpu.memory_space<vmem>>, vector<1x32x8xbf16>
    %269 = vector.shape_cast %268 : vector<1x32x8xbf16> to vector<32x8xbf16>
    %cst_163 = arith.constant dense<0.000000e+00> : vector<48x8xf32>
    %270 = tpu.matmul %222, %269, %cst_163 {dimension_numbers = #tpu.dot_dimension_numbers<[1], [0], [0], [1], [0, 0, 1, 1], [], []>} : vector<48x32xbf16>, vector<32x8xbf16>, vector<48x8xf32> -> vector<48x8xf32>
    %271 = arith.mulf %264, %2 : vector<48x8xf32>
    %cst_164 = arith.constant dense<0.000000e+00> : vector<48x8xf32>
    %272 = tpu.matmul %264, %4, %cst_164 {dimension_numbers = #tpu.dot_dimension_numbers<[1], [0], [0], [1], [0, 0, 1, 1], [], []>} : vector<48x8xf32>, vector<8x8xf32>, vector<48x8xf32> -> vector<48x8xf32>
    %273 = arith.mulf %272, %3 : vector<48x8xf32>
    %274 = arith.addf %271, %273 : vector<48x8xf32>
    %275 = arith.mulf %267, %2 : vector<48x8xf32>
    %cst_165 = arith.constant dense<0.000000e+00> : vector<48x8xf32>
    %276 = tpu.matmul %267, %4, %cst_165 {dimension_numbers = #tpu.dot_dimension_numbers<[1], [0], [0], [1], [0, 0, 1, 1], [], []>} : vector<48x8xf32>, vector<8x8xf32>, vector<48x8xf32> -> vector<48x8xf32>
    %277 = arith.mulf %276, %3 : vector<48x8xf32>
    %278 = arith.addf %275, %277 : vector<48x8xf32>
    %cst_166 = arith.constant dense<0.000000e+00> : vector<48x48xf32>
    %279 = tpu.matmul %274, %278, %cst_166 {dimension_numbers = #tpu.dot_dimension_numbers<[1], [1], [0], [0], [0, 0, 1, 0], [], []>} : vector<48x8xf32>, vector<48x8xf32>, vector<48x48xf32> -> vector<48x48xf32>
    %cst_167 = arith.constant 0.353553385 : f32
    %280 = vector.broadcast %cst_167 : f32 to vector<48x48xf32>
    %281 = arith.mulf %279, %280 : vector<48x48xf32>
    %282 = arith.addf %281, %5 : vector<48x48xf32>
    %cst_168 = arith.constant dense<0xFF800000> : vector<48xf32>
    %283 = vector.multi_reduction <maximumf>, %282, %cst_168 [1] : vector<48x48xf32> to vector<48xf32>
    %284 = vector.shape_cast %283 : vector<48xf32> to vector<48x1xf32>
    %285 = vector.broadcast %284 : vector<48x1xf32> to vector<48x48xf32>
    %286 = arith.subf %282, %285 : vector<48x48xf32>
    %287 = math.exp %286 : vector<48x48xf32>
    %cst_169 = arith.constant dense<0.000000e+00> : vector<48xf32>
    %288 = vector.multi_reduction <add>, %287, %cst_169 [1] : vector<48x48xf32> to vector<48xf32>
    %289 = vector.shape_cast %288 : vector<48xf32> to vector<48x1xf32>
    %290 = vector.broadcast %289 : vector<48x1xf32> to vector<48x48xf32>
    %291 = arith.divf %287, %290 : vector<48x48xf32>
    %292 = arith.truncf %291 : vector<48x48xf32> to vector<48x48xbf16>
    %293 = arith.truncf %270 : vector<48x8xf32> to vector<48x8xbf16>
    %cst_170 = arith.constant dense<0.000000e+00> : vector<48x8xf32>
    %294 = tpu.matmul %292, %293, %cst_170 {dimension_numbers = #tpu.dot_dimension_numbers<[1], [0], [0], [1], [0, 0, 1, 1], [], []>} : vector<48x48xbf16>, vector<48x8xbf16>, vector<48x8xf32> -> vector<48x8xf32>
    %295 = arith.truncf %294 : vector<48x8xf32> to vector<48x8xbf16>
    %c5_171 = arith.constant 5 : index
    %c0_172 = arith.constant 0 : index
    %c0_173 = arith.constant 0 : index
    %296 = vector.load %arg5[%c5_171, %c0_172, %c0_173] : memref<8x8x32xbf16, #tpu.memory_space<vmem>>, vector<1x8x32xbf16>
    %297 = vector.shape_cast %296 : vector<1x8x32xbf16> to vector<8x32xbf16>
    %cst_174 = arith.constant dense<0.000000e+00> : vector<48x32xf32>
    %298 = tpu.matmul %295, %297, %cst_174 {dimension_numbers = #tpu.dot_dimension_numbers<[1], [0], [0], [1], [0, 0, 1, 1], [], []>} : vector<48x8xbf16>, vector<8x32xbf16>, vector<48x32xf32> -> vector<48x32xf32>
    %299 = arith.addf %261, %298 : vector<48x32xf32>
    %c6 = arith.constant 6 : index
    %c0_175 = arith.constant 0 : index
    %c0_176 = arith.constant 0 : index
    %300 = vector.load %arg2[%c6, %c0_175, %c0_176] : memref<8x32x8xbf16, #tpu.memory_space<vmem>>, vector<1x32x8xbf16>
    %301 = vector.shape_cast %300 : vector<1x32x8xbf16> to vector<32x8xbf16>
    %cst_177 = arith.constant dense<0.000000e+00> : vector<48x8xf32>
    %302 = tpu.matmul %222, %301, %cst_177 {dimension_numbers = #tpu.dot_dimension_numbers<[1], [0], [0], [1], [0, 0, 1, 1], [], []>} : vector<48x32xbf16>, vector<32x8xbf16>, vector<48x8xf32> -> vector<48x8xf32>
    %c6_178 = arith.constant 6 : index
    %c0_179 = arith.constant 0 : index
    %c0_180 = arith.constant 0 : index
    %303 = vector.load %arg3[%c6_178, %c0_179, %c0_180] : memref<8x32x8xbf16, #tpu.memory_space<vmem>>, vector<1x32x8xbf16>
    %304 = vector.shape_cast %303 : vector<1x32x8xbf16> to vector<32x8xbf16>
    %cst_181 = arith.constant dense<0.000000e+00> : vector<48x8xf32>
    %305 = tpu.matmul %222, %304, %cst_181 {dimension_numbers = #tpu.dot_dimension_numbers<[1], [0], [0], [1], [0, 0, 1, 1], [], []>} : vector<48x32xbf16>, vector<32x8xbf16>, vector<48x8xf32> -> vector<48x8xf32>
    %c6_182 = arith.constant 6 : index
    %c0_183 = arith.constant 0 : index
    %c0_184 = arith.constant 0 : index
    %306 = vector.load %arg4[%c6_182, %c0_183, %c0_184] : memref<8x32x8xbf16, #tpu.memory_space<vmem>>, vector<1x32x8xbf16>
    %307 = vector.shape_cast %306 : vector<1x32x8xbf16> to vector<32x8xbf16>
    %cst_185 = arith.constant dense<0.000000e+00> : vector<48x8xf32>
    %308 = tpu.matmul %222, %307, %cst_185 {dimension_numbers = #tpu.dot_dimension_numbers<[1], [0], [0], [1], [0, 0, 1, 1], [], []>} : vector<48x32xbf16>, vector<32x8xbf16>, vector<48x8xf32> -> vector<48x8xf32>
    %309 = arith.mulf %302, %2 : vector<48x8xf32>
    %cst_186 = arith.constant dense<0.000000e+00> : vector<48x8xf32>
    %310 = tpu.matmul %302, %4, %cst_186 {dimension_numbers = #tpu.dot_dimension_numbers<[1], [0], [0], [1], [0, 0, 1, 1], [], []>} : vector<48x8xf32>, vector<8x8xf32>, vector<48x8xf32> -> vector<48x8xf32>
    %311 = arith.mulf %310, %3 : vector<48x8xf32>
    %312 = arith.addf %309, %311 : vector<48x8xf32>
    %313 = arith.mulf %305, %2 : vector<48x8xf32>
    %cst_187 = arith.constant dense<0.000000e+00> : vector<48x8xf32>
    %314 = tpu.matmul %305, %4, %cst_187 {dimension_numbers = #tpu.dot_dimension_numbers<[1], [0], [0], [1], [0, 0, 1, 1], [], []>} : vector<48x8xf32>, vector<8x8xf32>, vector<48x8xf32> -> vector<48x8xf32>
    %315 = arith.mulf %314, %3 : vector<48x8xf32>
    %316 = arith.addf %313, %315 : vector<48x8xf32>
    %cst_188 = arith.constant dense<0.000000e+00> : vector<48x48xf32>
    %317 = tpu.matmul %312, %316, %cst_188 {dimension_numbers = #tpu.dot_dimension_numbers<[1], [1], [0], [0], [0, 0, 1, 0], [], []>} : vector<48x8xf32>, vector<48x8xf32>, vector<48x48xf32> -> vector<48x48xf32>
    %cst_189 = arith.constant 0.353553385 : f32
    %318 = vector.broadcast %cst_189 : f32 to vector<48x48xf32>
    %319 = arith.mulf %317, %318 : vector<48x48xf32>
    %320 = arith.addf %319, %5 : vector<48x48xf32>
    %cst_190 = arith.constant dense<0xFF800000> : vector<48xf32>
    %321 = vector.multi_reduction <maximumf>, %320, %cst_190 [1] : vector<48x48xf32> to vector<48xf32>
    %322 = vector.shape_cast %321 : vector<48xf32> to vector<48x1xf32>
    %323 = vector.broadcast %322 : vector<48x1xf32> to vector<48x48xf32>
    %324 = arith.subf %320, %323 : vector<48x48xf32>
    %325 = math.exp %324 : vector<48x48xf32>
    %cst_191 = arith.constant dense<0.000000e+00> : vector<48xf32>
    %326 = vector.multi_reduction <add>, %325, %cst_191 [1] : vector<48x48xf32> to vector<48xf32>
    %327 = vector.shape_cast %326 : vector<48xf32> to vector<48x1xf32>
    %328 = vector.broadcast %327 : vector<48x1xf32> to vector<48x48xf32>
    %329 = arith.divf %325, %328 : vector<48x48xf32>
    %330 = arith.truncf %329 : vector<48x48xf32> to vector<48x48xbf16>
    %331 = arith.truncf %308 : vector<48x8xf32> to vector<48x8xbf16>
    %cst_192 = arith.constant dense<0.000000e+00> : vector<48x8xf32>
    %332 = tpu.matmul %330, %331, %cst_192 {dimension_numbers = #tpu.dot_dimension_numbers<[1], [0], [0], [1], [0, 0, 1, 1], [], []>} : vector<48x48xbf16>, vector<48x8xbf16>, vector<48x8xf32> -> vector<48x8xf32>
    %333 = arith.truncf %332 : vector<48x8xf32> to vector<48x8xbf16>
    %c6_193 = arith.constant 6 : index
    %c0_194 = arith.constant 0 : index
    %c0_195 = arith.constant 0 : index
    %334 = vector.load %arg5[%c6_193, %c0_194, %c0_195] : memref<8x8x32xbf16, #tpu.memory_space<vmem>>, vector<1x8x32xbf16>
    %335 = vector.shape_cast %334 : vector<1x8x32xbf16> to vector<8x32xbf16>
    %cst_196 = arith.constant dense<0.000000e+00> : vector<48x32xf32>
    %336 = tpu.matmul %333, %335, %cst_196 {dimension_numbers = #tpu.dot_dimension_numbers<[1], [0], [0], [1], [0, 0, 1, 1], [], []>} : vector<48x8xbf16>, vector<8x32xbf16>, vector<48x32xf32> -> vector<48x32xf32>
    %337 = arith.addf %299, %336 : vector<48x32xf32>
    %c7 = arith.constant 7 : index
    %c0_197 = arith.constant 0 : index
    %c0_198 = arith.constant 0 : index
    %338 = vector.load %arg2[%c7, %c0_197, %c0_198] : memref<8x32x8xbf16, #tpu.memory_space<vmem>>, vector<1x32x8xbf16>
    %339 = vector.shape_cast %338 : vector<1x32x8xbf16> to vector<32x8xbf16>
    %cst_199 = arith.constant dense<0.000000e+00> : vector<48x8xf32>
    %340 = tpu.matmul %222, %339, %cst_199 {dimension_numbers = #tpu.dot_dimension_numbers<[1], [0], [0], [1], [0, 0, 1, 1], [], []>} : vector<48x32xbf16>, vector<32x8xbf16>, vector<48x8xf32> -> vector<48x8xf32>
    %c7_200 = arith.constant 7 : index
    %c0_201 = arith.constant 0 : index
    %c0_202 = arith.constant 0 : index
    %341 = vector.load %arg3[%c7_200, %c0_201, %c0_202] : memref<8x32x8xbf16, #tpu.memory_space<vmem>>, vector<1x32x8xbf16>
    %342 = vector.shape_cast %341 : vector<1x32x8xbf16> to vector<32x8xbf16>
    %cst_203 = arith.constant dense<0.000000e+00> : vector<48x8xf32>
    %343 = tpu.matmul %222, %342, %cst_203 {dimension_numbers = #tpu.dot_dimension_numbers<[1], [0], [0], [1], [0, 0, 1, 1], [], []>} : vector<48x32xbf16>, vector<32x8xbf16>, vector<48x8xf32> -> vector<48x8xf32>
    %c7_204 = arith.constant 7 : index
    %c0_205 = arith.constant 0 : index
    %c0_206 = arith.constant 0 : index
    %344 = vector.load %arg4[%c7_204, %c0_205, %c0_206] : memref<8x32x8xbf16, #tpu.memory_space<vmem>>, vector<1x32x8xbf16>
    %345 = vector.shape_cast %344 : vector<1x32x8xbf16> to vector<32x8xbf16>
    %cst_207 = arith.constant dense<0.000000e+00> : vector<48x8xf32>
    %346 = tpu.matmul %222, %345, %cst_207 {dimension_numbers = #tpu.dot_dimension_numbers<[1], [0], [0], [1], [0, 0, 1, 1], [], []>} : vector<48x32xbf16>, vector<32x8xbf16>, vector<48x8xf32> -> vector<48x8xf32>
    %347 = arith.mulf %340, %2 : vector<48x8xf32>
    %cst_208 = arith.constant dense<0.000000e+00> : vector<48x8xf32>
    %348 = tpu.matmul %340, %4, %cst_208 {dimension_numbers = #tpu.dot_dimension_numbers<[1], [0], [0], [1], [0, 0, 1, 1], [], []>} : vector<48x8xf32>, vector<8x8xf32>, vector<48x8xf32> -> vector<48x8xf32>
    %349 = arith.mulf %348, %3 : vector<48x8xf32>
    %350 = arith.addf %347, %349 : vector<48x8xf32>
    %351 = arith.mulf %343, %2 : vector<48x8xf32>
    %cst_209 = arith.constant dense<0.000000e+00> : vector<48x8xf32>
    %352 = tpu.matmul %343, %4, %cst_209 {dimension_numbers = #tpu.dot_dimension_numbers<[1], [0], [0], [1], [0, 0, 1, 1], [], []>} : vector<48x8xf32>, vector<8x8xf32>, vector<48x8xf32> -> vector<48x8xf32>
    %353 = arith.mulf %352, %3 : vector<48x8xf32>
    %354 = arith.addf %351, %353 : vector<48x8xf32>
    %cst_210 = arith.constant dense<0.000000e+00> : vector<48x48xf32>
    %355 = tpu.matmul %350, %354, %cst_210 {dimension_numbers = #tpu.dot_dimension_numbers<[1], [1], [0], [0], [0, 0, 1, 0], [], []>} : vector<48x8xf32>, vector<48x8xf32>, vector<48x48xf32> -> vector<48x48xf32>
    %cst_211 = arith.constant 0.353553385 : f32
    %356 = vector.broadcast %cst_211 : f32 to vector<48x48xf32>
    %357 = arith.mulf %355, %356 : vector<48x48xf32>
    %358 = arith.addf %357, %5 : vector<48x48xf32>
    %cst_212 = arith.constant dense<0xFF800000> : vector<48xf32>
    %359 = vector.multi_reduction <maximumf>, %358, %cst_212 [1] : vector<48x48xf32> to vector<48xf32>
    %360 = vector.shape_cast %359 : vector<48xf32> to vector<48x1xf32>
    %361 = vector.broadcast %360 : vector<48x1xf32> to vector<48x48xf32>
    %362 = arith.subf %358, %361 : vector<48x48xf32>
    %363 = math.exp %362 : vector<48x48xf32>
    %cst_213 = arith.constant dense<0.000000e+00> : vector<48xf32>
    %364 = vector.multi_reduction <add>, %363, %cst_213 [1] : vector<48x48xf32> to vector<48xf32>
    %365 = vector.shape_cast %364 : vector<48xf32> to vector<48x1xf32>
    %366 = vector.broadcast %365 : vector<48x1xf32> to vector<48x48xf32>
    %367 = arith.divf %363, %366 : vector<48x48xf32>
    %368 = arith.truncf %367 : vector<48x48xf32> to vector<48x48xbf16>
    %369 = arith.truncf %346 : vector<48x8xf32> to vector<48x8xbf16>
    %cst_214 = arith.constant dense<0.000000e+00> : vector<48x8xf32>
    %370 = tpu.matmul %368, %369, %cst_214 {dimension_numbers = #tpu.dot_dimension_numbers<[1], [0], [0], [1], [0, 0, 1, 1], [], []>} : vector<48x48xbf16>, vector<48x8xbf16>, vector<48x8xf32> -> vector<48x8xf32>
    %371 = arith.truncf %370 : vector<48x8xf32> to vector<48x8xbf16>
    %c7_215 = arith.constant 7 : index
    %c0_216 = arith.constant 0 : index
    %c0_217 = arith.constant 0 : index
    %372 = vector.load %arg5[%c7_215, %c0_216, %c0_217] : memref<8x8x32xbf16, #tpu.memory_space<vmem>>, vector<1x8x32xbf16>
    %373 = vector.shape_cast %372 : vector<1x8x32xbf16> to vector<8x32xbf16>
    %cst_218 = arith.constant dense<0.000000e+00> : vector<48x32xf32>
    %374 = tpu.matmul %371, %373, %cst_218 {dimension_numbers = #tpu.dot_dimension_numbers<[1], [0], [0], [1], [0, 0, 1, 1], [], []>} : vector<48x8xbf16>, vector<8x32xbf16>, vector<48x32xf32> -> vector<48x32xf32>
    %375 = arith.addf %337, %374 : vector<48x32xf32>
    %376 = arith.addf %207, %375 : vector<48x32xf32>
    %c1_219 = arith.constant 1 : index
    %c0_220 = arith.constant 0 : index
    %c0_221 = arith.constant 0 : index
    %377 = vector.load %arg10[%c1_219, %c0_220, %c0_221] : memref<2x1x32xbf16, #tpu.memory_space<vmem>>, vector<1x1x32xbf16>
    %378 = vector.shape_cast %377 : vector<1x1x32xbf16> to vector<1x32xbf16>
    %379 = arith.mulf %376, %376 : vector<48x32xf32>
    %cst_222 = arith.constant dense<0.000000e+00> : vector<48xf32>
    %380 = vector.multi_reduction <add>, %379, %cst_222 [1] : vector<48x32xf32> to vector<48xf32>
    %381 = vector.shape_cast %380 : vector<48xf32> to vector<48x1xf32>
    %cst_223 = arith.constant 3.200000e+01 : f32
    %382 = vector.broadcast %cst_223 : f32 to vector<48x1xf32>
    %383 = arith.divf %381, %382 : vector<48x1xf32>
    %cst_224 = arith.constant 9.99999997E-7 : f32
    %384 = vector.broadcast %cst_224 : f32 to vector<48x1xf32>
    %385 = arith.addf %383, %384 : vector<48x1xf32>
    %386 = math.rsqrt %385 : vector<48x1xf32>
    %387 = vector.broadcast %386 : vector<48x1xf32> to vector<48x32xf32>
    %388 = arith.mulf %376, %387 : vector<48x32xf32>
    %389 = arith.truncf %388 : vector<48x32xf32> to vector<48x32xbf16>
    %390 = vector.broadcast %378 : vector<1x32xbf16> to vector<48x32xbf16>
    %391 = arith.mulf %389, %390 : vector<48x32xbf16>
    %c1_225 = arith.constant 1 : index
    %c0_226 = arith.constant 0 : index
    %c0_227 = arith.constant 0 : index
    %392 = vector.load %arg6[%c1_225, %c0_226, %c0_227] : memref<2x32x64xbf16, #tpu.memory_space<vmem>>, vector<1x32x64xbf16>
    %393 = vector.shape_cast %392 : vector<1x32x64xbf16> to vector<32x64xbf16>
    %cst_228 = arith.constant dense<0.000000e+00> : vector<48x64xf32>
    %394 = tpu.matmul %391, %393, %cst_228 {dimension_numbers = #tpu.dot_dimension_numbers<[1], [0], [0], [1], [0, 0, 1, 1], [], []>} : vector<48x32xbf16>, vector<32x64xbf16>, vector<48x64xf32> -> vector<48x64xf32>
    %c1_229 = arith.constant 1 : index
    %c0_230 = arith.constant 0 : index
    %c0_231 = arith.constant 0 : index
    %395 = vector.load %arg7[%c1_229, %c0_230, %c0_231] : memref<2x32x64xbf16, #tpu.memory_space<vmem>>, vector<1x32x64xbf16>
    %396 = vector.shape_cast %395 : vector<1x32x64xbf16> to vector<32x64xbf16>
    %cst_232 = arith.constant dense<0.000000e+00> : vector<48x64xf32>
    %397 = tpu.matmul %391, %396, %cst_232 {dimension_numbers = #tpu.dot_dimension_numbers<[1], [0], [0], [1], [0, 0, 1, 1], [], []>} : vector<48x32xbf16>, vector<32x64xbf16>, vector<48x64xf32> -> vector<48x64xf32>
    %cst_233 = arith.constant 0.000000e+00 : f32
    %398 = vector.broadcast %cst_233 : f32 to vector<48x64xf32>
    %399 = arith.subf %398, %394 : vector<48x64xf32>
    %400 = math.exp %399 : vector<48x64xf32>
    %cst_234 = arith.constant 1.000000e+00 : f32
    %401 = vector.broadcast %cst_234 : f32 to vector<48x64xf32>
    %402 = arith.addf %401, %400 : vector<48x64xf32>
    %403 = arith.divf %394, %402 : vector<48x64xf32>
    %404 = arith.mulf %403, %397 : vector<48x64xf32>
    %405 = arith.truncf %404 : vector<48x64xf32> to vector<48x64xbf16>
    %c1_235 = arith.constant 1 : index
    %c0_236 = arith.constant 0 : index
    %c0_237 = arith.constant 0 : index
    %406 = vector.load %arg8[%c1_235, %c0_236, %c0_237] : memref<2x64x32xbf16, #tpu.memory_space<vmem>>, vector<1x64x32xbf16>
    %407 = vector.shape_cast %406 : vector<1x64x32xbf16> to vector<64x32xbf16>
    %cst_238 = arith.constant dense<0.000000e+00> : vector<48x32xf32>
    %408 = tpu.matmul %405, %407, %cst_238 {dimension_numbers = #tpu.dot_dimension_numbers<[1], [0], [0], [1], [0, 0, 1, 1], [], []>} : vector<48x64xbf16>, vector<64x32xbf16>, vector<48x32xf32> -> vector<48x32xf32>
    %409 = arith.addf %376, %408 : vector<48x32xf32>
    %410 = arith.mulf %409, %409 : vector<48x32xf32>
    %cst_239 = arith.constant dense<0.000000e+00> : vector<48xf32>
    %411 = vector.multi_reduction <add>, %410, %cst_239 [1] : vector<48x32xf32> to vector<48xf32>
    %412 = vector.shape_cast %411 : vector<48xf32> to vector<48x1xf32>
    %cst_240 = arith.constant 3.200000e+01 : f32
    %413 = vector.broadcast %cst_240 : f32 to vector<48x1xf32>
    %414 = arith.divf %412, %413 : vector<48x1xf32>
    %cst_241 = arith.constant 9.99999997E-7 : f32
    %415 = vector.broadcast %cst_241 : f32 to vector<48x1xf32>
    %416 = arith.addf %414, %415 : vector<48x1xf32>
    %417 = math.rsqrt %416 : vector<48x1xf32>
    %418 = vector.broadcast %417 : vector<48x1xf32> to vector<48x32xf32>
    %419 = arith.mulf %409, %418 : vector<48x32xf32>
    %420 = arith.truncf %419 : vector<48x32xf32> to vector<48x32xbf16>
    %c0_242 = arith.constant 0 : index
    %c0_243 = arith.constant 0 : index
    %421 = vector.load %arg11[%c0_242, %c0_243] : memref<1x32xbf16, #tpu.memory_space<vmem>>, vector<1x32xbf16>
    %422 = vector.broadcast %421 : vector<1x32xbf16> to vector<48x32xbf16>
    %423 = arith.mulf %420, %422 : vector<48x32xbf16>
    %c0_244 = arith.constant 0 : index
    %c0_245 = arith.constant 0 : index
    %424 = vector.load %arg16[%c0_244, %c0_245] : memref<48x32xbf16, #tpu.memory_space<vmem>>, vector<48x32xbf16>
    tpu.vector_store %arg16[%c0_244, %c0_245], %423 {strides = array<i32>} : memref<48x32xbf16, #tpu.memory_space<vmem>>, vector<48x32xbf16>,
    return
  }
  func.func @transform_0(%arg0: i32) -> (i32, i32) {
    %c0_i32 = arith.constant 0 : i32
    %c0_i32_0 = arith.constant 0 : i32
    %c0_i32_1 = arith.constant 0 : i32
    return %c0_i32, %c0_i32_0 : i32, i32
  }
  func.func @transform_1(%arg0: i32) -> (i32, i32, i32) {
    %c0_i32 = arith.constant 0 : i32
    %c0_i32_0 = arith.constant 0 : i32
    %c0_i32_1 = arith.constant 0 : i32
    %c0_i32_2 = arith.constant 0 : i32
    return %c0_i32, %c0_i32_0, %c0_i32_1 : i32, i32, i32
  }
  func.func @transform_2(%arg0: i32) -> (i32, i32, i32) {
    %c0_i32 = arith.constant 0 : i32
    %c0_i32_0 = arith.constant 0 : i32
    %c0_i32_1 = arith.constant 0 : i32
    %c0_i32_2 = arith.constant 0 : i32
    return %c0_i32, %c0_i32_0, %c0_i32_1 : i32, i32, i32
  }
  func.func @transform_3(%arg0: i32) -> (i32, i32, i32) {
    %c0_i32 = arith.constant 0 : i32
    %c0_i32_0 = arith.constant 0 : i32
    %c0_i32_1 = arith.constant 0 : i32
    %c0_i32_2 = arith.constant 0 : i32
    return %c0_i32, %c0_i32_0, %c0_i32_1 : i32, i32, i32
  }
  func.func @transform_4(%arg0: i32) -> (i32, i32, i32) {
    %c0_i32 = arith.constant 0 : i32
    %c0_i32_0 = arith.constant 0 : i32
    %c0_i32_1 = arith.constant 0 : i32
    %c0_i32_2 = arith.constant 0 : i32
    return %c0_i32, %c0_i32_0, %c0_i32_1 : i32, i32, i32
  }
  func.func @transform_5(%arg0: i32) -> (i32, i32, i32) {
    %c0_i32 = arith.constant 0 : i32
    %c0_i32_0 = arith.constant 0 : i32
    %c0_i32_1 = arith.constant 0 : i32
    %c0_i32_2 = arith.constant 0 : i32
    return %c0_i32, %c0_i32_0, %c0_i32_1 : i32, i32, i32
  }
  func.func @transform_6(%arg0: i32) -> (i32, i32, i32) {
    %c0_i32 = arith.constant 0 : i32
    %c0_i32_0 = arith.constant 0 : i32
    %c0_i32_1 = arith.constant 0 : i32
    %c0_i32_2 = arith.constant 0 : i32
    return %c0_i32, %c0_i32_0, %c0_i32_1 : i32, i32, i32
  }
  func.func @transform_7(%arg0: i32) -> (i32, i32, i32) {
    %c0_i32 = arith.constant 0 : i32
    %c0_i32_0 = arith.constant 0 : i32
    %c0_i32_1 = arith.constant 0 : i32
    %c0_i32_2 = arith.constant 0 : i32
    return %c0_i32, %c0_i32_0, %c0_i32_1 : i32, i32, i32
  }
  func.func @transform_8(%arg0: i32) -> (i32, i32, i32) {
    %c0_i32 = arith.constant 0 : i32
    %c0_i32_0 = arith.constant 0 : i32
    %c0_i32_1 = arith.constant 0 : i32
    %c0_i32_2 = arith.constant 0 : i32
    return %c0_i32, %c0_i32_0, %c0_i32_1 : i32, i32, i32
  }
  func.func @transform_9(%arg0: i32) -> (i32, i32, i32) {
    %c0_i32 = arith.constant 0 : i32
    %c0_i32_0 = arith.constant 0 : i32
    %c0_i32_1 = arith.constant 0 : i32
    %c0_i32_2 = arith.constant 0 : i32
    return %c0_i32, %c0_i32_0, %c0_i32_1 : i32, i32, i32
  }
  func.func @transform_10(%arg0: i32) -> (i32, i32) {
    %c0_i32 = arith.constant 0 : i32
    %c0_i32_0 = arith.constant 0 : i32
    %c0_i32_1 = arith.constant 0 : i32
    return %c0_i32, %c0_i32_0 : i32, i32
  }
  func.func @transform_11(%arg0: i32) -> (i32, i32) {
    %c0_i32 = arith.constant 0 : i32
    %c0_i32_0 = arith.constant 0 : i32
    %c0_i32_1 = arith.constant 0 : i32
    return %c0_i32, %c0_i32_0 : i32, i32
  }
  func.func @transform_12(%arg0: i32) -> (i32, i32) {
    %c0_i32 = arith.constant 0 : i32
    %c0_i32_0 = arith.constant 0 : i32
    %c0_i32_1 = arith.constant 0 : i32
    return %c0_i32, %c0_i32_0 : i32, i32
  }
  func.func @transform_13(%arg0: i32) -> (i32, i32) {
    %c0_i32 = arith.constant 0 : i32
    %c0_i32_0 = arith.constant 0 : i32
    %c0_i32_1 = arith.constant 0 : i32
    return %c0_i32, %c0_i32_0 : i32, i32
  }
  func.func @transform_14(%arg0: i32) -> (i32, i32) {
    %c0_i32 = arith.constant 0 : i32
    %c0_i32_0 = arith.constant 0 : i32
    %c0_i32_1 = arith.constant 0 : i32
    return %c0_i32, %c0_i32_0 : i32, i32
  }
  func.func @transform_15(%arg0: i32) -> (i32, i32) {
    %c0_i32 = arith.constant 0 : i32
    %c0_i32_0 = arith.constant 0 : i32
    %c0_i32_1 = arith.constant 0 : i32
    return %c0_i32, %c0_i32_0 : i32, i32
  }
}

</mosaic_0001>

<llo_original>
// kernel: squeeze.2
$region0: #{squeeze.2}
  %s0 = inlined_call_operand.vmem [shape: f32[6], index: 0, kind: input, shape index: {}]
  %s1 = inlined_call_operand.vmem [shape: f32[2,3], index: 1, kind: output, shape index: {}]
  $region1: #{squeeze.2} parent=0
    #allocation0 [shape = 'u8[4096]{0}', space=vmem, size = 0x1000, scoped, tag = 'scoped mem for output reshape']
    #allocation1 [shape = 'u8[4096]{0}', space=vmem, size = 0x1000, scoped, tag = 'scoped mem for input reshape']
    %s3 = sshllo.u32 0, 1
    %v4 = vld [vmem:[%s0] sm:%s3]
    %5 = vst [vmem:[#allocation1] sm:%s3] %v4
    %v6 = vld [vmem:[#allocation1] sm:$0x1]
    %vm7 = vcmask 23552
    %8 = vst.msk [vmem:[#allocation0] sm:$0x1] %vm7, %v6
    %v9 = vld [vmem:[#allocation1] sm:$0x1]
    %10 = vrot.lane.b32.xlu0 %v9, 125
    %v11 = vpop.permute.xlu0 %10
    %vm12 = vcmask 23552
    %s13 = scalar_lea.vmem [#allocation0], 1
    %14 = vst.msk [vmem:[%s13] sm:$0x1] %vm12, %v11
    %s16 = sshllo.u32 0, 2
    %v18 = vld [vmem:[#allocation0] sm:%s16]
    %s19 = sshllo.u32 0, 2
    %20 = vst [vmem:[%s1] sm:%s19] %v18

// kernel: forward.3
$region0: #{forward.3}
  #allocation0 [shape = 'u32[]', space=smem, size = 0x4, offset = 0x4, fixed_abs, tag = 'smem constant byte address 0x4 - core index']
  #allocation1 [shape = 'u32[144,128]{1,0:T(1,128)}', space=vmem, size = 0x12000, scoped, tag = 'internal scratch']
  #allocation2 [shape = 'f32[48,1]{1,0:T(8,128)}', space=vmem, size = 0x6000, scoped, tag = 'scratch operand']
  #allocation3 [shape = 'f32[48,1]{1,0:T(8,128)}', space=vmem, size = 0x6000, scoped, tag = 'scratch operand']
  #allocation4 [shape = 'f32[48,1]{1,0:T(8,128)}', space=vmem, size = 0x6000, scoped, tag = 'scratch operand']
  %s0 = inlined_call_operand.vmem [shape: bf16[48,32], index: 0, kind: input, shape index: {}]
  %s1 = inlined_call_operand.vmem [shape: bf16[32,256], index: 1, kind: input, shape index: {}]
  %s2 = inlined_call_operand.vmem [shape: s32[48,1], index: 2, kind: input, shape index: {}]
  %s3 = inlined_call_operand.vmem [shape: f32[6,48], index: 3, kind: input, shape index: {}]
  %s4 = inlined_call_operand.vmem [shape: f32[6,128], index: 4, kind: output, shape index: {}]
  %s5 = sld [smem:[#allocation0]]
  $region34: #{forward.3} parent=0
    _
  %s7 = ssub.s32 1, %s5
  %s8 = scalar_select 0, %s7, %s5
  // Predicated region
  $region2: #{forward.3} parent=0 // pred_check
    _
  $region3: #{forward.3} parent=0 // pred_check_branch
    %10 = sbr.rel (0) target = $region5
  $region4: #{forward.3} parent=0 // pred_region
    _
  $region5: #{forward.3} parent=0 // pred_fallthru
    _
  // Predicated region
  $region6: #{forward.3} parent=0 // pred_check
    _
  $region7: #{forward.3} parent=0 // pred_check_branch
    %12 = sbr.rel (0) target = $region9
  $region8: #{forward.3} parent=0 // pred_region
    _
  $region9: #{forward.3} parent=0 // pred_fallthru
    _
  // Predicated region
  $region10: #{forward.3} parent=0 // pred_check
    _
  $region11: #{forward.3} parent=0 // pred_check_branch
    %14 = sbr.rel (0) target = $region13
  $region12: #{forward.3} parent=0 // pred_region
    _
  $region13: #{forward.3} parent=0 // pred_fallthru
    _
  // Predicated region
  $region14: #{forward.3} parent=0 // pred_check
    _
  $region15: #{forward.3} parent=0 // pred_check_branch
    %16 = sbr.rel (0) target = $region17
  $region16: #{forward.3} parent=0 // pred_region
    _
  $region17: #{forward.3} parent=0 // pred_fallthru
    _
  %p18 = scmp.eq.s32.totalorder 0, 0
  // Predicated region
  $region18: #{forward.3} parent=0 // pred_check
    %p19 = pneg %p18
  $region19: #{forward.3} parent=0 // pred_check_branch
    %21 = sbr.rel (%p19) target = $region21
  $region20: #{forward.3} parent=0 // pred_region
    %vm22 = vcmask 7168
    %23 = vst.msk [vmem:[#allocation2] sm:$0xff] %vm22, -inf
    %24 = vst.msk [vmem:[#allocation2 + $0x8] sm:$0xff] %vm22, -inf
    %25 = vst.msk [vmem:[#allocation2 + $0x10] sm:$0xff] %vm22, -inf
    %26 = vst.msk [vmem:[#allocation2 + $0x18] sm:$0xff] %vm22, -inf
    %27 = vst.msk [vmem:[#allocation2 + $0x20] sm:$0xff] %vm22, -inf
    %28 = vst.msk [vmem:[#allocation2 + $0x28] sm:$0xff] %vm22, -inf
    %29 = vst.msk [vmem:[#allocation3] sm:$0xff] %vm22, 0.0
    %30 = vst.msk [vmem:[#allocation3 + $0x8] sm:$0xff] %vm22, 0.0
    %31 = vst.msk [vmem:[#allocation3 + $0x10] sm:$0xff] %vm22, 0.0
    %32 = vst.msk [vmem:[#allocation3 + $0x18] sm:$0xff] %vm22, 0.0
    %33 = vst.msk [vmem:[#allocation3 + $0x20] sm:$0xff] %vm22, 0.0
    %34 = vst.msk [vmem:[#allocation3 + $0x28] sm:$0xff] %vm22, 0.0
    %35 = vst.msk [vmem:[#allocation4] sm:$0xff] %vm22, 0.0
    %36 = vst.msk [vmem:[#allocation4 + $0x8] sm:$0xff] %vm22, 0.0
    %37 = vst.msk [vmem:[#allocation4 + $0x10] sm:$0xff] %vm22, 0.0
    %38 = vst.msk [vmem:[#allocation4 + $0x18] sm:$0xff] %vm22, 0.0
    %39 = vst.msk [vmem:[#allocation4 + $0x20] sm:$0xff] %vm22, 0.0
    %40 = vst.msk [vmem:[#allocation4 + $0x28] sm:$0xff] %vm22, 0.0
  $region21: #{forward.3} parent=0 // pred_fallthru
    _
  %v41 = vld [vmem:[%s0] sm:$0xf]
  %v42 = vld [vmem:[%s0 + $0x4] sm:$0xf]
  %v43 = vld [vmem:[%s0 + $0x8] sm:$0xf]
  %v44 = vld [vmem:[%s0 + $0xc] sm:$0xf]
  %v45 = vld [vmem:[%s0 + $0x10] sm:$0xf]
  %v46 = vld [vmem:[%s0 + $0x14] sm:$0xf]
  %v47 = vld [vmem:[%s1] sm:$0xff]
  %v48 = vld [vmem:[%s1 + $0x8] sm:$0xff]
  %v49 = vld [vmem:[%s1 + $0x10] sm:$0xff]
  %v50 = vld [vmem:[%s1 + $0x18] sm:$0xff]
  %v57 = vunpack.c.l.b16 %v41
  %v58 = vunpack.c.l.b16 %v42
  %v59 = vunpack.c.l.b16 %v43
  %v60 = vunpack.c.l.b16 %v44
  %v61 = vunpack.c.l.b16 %v45
  %v62 = vunpack.c.l.b16 %v46
  %v63 = vpack.c.b16 %v58, %v57
  %v64 = vpack.c.b16 %v60, %v59
  %v65 = vpack.c.b16 %v62, %v61
  %v70 = vunpack.c.l.b16 %v47
  %v71 = vunpack.c.h.b16 %v47
  %v72 = vunpack.c.l.b16 %v48
  %v73 = vunpack.c.h.b16 %v48
  %v74 = vunpack.c.l.b16 %v49
  %v75 = vunpack.c.h.b16 %v49
  %v76 = vunpack.c.l.b16 %v50
  %v77 = vunpack.c.h.b16 %v50
  %v78 = vpack.c.b16 %v72, %v70
  %v79 = vpack.c.b16 %v73, %v71
  %v80 = vpack.c.b16 %v76, %v74
  %v81 = vpack.c.b16 %v77, %v75
  %vm86 = vcmask 261120
  %v88 = vsel %vm86, %v63, 0
  %v91 = vsel %vm86, %v64, 0
  %v94 = vsel %vm86, %v65, 0
  %96 = vmatprep.subr.bf16.mxu0 %v79
  %97 = vmatpush1.bf16.msra.mxu0 %v78
  %98 = vmatprep.subr.bf16.mxu0 %v81
  %99 = vmatpush1.bf16.msra.mxu0 %v80
  %100 = vmatprep.subr.bf16.mxu0 0
  %101 = vmatpush1.bf16.msra.mxu0 0
  %102 = vmatprep.subr.bf16.mxu0 0
  %103 = vmatpush1.bf16.msra.mxu0 0
  %104 = vmatprep.subr.bf16.mxu0 0
  %105 = vmatpush1.bf16.msra.mxu0 0
  %106 = vmatprep.subr.bf16.mxu0 0
  %107 = vmatpush1.bf16.msra.mxu0 0
  %108 = vmatprep.subr.bf16.mxu0 0
  %109 = vmatpush1.bf16.msra.mxu0 0
  %110 = vmatprep.subr.bf16.mxu0 0
  %111 = vmatpush1.bf16.msra.mxu0 0
  %112 = vmatprep.subr.bf16.mxu0 0
  %113 = vmatpush1.bf16.msra.mxu0 0
  %114 = vmatprep.subr.bf16.mxu0 0
  %115 = vmatpush1.bf16.msra.mxu0 0
  %116 = vmatprep.subr.bf16.mxu0 0
  %117 = vmatpush1.bf16.msra.mxu0 0
  %118 = vmatprep.subr.bf16.mxu0 0
  %119 = vmatpush1.bf16.msra.mxu0 0
  %120 = vmatprep.subr.bf16.mxu0 0
  %121 = vmatpush1.bf16.msra.mxu0 0
  %122 = vmatprep.subr.bf16.mxu0 0
  %123 = vmatpush1.bf16.msra.mxu0 0
  %124 = vmatprep.subr.bf16.mxu0 0
  %125 = vmatpush1.bf16.msra.mxu0 0
  %126 = vmatprep.subr.bf16.mxu0 0
  %127 = vmatpush1.bf16.msra.mxu0 0
  %128 = vmatprep.mubr.bf16.mxu0 0
  %129 = vmatmul.mubr.bf16.gmra.mrb[0].mxu0 %v88
  %v130 = vpop.f32.mrb[0].mxu0
  %v131 = vadd.f32 0.0, %v130
  %v132 = vpop.f32.mrb[0].mxu0
  %v133 = vadd.f32 0.0, %v132
  %v134 = vpop.f32.mrb[0].mxu0
  %v135 = vadd.f32 0.0, %v134
  %v136 = vpop.f32.mrb[0].mxu0
  %v137 = vadd.f32 0.0, %v136
  %138 = vmatprep.mubr.bf16.mxu0 0
  %139 = vmatmul.mubr.bf16.gmra.mrb[0].mxu0 %v91
  %v140 = vpop.f32.mrb[0].mxu0
  %v141 = vadd.f32 0.0, %v140
  %v142 = vpop.f32.mrb[0].mxu0
  %v143 = vadd.f32 0.0, %v142
  %v144 = vpop.f32.mrb[0].mxu0
  %v145 = vadd.f32 0.0, %v144
  %v146 = vpop.f32.mrb[0].mxu0
  %v147 = vadd.f32 0.0, %v146
  %148 = vmatprep.mubr.bf16.mxu0 0
  %149 = vmatmul.mubr.bf16.gmra.mrb[0].mxu0 %v94
  %v150 = vpop.f32.mrb[0].mxu0
  %v151 = vadd.f32 0.0, %v150
  %v152 = vpop.f32.mrb[0].mxu0
  %v153 = vadd.f32 0.0, %v152
  %v154 = vpop.f32.mrb[0].mxu0
  %v155 = vadd.f32 0.0, %v154
  %v156 = vpop.f32.mrb[0].mxu0
  %v157 = vadd.f32 0.0, %v156
  %158 = vdwg.mxu0
  %v159 = vld [vmem:[#allocation2] sm:$0xff]
  %v160 = vld [vmem:[#allocation2 + $0x8] sm:$0xff]
  %v161 = vld [vmem:[#allocation2 + $0x10] sm:$0xff]
  %v162 = vld [vmem:[#allocation2 + $0x18] sm:$0xff]
  %v163 = vld [vmem:[#allocation2 + $0x20] sm:$0xff]
  %v164 = vld [vmem:[#allocation2 + $0x28] sm:$0xff]
  %v165 = vmax.f32 %v131, %v133
  %166 = vmax.xlane.f32.xlu0 %v165
  %v167 = vpop.xlane.xlu0 %166
  %v168 = vmax.f32 %v135, %v137
  %169 = vmax.xlane.f32.xlu0 %v168
  %v170 = vpop.xlane.xlu0 %169
  %v171 = vmax.f32 %v141, %v143
  %172 = vmax.xlane.f32.xlu0 %v171
  %v173 = vpop.xlane.xlu0 %172
  %v174 = vmax.f32 %v145, %v147
  %175 = vmax.xlane.f32.xlu0 %v174
  %v176 = vpop.xlane.xlu0 %175
  %v177 = vmax.f32 %v151, %v153
  %178 = vmax.xlane.f32.xlu0 %v177
  %v179 = vpop.xlane.xlu0 %178
  %v180 = vmax.f32 %v155, %v157
  %181 = vmax.xlane.f32.xlu0 %v180
  %v182 = vpop.xlane.xlu0 %181
  %v183 = vmax.f32 %v159, %v167
  %v184 = vmax.f32 %v160, %v170
  %v185 = vmax.f32 %v161, %v173
  %v186 = vmax.f32 %v162, %v176
  %v187 = vmax.f32 %v163, %v179
  %v188 = vmax.f32 %v164, %v182
  %v189 = vld [vmem:[#allocation3] sm:$0xff]
  %v190 = vld [vmem:[#allocation3 + $0x8] sm:$0xff]
  %v191 = vld [vmem:[#allocation3 + $0x10] sm:$0xff]
  %v192 = vld [vmem:[#allocation3 + $0x18] sm:$0xff]
  %v193 = vld [vmem:[#allocation3 + $0x20] sm:$0xff]
  %v194 = vld [vmem:[#allocation3 + $0x28] sm:$0xff]
  %v195 = vsub.f32 %v159, %v183
  %v196 = vsub.f32 %v160, %v184
  %v197 = vsub.f32 %v161, %v185
  %v198 = vsub.f32 %v162, %v186
  %v199 = vsub.f32 %v163, %v187
  %v200 = vsub.f32 %v164, %v188
  %v201 = vmul.f32 %v195, 1.442695
  %v202 = vpow.pop %v201
  %v203 = vmul.f32 %v196, 1.442695
  %v204 = vpow.pop %v203
  %v205 = vmul.f32 %v197, 1.442695
  %v206 = vpow.pop %v205
  %v207 = vmul.f32 %v198, 1.442695
  %v208 = vpow.pop %v207
  %v209 = vmul.f32 %v199, 1.442695
  %v210 = vpow.pop %v209
  %v211 = vmul.f32 %v200, 1.442695
  %v212 = vpow.pop %v211
  %v213 = vmul.f32 %v189, %v202
  %v214 = vmul.f32 %v190, %v204
  %v215 = vmul.f32 %v191, %v206
  %v216 = vmul.f32 %v192, %v208
  %v217 = vmul.f32 %v193, %v210
  %v218 = vmul.f32 %v194, %v212
  %220 = vset.pattern.permute.xlu0 0
  %221 = vperm.xlu0 %220, %v183
  %v222 = vpop.permute.xlu0 %221
  %225 = vset.pattern.permute.xlu0 0
  %226 = vperm.xlu0 %225, %v184
  %v227 = vpop.permute.xlu0 %226
  %230 = vset.pattern.permute.xlu0 0
  %231 = vperm.xlu0 %230, %v185
  %v232 = vpop.permute.xlu0 %231
  %235 = vset.pattern.permute.xlu0 0
  %236 = vperm.xlu0 %235, %v186
  %v237 = vpop.permute.xlu0 %236
  %240 = vset.pattern.permute.xlu0 0
  %241 = vperm.xlu0 %240, %v187
  %v242 = vpop.permute.xlu0 %241
  %245 = vset.pattern.permute.xlu0 0
  %246 = vperm.xlu0 %245, %v188
  %v247 = vpop.permute.xlu0 %246
  %v249 = vsub.f32 %v131, %v222
  %v250 = vsub.f32 %v133, %v222
  %v251 = vsub.f32 %v135, %v227
  %v252 = vsub.f32 %v137, %v227
  %v253 = vsub.f32 %v141, %v232
  %v254 = vsub.f32 %v143, %v232
  %v255 = vsub.f32 %v145, %v237
  %v256 = vsub.f32 %v147, %v237
  %v257 = vsub.f32 %v151, %v242
  %v258 = vsub.f32 %v153, %v242
  %v259 = vsub.f32 %v155, %v247
  %v260 = vsub.f32 %v157, %v247
  %v261 = vmul.f32 %v249, 1.442695
  %v262 = vpow.pop %v261
  %v263 = vmul.f32 %v250, 1.442695
  %v264 = vpow.pop %v263
  %v265 = vmul.f32 %v251, 1.442695
  %v266 = vpow.pop %v265
  %v267 = vmul.f32 %v252, 1.442695
  %v268 = vpow.pop %v267
  %v269 = vmul.f32 %v253, 1.442695
  %v270 = vpow.pop %v269
  %v271 = vmul.f32 %v254, 1.442695
  %v272 = vpow.pop %v271
  %v273 = vmul.f32 %v255, 1.442695
  %v274 = vpow.pop %v273
  %v275 = vmul.f32 %v256, 1.442695
  %v276 = vpow.pop %v275
  %v277 = vmul.f32 %v257, 1.442695
  %v278 = vpow.pop %v277
  %v279 = vmul.f32 %v258, 1.442695
  %v280 = vpow.pop %v279
  %v281 = vmul.f32 %v259, 1.442695
  %v282 = vpow.pop %v281
  %v283 = vmul.f32 %v260, 1.442695
  %v284 = vpow.pop %v283
  %v285 = vadd.f32 %v262, %v264
  %286 = vadd.xlane.f32.xlu0 %v285
  %v287 = vpop.xlane.xlu0 %286
  %v288 = vadd.f32 %v266, %v268
  %289 = vadd.xlane.f32.xlu0 %v288
  %v290 = vpop.xlane.xlu0 %289
  %v291 = vadd.f32 %v270, %v272
  %292 = vadd.xlane.f32.xlu0 %v291
  %v293 = vpop.xlane.xlu0 %292
  %v294 = vadd.f32 %v274, %v276
  %295 = vadd.xlane.f32.xlu0 %v294
  %v296 = vpop.xlane.xlu0 %295
  %v297 = vadd.f32 %v278, %v280
  %298 = vadd.xlane.f32.xlu0 %v297
  %v299 = vpop.xlane.xlu0 %298
  %v300 = vadd.f32 %v282, %v284
  %301 = vadd.xlane.f32.xlu0 %v300
  %v302 = vpop.xlane.xlu0 %301
  %v303 = vadd.f32 %v213, %v287
  %v304 = vadd.f32 %v214, %v290
  %v305 = vadd.f32 %v215, %v293
  %v306 = vadd.f32 %v216, %v296
  %v307 = vadd.f32 %v217, %v299
  %v308 = vadd.f32 %v218, %v302
  %vm309 = vcmask 7168
  %310 = vst.msk [vmem:[#allocation3] sm:$0xff] %vm309, %v303
  %311 = vst.msk [vmem:[#allocation3 + $0x8] sm:$0xff] %vm309, %v304
  %312 = vst.msk [vmem:[#allocation3 + $0x10] sm:$0xff] %vm309, %v305
  %313 = vst.msk [vmem:[#allocation3 + $0x18] sm:$0xff] %vm309, %v306
  %314 = vst.msk [vmem:[#allocation3 + $0x20] sm:$0xff] %vm309, %v307
  %315 = vst.msk [vmem:[#allocation3 + $0x28] sm:$0xff] %vm309, %v308
  %316 = vst.msk [vmem:[#allocation2] sm:$0xff] %vm309, %v183
  %317 = vst.msk [vmem:[#allocation2 + $0x8] sm:$0xff] %vm309, %v184
  %318 = vst.msk [vmem:[#allocation2 + $0x10] sm:$0xff] %vm309, %v185
  %319 = vst.msk [vmem:[#allocation2 + $0x18] sm:$0xff] %vm309, %v186
  %320 = vst.msk [vmem:[#allocation2 + $0x20] sm:$0xff] %vm309, %v187
  %321 = vst.msk [vmem:[#allocation2 + $0x28] sm:$0xff] %vm309, %v188
  %v322 = vld [vmem:[%s2] sm:$0xff]
  %v323 = vld [vmem:[%s2 + $0x8] sm:$0xff]
  %v324 = vld [vmem:[%s2 + $0x10] sm:$0xff]
  %v325 = vld [vmem:[%s2 + $0x18] sm:$0xff]
  %v326 = vld [vmem:[%s2 + $0x20] sm:$0xff]
  %v327 = vld [vmem:[%s2 + $0x28] sm:$0xff]
  %s328 = smul.u32 0, 256
  %v329 = vstv %s328
  %v330 = vsub.s32 %v322, %v329
  %v331 = vsub.s32 %v323, %v329
  %v332 = vsub.s32 %v324, %v329
  %v333 = vsub.s32 %v325, %v329
  %v334 = vsub.s32 %v326, %v329
  %v335 = vsub.s32 %v327, %v329
  %v336 = vlaneseq
  %v337 = vand.u32 %v336, 127
  %v338 = vadd.s32 %v337, 128
  %v339 = vld [vmem:[#allocation4] sm:$0xff]
  %v340 = vld [vmem:[#allocation4 + $0x8] sm:$0xff]
  %v341 = vld [vmem:[#allocation4 + $0x10] sm:$0xff]
  %v342 = vld [vmem:[#allocation4 + $0x18] sm:$0xff]
  %v343 = vld [vmem:[#allocation4 + $0x20] sm:$0xff]
  %v344 = vld [vmem:[#allocation4 + $0x28] sm:$0xff]
  %345 = vset.pattern.permute.xlu0 0
  %346 = vperm.xlu0 %345, %v330
  %v347 = vpop.permute.xlu0 %346
  %348 = vset.pattern.permute.xlu0 0
  %349 = vperm.xlu0 %348, %v331
  %v350 = vpop.permute.xlu0 %349
  %351 = vset.pattern.permute.xlu0 0
  %352 = vperm.xlu0 %351, %v332
  %v353 = vpop.permute.xlu0 %352
  %354 = vset.pattern.permute.xlu0 0
  %355 = vperm.xlu0 %354, %v333
  %v356 = vpop.permute.xlu0 %355
  %357 = vset.pattern.permute.xlu0 0
  %358 = vperm.xlu0 %357, %v334
  %v359 = vpop.permute.xlu0 %358
  %360 = vset.pattern.permute.xlu0 0
  %361 = vperm.xlu0 %360, %v335
  %v362 = vpop.permute.xlu0 %361
  %vm363 = vcmp.eq.s32.totalorder %v337, %v347
  %vm364 = vcmp.eq.s32.totalorder %v338, %v347
  %vm365 = vcmp.eq.s32.totalorder %v337, %v350
  %vm366 = vcmp.eq.s32.totalorder %v338, %v350
  %vm367 = vcmp.eq.s32.totalorder %v337, %v353
  %vm368 = vcmp.eq.s32.totalorder %v338, %v353
  %vm369 = vcmp.eq.s32.totalorder %v337, %v356
  %vm370 = vcmp.eq.s32.totalorder %v338, %v356
  %vm371 = vcmp.eq.s32.totalorder %v337, %v359
  %vm372 = vcmp.eq.s32.totalorder %v338, %v359
  %vm373 = vcmp.eq.s32.totalorder %v337, %v362
  %vm374 = vcmp.eq.s32.totalorder %v338, %v362
  %v375 = vsel %vm363, %v131, 0.0
  %v376 = vsel %vm364, %v133, 0.0
  %v377 = vsel %vm365, %v135, 0.0
  %v378 = vsel %vm366, %v137, 0.0
  %v379 = vsel %vm367, %v141, 0.0
  %v380 = vsel %vm368, %v143, 0.0
  %v381 = vsel %vm369, %v145, 0.0
  %v382 = vsel %vm370, %v147, 0.0
  %v383 = vsel %vm371, %v151, 0.0
  %v384 = vsel %vm372, %v153, 0.0
  %v385 = vsel %vm373, %v155, 0.0
  %v386 = vsel %vm374, %v157, 0.0
  %v387 = vadd.f32 %v375, %v376
  %388 = vadd.xlane.f32.xlu0 %v387
  %v389 = vpop.xlane.xlu0 %388
  %v390 = vadd.f32 %v377, %v378
  %391 = vadd.xlane.f32.xlu0 %v390
  %v392 = vpop.xlane.xlu0 %391
  %v393 = vadd.f32 %v379, %v380
  %394 = vadd.xlane.f32.xlu0 %v393
  %v395 = vpop.xlane.xlu0 %394
  %v396 = vadd.f32 %v381, %v382
  %397 = vadd.xlane.f32.xlu0 %v396
  %v398 = vpop.xlane.xlu0 %397
  %v399 = vadd.f32 %v383, %v384
  %400 = vadd.xlane.f32.xlu0 %v399
  %v401 = vpop.xlane.xlu0 %400
  %v402 = vadd.f32 %v385, %v386
  %403 = vadd.xlane.f32.xlu0 %v402
  %v404 = vpop.xlane.xlu0 %403
  %v405 = vadd.f32 %v339, %v389
  %v406 = vadd.f32 %v340, %v392
  %v407 = vadd.f32 %v341, %v395
  %v408 = vadd.f32 %v342, %v398
  %v409 = vadd.f32 %v343, %v401
  %v410 = vadd.f32 %v344, %v404
  %411 = vst.msk [vmem:[#allocation4] sm:$0xff] %vm309, %v405
  %412 = vst.msk [vmem:[#allocation4 + $0x8] sm:$0xff] %vm309, %v406
  %413 = vst.msk [vmem:[#allocation4 + $0x10] sm:$0xff] %vm309, %v407
  %414 = vst.msk [vmem:[#allocation4 + $0x18] sm:$0xff] %vm309, %v408
  %415 = vst.msk [vmem:[#allocation4 + $0x20] sm:$0xff] %vm309, %v409
  %416 = vst.msk [vmem:[#allocation4 + $0x28] sm:$0xff] %vm309, %v410
  // Predicated region
  $region22: #{forward.3} parent=0 // pred_check
    %p417 = pneg %p18
  $region23: #{forward.3} parent=0 // pred_check_branch
    %419 = sbr.rel (%p417) target = $region25
  $region24: #{forward.3} parent=0 // pred_region
    %v420 = vld [vmem:[#allocation2] sm:$0xff]
    %v421 = vld [vmem:[#allocation2 + $0x8] sm:$0xff]
    %v422 = vld [vmem:[#allocation2 + $0x10] sm:$0xff]
    %v423 = vld [vmem:[#allocation2 + $0x18] sm:$0xff]
    %v424 = vld [vmem:[#allocation2 + $0x20] sm:$0xff]
    %v425 = vld [vmem:[#allocation2 + $0x28] sm:$0xff]
    %v426 = vld [vmem:[#allocation3] sm:$0xff]
    %v427 = vld [vmem:[#allocation3 + $0x8] sm:$0xff]
    %v428 = vld [vmem:[#allocation3 + $0x10] sm:$0xff]
    %v429 = vld [vmem:[#allocation3 + $0x18] sm:$0xff]
    %v430 = vld [vmem:[#allocation3 + $0x20] sm:$0xff]
    %v431 = vld [vmem:[#allocation3 + $0x28] sm:$0xff]
    %v432 = vlog2.pop %v426
    %v433 = vmul.f32 %v432, 0.6931472
    %v434 = vlog2.pop %v427
    %v435 = vmul.f32 %v434, 0.6931472
    %v436 = vlog2.pop %v428
    %v437 = vmul.f32 %v436, 0.6931472
    %v438 = vlog2.pop %v429
    %v439 = vmul.f32 %v438, 0.6931472
    %v440 = vlog2.pop %v430
    %v441 = vmul.f32 %v440, 0.6931472
    %v442 = vlog2.pop %v431
    %v443 = vmul.f32 %v442, 0.6931472
    %v444 = vadd.f32 %v420, %v433
    %v445 = vadd.f32 %v421, %v435
    %v446 = vadd.f32 %v422, %v437
    %v447 = vadd.f32 %v423, %v439
    %v448 = vadd.f32 %v424, %v441
    %v449 = vadd.f32 %v425, %v443
    %v450 = vld [vmem:[%s2] sm:$0xff]
    %v451 = vld [vmem:[%s2 + $0x8] sm:$0xff]
    %v452 = vld [vmem:[%s2 + $0x10] sm:$0xff]
    %v453 = vld [vmem:[%s2 + $0x18] sm:$0xff]
    %v454 = vld [vmem:[%s2 + $0x20] sm:$0xff]
    %v455 = vld [vmem:[%s2 + $0x28] sm:$0xff]
    %vm456 = vcmp.ge.s32.totalorder %v450, 0
    %vm457 = vcmp.ge.s32.totalorder %v451, 0
    %vm458 = vcmp.ge.s32.totalorder %v452, 0
    %vm459 = vcmp.ge.s32.totalorder %v453, 0
    %vm460 = vcmp.ge.s32.totalorder %v454, 0
    %vm461 = vcmp.ge.s32.totalorder %v455, 0
    %v462 = vsel %vm456, 1, 0
    %v463 = vsel %vm457, 1, 0
    %v464 = vsel %vm458, 1, 0
    %v465 = vsel %vm459, 1, 0
    %v466 = vsel %vm460, 1, 0
    %v467 = vsel %vm461, 1, 0
    %v468 = vcvt.s32.f32 %v462
    %v469 = vcvt.s32.f32 %v463
    %v470 = vcvt.s32.f32 %v464
    %v471 = vcvt.s32.f32 %v465
    %v472 = vcvt.s32.f32 %v466
    %v473 = vcvt.s32.f32 %v467
    %v474 = vld [vmem:[#allocation4] sm:$0xff]
    %v475 = vld [vmem:[#allocation4 + $0x8] sm:$0xff]
    %v476 = vld [vmem:[#allocation4 + $0x10] sm:$0xff]
    %v477 = vld [vmem:[#allocation4 + $0x18] sm:$0xff]
    %v478 = vld [vmem:[#allocation4 + $0x20] sm:$0xff]
    %v479 = vld [vmem:[#allocation4 + $0x28] sm:$0xff]
    %v480 = vsub.f32 %v474, %v444
    %v481 = vsub.f32 %v475, %v445
    %v482 = vsub.f32 %v476, %v446
    %v483 = vsub.f32 %v477, %v447
    %v484 = vsub.f32 %v478, %v448
    %v485 = vsub.f32 %v479, %v449
    %v486 = vmul.f32 %v468, %v480
    %v487 = vmul.f32 %v469, %v481
    %v488 = vmul.f32 %v470, %v482
    %v489 = vmul.f32 %v471, %v483
    %v490 = vmul.f32 %v472, %v484
    %v491 = vmul.f32 %v473, %v485
    %493 = vset.pattern.permute.xlu0 0
    %494 = vperm.xlu0 %493, %v486
    %v495 = vpop.permute.xlu0 %494
    %498 = vset.pattern.permute.xlu0 0
    %499 = vperm.xlu0 %498, %v487
    %v500 = vpop.permute.xlu0 %499
    %503 = vset.pattern.permute.xlu0 0
    %504 = vperm.xlu0 %503, %v488
    %v505 = vpop.permute.xlu0 %504
    %508 = vset.pattern.permute.xlu0 0
    %509 = vperm.xlu0 %508, %v489
    %v510 = vpop.permute.xlu0 %509
    %513 = vset.pattern.permute.xlu0 0
    %514 = vperm.xlu0 %513, %v490
    %v515 = vpop.permute.xlu0 %514
    %518 = vset.pattern.permute.xlu0 0
    %519 = vperm.xlu0 %518, %v491
    %v520 = vpop.permute.xlu0 %519
    %v522 = vld [vmem:[%s3] sm:$0x3f]
    %vm523 = vcmask 392192
    %v525 = vsel %vm523, %v522, 0
    %527 = vmatprep.subr.mxu0 0.0
    %528 = vmatpush1.msra.mxu0 %v495
    %529 = vmatprep.subr.mxu0 0.0
    %530 = vmatpush1.msra.mxu0 %v500
    %531 = vmatprep.subr.mxu0 0.0
    %532 = vmatpush1.msra.mxu0 %v505
    %533 = vmatprep.subr.mxu0 0.0
    %534 = vmatpush1.msra.mxu0 %v510
    %535 = vmatprep.subr.mxu0 0.0
    %536 = vmatpush1.msra.mxu0 %v515
    %537 = vmatprep.subr.mxu0 0.0
    %538 = vmatpush1.msra.mxu0 %v520
    %539 = vmatprep.subr.mxu0 0.0
    %540 = vmatpush1.msra.mxu0 0.0
    %541 = vmatprep.subr.mxu0 0.0
    %542 = vmatpush1.msra.mxu0 0.0
    %543 = vmatprep.subr.mxu0 0.0
    %544 = vmatpush1.msra.mxu0 0.0
    %545 = vmatprep.subr.mxu0 0.0
    %546 = vmatpush1.msra.mxu0 0.0
    %547 = vmatprep.subr.mxu0 0.0
    %548 = vmatpush1.msra.mxu0 0.0
    %549 = vmatprep.subr.mxu0 0.0
    %550 = vmatpush1.msra.mxu0 0.0
    %551 = vmatprep.subr.mxu0 0.0
    %552 = vmatpush1.msra.mxu0 0.0
    %553 = vmatprep.subr.mxu0 0.0
    %554 = vmatpush1.msra.mxu0 0.0
    %555 = vmatprep.subr.mxu0 0.0
    %556 = vmatpush1.msra.mxu0 0.0
    %557 = vmatprep.subr.mxu0 0.0
    %558 = vmatpush1.msra.mxu0 0.0
    %559 = vmatprep.subr.mxu0 0.0
    %560 = vmatpush1.msra.mxu0 0.0
    %561 = vmatprep.subr.mxu0 0.0
    %562 = vmatpush1.msra.mxu0 0.0
    %563 = vmatprep.subr.mxu0 0.0
    %564 = vmatpush1.msra.mxu0 0.0
    %565 = vmatprep.subr.mxu0 0.0
    %566 = vmatpush1.msra.mxu0 0.0
    %567 = vmatprep.subr.mxu0 0.0
    %568 = vmatpush1.msra.mxu0 0.0
    %569 = vmatprep.subr.mxu0 0.0
    %570 = vmatpush1.msra.mxu0 0.0
    %571 = vmatprep.subr.mxu0 0.0
    %572 = vmatpush1.msra.mxu0 0.0
    %573 = vmatprep.subr.mxu0 0.0
    %574 = vmatpush1.msra.mxu0 0.0
    %575 = vmatprep.subr.mxu0 0.0
    %576 = vmatpush1.msra.mxu0 0.0
    %577 = vmatprep.subr.mxu0 0.0
    %578 = vmatpush1.msra.mxu0 0.0
    %579 = vmatprep.subr.mxu0 0.0
    %580 = vmatpush1.msra.mxu0 0.0
    %581 = vmatprep.subr.mxu0 0.0
    %582 = vmatpush1.msra.mxu0 0.0
    %583 = vmatprep.subr.mxu0 0.0
    %584 = vmatpush1.msra.mxu0 0.0
    %585 = vmatprep.subr.mxu0 0.0
    %586 = vmatpush1.msra.mxu0 0.0
    %587 = vmatprep.subr.mxu0 0.0
    %588 = vmatpush1.msra.mxu0 0.0
    %589 = vmatprep.subr.mxu0 0.0
    %590 = vmatpush1.msra.mxu0 0.0
    %591 = vmatprep.mubr.f32.mxu0 0.0
    %592 = vmatmul.mubr.f32.gmra.mrb[0].mxu0 %v525
    %v593 = vpop.f32.mrb[0].mxu0
    %v594 = vadd.f32 0.0, %v593
    %v595 = vpop.f32.mrb[0].mxu0
    %596 = vdwg.mxu0
    %597 = vst [vmem:[%s4] sm:$0x3f] %v594
  $region25: #{forward.3} parent=0 // pred_fallthru
    _
  // Predicated region
  $region26: #{forward.3} parent=0 // pred_check
    _
  $region27: #{forward.3} parent=0 // pred_check_branch
    %599 = sbr.rel (0) target = $region29
  $region28: #{forward.3} parent=0 // pred_region
    _
  $region29: #{forward.3} parent=0 // pred_fallthru
    _
  // Predicated region
  $region30: #{forward.3} parent=0 // pred_check
    _
  $region31: #{forward.3} parent=0 // pred_check_branch
    %601 = sbr.rel (0) target = $region33
  $region32: #{forward.3} parent=0 // pred_region
    _
  $region33: #{forward.3} parent=0 // pred_fallthru
    _

// kernel: forward.2
$region0: #{forward.2}
  #allocation0 [shape = 'u32[]', space=smem, size = 0x4, offset = 0x4, fixed_abs, tag = 'smem constant byte address 0x4 - core index']
  #allocation1 [shape = 'u32[144,128]{1,0:T(1,128)}', space=vmem, size = 0x12000, scoped, tag = 'internal scratch']
  %s0 = inlined_call_operand.vmem [shape: bf16[48,32], index: 0, kind: input, shape index: {}]
  %s1 = inlined_call_operand.vmem [shape: bf16[8,32,8], index: 1, kind: input, shape index: {}]
  %s2 = inlined_call_operand.vmem [shape: bf16[8,32,8], index: 2, kind: input, shape index: {}]
  %s3 = inlined_call_operand.vmem [shape: bf16[8,32,8], index: 3, kind: input, shape index: {}]
  %s4 = inlined_call_operand.vmem [shape: bf16[8,8,32], index: 4, kind: input, shape index: {}]
  %s5 = inlined_call_operand.vmem [shape: bf16[2,32,64], index: 5, kind: input, shape index: {}]
  %s6 = inlined_call_operand.vmem [shape: bf16[2,32,64], index: 6, kind: input, shape index: {}]
  %s7 = inlined_call_operand.vmem [shape: bf16[2,64,32], index: 7, kind: input, shape index: {}]
  %s8 = inlined_call_operand.vmem [shape: bf16[2,1,32], index: 8, kind: input, shape index: {}]
  %s9 = inlined_call_operand.vmem [shape: bf16[2,1,32], index: 9, kind: input, shape index: {}]
  %s10 = inlined_call_operand.vmem [shape: bf16[1,32], index: 10, kind: input, shape index: {}]
  %s11 = inlined_call_operand.vmem [shape: f32[48,8], index: 11, kind: input, shape index: {}]
  %s12 = inlined_call_operand.vmem [shape: f32[48,8], index: 12, kind: input, shape index: {}]
  %s13 = inlined_call_operand.vmem [shape: f32[8,8], index: 13, kind: input, shape index: {}]
  %s14 = inlined_call_operand.vmem [shape: f32[48,48], index: 14, kind: input, shape index: {}]
  %s15 = inlined_call_operand.vmem [shape: bf16[48,32], index: 15, kind: output, shape index: {}]
  %s16 = sld [smem:[#allocation0]]
  $region70: #{forward.2} parent=0
    _
  %s18 = ssub.s32 1, %s16
  %s19 = scalar_select 0, %s18, %s16
  // Predicated region
  $region2: #{forward.2} parent=0 // pred_check
    _
  $region3: #{forward.2} parent=0 // pred_check_branch
    %21 = sbr.rel (0) target = $region5
  $region4: #{forward.2} parent=0 // pred_region
    _
  $region5: #{forward.2} parent=0 // pred_fallthru
    _
  // Predicated region
  $region6: #{forward.2} parent=0 // pred_check
    _
  $region7: #{forward.2} parent=0 // pred_check_branch
    %23 = sbr.rel (0) target = $region9
  $region8: #{forward.2} parent=0 // pred_region
    _
  $region9: #{forward.2} parent=0 // pred_fallthru
    _
  // Predicated region
  $region10: #{forward.2} parent=0 // pred_check
    _
  $region11: #{forward.2} parent=0 // pred_check_branch
    %25 = sbr.rel (0) target = $region13
  $region12: #{forward.2} parent=0 // pred_region
    _
  $region13: #{forward.2} parent=0 // pred_fallthru
    _
  // Predicated region
  $region14: #{forward.2} parent=0 // pred_check
    _
  $region15: #{forward.2} parent=0 // pred_check_branch
    %27 = sbr.rel (0) target = $region17
  $region16: #{forward.2} parent=0 // pred_region
    _
  $region17: #{forward.2} parent=0 // pred_fallthru
    _
  // Predicated region
  $region18: #{forward.2} parent=0 // pred_check
    _
  $region19: #{forward.2} parent=0 // pred_check_branch
    %29 = sbr.rel (0) target = $region21
  $region20: #{forward.2} parent=0 // pred_region
    _
  $region21: #{forward.2} parent=0 // pred_fallthru
    _
  // Predicated region
  $region22: #{forward.2} parent=0 // pred_check
    _
  $region23: #{forward.2} parent=0 // pred_check_branch
    %31 = sbr.rel (0) target = $region25
  $region24: #{forward.2} parent=0 // pred_region
    _
  $region25: #{forward.2} parent=0 // pred_fallthru
    _
  // Predicated region
  $region26: #{forward.2} parent=0 // pred_check
    _
  $region27: #{forward.2} parent=0 // pred_check_branch
    %33 = sbr.rel (0) target = $region29
  $region28: #{forward.2} parent=0 // pred_region
    _
  $region29: #{forward.2} parent=0 // pred_fallthru
    _
  // Predicated region
  $region30: #{forward.2} parent=0 // pred_check
    _
  $region31: #{forward.2} parent=0 // pred_check_branch
    %35 = sbr.rel (0) target = $region33
  $region32: #{forward.2} parent=0 // pred_region
    _
  $region33: #{forward.2} parent=0 // pred_fallthru
    _
  // Predicated region
  $region34: #{forward.2} parent=0 // pred_check
    _
  $region35: #{forward.2} parent=0 // pred_check_branch
    %37 = sbr.rel (0) target = $region37
  $region36: #{forward.2} parent=0 // pred_region
    _
  $region37: #{forward.2} parent=0 // pred_fallthru
    _
  // Predicated region
  $region38: #{forward.2} parent=0 // pred_check
    _
  $region39: #{forward.2} parent=0 // pred_check_branch
    %39 = sbr.rel (0) target = $region41
  $region40: #{forward.2} parent=0 // pred_region
    _
  $region41: #{forward.2} parent=0 // pred_fallthru
    _
  // Predicated region
  $region42: #{forward.2} parent=0 // pred_check
    _
  $region43: #{forward.2} parent=0 // pred_check_branch
    %41 = sbr.rel (0) target = $region45
  $region44: #{forward.2} parent=0 // pred_region
    _
  $region45: #{forward.2} parent=0 // pred_fallthru
    _
  // Predicated region
  $region46: #{forward.2} parent=0 // pred_check
    _
  $region47: #{forward.2} parent=0 // pred_check_branch
    %43 = sbr.rel (0) target = $region49
  $region48: #{forward.2} parent=0 // pred_region
    _
  $region49: #{forward.2} parent=0 // pred_fallthru
    _
  // Predicated region
  $region50: #{forward.2} parent=0 // pred_check
    _
  $region51: #{forward.2} parent=0 // pred_check_branch
    %45 = sbr.rel (0) target = $region53
  $region52: #{forward.2} parent=0 // pred_region
    _
  $region53: #{forward.2} parent=0 // pred_fallthru
    _
  // Predicated region
  $region54: #{forward.2} parent=0 // pred_check
    _
  $region55: #{forward.2} parent=0 // pred_check_branch
    %47 = sbr.rel (0) target = $region57
  $region56: #{forward.2} parent=0 // pred_region
    _
  $region57: #{forward.2} parent=0 // pred_fallthru
    _
  // Predicated region
  $region58: #{forward.2} parent=0 // pred_check
    _
  $region59: #{forward.2} parent=0 // pred_check_branch
    %49 = sbr.rel (0) target = $region61
  $region60: #{forward.2} parent=0 // pred_region
    _
  $region61: #{forward.2} parent=0 // pred_fallthru
    _
  %v51 = vld [vmem:[%s0] sm:$0xf]
  %v52 = vld [vmem:[%s0 + $0x4] sm:$0xf]
  %v53 = vld [vmem:[%s0 + $0x8] sm:$0xf]
  %v54 = vld [vmem:[%s0 + $0xc] sm:$0xf]
  %v55 = vld [vmem:[%s0 + $0x10] sm:$0xf]
  %v56 = vld [vmem:[%s0 + $0x14] sm:$0xf]
  %v57 = vunpack.c.l.bf16 %v51
  %v58 = vunpack.c.l.bf16 %v52
  %v59 = vunpack.c.l.bf16 %v53
  %v60 = vunpack.c.l.bf16 %v54
  %v61 = vunpack.c.l.bf16 %v55
  %v62 = vunpack.c.l.bf16 %v56
  %v63 = vld [vmem:[%s11] sm:$0xff]
  %v64 = vld [vmem:[%s11 + $0x8] sm:$0xff]
  %v65 = vld [vmem:[%s11 + $0x10] sm:$0xff]
  %v66 = vld [vmem:[%s11 + $0x18] sm:$0xff]
  %v67 = vld [vmem:[%s11 + $0x20] sm:$0xff]
  %v68 = vld [vmem:[%s11 + $0x28] sm:$0xff]
  %v69 = vld [vmem:[%s12] sm:$0xff]
  %v70 = vld [vmem:[%s12 + $0x8] sm:$0xff]
  %v71 = vld [vmem:[%s12 + $0x10] sm:$0xff]
  %v72 = vld [vmem:[%s12 + $0x18] sm:$0xff]
  %v73 = vld [vmem:[%s12 + $0x20] sm:$0xff]
  %v74 = vld [vmem:[%s12 + $0x28] sm:$0xff]
  %v75 = vld [vmem:[%s13] sm:$0xff]
  %v76 = vld [vmem:[%s14] sm:$0xff]
  %v77 = vld [vmem:[%s14 + $0x8] sm:$0xff]
  %v78 = vld [vmem:[%s14 + $0x10] sm:$0xff]
  %v79 = vld [vmem:[%s14 + $0x18] sm:$0xff]
  %v80 = vld [vmem:[%s14 + $0x20] sm:$0xff]
  %v81 = vld [vmem:[%s14 + $0x28] sm:$0xff]
  %v82 = vld [vmem:[%s8] sm:$0x1]
  %v83 = vmul.f32 %v57, %v57
  %v84 = vmul.f32 %v58, %v58
  %v85 = vmul.f32 %v59, %v59
  %v86 = vmul.f32 %v60, %v60
  %v87 = vmul.f32 %v61, %v61
  %v88 = vmul.f32 %v62, %v62
  %vm89 = vcmask 261120
  %v90 = vsel %vm89, %v83, 0.0
  %91 = vadd.xlane.f32.xlu0 %v90
  %v92 = vpop.xlane.xlu0 %91
  %v93 = vsel %vm89, %v84, 0.0
  %94 = vadd.xlane.f32.xlu0 %v93
  %v95 = vpop.xlane.xlu0 %94
  %v96 = vsel %vm89, %v85, 0.0
  %97 = vadd.xlane.f32.xlu0 %v96
  %v98 = vpop.xlane.xlu0 %97
  %v99 = vsel %vm89, %v86, 0.0
  %100 = vadd.xlane.f32.xlu0 %v99
  %v101 = vpop.xlane.xlu0 %100
  %v102 = vsel %vm89, %v87, 0.0
  %103 = vadd.xlane.f32.xlu0 %v102
  %v104 = vpop.xlane.xlu0 %103
  %v105 = vsel %vm89, %v88, 0.0
  %106 = vadd.xlane.f32.xlu0 %v105
  %v107 = vpop.xlane.xlu0 %106
  %v108 = vrcp.pop 32.0
  %v109 = vmul.f32 %v92, %v108
  %v110 = vmul.f32 %v95, %v108
  %v111 = vmul.f32 %v98, %v108
  %v112 = vmul.f32 %v101, %v108
  %v113 = vmul.f32 %v104, %v108
  %v114 = vmul.f32 %v107, %v108
  %v115 = vadd.f32 %v109, 1e-06
  %v116 = vadd.f32 %v110, 1e-06
  %v117 = vadd.f32 %v111, 1e-06
  %v118 = vadd.f32 %v112, 1e-06
  %v119 = vadd.f32 %v113, 1e-06
  %v120 = vadd.f32 %v114, 1e-06
  %v121 = vrsqrt.pop %v115
  %v122 = vrsqrt.pop %v116
  %v123 = vrsqrt.pop %v117
  %v124 = vrsqrt.pop %v118
  %v125 = vrsqrt.pop %v119
  %v126 = vrsqrt.pop %v120
  %v127 = vmul.f32 %v57, %v121
  %v128 = vmul.f32 %v58, %v122
  %v129 = vmul.f32 %v59, %v123
  %v130 = vmul.f32 %v60, %v124
  %v131 = vmul.f32 %v61, %v125
  %v132 = vmul.f32 %v62, %v126
  %v133 = vpack.c.bf16 %v128, %v127
  %v134 = vpack.c.bf16 %v130, %v129
  %v135 = vpack.c.bf16 %v132, %v131
  %v137 = vpack.i.b16 %v82, %v82
  %v139 = vlaneseq
  %v140 = vshrl.u32 %v139, 7
  %v141 = vsub.s32 0, %v140
  %v142 = vrot.slane %v137, %v141
  %v143 = vmul.bf16 %v133, %v142
  %v144 = vmul.bf16 %v134, %v142
  %v145 = vmul.bf16 %v135, %v142
  %v146 = vld [vmem:[%s1] sm:$0xf]
  %v147 = vld [vmem:[%s1 + $0x4] sm:$0xf]
  %v148 = vld [vmem:[%s1 + $0x8] sm:$0xf]
  %v149 = vld [vmem:[%s1 + $0xc] sm:$0xf]
  %v154 = vunpack.c.l.b16 %v146
  %v155 = vunpack.c.l.b16 %v147
  %v156 = vunpack.c.l.b16 %v148
  %v157 = vunpack.c.l.b16 %v149
  %v158 = vpack.c.b16 %v155, %v154
  %v159 = vpack.c.b16 %v157, %v156
  %v163 = vsel %vm89, %v143, 0
  %v166 = vsel %vm89, %v144, 0
  %v169 = vsel %vm89, %v145, 0
  %171 = vmatprep.subr.bf16.mxu0 0
  %172 = vmatpush1.bf16.msra.mxu0 %v158
  %173 = vmatprep.subr.bf16.mxu0 0
  %174 = vmatpush1.bf16.msra.mxu0 %v159
  %175 = vmatprep.subr.bf16.mxu0 0
  %176 = vmatpush1.bf16.msra.mxu0 0
  %177 = vmatprep.subr.bf16.mxu0 0
  %178 = vmatpush1.bf16.msra.mxu0 0
  %179 = vmatprep.subr.bf16.mxu0 0
  %180 = vmatpush1.bf16.msra.mxu0 0
  %181 = vmatprep.subr.bf16.mxu0 0
  %182 = vmatpush1.bf16.msra.mxu0 0
  %183 = vmatprep.subr.bf16.mxu0 0
  %184 = vmatpush1.bf16.msra.mxu0 0
  %185 = vmatprep.subr.bf16.mxu0 0
  %186 = vmatpush1.bf16.msra.mxu0 0
  %187 = vmatprep.subr.bf16.mxu0 0
  %188 = vmatpush1.bf16.msra.mxu0 0
  %189 = vmatprep.subr.bf16.mxu0 0
  %190 = vmatpush1.bf16.msra.mxu0 0
  %191 = vmatprep.subr.bf16.mxu0 0
  %192 = vmatpush1.bf16.msra.mxu0 0
  %193 = vmatprep.subr.bf16.mxu0 0
  %194 = vmatpush1.bf16.msra.mxu0 0
  %195 = vmatprep.subr.bf16.mxu0 0
  %196 = vmatpush1.bf16.msra.mxu0 0
  %197 = vmatprep.subr.bf16.mxu0 0
  %198 = vmatpush1.bf16.msra.mxu0 0
  %199 = vmatprep.subr.bf16.mxu0 0
  %200 = vmatpush1.bf16.msra.mxu0 0
  %201 = vmatprep.subr.bf16.mxu0 0
  %202 = vmatpush1.bf16.msra.mxu0 0
  %203 = vmatprep.mubr.bf16.mxu0 0
  %204 = vmatmul.mubr.bf16.gmra.mrb[0].mxu0 %v163
  %v205 = vpop.f32.mrb[0].mxu0
  %v206 = vadd.f32 0.0, %v205
  %v207 = vpop.f32.mrb[0].mxu0
  %v208 = vpop.f32.mrb[0].mxu0
  %v209 = vadd.f32 0.0, %v208
  %v210 = vpop.f32.mrb[0].mxu0
  %211 = vmatprep.mubr.bf16.mxu0 0
  %212 = vmatmul.mubr.bf16.gmra.mrb[0].mxu0 %v166
  %v213 = vpop.f32.mrb[0].mxu0
  %v214 = vadd.f32 0.0, %v213
  %v215 = vpop.f32.mrb[0].mxu0
  %v216 = vpop.f32.mrb[0].mxu0
  %v217 = vadd.f32 0.0, %v216
  %v218 = vpop.f32.mrb[0].mxu0
  %219 = vmatprep.mubr.bf16.mxu0 0
  %220 = vmatmul.mubr.bf16.gmra.mrb[0].mxu0 %v169
  %v221 = vpop.f32.mrb[0].mxu0
  %v222 = vadd.f32 0.0, %v221
  %v223 = vpop.f32.mrb[0].mxu0
  %v224 = vpop.f32.mrb[0].mxu0
  %v225 = vadd.f32 0.0, %v224
  %v226 = vpop.f32.mrb[0].mxu0
  %227 = vdwg.mxu0
  %v228 = vld [vmem:[%s2] sm:$0xf]
  %v229 = vld [vmem:[%s2 + $0x4] sm:$0xf]
  %v230 = vld [vmem:[%s2 + $0x8] sm:$0xf]
  %v231 = vld [vmem:[%s2 + $0xc] sm:$0xf]
  %v236 = vunpack.c.l.b16 %v228
  %v237 = vunpack.c.l.b16 %v229
  %v238 = vunpack.c.l.b16 %v230
  %v239 = vunpack.c.l.b16 %v231
  %v240 = vpack.c.b16 %v237, %v236
  %v241 = vpack.c.b16 %v239, %v238
  %244 = vmatprep.subr.bf16.mxu0 0
  %245 = vmatpush1.bf16.msra.mxu0 %v240
  %246 = vmatprep.subr.bf16.mxu0 0
  %247 = vmatpush1.bf16.msra.mxu0 %v241
  %248 = vmatprep.subr.bf16.mxu0 0
  %249 = vmatpush1.bf16.msra.mxu0 0
  %250 = vmatprep.subr.bf16.mxu0 0
  %251 = vmatpush1.bf16.msra.mxu0 0
  %252 = vmatprep.subr.bf16.mxu0 0
  %253 = vmatpush1.bf16.msra.mxu0 0
  %254 = vmatprep.subr.bf16.mxu0 0
  %255 = vmatpush1.bf16.msra.mxu0 0
  %256 = vmatprep.subr.bf16.mxu0 0
  %257 = vmatpush1.bf16.msra.mxu0 0
  %258 = vmatprep.subr.bf16.mxu0 0
  %259 = vmatpush1.bf16.msra.mxu0 0
  %260 = vmatprep.subr.bf16.mxu0 0
  %261 = vmatpush1.bf16.msra.mxu0 0
  %262 = vmatprep.subr.bf16.mxu0 0
  %263 = vmatpush1.bf16.msra.mxu0 0
  %264 = vmatprep.subr.bf16.mxu0 0
  %265 = vmatpush1.bf16.msra.mxu0 0
  %266 = vmatprep.subr.bf16.mxu0 0
  %267 = vmatpush1.bf16.msra.mxu0 0
  %268 = vmatprep.subr.bf16.mxu0 0
  %269 = vmatpush1.bf16.msra.mxu0 0
  %270 = vmatprep.subr.bf16.mxu0 0
  %271 = vmatpush1.bf16.msra.mxu0 0
  %272 = vmatprep.subr.bf16.mxu0 0
  %273 = vmatpush1.bf16.msra.mxu0 0
  %274 = vmatprep.subr.bf16.mxu0 0
  %275 = vmatpush1.bf16.msra.mxu0 0
  %276 = vmatprep.mubr.bf16.mxu0 0
  %277 = vmatmul.mubr.bf16.gmra.mrb[0].mxu0 %v163
  %v278 = vpop.f32.mrb[0].mxu0
  %v279 = vadd.f32 0.0, %v278
  %v280 = vpop.f32.mrb[0].mxu0
  %v281 = vpop.f32.mrb[0].mxu0
  %v282 = vadd.f32 0.0, %v281
  %v283 = vpop.f32.mrb[0].mxu0
  %284 = vmatprep.mubr.bf16.mxu0 0
  %285 = vmatmul.mubr.bf16.gmra.mrb[0].mxu0 %v166
  %v286 = vpop.f32.mrb[0].mxu0
  %v287 = vadd.f32 0.0, %v286
  %v288 = vpop.f32.mrb[0].mxu0
  %v289 = vpop.f32.mrb[0].mxu0
  %v290 = vadd.f32 0.0, %v289
  %v291 = vpop.f32.mrb[0].mxu0
  %292 = vmatprep.mubr.bf16.mxu0 0
  %293 = vmatmul.mubr.bf16.gmra.mrb[0].mxu0 %v169
  %v294 = vpop.f32.mrb[0].mxu0
  %v295 = vadd.f32 0.0, %v294
  %v296 = vpop.f32.mrb[0].mxu0
  %v297 = vpop.f32.mrb[0].mxu0
  %v298 = vadd.f32 0.0, %v297
  %v299 = vpop.f32.mrb[0].mxu0
  %300 = vdwg.mxu0
  %v301 = vld [vmem:[%s3] sm:$0xf]
  %v302 = vld [vmem:[%s3 + $0x4] sm:$0xf]
  %v303 = vld [vmem:[%s3 + $0x8] sm:$0xf]
  %v304 = vld [vmem:[%s3 + $0xc] sm:$0xf]
  %v309 = vunpack.c.l.b16 %v301
  %v310 = vunpack.c.l.b16 %v302
  %v311 = vunpack.c.l.b16 %v303
  %v312 = vunpack.c.l.b16 %v304
  %v313 = vpack.c.b16 %v310, %v309
  %v314 = vpack.c.b16 %v312, %v311
  %317 = vmatprep.subr.bf16.mxu0 0
  %318 = vmatpush1.bf16.msra.mxu0 %v313
  %319 = vmatprep.subr.bf16.mxu0 0
  %320 = vmatpush1.bf16.msra.mxu0 %v314
  %321 = vmatprep.subr.bf16.mxu0 0
  %322 = vmatpush1.bf16.msra.mxu0 0
  %323 = vmatprep.subr.bf16.mxu0 0
  %324 = vmatpush1.bf16.msra.mxu0 0
  %325 = vmatprep.subr.bf16.mxu0 0
  %326 = vmatpush1.bf16.msra.mxu0 0
  %327 = vmatprep.subr.bf16.mxu0 0
  %328 = vmatpush1.bf16.msra.mxu0 0
  %329 = vmatprep.subr.bf16.mxu0 0
  %330 = vmatpush1.bf16.msra.mxu0 0
  %331 = vmatprep.subr.bf16.mxu0 0
  %332 = vmatpush1.bf16.msra.mxu0 0
  %333 = vmatprep.subr.bf16.mxu0 0
  %334 = vmatpush1.bf16.msra.mxu0 0
  %335 = vmatprep.subr.bf16.mxu0 0
  %336 = vmatpush1.bf16.msra.mxu0 0
  %337 = vmatprep.subr.bf16.mxu0 0
  %338 = vmatpush1.bf16.msra.mxu0 0
  %339 = vmatprep.subr.bf16.mxu0 0
  %340 = vmatpush1.bf16.msra.mxu0 0
  %341 = vmatprep.subr.bf16.mxu0 0
  %342 = vmatpush1.bf16.msra.mxu0 0
  %343 = vmatprep.subr.bf16.mxu0 0
  %344 = vmatpush1.bf16.msra.mxu0 0
  %345 = vmatprep.subr.bf16.mxu0 0
  %346 = vmatpush1.bf16.msra.mxu0 0
  %347 = vmatprep.subr.bf16.mxu0 0
  %348 = vmatpush1.bf16.msra.mxu0 0
  %349 = vmatprep.mubr.bf16.mxu0 0
  %350 = vmatmul.mubr.bf16.gmra.mrb[0].mxu0 %v163
  %v351 = vpop.f32.mrb[0].mxu0
  %v352 = vadd.f32 0.0, %v351
  %v353 = vpop.f32.mrb[0].mxu0
  %v354 = vpop.f32.mrb[0].mxu0
  %v355 = vadd.f32 0.0, %v354
  %v356 = vpop.f32.mrb[0].mxu0
  %357 = vmatprep.mubr.bf16.mxu0 0
  %358 = vmatmul.mubr.bf16.gmra.mrb[0].mxu0 %v166
  %v359 = vpop.f32.mrb[0].mxu0
  %v360 = vadd.f32 0.0, %v359
  %v361 = vpop.f32.mrb[0].mxu0
  %v362 = vpop.f32.mrb[0].mxu0
  %v363 = vadd.f32 0.0, %v362
  %v364 = vpop.f32.mrb[0].mxu0
  %365 = vmatprep.mubr.bf16.mxu0 0
  %366 = vmatmul.mubr.bf16.gmra.mrb[0].mxu0 %v169
  %v367 = vpop.f32.mrb[0].mxu0
  %v368 = vadd.f32 0.0, %v367
  %v369 = vpop.f32.mrb[0].mxu0
  %v370 = vpop.f32.mrb[0].mxu0
  %v371 = vadd.f32 0.0, %v370
  %v372 = vpop.f32.mrb[0].mxu0
  %373 = vdwg.mxu0
  %v374 = vmul.f32 %v206, %v63
  %v375 = vmul.f32 %v209, %v64
  %v376 = vmul.f32 %v214, %v65
  %v377 = vmul.f32 %v217, %v66
  %v378 = vmul.f32 %v222, %v67
  %v379 = vmul.f32 %v225, %v68
  %vm380 = vcmask 64512
  %v382 = vsel %vm380, %v206, 0
  %v385 = vsel %vm380, %v209, 0
  %v388 = vsel %vm380, %v214, 0
  %v391 = vsel %vm380, %v217, 0
  %v394 = vsel %vm380, %v222, 0
  %v397 = vsel %vm380, %v225, 0
  %399 = vmatprep.subr.mxu0 0.0
  %400 = vmatpush1.msra.mxu0 %v75
  %401 = vmatprep.subr.mxu0 0.0
  %402 = vmatpush1.msra.mxu0 0.0
  %403 = vmatprep.subr.mxu0 0.0
  %404 = vmatpush1.msra.mxu0 0.0
  %405 = vmatprep.subr.mxu0 0.0
  %406 = vmatpush1.msra.mxu0 0.0
  %407 = vmatprep.subr.mxu0 0.0
  %408 = vmatpush1.msra.mxu0 0.0
  %409 = vmatprep.subr.mxu0 0.0
  %410 = vmatpush1.msra.mxu0 0.0
  %411 = vmatprep.subr.mxu0 0.0
  %412 = vmatpush1.msra.mxu0 0.0
  %413 = vmatprep.subr.mxu0 0.0
  %414 = vmatpush1.msra.mxu0 0.0
  %415 = vmatprep.subr.mxu0 0.0
  %416 = vmatpush1.msra.mxu0 0.0
  %417 = vmatprep.subr.mxu0 0.0
  %418 = vmatpush1.msra.mxu0 0.0
  %419 = vmatprep.subr.mxu0 0.0
  %420 = vmatpush1.msra.mxu0 0.0
  %421 = vmatprep.subr.mxu0 0.0
  %422 = vmatpush1.msra.mxu0 0.0
  %423 = vmatprep.subr.mxu0 0.0
  %424 = vmatpush1.msra.mxu0 0.0
  %425 = vmatprep.subr.mxu0 0.0
  %426 = vmatpush1.msra.mxu0 0.0
  %427 = vmatprep.subr.mxu0 0.0
  %428 = vmatpush1.msra.mxu0 0.0
  %429 = vmatprep.subr.mxu0 0.0
  %430 = vmatpush1.msra.mxu0 0.0
  %431 = vmatprep.subr.mxu0 0.0
  %432 = vmatpush1.msra.mxu0 0.0
  %433 = vmatprep.subr.mxu0 0.0
  %434 = vmatpush1.msra.mxu0 0.0
  %435 = vmatprep.subr.mxu0 0.0
  %436 = vmatpush1.msra.mxu0 0.0
  %437 = vmatprep.subr.mxu0 0.0
  %438 = vmatpush1.msra.mxu0 0.0
  %439 = vmatprep.subr.mxu0 0.0
  %440 = vmatpush1.msra.mxu0 0.0
  %441 = vmatprep.subr.mxu0 0.0
  %442 = vmatpush1.msra.mxu0 0.0
  %443 = vmatprep.subr.mxu0 0.0
  %444 = vmatpush1.msra.mxu0 0.0
  %445 = vmatprep.subr.mxu0 0.0
  %446 = vmatpush1.msra.mxu0 0.0
  %447 = vmatprep.subr.mxu0 0.0
  %448 = vmatpush1.msra.mxu0 0.0
  %449 = vmatprep.subr.mxu0 0.0
  %450 = vmatpush1.msra.mxu0 0.0
  %451 = vmatprep.subr.mxu0 0.0
  %452 = vmatpush1.msra.mxu0 0.0
  %453 = vmatprep.subr.mxu0 0.0
  %454 = vmatpush1.msra.mxu0 0.0
  %455 = vmatprep.subr.mxu0 0.0
  %456 = vmatpush1.msra.mxu0 0.0
  %457 = vmatprep.subr.mxu0 0.0
  %458 = vmatpush1.msra.mxu0 0.0
  %459 = vmatprep.subr.mxu0 0.0
  %460 = vmatpush1.msra.mxu0 0.0
  %461 = vmatprep.subr.mxu0 0.0
  %462 = vmatpush1.msra.mxu0 0.0
  %463 = vmatprep.mubr.f32.mxu0 0.0
  %464 = vmatmul.mubr.f32.gmra.mrb[0].mxu0 %v382
  %v465 = vpop.f32.mrb[0].mxu0
  %v466 = vadd.f32 0.0, %v465
  %v467 = vpop.f32.mrb[0].mxu0
  %468 = vmatprep.mubr.f32.mxu0 0.0
  %469 = vmatmul.mubr.f32.gmra.mrb[0].mxu0 %v385
  %v470 = vpop.f32.mrb[0].mxu0
  %v471 = vadd.f32 0.0, %v470
  %v472 = vpop.f32.mrb[0].mxu0
  %473 = vmatprep.mubr.f32.mxu0 0.0
  %474 = vmatmul.mubr.f32.gmra.mrb[0].mxu0 %v388
  %v475 = vpop.f32.mrb[0].mxu0
  %v476 = vadd.f32 0.0, %v475
  %v477 = vpop.f32.mrb[0].mxu0
  %478 = vmatprep.mubr.f32.mxu0 0.0
  %479 = vmatmul.mubr.f32.gmra.mrb[0].mxu0 %v391
  %v480 = vpop.f32.mrb[0].mxu0
  %v481 = vadd.f32 0.0, %v480
  %v482 = vpop.f32.mrb[0].mxu0
  %483 = vmatprep.mubr.f32.mxu0 0.0
  %484 = vmatmul.mubr.f32.gmra.mrb[0].mxu0 %v394
  %v485 = vpop.f32.mrb[0].mxu0
  %v486 = vadd.f32 0.0, %v485
  %v487 = vpop.f32.mrb[0].mxu0
  %488 = vmatprep.mubr.f32.mxu0 0.0
  %489 = vmatmul.mubr.f32.gmra.mrb[0].mxu0 %v397
  %v490 = vpop.f32.mrb[0].mxu0
  %v491 = vadd.f32 0.0, %v490
  %v492 = vpop.f32.mrb[0].mxu0
  %493 = vdwg.mxu0
  %v494 = vmul.f32 %v466, %v69
  %v495 = vmul.f32 %v471, %v70
  %v496 = vmul.f32 %v476, %v71
  %v497 = vmul.f32 %v481, %v72
  %v498 = vmul.f32 %v486, %v73
  %v499 = vmul.f32 %v491, %v74
  %v500 = vadd.f32 %v374, %v494
  %v501 = vadd.f32 %v375, %v495
  %v502 = vadd.f32 %v376, %v496
  %v503 = vadd.f32 %v377, %v497
  %v504 = vadd.f32 %v378, %v498
  %v505 = vadd.f32 %v379, %v499
  %v506 = vmul.f32 %v279, %v63
  %v507 = vmul.f32 %v282, %v64
  %v508 = vmul.f32 %v287, %v65
  %v509 = vmul.f32 %v290, %v66
  %v510 = vmul.f32 %v295, %v67
  %v511 = vmul.f32 %v298, %v68
  %v513 = vsel %vm380, %v279, 0
  %v516 = vsel %vm380, %v282, 0
  %v519 = vsel %vm380, %v287, 0
  %v522 = vsel %vm380, %v290, 0
  %v525 = vsel %vm380, %v295, 0
  %v528 = vsel %vm380, %v298, 0
  %530 = vmatprep.subr.mxu0 0.0
  %531 = vmatpush1.msra.mxu0 %v75
  %532 = vmatprep.subr.mxu0 0.0
  %533 = vmatpush1.msra.mxu0 0.0
  %534 = vmatprep.subr.mxu0 0.0
  %535 = vmatpush1.msra.mxu0 0.0
  %536 = vmatprep.subr.mxu0 0.0
  %537 = vmatpush1.msra.mxu0 0.0
  %538 = vmatprep.subr.mxu0 0.0
  %539 = vmatpush1.msra.mxu0 0.0
  %540 = vmatprep.subr.mxu0 0.0
  %541 = vmatpush1.msra.mxu0 0.0
  %542 = vmatprep.subr.mxu0 0.0
  %543 = vmatpush1.msra.mxu0 0.0
  %544 = vmatprep.subr.mxu0 0.0
  %545 = vmatpush1.msra.mxu0 0.0
  %546 = vmatprep.subr.mxu0 0.0
  %547 = vmatpush1.msra.mxu0 0.0
  %548 = vmatprep.subr.mxu0 0.0
  %549 = vmatpush1.msra.mxu0 0.0
  %550 = vmatprep.subr.mxu0 0.0
  %551 = vmatpush1.msra.mxu0 0.0
  %552 = vmatprep.subr.mxu0 0.0
  %553 = vmatpush1.msra.mxu0 0.0
  %554 = vmatprep.subr.mxu0 0.0
  %555 = vmatpush1.msra.mxu0 0.0
  %556 = vmatprep.subr.mxu0 0.0
  %557 = vmatpush1.msra.mxu0 0.0
  %558 = vmatprep.subr.mxu0 0.0
  %559 = vmatpush1.msra.mxu0 0.0
  %560 = vmatprep.subr.mxu0 0.0
  %561 = vmatpush1.msra.mxu0 0.0
  %562 = vmatprep.subr.mxu0 0.0
  %563 = vmatpush1.msra.mxu0 0.0
  %564 = vmatprep.subr.mxu0 0.0
  %565 = vmatpush1.msra.mxu0 0.0
  %566 = vmatprep.subr.mxu0 0.0
  %567 = vmatpush1.msra.mxu0 0.0
  %568 = vmatprep.subr.mxu0 0.0
  %569 = vmatpush1.msra.mxu0 0.0
  %570 = vmatprep.subr.mxu0 0.0
  %571 = vmatpush1.msra.mxu0 0.0
  %572 = vmatprep.subr.mxu0 0.0
  %573 = vmatpush1.msra.mxu0 0.0
  %574 = vmatprep.subr.mxu0 0.0
  %575 = vmatpush1.msra.mxu0 0.0
  %576 = vmatprep.subr.mxu0 0.0
  %577 = vmatpush1.msra.mxu0 0.0
  %578 = vmatprep.subr.mxu0 0.0
  %579 = vmatpush1.msra.mxu0 0.0
  %580 = vmatprep.subr.mxu0 0.0
  %581 = vmatpush1.msra.mxu0 0.0
  %582 = vmatprep.subr.mxu0 0.0
  %583 = vmatpush1.msra.mxu0 0.0
  %584 = vmatprep.subr.mxu0 0.0
  %585 = vmatpush1.msra.mxu0 0.0
  %586 = vmatprep.subr.mxu0 0.0
  %587 = vmatpush1.msra.mxu0 0.0
  %588 = vmatprep.subr.mxu0 0.0
  %589 = vmatpush1.msra.mxu0 0.0
  %590 = vmatprep.subr.mxu0 0.0
  %591 = vmatpush1.msra.mxu0 0.0
  %592 = vmatprep.subr.mxu0 0.0
  %593 = vmatpush1.msra.mxu0 0.0
  %594 = vmatprep.mubr.f32.mxu0 0.0
  %595 = vmatmul.mubr.f32.gmra.mrb[0].mxu0 %v513
  %v596 = vpop.f32.mrb[0].mxu0
  %v597 = vadd.f32 0.0, %v596
  %v598 = vpop.f32.mrb[0].mxu0
  %599 = vmatprep.mubr.f32.mxu0 0.0
  %600 = vmatmul.mubr.f32.gmra.mrb[0].mxu0 %v516
  %v601 = vpop.f32.mrb[0].mxu0
  %v602 = vadd.f32 0.0, %v601
  %v603 = vpop.f32.mrb[0].mxu0
  %604 = vmatprep.mubr.f32.mxu0 0.0
  %605 = vmatmul.mubr.f32.gmra.mrb[0].mxu0 %v519
  %v606 = vpop.f32.mrb[0].mxu0
  %v607 = vadd.f32 0.0, %v606
  %v608 = vpop.f32.mrb[0].mxu0
  %609 = vmatprep.mubr.f32.mxu0 0.0
  %610 = vmatmul.mubr.f32.gmra.mrb[0].mxu0 %v522
  %v611 = vpop.f32.mrb[0].mxu0
  %v612 = vadd.f32 0.0, %v611
  %v613 = vpop.f32.mrb[0].mxu0
  %614 = vmatprep.mubr.f32.mxu0 0.0
  %615 = vmatmul.mubr.f32.gmra.mrb[0].mxu0 %v525
  %v616 = vpop.f32.mrb[0].mxu0
  %v617 = vadd.f32 0.0, %v616
  %v618 = vpop.f32.mrb[0].mxu0
  %619 = vmatprep.mubr.f32.mxu0 0.0
  %620 = vmatmul.mubr.f32.gmra.mrb[0].mxu0 %v528
  %v621 = vpop.f32.mrb[0].mxu0
  %v622 = vadd.f32 0.0, %v621
  %v623 = vpop.f32.mrb[0].mxu0
  %624 = vdwg.mxu0
  %v625 = vmul.f32 %v597, %v69
  %v626 = vmul.f32 %v602, %v70
  %v627 = vmul.f32 %v607, %v71
  %v628 = vmul.f32 %v612, %v72
  %v629 = vmul.f32 %v617, %v73
  %v630 = vmul.f32 %v622, %v74
  %v631 = vadd.f32 %v506, %v625
  %v632 = vadd.f32 %v507, %v626
  %v633 = vadd.f32 %v508, %v627
  %v634 = vadd.f32 %v509, %v628
  %v635 = vadd.f32 %v510, %v629
  %v636 = vadd.f32 %v511, %v630
  %v638 = vsel %vm380, %v500, 0
  %v641 = vsel %vm380, %v501, 0
  %v644 = vsel %vm380, %v502, 0
  %v647 = vsel %vm380, %v503, 0
  %v650 = vsel %vm380, %v504, 0
  %v653 = vsel %vm380, %v505, 0
  %v656 = vsel %vm380, %v631, 0
  %v659 = vsel %vm380, %v632, 0
  %v662 = vsel %vm380, %v633, 0
  %v665 = vsel %vm380, %v634, 0
  %v668 = vsel %vm380, %v635, 0
  %v671 = vsel %vm380, %v636, 0
  %673 = vmatprep.subr.mxu0 0.0
  %674 = vmatpush1.xpose.msra.mxu0 %v656
  %675 = vmatprep.subr.mxu0 0.0
  %676 = vmatpush1.xpose.msra.mxu0 %v659
  %677 = vmatprep.subr.mxu0 0.0
  %678 = vmatpush1.xpose.msra.mxu0 %v662
  %679 = vmatprep.subr.mxu0 0.0
  %680 = vmatpush1.xpose.msra.mxu0 %v665
  %681 = vmatprep.subr.mxu0 0.0
  %682 = vmatpush1.xpose.msra.mxu0 %v668
  %683 = vmatprep.subr.mxu0 0.0
  %684 = vmatpush1.xpose.msra.mxu0 %v671
  %685 = vmatprep.subr.mxu0 0.0
  %686 = vmatpush1.xpose.msra.mxu0 0.0
  %687 = vmatprep.subr.mxu0 0.0
  %688 = vmatpush1.xpose.msra.mxu0 0.0
  %689 = vmatprep.subr.mxu0 0.0
  %690 = vmatpush1.xpose.msra.mxu0 0.0
  %691 = vmatprep.subr.mxu0 0.0
  %692 = vmatpush1.xpose.msra.mxu0 0.0
  %693 = vmatprep.subr.mxu0 0.0
  %694 = vmatpush1.xpose.msra.mxu0 0.0
  %695 = vmatprep.subr.mxu0 0.0
  %696 = vmatpush1.xpose.msra.mxu0 0.0
  %697 = vmatprep.subr.mxu0 0.0
  %698 = vmatpush1.xpose.msra.mxu0 0.0
  %699 = vmatprep.subr.mxu0 0.0
  %700 = vmatpush1.xpose.msra.mxu0 0.0
  %701 = vmatprep.subr.mxu0 0.0
  %702 = vmatpush1.xpose.msra.mxu0 0.0
  %703 = vmatprep.subr.mxu0 0.0
  %704 = vmatpush1.xpose.msra.mxu0 0.0
  %705 = vmatprep.subr.mxu0 0.0
  %706 = vmatpush1.xpose.msra.mxu0 0.0
  %707 = vmatprep.subr.mxu0 0.0
  %708 = vmatpush1.xpose.msra.mxu0 0.0
  %709 = vmatprep.subr.mxu0 0.0
  %710 = vmatpush1.xpose.msra.mxu0 0.0
  %711 = vmatprep.subr.mxu0 0.0
  %712 = vmatpush1.xpose.msra.mxu0 0.0
  %713 = vmatprep.subr.mxu0 0.0
  %714 = vmatpush1.xpose.msra.mxu0 0.0
  %715 = vmatprep.subr.mxu0 0.0
  %716 = vmatpush1.xpose.msra.mxu0 0.0
  %717 = vmatprep.subr.mxu0 0.0
  %718 = vmatpush1.xpose.msra.mxu0 0.0
  %719 = vmatprep.subr.mxu0 0.0
  %720 = vmatpush1.xpose.msra.mxu0 0.0
  %721 = vmatprep.subr.mxu0 0.0
  %722 = vmatpush1.xpose.msra.mxu0 0.0
  %723 = vmatprep.subr.mxu0 0.0
  %724 = vmatpush1.xpose.msra.mxu0 0.0
  %725 = vmatprep.subr.mxu0 0.0
  %726 = vmatpush1.xpose.msra.mxu0 0.0
  %727 = vmatprep.subr.mxu0 0.0
  %728 = vmatpush1.xpose.msra.mxu0 0.0
  %729 = vmatprep.subr.mxu0 0.0
  %730 = vmatpush1.xpose.msra.mxu0 0.0
  %731 = vmatprep.subr.mxu0 0.0
  %732 = vmatpush1.xpose.msra.mxu0 0.0
  %733 = vmatprep.subr.mxu0 0.0
  %734 = vmatpush1.xpose.msra.mxu0 0.0
  %735 = vmatprep.subr.mxu0 0.0
  %736 = vmatpush1.xpose.msra.mxu0 0.0
  %737 = vmatprep.mubr.f32.mxu0 0.0
  %738 = vmatmul.mubr.f32.gmra.mrb[0].mxu0 %v638
  %v739 = vpop.f32.mrb[0].mxu0
  %v740 = vadd.f32 0.0, %v739
  %v741 = vpop.f32.mrb[0].mxu0
  %742 = vmatprep.mubr.f32.mxu0 0.0
  %743 = vmatmul.mubr.f32.gmra.mrb[0].mxu0 %v641
  %v744 = vpop.f32.mrb[0].mxu0
  %v745 = vadd.f32 0.0, %v744
  %v746 = vpop.f32.mrb[0].mxu0
  %747 = vmatprep.mubr.f32.mxu0 0.0
  %748 = vmatmul.mubr.f32.gmra.mrb[0].mxu0 %v644
  %v749 = vpop.f32.mrb[0].mxu0
  %v750 = vadd.f32 0.0, %v749
  %v751 = vpop.f32.mrb[0].mxu0
  %752 = vmatprep.mubr.f32.mxu0 0.0
  %753 = vmatmul.mubr.f32.gmra.mrb[0].mxu0 %v647
  %v754 = vpop.f32.mrb[0].mxu0
  %v755 = vadd.f32 0.0, %v754
  %v756 = vpop.f32.mrb[0].mxu0
  %757 = vmatprep.mubr.f32.mxu0 0.0
  %758 = vmatmul.mubr.f32.gmra.mrb[0].mxu0 %v650
  %v759 = vpop.f32.mrb[0].mxu0
  %v760 = vadd.f32 0.0, %v759
  %v761 = vpop.f32.mrb[0].mxu0
  %762 = vmatprep.mubr.f32.mxu0 0.0
  %763 = vmatmul.mubr.f32.gmra.mrb[0].mxu0 %v653
  %v764 = vpop.f32.mrb[0].mxu0
  %v765 = vadd.f32 0.0, %v764
  %v766 = vpop.f32.mrb[0].mxu0
  %767 = vdwg.mxu0
  %v768 = vmul.f32 %v740, 0.35355338
  %v769 = vmul.f32 %v745, 0.35355338
  %v770 = vmul.f32 %v750, 0.35355338
  %v771 = vmul.f32 %v755, 0.35355338
  %v772 = vmul.f32 %v760, 0.35355338
  %v773 = vmul.f32 %v765, 0.35355338
  %v774 = vadd.f32 %v768, %v76
  %v775 = vadd.f32 %v769, %v77
  %v776 = vadd.f32 %v770, %v78
  %v777 = vadd.f32 %v771, %v79
  %v778 = vadd.f32 %v772, %v80
  %v779 = vadd.f32 %v773, %v81
  %vm780 = vcmask 392192
  %v781 = vsel %vm780, %v774, -inf
  %782 = vmax.xlane.f32.xlu0 %v781
  %v783 = vpop.xlane.xlu0 %782
  %v784 = vsel %vm780, %v775, -inf
  %785 = vmax.xlane.f32.xlu0 %v784
  %v786 = vpop.xlane.xlu0 %785
  %v787 = vsel %vm780, %v776, -inf
  %788 = vmax.xlane.f32.xlu0 %v787
  %v789 = vpop.xlane.xlu0 %788
  %v790 = vsel %vm780, %v777, -inf
  %791 = vmax.xlane.f32.xlu0 %v790
  %v792 = vpop.xlane.xlu0 %791
  %v793 = vsel %vm780, %v778, -inf
  %794 = vmax.xlane.f32.xlu0 %v793
  %v795 = vpop.xlane.xlu0 %794
  %v796 = vsel %vm780, %v779, -inf
  %797 = vmax.xlane.f32.xlu0 %v796
  %v798 = vpop.xlane.xlu0 %797
  %v799 = vsub.f32 %v774, %v783
  %v800 = vsub.f32 %v775, %v786
  %v801 = vsub.f32 %v776, %v789
  %v802 = vsub.f32 %v777, %v792
  %v803 = vsub.f32 %v778, %v795
  %v804 = vsub.f32 %v779, %v798
  %v805 = vmul.f32 %v799, 1.442695
  %v806 = vpow.pop %v805
  %v807 = vmul.f32 %v800, 1.442695
  %v808 = vpow.pop %v807
  %v809 = vmul.f32 %v801, 1.442695
  %v810 = vpow.pop %v809
  %v811 = vmul.f32 %v802, 1.442695
  %v812 = vpow.pop %v811
  %v813 = vmul.f32 %v803, 1.442695
  %v814 = vpow.pop %v813
  %v815 = vmul.f32 %v804, 1.442695
  %v816 = vpow.pop %v815
  %v817 = vsel %vm780, %v806, 0.0
  %818 = vadd.xlane.f32.xlu0 %v817
  %v819 = vpop.xlane.xlu0 %818
  %v820 = vsel %vm780, %v808, 0.0
  %821 = vadd.xlane.f32.xlu0 %v820
  %v822 = vpop.xlane.xlu0 %821
  %v823 = vsel %vm780, %v810, 0.0
  %824 = vadd.xlane.f32.xlu0 %v823
  %v825 = vpop.xlane.xlu0 %824
  %v826 = vsel %vm780, %v812, 0.0
  %827 = vadd.xlane.f32.xlu0 %v826
  %v828 = vpop.xlane.xlu0 %827
  %v829 = vsel %vm780, %v814, 0.0
  %830 = vadd.xlane.f32.xlu0 %v829
  %v831 = vpop.xlane.xlu0 %830
  %v832 = vsel %vm780, %v816, 0.0
  %833 = vadd.xlane.f32.xlu0 %v832
  %v834 = vpop.xlane.xlu0 %833
  %v835 = vrcp.pop %v819
  %v836 = vmul.f32 %v806, %v835
  %v837 = vrcp.pop %v822
  %v838 = vmul.f32 %v808, %v837
  %v839 = vrcp.pop %v825
  %v840 = vmul.f32 %v810, %v839
  %v841 = vrcp.pop %v828
  %v842 = vmul.f32 %v812, %v841
  %v843 = vrcp.pop %v831
  %v844 = vmul.f32 %v814, %v843
  %v845 = vrcp.pop %v834
  %v846 = vmul.f32 %v816, %v845
  %v847 = vpack.c.bf16 %v838, %v836
  %v848 = vpack.c.bf16 %v842, %v840
  %v849 = vpack.c.bf16 %v846, %v844
  %v850 = vpack.c.bf16 %v355, %v352
  %v851 = vpack.c.bf16 %v363, %v360
  %v852 = vpack.c.bf16 %v371, %v368
  %v854 = vsel %vm780, %v847, 0
  %v857 = vsel %vm780, %v848, 0
  %v860 = vsel %vm780, %v849, 0
  %862 = vmatprep.subr.bf16.mxu0 0
  %863 = vmatpush1.bf16.msra.mxu0 %v850
  %864 = vmatprep.subr.bf16.mxu0 0
  %865 = vmatpush1.bf16.msra.mxu0 %v851
  %866 = vmatprep.subr.bf16.mxu0 0
  %867 = vmatpush1.bf16.msra.mxu0 %v852
  %868 = vmatprep.subr.bf16.mxu0 0
  %869 = vmatpush1.bf16.msra.mxu0 0
  %870 = vmatprep.subr.bf16.mxu0 0
  %871 = vmatpush1.bf16.msra.mxu0 0
  %872 = vmatprep.subr.bf16.mxu0 0
  %873 = vmatpush1.bf16.msra.mxu0 0
  %874 = vmatprep.subr.bf16.mxu0 0
  %875 = vmatpush1.bf16.msra.mxu0 0
  %876 = vmatprep.subr.bf16.mxu0 0
  %877 = vmatpush1.bf16.msra.mxu0 0
  %878 = vmatprep.subr.bf16.mxu0 0
  %879 = vmatpush1.bf16.msra.mxu0 0
  %880 = vmatprep.subr.bf16.mxu0 0
  %881 = vmatpush1.bf16.msra.mxu0 0
  %882 = vmatprep.subr.bf16.mxu0 0
  %883 = vmatpush1.bf16.msra.mxu0 0
  %884 = vmatprep.subr.bf16.mxu0 0
  %885 = vmatpush1.bf16.msra.mxu0 0
  %886 = vmatprep.subr.bf16.mxu0 0
  %887 = vmatpush1.bf16.msra.mxu0 0
  %888 = vmatprep.subr.bf16.mxu0 0
  %889 = vmatpush1.bf16.msra.mxu0 0
  %890 = vmatprep.subr.bf16.mxu0 0
  %891 = vmatpush1.bf16.msra.mxu0 0
  %892 = vmatprep.subr.bf16.mxu0 0
  %893 = vmatpush1.bf16.msra.mxu0 0
  %894 = vmatprep.mubr.bf16.mxu0 0
  %895 = vmatmul.mubr.bf16.gmra.mrb[0].mxu0 %v854
  %v896 = vpop.f32.mrb[0].mxu0
  %v897 = vadd.f32 0.0, %v896
  %v898 = vpop.f32.mrb[0].mxu0
  %v899 = vpop.f32.mrb[0].mxu0
  %v900 = vadd.f32 0.0, %v899
  %v901 = vpop.f32.mrb[0].mxu0
  %902 = vmatprep.mubr.bf16.mxu0 0
  %903 = vmatmul.mubr.bf16.gmra.mrb[0].mxu0 %v857
  %v904 = vpop.f32.mrb[0].mxu0
  %v905 = vadd.f32 0.0, %v904
  %v906 = vpop.f32.mrb[0].mxu0
  %v907 = vpop.f32.mrb[0].mxu0
  %v908 = vadd.f32 0.0, %v907
  %v909 = vpop.f32.mrb[0].mxu0
  %910 = vmatprep.mubr.bf16.mxu0 0
  %911 = vmatmul.mubr.bf16.gmra.mrb[0].mxu0 %v860
  %v912 = vpop.f32.mrb[0].mxu0
  %v913 = vadd.f32 0.0, %v912
  %v914 = vpop.f32.mrb[0].mxu0
  %v915 = vpop.f32.mrb[0].mxu0
  %v916 = vadd.f32 0.0, %v915
  %v917 = vpop.f32.mrb[0].mxu0
  %918 = vdwg.mxu0
  %v919 = vpack.c.bf16 %v900, %v897
  %v920 = vpack.c.bf16 %v908, %v905
  %v921 = vpack.c.bf16 %v916, %v913
  %v922 = vld [vmem:[%s4] sm:$0xf]
  %s923 = scalar_lea.vmem %s1, 16
  %v924 = vld [vmem:[%s923] sm:$0xf]
  %v925 = vld [vmem:[%s923 + $0x4] sm:$0xf]
  %v926 = vld [vmem:[%s923 + $0x8] sm:$0xf]
  %v927 = vld [vmem:[%s923 + $0xc] sm:$0xf]
  %v932 = vunpack.c.l.b16 %v924
  %v933 = vunpack.c.l.b16 %v925
  %v934 = vunpack.c.l.b16 %v926
  %v935 = vunpack.c.l.b16 %v927
  %v936 = vpack.c.b16 %v933, %v932
  %v937 = vpack.c.b16 %v935, %v934
  %940 = vmatprep.subr.bf16.mxu0 0
  %941 = vmatpush1.bf16.msra.mxu0 %v936
  %942 = vmatprep.subr.bf16.mxu0 0
  %943 = vmatpush1.bf16.msra.mxu0 %v937
  %944 = vmatprep.subr.bf16.mxu0 0
  %945 = vmatpush1.bf16.msra.mxu0 0
  %946 = vmatprep.subr.bf16.mxu0 0
  %947 = vmatpush1.bf16.msra.mxu0 0
  %948 = vmatprep.subr.bf16.mxu0 0
  %949 = vmatpush1.bf16.msra.mxu0 0
  %950 = vmatprep.subr.bf16.mxu0 0
  %951 = vmatpush1.bf16.msra.mxu0 0
  %952 = vmatprep.subr.bf16.mxu0 0
  %953 = vmatpush1.bf16.msra.mxu0 0
  %954 = vmatprep.subr.bf16.mxu0 0
  %955 = vmatpush1.bf16.msra.mxu0 0
  %956 = vmatprep.subr.bf16.mxu0 0
  %957 = vmatpush1.bf16.msra.mxu0 0
  %958 = vmatprep.subr.bf16.mxu0 0
  %959 = vmatpush1.bf16.msra.mxu0 0
  %960 = vmatprep.subr.bf16.mxu0 0
  %961 = vmatpush1.bf16.msra.mxu0 0
  %962 = vmatprep.subr.bf16.mxu0 0
  %963 = vmatpush1.bf16.msra.mxu0 0
  %964 = vmatprep.subr.bf16.mxu0 0
  %965 = vmatpush1.bf16.msra.mxu0 0
  %966 = vmatprep.subr.bf16.mxu0 0
  %967 = vmatpush1.bf16.msra.mxu0 0
  %968 = vmatprep.subr.bf16.mxu0 0
  %969 = vmatpush1.bf16.msra.mxu0 0
  %970 = vmatprep.subr.bf16.mxu0 0
  %971 = vmatpush1.bf16.msra.mxu0 0
  %972 = vmatprep.mubr.bf16.mxu0 0
  %973 = vmatmul.mubr.bf16.gmra.mrb[0].mxu0 %v163
  %v974 = vpop.f32.mrb[0].mxu0
  %v975 = vadd.f32 0.0, %v974
  %v976 = vpop.f32.mrb[0].mxu0
  %v977 = vpop.f32.mrb[0].mxu0
  %v978 = vadd.f32 0.0, %v977
  %v979 = vpop.f32.mrb[0].mxu0
  %980 = vmatprep.mubr.bf16.mxu0 0
  %981 = vmatmul.mubr.bf16.gmra.mrb[0].mxu0 %v166
  %v982 = vpop.f32.mrb[0].mxu0
  %v983 = vadd.f32 0.0, %v982
  %v984 = vpop.f32.mrb[0].mxu0
  %v985 = vpop.f32.mrb[0].mxu0
  %v986 = vadd.f32 0.0, %v985
  %v987 = vpop.f32.mrb[0].mxu0
  %988 = vmatprep.mubr.bf16.mxu0 0
  %989 = vmatmul.mubr.bf16.gmra.mrb[0].mxu0 %v169
  %v990 = vpop.f32.mrb[0].mxu0
  %v991 = vadd.f32 0.0, %v990
  %v992 = vpop.f32.mrb[0].mxu0
  %v993 = vpop.f32.mrb[0].mxu0
  %v994 = vadd.f32 0.0, %v993
  %v995 = vpop.f32.mrb[0].mxu0
  %996 = vdwg.mxu0
  %s997 = scalar_lea.vmem %s2, 16
  %v998 = vld [vmem:[%s997] sm:$0xf]
  %v999 = vld [vmem:[%s997 + $0x4] sm:$0xf]
  %v1000 = vld [vmem:[%s997 + $0x8] sm:$0xf]
  %v1001 = vld [vmem:[%s997 + $0xc] sm:$0xf]
  %v1006 = vunpack.c.l.b16 %v998
  %v1007 = vunpack.c.l.b16 %v999
  %v1008 = vunpack.c.l.b16 %v1000
  %v1009 = vunpack.c.l.b16 %v1001
  %v1010 = vpack.c.b16 %v1007, %v1006
  %v1011 = vpack.c.b16 %v1009, %v1008
  %1014 = vmatprep.subr.bf16.mxu0 0
  %1015 = vmatpush1.bf16.msra.mxu0 %v1010
  %1016 = vmatprep.subr.bf16.mxu0 0
  %1017 = vmatpush1.bf16.msra.mxu0 %v1011
  %1018 = vmatprep.subr.bf16.mxu0 0
  %1019 = vmatpush1.bf16.msra.mxu0 0
  %1020 = vmatprep.subr.bf16.mxu0 0
  %1021 = vmatpush1.bf16.msra.mxu0 0
  %1022 = vmatprep.subr.bf16.mxu0 0
  %1023 = vmatpush1.bf16.msra.mxu0 0
  %1024 = vmatprep.subr.bf16.mxu0 0
  %1025 = vmatpush1.bf16.msra.mxu0 0
  %1026 = vmatprep.subr.bf16.mxu0 0
  %1027 = vmatpush1.bf16.msra.mxu0 0
  %1028 = vmatprep.subr.bf16.mxu0 0
  %1029 = vmatpush1.bf16.msra.mxu0 0
  %1030 = vmatprep.subr.bf16.mxu0 0
  %1031 = vmatpush1.bf16.msra.mxu0 0
  %1032 = vmatprep.subr.bf16.mxu0 0
  %1033 = vmatpush1.bf16.msra.mxu0 0
  %1034 = vmatprep.subr.bf16.mxu0 0
  %1035 = vmatpush1.bf16.msra.mxu0 0
  %1036 = vmatprep.subr.bf16.mxu0 0
  %1037 = vmatpush1.bf16.msra.mxu0 0
  %1038 = vmatprep.subr.bf16.mxu0 0
  %1039 = vmatpush1.bf16.msra.mxu0 0
  %1040 = vmatprep.subr.bf16.mxu0 0
  %1041 = vmatpush1.bf16.msra.mxu0 0
  %1042 = vmatprep.subr.bf16.mxu0 0
  %1043 = vmatpush1.bf16.msra.mxu0 0
  %1044 = vmatprep.subr.bf16.mxu0 0
  %1045 = vmatpush1.bf16.msra.mxu0 0
  %1046 = vmatprep.mubr.bf16.mxu0 0
  %1047 = vmatmul.mubr.bf16.gmra.mrb[0].mxu0 %v163
  %v1048 = vpop.f32.mrb[0].mxu0
  %v1049 = vadd.f32 0.0, %v1048
  %v1050 = vpop.f32.mrb[0].mxu0
  %v1051 = vpop.f32.mrb[0].mxu0
  %v1052 = vadd.f32 0.0, %v1051
  %v1053 = vpop.f32.mrb[0].mxu0
  %1054 = vmatprep.mubr.bf16.mxu0 0
  %1055 = vmatmul.mubr.bf16.gmra.mrb[0].mxu0 %v166
  %v1056 = vpop.f32.mrb[0].mxu0
  %v1057 = vadd.f32 0.0, %v1056
  %v1058 = vpop.f32.mrb[0].mxu0
  %v1059 = vpop.f32.mrb[0].mxu0
  %v1060 = vadd.f32 0.0, %v1059
  %v1061 = vpop.f32.mrb[0].mxu0
  %1062 = vmatprep.mubr.bf16.mxu0 0
  %1063 = vmatmul.mubr.bf16.gmra.mrb[0].mxu0 %v169
  %v1064 = vpop.f32.mrb[0].mxu0
  %v1065 = vadd.f32 0.0, %v1064
  %v1066 = vpop.f32.mrb[0].mxu0
  %v1067 = vpop.f32.mrb[0].mxu0
  %v1068 = vadd.f32 0.0, %v1067
  %v1069 = vpop.f32.mrb[0].mxu0
  %1070 = vdwg.mxu0
  %s1071 = scalar_lea.vmem %s3, 16
  %v1072 = vld [vmem:[%s1071] sm:$0xf]
  %v1073 = vld [vmem:[%s1071 + $0x4] sm:$0xf]
  %v1074 = vld [vmem:[%s1071 + $0x8] sm:$0xf]
  %v1075 = vld [vmem:[%s1071 + $0xc] sm:$0xf]
  %v1080 = vunpack.c.l.b16 %v1072
  %v1081 = vunpack.c.l.b16 %v1073
  %v1082 = vunpack.c.l.b16 %v1074
  %v1083 = vunpack.c.l.b16 %v1075
  %v1084 = vpack.c.b16 %v1081, %v1080
  %v1085 = vpack.c.b16 %v1083, %v1082
  %1088 = vmatprep.subr.bf16.mxu0 0
  %1089 = vmatpush1.bf16.msra.mxu0 %v1084
  %1090 = vmatprep.subr.bf16.mxu0 0
  %1091 = vmatpush1.bf16.msra.mxu0 %v1085
  %1092 = vmatprep.subr.bf16.mxu0 0
  %1093 = vmatpush1.bf16.msra.mxu0 0
  %1094 = vmatprep.subr.bf16.mxu0 0
  %1095 = vmatpush1.bf16.msra.mxu0 0
  %1096 = vmatprep.subr.bf16.mxu0 0
  %1097 = vmatpush1.bf16.msra.mxu0 0
  %1098 = vmatprep.subr.bf16.mxu0 0
  %1099 = vmatpush1.bf16.msra.mxu0 0
  %1100 = vmatprep.subr.bf16.mxu0 0
  %1101 = vmatpush1.bf16.msra.mxu0 0
  %1102 = vmatprep.subr.bf16.mxu0 0
  %1103 = vmatpush1.bf16.msra.mxu0 0
  %1104 = vmatprep.subr.bf16.mxu0 0
  %1105 = vmatpush1.bf16.msra.mxu0 0
  %1106 = vmatprep.subr.bf16.mxu0 0
  %1107 = vmatpush1.bf16.msra.mxu0 0
  %1108 = vmatprep.subr.bf16.mxu0 0
  %1109 = vmatpush1.bf16.msra.mxu0 0
  %1110 = vmatprep.subr.bf16.mxu0 0
  %1111 = vmatpush1.bf16.msra.mxu0 0
  %1112 = vmatprep.subr.bf16.mxu0 0
  %1113 = vmatpush1.bf16.msra.mxu0 0
  %1114 = vmatprep.subr.bf16.mxu0 0
  %1115 = vmatpush1.bf16.msra.mxu0 0
  %1116 = vmatprep.subr.bf16.mxu0 0
  %1117 = vmatpush1.bf16.msra.mxu0 0
  %1118 = vmatprep.subr.bf16.mxu0 0
  %1119 = vmatpush1.bf16.msra.mxu0 0
  %1120 = vmatprep.mubr.bf16.mxu0 0
  %1121 = vmatmul.mubr.bf16.gmra.mrb[0].mxu0 %v163
  %v1122 = vpop.f32.mrb[0].mxu0
  %v1123 = vadd.f32 0.0, %v1122
  %v1124 = vpop.f32.mrb[0].mxu0
  %v1125 = vpop.f32.mrb[0].mxu0
  %v1126 = vadd.f32 0.0, %v1125
  %v1127 = vpop.f32.mrb[0].mxu0
  %1128 = vmatprep.mubr.bf16.mxu0 0
  %1129 = vmatmul.mubr.bf16.gmra.mrb[0].mxu0 %v166
  %v1130 = vpop.f32.mrb[0].mxu0
  %v1131 = vadd.f32 0.0, %v1130
  %v1132 = vpop.f32.mrb[0].mxu0
  %v1133 = vpop.f32.mrb[0].mxu0
  %v1134 = vadd.f32 0.0, %v1133
  %v1135 = vpop.f32.mrb[0].mxu0
  %1136 = vmatprep.mubr.bf16.mxu0 0
  %1137 = vmatmul.mubr.bf16.gmra.mrb[0].mxu0 %v169
  %v1138 = vpop.f32.mrb[0].mxu0
  %v1139 = vadd.f32 0.0, %v1138
  %v1140 = vpop.f32.mrb[0].mxu0
  %v1141 = vpop.f32.mrb[0].mxu0
  %v1142 = vadd.f32 0.0, %v1141
  %v1143 = vpop.f32.mrb[0].mxu0
  %1144 = vdwg.mxu0
  %v1145 = vmul.f32 %v975, %v63
  %v1146 = vmul.f32 %v978, %v64
  %v1147 = vmul.f32 %v983, %v65
  %v1148 = vmul.f32 %v986, %v66
  %v1149 = vmul.f32 %v991, %v67
  %v1150 = vmul.f32 %v994, %v68
  %v1152 = vsel %vm380, %v975, 0
  %v1155 = vsel %vm380, %v978, 0
  %v1158 = vsel %vm380, %v983, 0
  %v1161 = vsel %vm380, %v986, 0
  %v1164 = vsel %vm380, %v991, 0
  %v1167 = vsel %vm380, %v994, 0
  %1169 = vmatprep.subr.mxu0 0.0
  %1170 = vmatpush1.msra.mxu0 %v75
  %1171 = vmatprep.subr.mxu0 0.0
  %1172 = vmatpush1.msra.mxu0 0.0
  %1173 = vmatprep.subr.mxu0 0.0
  %1174 = vmatpush1.msra.mxu0 0.0
  %1175 = vmatprep.subr.mxu0 0.0
  %1176 = vmatpush1.msra.mxu0 0.0
  %1177 = vmatprep.subr.mxu0 0.0
  %1178 = vmatpush1.msra.mxu0 0.0
  %1179 = vmatprep.subr.mxu0 0.0
  %1180 = vmatpush1.msra.mxu0 0.0
  %1181 = vmatprep.subr.mxu0 0.0
  %1182 = vmatpush1.msra.mxu0 0.0
  %1183 = vmatprep.subr.mxu0 0.0
  %1184 = vmatpush1.msra.mxu0 0.0
  %1185 = vmatprep.subr.mxu0 0.0
  %1186 = vmatpush1.msra.mxu0 0.0
  %1187 = vmatprep.subr.mxu0 0.0
  %1188 = vmatpush1.msra.mxu0 0.0
  %1189 = vmatprep.subr.mxu0 0.0
  %1190 = vmatpush1.msra.mxu0 0.0
  %1191 = vmatprep.subr.mxu0 0.0
  %1192 = vmatpush1.msra.mxu0 0.0
  %1193 = vmatprep.subr.mxu0 0.0
  %1194 = vmatpush1.msra.mxu0 0.0
  %1195 = vmatprep.subr.mxu0 0.0
  %1196 = vmatpush1.msra.mxu0 0.0
  %1197 = vmatprep.subr.mxu0 0.0
  %1198 = vmatpush1.msra.mxu0 0.0
  %1199 = vmatprep.subr.mxu0 0.0
  %1200 = vmatpush1.msra.mxu0 0.0
  %1201 = vmatprep.subr.mxu0 0.0
  %1202 = vmatpush1.msra.mxu0 0.0
  %1203 = vmatprep.subr.mxu0 0.0
  %1204 = vmatpush1.msra.mxu0 0.0
  %1205 = vmatprep.subr.mxu0 0.0
  %1206 = vmatpush1.msra.mxu0 0.0
  %1207 = vmatprep.subr.mxu0 0.0
  %1208 = vmatpush1.msra.mxu0 0.0
  %1209 = vmatprep.subr.mxu0 0.0
  %1210 = vmatpush1.msra.mxu0 0.0
  %1211 = vmatprep.subr.mxu0 0.0
  %1212 = vmatpush1.msra.mxu0 0.0
  %1213 = vmatprep.subr.mxu0 0.0
  %1214 = vmatpush1.msra.mxu0 0.0
  %1215 = vmatprep.subr.mxu0 0.0
  %1216 = vmatpush1.msra.mxu0 0.0
  %1217 = vmatprep.subr.mxu0 0.0
  %1218 = vmatpush1.msra.mxu0 0.0
  %1219 = vmatprep.subr.mxu0 0.0
  %1220 = vmatpush1.msra.mxu0 0.0
  %1221 = vmatprep.subr.mxu0 0.0
  %1222 = vmatpush1.msra.mxu0 0.0
  %1223 = vmatprep.subr.mxu0 0.0
  %1224 = vmatpush1.msra.mxu0 0.0
  %1225 = vmatprep.subr.mxu0 0.0
  %1226 = vmatpush1.msra.mxu0 0.0
  %1227 = vmatprep.subr.mxu0 0.0
  %1228 = vmatpush1.msra.mxu0 0.0
  %1229 = vmatprep.subr.mxu0 0.0
  %1230 = vmatpush1.msra.mxu0 0.0
  %1231 = vmatprep.subr.mxu0 0.0
  %1232 = vmatpush1.msra.mxu0 0.0
  %1233 = vmatprep.mubr.f32.mxu0 0.0
  %1234 = vmatmul.mubr.f32.gmra.mrb[0].mxu0 %v1152
  %v1235 = vpop.f32.mrb[0].mxu0
  %v1236 = vadd.f32 0.0, %v1235
  %v1237 = vpop.f32.mrb[0].mxu0
  %1238 = vmatprep.mubr.f32.mxu0 0.0
  %1239 = vmatmul.mubr.f32.gmra.mrb[0].mxu0 %v1155
  %v1240 = vpop.f32.mrb[0].mxu0
  %v1241 = vadd.f32 0.0, %v1240
  %v1242 = vpop.f32.mrb[0].mxu0
  %1243 = vmatprep.mubr.f32.mxu0 0.0
  %1244 = vmatmul.mubr.f32.gmra.mrb[0].mxu0 %v1158
  %v1245 = vpop.f32.mrb[0].mxu0
  %v1246 = vadd.f32 0.0, %v1245
  %v1247 = vpop.f32.mrb[0].mxu0
  %1248 = vmatprep.mubr.f32.mxu0 0.0
  %1249 = vmatmul.mubr.f32.gmra.mrb[0].mxu0 %v1161
  %v1250 = vpop.f32.mrb[0].mxu0
  %v1251 = vadd.f32 0.0, %v1250
  %v1252 = vpop.f32.mrb[0].mxu0
  %1253 = vmatprep.mubr.f32.mxu0 0.0
  %1254 = vmatmul.mubr.f32.gmra.mrb[0].mxu0 %v1164
  %v1255 = vpop.f32.mrb[0].mxu0
  %v1256 = vadd.f32 0.0, %v1255
  %v1257 = vpop.f32.mrb[0].mxu0
  %1258 = vmatprep.mubr.f32.mxu0 0.0
  %1259 = vmatmul.mubr.f32.gmra.mrb[0].mxu0 %v1167
  %v1260 = vpop.f32.mrb[0].mxu0
  %v1261 = vadd.f32 0.0, %v1260
  %v1262 = vpop.f32.mrb[0].mxu0
  %1263 = vdwg.mxu0
  %v1264 = vmul.f32 %v1236, %v69
  %v1265 = vmul.f32 %v1241, %v70
  %v1266 = vmul.f32 %v1246, %v71
  %v1267 = vmul.f32 %v1251, %v72
  %v1268 = vmul.f32 %v1256, %v73
  %v1269 = vmul.f32 %v1261, %v74
  %v1270 = vadd.f32 %v1145, %v1264
  %v1271 = vadd.f32 %v1146, %v1265
  %v1272 = vadd.f32 %v1147, %v1266
  %v1273 = vadd.f32 %v1148, %v1267
  %v1274 = vadd.f32 %v1149, %v1268
  %v1275 = vadd.f32 %v1150, %v1269
  %v1276 = vmul.f32 %v1049, %v63
  %v1277 = vmul.f32 %v1052, %v64
  %v1278 = vmul.f32 %v1057, %v65
  %v1279 = vmul.f32 %v1060, %v66
  %v1280 = vmul.f32 %v1065, %v67
  %v1281 = vmul.f32 %v1068, %v68
  %v1283 = vsel %vm380, %v1049, 0
  %v1286 = vsel %vm380, %v1052, 0
  %v1289 = vsel %vm380, %v1057, 0
  %v1292 = vsel %vm380, %v1060, 0
  %v1295 = vsel %vm380, %v1065, 0
  %v1298 = vsel %vm380, %v1068, 0
  %1300 = vmatprep.subr.mxu0 0.0
  %1301 = vmatpush1.msra.mxu0 %v75
  %1302 = vmatprep.subr.mxu0 0.0
  %1303 = vmatpush1.msra.mxu0 0.0
  %1304 = vmatprep.subr.mxu0 0.0
  %1305 = vmatpush1.msra.mxu0 0.0
  %1306 = vmatprep.subr.mxu0 0.0
  %1307 = vmatpush1.msra.mxu0 0.0
  %1308 = vmatprep.subr.mxu0 0.0
  %1309 = vmatpush1.msra.mxu0 0.0
  %1310 = vmatprep.subr.mxu0 0.0
  %1311 = vmatpush1.msra.mxu0 0.0
  %1312 = vmatprep.subr.mxu0 0.0
  %1313 = vmatpush1.msra.mxu0 0.0
  %1314 = vmatprep.subr.mxu0 0.0
  %1315 = vmatpush1.msra.mxu0 0.0
  %1316 = vmatprep.subr.mxu0 0.0
  %1317 = vmatpush1.msra.mxu0 0.0
  %1318 = vmatprep.subr.mxu0 0.0
  %1319 = vmatpush1.msra.mxu0 0.0
  %1320 = vmatprep.subr.mxu0 0.0
  %1321 = vmatpush1.msra.mxu0 0.0
  %1322 = vmatprep.subr.mxu0 0.0
  %1323 = vmatpush1.msra.mxu0 0.0
  %1324 = vmatprep.subr.mxu0 0.0
  %1325 = vmatpush1.msra.mxu0 0.0
  %1326 = vmatprep.subr.mxu0 0.0
  %1327 = vmatpush1.msra.mxu0 0.0
  %1328 = vmatprep.subr.mxu0 0.0
  %1329 = vmatpush1.msra.mxu0 0.0
  %1330 = vmatprep.subr.mxu0 0.0
  %1331 = vmatpush1.msra.mxu0 0.0
  %1332 = vmatprep.subr.mxu0 0.0
  %1333 = vmatpush1.msra.mxu0 0.0
  %1334 = vmatprep.subr.mxu0 0.0
  %1335 = vmatpush1.msra.mxu0 0.0
  %1336 = vmatprep.subr.mxu0 0.0
  %1337 = vmatpush1.msra.mxu0 0.0
  %1338 = vmatprep.subr.mxu0 0.0
  %1339 = vmatpush1.msra.mxu0 0.0
  %1340 = vmatprep.subr.mxu0 0.0
  %1341 = vmatpush1.msra.mxu0 0.0
  %1342 = vmatprep.subr.mxu0 0.0
  %1343 = vmatpush1.msra.mxu0 0.0
  %1344 = vmatprep.subr.mxu0 0.0
  %1345 = vmatpush1.msra.mxu0 0.0
  %1346 = vmatprep.subr.mxu0 0.0
  %1347 = vmatpush1.msra.mxu0 0.0
  %1348 = vmatprep.subr.mxu0 0.0
  %1349 = vmatpush1.msra.mxu0 0.0
  %1350 = vmatprep.subr.mxu0 0.0
  %1351 = vmatpush1.msra.mxu0 0.0
  %1352 = vmatprep.subr.mxu0 0.0
  %1353 = vmatpush1.msra.mxu0 0.0
  %1354 = vmatprep.subr.mxu0 0.0
  %1355 = vmatpush1.msra.mxu0 0.0
  %1356 = vmatprep.subr.mxu0 0.0
  %1357 = vmatpush1.msra.mxu0 0.0
  %1358 = vmatprep.subr.mxu0 0.0
  %1359 = vmatpush1.msra.mxu0 0.0
  %1360 = vmatprep.subr.mxu0 0.0
  %1361 = vmatpush1.msra.mxu0 0.0
  %1362 = vmatprep.subr.mxu0 0.0
  %1363 = vmatpush1.msra.mxu0 0.0
  %1364 = vmatprep.mubr.f32.mxu0 0.0
  %1365 = vmatmul.mubr.f32.gmra.mrb[0].mxu0 %v1283
  %v1366 = vpop.f32.mrb[0].mxu0
  %v1367 = vadd.f32 0.0, %v1366
  %v1368 = vpop.f32.mrb[0].mxu0
  %1369 = vmatprep.mubr.f32.mxu0 0.0
  %1370 = vmatmul.mubr.f32.gmra.mrb[0].mxu0 %v1286
  %v1371 = vpop.f32.mrb[0].mxu0
  %v1372 = vadd.f32 0.0, %v1371
  %v1373 = vpop.f32.mrb[0].mxu0
  %1374 = vmatprep.mubr.f32.mxu0 0.0
  %1375 = vmatmul.mubr.f32.gmra.mrb[0].mxu0 %v1289
  %v1376 = vpop.f32.mrb[0].mxu0
  %v1377 = vadd.f32 0.0, %v1376
  %v1378 = vpop.f32.mrb[0].mxu0
  %1379 = vmatprep.mubr.f32.mxu0 0.0
  %1380 = vmatmul.mubr.f32.gmra.mrb[0].mxu0 %v1292
  %v1381 = vpop.f32.mrb[0].mxu0
  %v1382 = vadd.f32 0.0, %v1381
  %v1383 = vpop.f32.mrb[0].mxu0
  %1384 = vmatprep.mubr.f32.mxu0 0.0
  %1385 = vmatmul.mubr.f32.gmra.mrb[0].mxu0 %v1295
  %v1386 = vpop.f32.mrb[0].mxu0
  %v1387 = vadd.f32 0.0, %v1386
  %v1388 = vpop.f32.mrb[0].mxu0
  %1389 = vmatprep.mubr.f32.mxu0 0.0
  %1390 = vmatmul.mubr.f32.gmra.mrb[0].mxu0 %v1298
  %v1391 = vpop.f32.mrb[0].mxu0
  %v1392 = vadd.f32 0.0, %v1391
  %v1393 = vpop.f32.mrb[0].mxu0
  %1394 = vdwg.mxu0
  %v1395 = vmul.f32 %v1367, %v69
  %v1396 = vmul.f32 %v1372, %v70
  %v1397 = vmul.f32 %v1377, %v71
  %v1398 = vmul.f32 %v1382, %v72
  %v1399 = vmul.f32 %v1387, %v73
  %v1400 = vmul.f32 %v1392, %v74
  %v1401 = vadd.f32 %v1276, %v1395
  %v1402 = vadd.f32 %v1277, %v1396
  %v1403 = vadd.f32 %v1278, %v1397
  %v1404 = vadd.f32 %v1279, %v1398
  %v1405 = vadd.f32 %v1280, %v1399
  %v1406 = vadd.f32 %v1281, %v1400
  %v1408 = vsel %vm380, %v1270, 0
  %v1411 = vsel %vm380, %v1271, 0
  %v1414 = vsel %vm380, %v1272, 0
  %v1417 = vsel %vm380, %v1273, 0
  %v1420 = vsel %vm380, %v1274, 0
  %v1423 = vsel %vm380, %v1275, 0
  %v1426 = vsel %vm380, %v1401, 0
  %v1429 = vsel %vm380, %v1402, 0
  %v1432 = vsel %vm380, %v1403, 0
  %v1435 = vsel %vm380, %v1404, 0
  %v1438 = vsel %vm380, %v1405, 0
  %v1441 = vsel %vm380, %v1406, 0
  %1443 = vmatprep.subr.mxu0 0.0
  %1444 = vmatpush1.xpose.msra.mxu0 %v1426
  %1445 = vmatprep.subr.mxu0 0.0
  %1446 = vmatpush1.xpose.msra.mxu0 %v1429
  %1447 = vmatprep.subr.mxu0 0.0
  %1448 = vmatpush1.xpose.msra.mxu0 %v1432
  %1449 = vmatprep.subr.mxu0 0.0
  %1450 = vmatpush1.xpose.msra.mxu0 %v1435
  %1451 = vmatprep.subr.mxu0 0.0
  %1452 = vmatpush1.xpose.msra.mxu0 %v1438
  %1453 = vmatprep.subr.mxu0 0.0
  %1454 = vmatpush1.xpose.msra.mxu0 %v1441
  %1455 = vmatprep.subr.mxu0 0.0
  %1456 = vmatpush1.xpose.msra.mxu0 0.0
  %1457 = vmatprep.subr.mxu0 0.0
  %1458 = vmatpush1.xpose.msra.mxu0 0.0
  %1459 = vmatprep.subr.mxu0 0.0
  %1460 = vmatpush1.xpose.msra.mxu0 0.0
  %1461 = vmatprep.subr.mxu0 0.0
  %1462 = vmatpush1.xpose.msra.mxu0 0.0
  %1463 = vmatprep.subr.mxu0 0.0
  %1464 = vmatpush1.xpose.msra.mxu0 0.0
  %1465 = vmatprep.subr.mxu0 0.0
  %1466 = vmatpush1.xpose.msra.mxu0 0.0
  %1467 = vmatprep.subr.mxu0 0.0
  %1468 = vmatpush1.xpose.msra.mxu0 0.0
  %1469 = vmatprep.subr.mxu0 0.0
  %1470 = vmatpush1.xpose.msra.mxu0 0.0
  %1471 = vmatprep.subr.mxu0 0.0
  %1472 = vmatpush1.xpose.msra.mxu0 0.0
  %1473 = vmatprep.subr.mxu0 0.0
  %1474 = vmatpush1.xpose.msra.mxu0 0.0
  %1475 = vmatprep.subr.mxu0 0.0
  %1476 = vmatpush1.xpose.msra.mxu0 0.0
  %1477 = vmatprep.subr.mxu0 0.0
  %1478 = vmatpush1.xpose.msra.mxu0 0.0
  %1479 = vmatprep.subr.mxu0 0.0
  %1480 = vmatpush1.xpose.msra.mxu0 0.0
  %1481 = vmatprep.subr.mxu0 0.0
  %1482 = vmatpush1.xpose.msra.mxu0 0.0
  %1483 = vmatprep.subr.mxu0 0.0
  %1484 = vmatpush1.xpose.msra.mxu0 0.0
  %1485 = vmatprep.subr.mxu0 0.0
  %1486 = vmatpush1.xpose.msra.mxu0 0.0
  %1487 = vmatprep.subr.mxu0 0.0
  %1488 = vmatpush1.xpose.msra.mxu0 0.0
  %1489 = vmatprep.subr.mxu0 0.0
  %1490 = vmatpush1.xpose.msra.mxu0 0.0
  %1491 = vmatprep.subr.mxu0 0.0
  %1492 = vmatpush1.xpose.msra.mxu0 0.0
  %1493 = vmatprep.subr.mxu0 0.0
  %1494 = vmatpush1.xpose.msra.mxu0 0.0
  %1495 = vmatprep.subr.mxu0 0.0
  %1496 = vmatpush1.xpose.msra.mxu0 0.0
  %1497 = vmatprep.subr.mxu0 0.0
  %1498 = vmatpush1.xpose.msra.mxu0 0.0
  %1499 = vmatprep.subr.mxu0 0.0
  %1500 = vmatpush1.xpose.msra.mxu0 0.0
  %1501 = vmatprep.subr.mxu0 0.0
  %1502 = vmatpush1.xpose.msra.mxu0 0.0
  %1503 = vmatprep.subr.mxu0 0.0
  %1504 = vmatpush1.xpose.msra.mxu0 0.0
  %1505 = vmatprep.subr.mxu0 0.0
  %1506 = vmatpush1.xpose.msra.mxu0 0.0
  %1507 = vmatprep.mubr.f32.mxu0 0.0
  %1508 = vmatmul.mubr.f32.gmra.mrb[0].mxu0 %v1408
  %v1509 = vpop.f32.mrb[0].mxu0
  %v1510 = vadd.f32 0.0, %v1509
  %v1511 = vpop.f32.mrb[0].mxu0
  %1512 = vmatprep.mubr.f32.mxu0 0.0
  %1513 = vmatmul.mubr.f32.gmra.mrb[0].mxu0 %v1411
  %v1514 = vpop.f32.mrb[0].mxu0
  %v1515 = vadd.f32 0.0, %v1514
  %v1516 = vpop.f32.mrb[0].mxu0
  %1517 = vmatprep.mubr.f32.mxu0 0.0
  %1518 = vmatmul.mubr.f32.gmra.mrb[0].mxu0 %v1414
  %v1519 = vpop.f32.mrb[0].mxu0
  %v1520 = vadd.f32 0.0, %v1519
  %v1521 = vpop.f32.mrb[0].mxu0
  %1522 = vmatprep.mubr.f32.mxu0 0.0
  %1523 = vmatmul.mubr.f32.gmra.mrb[0].mxu0 %v1417
  %v1524 = vpop.f32.mrb[0].mxu0
  %v1525 = vadd.f32 0.0, %v1524
  %v1526 = vpop.f32.mrb[0].mxu0
  %1527 = vmatprep.mubr.f32.mxu0 0.0
  %1528 = vmatmul.mubr.f32.gmra.mrb[0].mxu0 %v1420
  %v1529 = vpop.f32.mrb[0].mxu0
  %v1530 = vadd.f32 0.0, %v1529
  %v1531 = vpop.f32.mrb[0].mxu0
  %1532 = vmatprep.mubr.f32.mxu0 0.0
  %1533 = vmatmul.mubr.f32.gmra.mrb[0].mxu0 %v1423
  %v1534 = vpop.f32.mrb[0].mxu0
  %v1535 = vadd.f32 0.0, %v1534
  %v1536 = vpop.f32.mrb[0].mxu0
  %1537 = vdwg.mxu0
  %v1538 = vmul.f32 %v1510, 0.35355338
  %v1539 = vmul.f32 %v1515, 0.35355338
  %v1540 = vmul.f32 %v1520, 0.35355338
  %v1541 = vmul.f32 %v1525, 0.35355338
  %v1542 = vmul.f32 %v1530, 0.35355338
  %v1543 = vmul.f32 %v1535, 0.35355338
  %v1544 = vadd.f32 %v1538, %v76
  %v1545 = vadd.f32 %v1539, %v77
  %v1546 = vadd.f32 %v1540, %v78
  %v1547 = vadd.f32 %v1541, %v79
  %v1548 = vadd.f32 %v1542, %v80
  %v1549 = vadd.f32 %v1543, %v81
  %v1550 = vsel %vm780, %v1544, -inf
  %1551 = vmax.xlane.f32.xlu0 %v1550
  %v1552 = vpop.xlane.xlu0 %1551
  %v1553 = vsel %vm780, %v1545, -inf
  %1554 = vmax.xlane.f32.xlu0 %v1553
  %v1555 = vpop.xlane.xlu0 %1554
  %v1556 = vsel %vm780, %v1546, -inf
  %1557 = vmax.xlane.f32.xlu0 %v1556
  %v1558 = vpop.xlane.xlu0 %1557
  %v1559 = vsel %vm780, %v1547, -inf
  %1560 = vmax.xlane.f32.xlu0 %v1559
  %v1561 = vpop.xlane.xlu0 %1560
  %v1562 = vsel %vm780, %v1548, -inf
  %1563 = vmax.xlane.f32.xlu0 %v1562
  %v1564 = vpop.xlane.xlu0 %1563
  %v1565 = vsel %vm780, %v1549, -inf
  %1566 = vmax.xlane.f32.xlu0 %v1565
  %v1567 = vpop.xlane.xlu0 %1566
  %v1568 = vsub.f32 %v1544, %v1552
  %v1569 = vsub.f32 %v1545, %v1555
  %v1570 = vsub.f32 %v1546, %v1558
  %v1571 = vsub.f32 %v1547, %v1561
  %v1572 = vsub.f32 %v1548, %v1564
  %v1573 = vsub.f32 %v1549, %v1567
  %v1574 = vmul.f32 %v1568, 1.442695
  %v1575 = vpow.pop %v1574
  %v1576 = vmul.f32 %v1569, 1.442695
  %v1577 = vpow.pop %v1576
  %v1578 = vmul.f32 %v1570, 1.442695
  %v1579 = vpow.pop %v1578
  %v1580 = vmul.f32 %v1571, 1.442695
  %v1581 = vpow.pop %v1580
  %v1582 = vmul.f32 %v1572, 1.442695
  %v1583 = vpow.pop %v1582
  %v1584 = vmul.f32 %v1573, 1.442695
  %v1585 = vpow.pop %v1584
  %v1586 = vsel %vm780, %v1575, 0.0
  %1587 = vadd.xlane.f32.xlu0 %v1586
  %v1588 = vpop.xlane.xlu0 %1587
  %v1589 = vsel %vm780, %v1577, 0.0
  %1590 = vadd.xlane.f32.xlu0 %v1589
  %v1591 = vpop.xlane.xlu0 %1590
  %v1592 = vsel %vm780, %v1579, 0.0
  %1593 = vadd.xlane.f32.xlu0 %v1592
  %v1594 = vpop.xlane.xlu0 %1593
  %v1595 = vsel %vm780, %v1581, 0.0
  %1596 = vadd.xlane.f32.xlu0 %v1595
  %v1597 = vpop.xlane.xlu0 %1596
  %v1598 = vsel %vm780, %v1583, 0.0
  %1599 = vadd.xlane.f32.xlu0 %v1598
  %v1600 = vpop.xlane.xlu0 %1599
  %v1601 = vsel %vm780, %v1585, 0.0
  %1602 = vadd.xlane.f32.xlu0 %v1601
  %v1603 = vpop.xlane.xlu0 %1602
  %v1604 = vrcp.pop %v1588
  %v1605 = vmul.f32 %v1575, %v1604
  %v1606 = vrcp.pop %v1591
  %v1607 = vmul.f32 %v1577, %v1606
  %v1608 = vrcp.pop %v1594
  %v1609 = vmul.f32 %v1579, %v1608
  %v1610 = vrcp.pop %v1597
  %v1611 = vmul.f32 %v1581, %v1610
  %v1612 = vrcp.pop %v1600
  %v1613 = vmul.f32 %v1583, %v1612
  %v1614 = vrcp.pop %v1603
  %v1615 = vmul.f32 %v1585, %v1614
  %v1616 = vpack.c.bf16 %v1607, %v1605
  %v1617 = vpack.c.bf16 %v1611, %v1609
  %v1618 = vpack.c.bf16 %v1615, %v1613
  %v1619 = vpack.c.bf16 %v1126, %v1123
  %v1620 = vpack.c.bf16 %v1134, %v1131
  %v1621 = vpack.c.bf16 %v1142, %v1139
  %v1623 = vsel %vm780, %v1616, 0
  %v1626 = vsel %vm780, %v1617, 0
  %v1629 = vsel %vm780, %v1618, 0
  %1631 = vmatprep.subr.bf16.mxu0 0
  %1632 = vmatpush1.bf16.msra.mxu0 %v1619
  %1633 = vmatprep.subr.bf16.mxu0 0
  %1634 = vmatpush1.bf16.msra.mxu0 %v1620
  %1635 = vmatprep.subr.bf16.mxu0 0
  %1636 = vmatpush1.bf16.msra.mxu0 %v1621
  %1637 = vmatprep.subr.bf16.mxu0 0
  %1638 = vmatpush1.bf16.msra.mxu0 0
  %1639 = vmatprep.subr.bf16.mxu0 0
  %1640 = vmatpush1.bf16.msra.mxu0 0
  %1641 = vmatprep.subr.bf16.mxu0 0
  %1642 = vmatpush1.bf16.msra.mxu0 0
  %1643 = vmatprep.subr.bf16.mxu0 0
  %1644 = vmatpush1.bf16.msra.mxu0 0
  %1645 = vmatprep.subr.bf16.mxu0 0
  %1646 = vmatpush1.bf16.msra.mxu0 0
  %1647 = vmatprep.subr.bf16.mxu0 0
  %1648 = vmatpush1.bf16.msra.mxu0 0
  %1649 = vmatprep.subr.bf16.mxu0 0
  %1650 = vmatpush1.bf16.msra.mxu0 0
  %1651 = vmatprep.subr.bf16.mxu0 0
  %1652 = vmatpush1.bf16.msra.mxu0 0
  %1653 = vmatprep.subr.bf16.mxu0 0
  %1654 = vmatpush1.bf16.msra.mxu0 0
  %1655 = vmatprep.subr.bf16.mxu0 0
  %1656 = vmatpush1.bf16.msra.mxu0 0
  %1657 = vmatprep.subr.bf16.mxu0 0
  %1658 = vmatpush1.bf16.msra.mxu0 0
  %1659 = vmatprep.subr.bf16.mxu0 0
  %1660 = vmatpush1.bf16.msra.mxu0 0
  %1661 = vmatprep.subr.bf16.mxu0 0
  %1662 = vmatpush1.bf16.msra.mxu0 0
  %1663 = vmatprep.mubr.bf16.mxu0 0
  %1664 = vmatmul.mubr.bf16.gmra.mrb[0].mxu0 %v1623
  %v1665 = vpop.f32.mrb[0].mxu0
  %v1666 = vadd.f32 0.0, %v1665
  %v1667 = vpop.f32.mrb[0].mxu0
  %v1668 = vpop.f32.mrb[0].mxu0
  %v1669 = vadd.f32 0.0, %v1668
  %v1670 = vpop.f32.mrb[0].mxu0
  %1671 = vmatprep.mubr.bf16.mxu0 0
  %1672 = vmatmul.mubr.bf16.gmra.mrb[0].mxu0 %v1626
  %v1673 = vpop.f32.mrb[0].mxu0
  %v1674 = vadd.f32 0.0, %v1673
  %v1675 = vpop.f32.mrb[0].mxu0
  %v1676 = vpop.f32.mrb[0].mxu0
  %v1677 = vadd.f32 0.0, %v1676
  %v1678 = vpop.f32.mrb[0].mxu0
  %1679 = vmatprep.mubr.bf16.mxu0 0
  %1680 = vmatmul.mubr.bf16.gmra.mrb[0].mxu0 %v1629
  %v1681 = vpop.f32.mrb[0].mxu0
  %v1682 = vadd.f32 0.0, %v1681
  %v1683 = vpop.f32.mrb[0].mxu0
  %v1684 = vpop.f32.mrb[0].mxu0
  %v1685 = vadd.f32 0.0, %v1684
  %v1686 = vpop.f32.mrb[0].mxu0
  %1687 = vdwg.mxu0
  %v1688 = vpack.c.bf16 %v1669, %v1666
  %v1689 = vpack.c.bf16 %v1677, %v1674
  %v1690 = vpack.c.bf16 %v1685, %v1682
  %s1691 = scalar_lea.vmem %s4, 4
  %v1692 = vld [vmem:[%s1691] sm:$0xf]
  %v1694 = vsel %vm380, %v1688, 0
  %v1697 = vsel %vm380, %v1689, 0
  %v1700 = vsel %vm380, %v1690, 0
  %vm1702 = vcmask 1043456
  %v1704 = vsel %vm1702, %v1692, 0
  %1706 = vmatprep.subr.bf16.mxu0 0
  %1707 = vmatpush1.bf16.msra.mxu0 %v1704
  %1708 = vmatprep.subr.bf16.mxu0 0
  %1709 = vmatpush1.bf16.msra.mxu0 0
  %1710 = vmatprep.subr.bf16.mxu0 0
  %1711 = vmatpush1.bf16.msra.mxu0 0
  %1712 = vmatprep.subr.bf16.mxu0 0
  %1713 = vmatpush1.bf16.msra.mxu0 0
  %1714 = vmatprep.subr.bf16.mxu0 0
  %1715 = vmatpush1.bf16.msra.mxu0 0
  %1716 = vmatprep.subr.bf16.mxu0 0
  %1717 = vmatpush1.bf16.msra.mxu0 0
  %1718 = vmatprep.subr.bf16.mxu0 0
  %1719 = vmatpush1.bf16.msra.mxu0 0
  %1720 = vmatprep.subr.bf16.mxu0 0
  %1721 = vmatpush1.bf16.msra.mxu0 0
  %1722 = vmatprep.subr.bf16.mxu0 0
  %1723 = vmatpush1.bf16.msra.mxu0 0
  %1724 = vmatprep.subr.bf16.mxu0 0
  %1725 = vmatpush1.bf16.msra.mxu0 0
  %1726 = vmatprep.subr.bf16.mxu0 0
  %1727 = vmatpush1.bf16.msra.mxu0 0
  %1728 = vmatprep.subr.bf16.mxu0 0
  %1729 = vmatpush1.bf16.msra.mxu0 0
  %1730 = vmatprep.subr.bf16.mxu0 0
  %1731 = vmatpush1.bf16.msra.mxu0 0
  %1732 = vmatprep.subr.bf16.mxu0 0
  %1733 = vmatpush1.bf16.msra.mxu0 0
  %1734 = vmatprep.subr.bf16.mxu0 0
  %1735 = vmatpush1.bf16.msra.mxu0 0
  %1736 = vmatprep.subr.bf16.mxu0 0
  %1737 = vmatpush1.bf16.msra.mxu0 0
  %1738 = vmatprep.mubr.bf16.mxu0 0
  %1739 = vmatmul.mubr.bf16.gmra.mrb[0].mxu0 %v1694
  %v1740 = vpop.f32.mrb[0].mxu0
  %v1741 = vadd.f32 0.0, %v1740
  %v1742 = vpop.f32.mrb[0].mxu0
  %v1743 = vpop.f32.mrb[0].mxu0
  %v1744 = vadd.f32 0.0, %v1743
  %v1745 = vpop.f32.mrb[0].mxu0
  %1746 = vmatprep.mubr.bf16.mxu0 0
  %1747 = vmatmul.mubr.bf16.gmra.mrb[0].mxu0 %v1697
  %v1748 = vpop.f32.mrb[0].mxu0
  %v1749 = vadd.f32 0.0, %v1748
  %v1750 = vpop.f32.mrb[0].mxu0
  %v1751 = vpop.f32.mrb[0].mxu0
  %v1752 = vadd.f32 0.0, %v1751
  %v1753 = vpop.f32.mrb[0].mxu0
  %1754 = vmatprep.mubr.bf16.mxu0 0
  %1755 = vmatmul.mubr.bf16.gmra.mrb[0].mxu0 %v1700
  %v1756 = vpop.f32.mrb[0].mxu0
  %v1757 = vadd.f32 0.0, %v1756
  %v1758 = vpop.f32.mrb[0].mxu0
  %v1759 = vpop.f32.mrb[0].mxu0
  %v1760 = vadd.f32 0.0, %v1759
  %v1761 = vpop.f32.mrb[0].mxu0
  %1762 = vdwg.mxu0
  %v1764 = vsel %vm380, %v919, 0
  %v1767 = vsel %vm380, %v920, 0
  %v1770 = vsel %vm380, %v921, 0
  %v1773 = vsel %vm1702, %v922, 0
  %1775 = vmatprep.subr.bf16.mxu0 0
  %1776 = vmatpush1.bf16.msra.mxu0 %v1773
  %1777 = vmatprep.subr.bf16.mxu0 0
  %1778 = vmatpush1.bf16.msra.mxu0 0
  %1779 = vmatprep.subr.bf16.mxu0 0
  %1780 = vmatpush1.bf16.msra.mxu0 0
  %1781 = vmatprep.subr.bf16.mxu0 0
  %1782 = vmatpush1.bf16.msra.mxu0 0
  %1783 = vmatprep.subr.bf16.mxu0 0
  %1784 = vmatpush1.bf16.msra.mxu0 0
  %1785 = vmatprep.subr.bf16.mxu0 0
  %1786 = vmatpush1.bf16.msra.mxu0 0
  %1787 = vmatprep.subr.bf16.mxu0 0
  %1788 = vmatpush1.bf16.msra.mxu0 0
  %1789 = vmatprep.subr.bf16.mxu0 0
  %1790 = vmatpush1.bf16.msra.mxu0 0
  %1791 = vmatprep.subr.bf16.mxu0 0
  %1792 = vmatpush1.bf16.msra.mxu0 0
  %1793 = vmatprep.subr.bf16.mxu0 0
  %1794 = vmatpush1.bf16.msra.mxu0 0
  %1795 = vmatprep.subr.bf16.mxu0 0
  %1796 = vmatpush1.bf16.msra.mxu0 0
  %1797 = vmatprep.subr.bf16.mxu0 0
  %1798 = vmatpush1.bf16.msra.mxu0 0
  %1799 = vmatprep.subr.bf16.mxu0 0
  %1800 = vmatpush1.bf16.msra.mxu0 0
  %1801 = vmatprep.subr.bf16.mxu0 0
  %1802 = vmatpush1.bf16.msra.mxu0 0
  %1803 = vmatprep.subr.bf16.mxu0 0
  %1804 = vmatpush1.bf16.msra.mxu0 0
  %1805 = vmatprep.subr.bf16.mxu0 0
  %1806 = vmatpush1.bf16.msra.mxu0 0
  %1807 = vmatprep.mubr.bf16.mxu0 0
  %1808 = vmatmul.mubr.bf16.gmra.mrb[0].mxu0 %v1764
  %v1809 = vpop.f32.mrb[0].mxu0
  %v1810 = vadd.f32 %v1741, %v1809
  %v1811 = vpop.f32.mrb[0].mxu0
  %v1812 = vpop.f32.mrb[0].mxu0
  %v1813 = vadd.f32 %v1744, %v1812
  %v1814 = vpop.f32.mrb[0].mxu0
  %1815 = vmatprep.mubr.bf16.mxu0 0
  %1816 = vmatmul.mubr.bf16.gmra.mrb[0].mxu0 %v1767
  %v1817 = vpop.f32.mrb[0].mxu0
  %v1818 = vadd.f32 %v1749, %v1817
  %v1819 = vpop.f32.mrb[0].mxu0
  %v1820 = vpop.f32.mrb[0].mxu0
  %v1821 = vadd.f32 %v1752, %v1820
  %v1822 = vpop.f32.mrb[0].mxu0
  %1823 = vmatprep.mubr.bf16.mxu0 0
  %1824 = vmatmul.mubr.bf16.gmra.mrb[0].mxu0 %v1770
  %v1825 = vpop.f32.mrb[0].mxu0
  %v1826 = vadd.f32 %v1757, %v1825
  %v1827 = vpop.f32.mrb[0].mxu0
  %v1828 = vpop.f32.mrb[0].mxu0
  %v1829 = vadd.f32 %v1760, %v1828
  %v1830 = vpop.f32.mrb[0].mxu0
  %1831 = vdwg.mxu0
  %s1832 = scalar_lea.vmem %s1, 32
  %v1833 = vld [vmem:[%s1832] sm:$0xf]
  %v1834 = vld [vmem:[%s1832 + $0x4] sm:$0xf]
  %v1835 = vld [vmem:[%s1832 + $0x8] sm:$0xf]
  %v1836 = vld [vmem:[%s1832 + $0xc] sm:$0xf]
  %v1841 = vunpack.c.l.b16 %v1833
  %v1842 = vunpack.c.l.b16 %v1834
  %v1843 = vunpack.c.l.b16 %v1835
  %v1844 = vunpack.c.l.b16 %v1836
  %v1845 = vpack.c.b16 %v1842, %v1841
  %v1846 = vpack.c.b16 %v1844, %v1843
  %1849 = vmatprep.subr.bf16.mxu0 0
  %1850 = vmatpush1.bf16.msra.mxu0 %v1845
  %1851 = vmatprep.subr.bf16.mxu0 0
  %1852 = vmatpush1.bf16.msra.mxu0 %v1846
  %1853 = vmatprep.subr.bf16.mxu0 0
  %1854 = vmatpush1.bf16.msra.mxu0 0
  %1855 = vmatprep.subr.bf16.mxu0 0
  %1856 = vmatpush1.bf16.msra.mxu0 0
  %1857 = vmatprep.subr.bf16.mxu0 0
  %1858 = vmatpush1.bf16.msra.mxu0 0
  %1859 = vmatprep.subr.bf16.mxu0 0
  %1860 = vmatpush1.bf16.msra.mxu0 0
  %1861 = vmatprep.subr.bf16.mxu0 0
  %1862 = vmatpush1.bf16.msra.mxu0 0
  %1863 = vmatprep.subr.bf16.mxu0 0
  %1864 = vmatpush1.bf16.msra.mxu0 0
  %1865 = vmatprep.subr.bf16.mxu0 0
  %1866 = vmatpush1.bf16.msra.mxu0 0
  %1867 = vmatprep.subr.bf16.mxu0 0
  %1868 = vmatpush1.bf16.msra.mxu0 0
  %1869 = vmatprep.subr.bf16.mxu0 0
  %1870 = vmatpush1.bf16.msra.mxu0 0
  %1871 = vmatprep.subr.bf16.mxu0 0
  %1872 = vmatpush1.bf16.msra.mxu0 0
  %1873 = vmatprep.subr.bf16.mxu0 0
  %1874 = vmatpush1.bf16.msra.mxu0 0
  %1875 = vmatprep.subr.bf16.mxu0 0
  %1876 = vmatpush1.bf16.msra.mxu0 0
  %1877 = vmatprep.subr.bf16.mxu0 0
  %1878 = vmatpush1.bf16.msra.mxu0 0
  %1879 = vmatprep.subr.bf16.mxu0 0
  %1880 = vmatpush1.bf16.msra.mxu0 0
  %1881 = vmatprep.mubr.bf16.mxu0 0
  %1882 = vmatmul.mubr.bf16.gmra.mrb[0].mxu0 %v163
  %v1883 = vpop.f32.mrb[0].mxu0
  %v1884 = vadd.f32 0.0, %v1883
  %v1885 = vpop.f32.mrb[0].mxu0
  %v1886 = vpop.f32.mrb[0].mxu0
  %v1887 = vadd.f32 0.0, %v1886
  %v1888 = vpop.f32.mrb[0].mxu0
  %1889 = vmatprep.mubr.bf16.mxu0 0
  %1890 = vmatmul.mubr.bf16.gmra.mrb[0].mxu0 %v166
  %v1891 = vpop.f32.mrb[0].mxu0
  %v1892 = vadd.f32 0.0, %v1891
  %v1893 = vpop.f32.mrb[0].mxu0
  %v1894 = vpop.f32.mrb[0].mxu0
  %v1895 = vadd.f32 0.0, %v1894
  %v1896 = vpop.f32.mrb[0].mxu0
  %1897 = vmatprep.mubr.bf16.mxu0 0
  %1898 = vmatmul.mubr.bf16.gmra.mrb[0].mxu0 %v169
  %v1899 = vpop.f32.mrb[0].mxu0
  %v1900 = vadd.f32 0.0, %v1899
  %v1901 = vpop.f32.mrb[0].mxu0
  %v1902 = vpop.f32.mrb[0].mxu0
  %v1903 = vadd.f32 0.0, %v1902
  %v1904 = vpop.f32.mrb[0].mxu0
  %1905 = vdwg.mxu0
  %s1906 = scalar_lea.vmem %s2, 32
  %v1907 = vld [vmem:[%s1906] sm:$0xf]
  %v1908 = vld [vmem:[%s1906 + $0x4] sm:$0xf]
  %v1909 = vld [vmem:[%s1906 + $0x8] sm:$0xf]
  %v1910 = vld [vmem:[%s1906 + $0xc] sm:$0xf]
  %v1915 = vunpack.c.l.b16 %v1907
  %v1916 = vunpack.c.l.b16 %v1908
  %v1917 = vunpack.c.l.b16 %v1909
  %v1918 = vunpack.c.l.b16 %v1910
  %v1919 = vpack.c.b16 %v1916, %v1915
  %v1920 = vpack.c.b16 %v1918, %v1917
  %1923 = vmatprep.subr.bf16.mxu0 0
  %1924 = vmatpush1.bf16.msra.mxu0 %v1919
  %1925 = vmatprep.subr.bf16.mxu0 0
  %1926 = vmatpush1.bf16.msra.mxu0 %v1920
  %1927 = vmatprep.subr.bf16.mxu0 0
  %1928 = vmatpush1.bf16.msra.mxu0 0
  %1929 = vmatprep.subr.bf16.mxu0 0
  %1930 = vmatpush1.bf16.msra.mxu0 0
  %1931 = vmatprep.subr.bf16.mxu0 0
  %1932 = vmatpush1.bf16.msra.mxu0 0
  %1933 = vmatprep.subr.bf16.mxu0 0
  %1934 = vmatpush1.bf16.msra.mxu0 0
  %1935 = vmatprep.subr.bf16.mxu0 0
  %1936 = vmatpush1.bf16.msra.mxu0 0
  %1937 = vmatprep.subr.bf16.mxu0 0
  %1938 = vmatpush1.bf16.msra.mxu0 0
  %1939 = vmatprep.subr.bf16.mxu0 0
  %1940 = vmatpush1.bf16.msra.mxu0 0
  %1941 = vmatprep.subr.bf16.mxu0 0
  %1942 = vmatpush1.bf16.msra.mxu0 0
  %1943 = vmatprep.subr.bf16.mxu0 0
  %1944 = vmatpush1.bf16.msra.mxu0 0
  %1945 = vmatprep.subr.bf16.mxu0 0
  %1946 = vmatpush1.bf16.msra.mxu0 0
  %1947 = vmatprep.subr.bf16.mxu0 0
  %1948 = vmatpush1.bf16.msra.mxu0 0
  %1949 = vmatprep.subr.bf16.mxu0 0
  %1950 = vmatpush1.bf16.msra.mxu0 0
  %1951 = vmatprep.subr.bf16.mxu0 0
  %1952 = vmatpush1.bf16.msra.mxu0 0
  %1953 = vmatprep.subr.bf16.mxu0 0
  %1954 = vmatpush1.bf16.msra.mxu0 0
  %1955 = vmatprep.mubr.bf16.mxu0 0
  %1956 = vmatmul.mubr.bf16.gmra.mrb[0].mxu0 %v163
  %v1957 = vpop.f32.mrb[0].mxu0
  %v1958 = vadd.f32 0.0, %v1957
  %v1959 = vpop.f32.mrb[0].mxu0
  %v1960 = vpop.f32.mrb[0].mxu0
  %v1961 = vadd.f32 0.0, %v1960
  %v1962 = vpop.f32.mrb[0].mxu0
  %1963 = vmatprep.mubr.bf16.mxu0 0
  %1964 = vmatmul.mubr.bf16.gmra.mrb[0].mxu0 %v166
  %v1965 = vpop.f32.mrb[0].mxu0
  %v1966 = vadd.f32 0.0, %v1965
  %v1967 = vpop.f32.mrb[0].mxu0
  %v1968 = vpop.f32.mrb[0].mxu0
  %v1969 = vadd.f32 0.0, %v1968
  %v1970 = vpop.f32.mrb[0].mxu0
  %1971 = vmatprep.mubr.bf16.mxu0 0
  %1972 = vmatmul.mubr.bf16.gmra.mrb[0].mxu0 %v169
  %v1973 = vpop.f32.mrb[0].mxu0
  %v1974 = vadd.f32 0.0, %v1973
  %v1975 = vpop.f32.mrb[0].mxu0
  %v1976 = vpop.f32.mrb[0].mxu0
  %v1977 = vadd.f32 0.0, %v1976
  %v1978 = vpop.f32.mrb[0].mxu0
  %1979 = vdwg.mxu0
  %s1980 = scalar_lea.vmem %s3, 32
  %v1981 = vld [vmem:[%s1980] sm:$0xf]
  %v1982 = vld [vmem:[%s1980 + $0x4] sm:$0xf]
  %v1983 = vld [vmem:[%s1980 + $0x8] sm:$0xf]
  %v1984 = vld [vmem:[%s1980 + $0xc] sm:$0xf]
  %v1989 = vunpack.c.l.b16 %v1981
  %v1990 = vunpack.c.l.b16 %v1982
  %v1991 = vunpack.c.l.b16 %v1983
  %v1992 = vunpack.c.l.b16 %v1984
  %v1993 = vpack.c.b16 %v1990, %v1989
  %v1994 = vpack.c.b16 %v1992, %v1991
  %1997 = vmatprep.subr.bf16.mxu0 0
  %1998 = vmatpush1.bf16.msra.mxu0 %v1993
  %1999 = vmatprep.subr.bf16.mxu0 0
  %2000 = vmatpush1.bf16.msra.mxu0 %v1994
  %2001 = vmatprep.subr.bf16.mxu0 0
  %2002 = vmatpush1.bf16.msra.mxu0 0
  %2003 = vmatprep.subr.bf16.mxu0 0
  %2004 = vmatpush1.bf16.msra.mxu0 0
  %2005 = vmatprep.subr.bf16.mxu0 0
  %2006 = vmatpush1.bf16.msra.mxu0 0
  %2007 = vmatprep.subr.bf16.mxu0 0
  %2008 = vmatpush1.bf16.msra.mxu0 0
  %2009 = vmatprep.subr.bf16.mxu0 0
  %2010 = vmatpush1.bf16.msra.mxu0 0
  %2011 = vmatprep.subr.bf16.mxu0 0
  %2012 = vmatpush1.bf16.msra.mxu0 0
  %2013 = vmatprep.subr.bf16.mxu0 0
  %2014 = vmatpush1.bf16.msra.mxu0 0
  %2015 = vmatprep.subr.bf16.mxu0 0
  %2016 = vmatpush1.bf16.msra.mxu0 0
  %2017 = vmatprep.subr.bf16.mxu0 0
  %2018 = vmatpush1.bf16.msra.mxu0 0
  %2019 = vmatprep.subr.bf16.mxu0 0
  %2020 = vmatpush1.bf16.msra.mxu0 0
  %2021 = vmatprep.subr.bf16.mxu0 0
  %2022 = vmatpush1.bf16.msra.mxu0 0
  %2023 = vmatprep.subr.bf16.mxu0 0
  %2024 = vmatpush1.bf16.msra.mxu0 0
  %2025 = vmatprep.subr.bf16.mxu0 0
  %2026 = vmatpush1.bf16.msra.mxu0 0
  %2027 = vmatprep.subr.bf16.mxu0 0
  %2028 = vmatpush1.bf16.msra.mxu0 0
  %2029 = vmatprep.mubr.bf16.mxu0 0
  %2030 = vmatmul.mubr.bf16.gmra.mrb[0].mxu0 %v163
  %v2031 = vpop.f32.mrb[0].mxu0
  %v2032 = vadd.f32 0.0, %v2031
  %v2033 = vpop.f32.mrb[0].mxu0
  %v2034 = vpop.f32.mrb[0].mxu0
  %v2035 = vadd.f32 0.0, %v2034
  %v2036 = vpop.f32.mrb[0].mxu0
  %2037 = vmatprep.mubr.bf16.mxu0 0
  %2038 = vmatmul.mubr.bf16.gmra.mrb[0].mxu0 %v166
  %v2039 = vpop.f32.mrb[0].mxu0
  %v2040 = vadd.f32 0.0, %v2039
  %v2041 = vpop.f32.mrb[0].mxu0
  %v2042 = vpop.f32.mrb[0].mxu0
  %v2043 = vadd.f32 0.0, %v2042
  %v2044 = vpop.f32.mrb[0].mxu0
  %2045 = vmatprep.mubr.bf16.mxu0 0
  %2046 = vmatmul.mubr.bf16.gmra.mrb[0].mxu0 %v169
  %v2047 = vpop.f32.mrb[0].mxu0
  %v2048 = vadd.f32 0.0, %v2047
  %v2049 = vpop.f32.mrb[0].mxu0
  %v2050 = vpop.f32.mrb[0].mxu0
  %v2051 = vadd.f32 0.0, %v2050
  %v2052 = vpop.f32.mrb[0].mxu0
  %2053 = vdwg.mxu0
  %v2054 = vmul.f32 %v1884, %v63
  %v2055 = vmul.f32 %v1887, %v64
  %v2056 = vmul.f32 %v1892, %v65
  %v2057 = vmul.f32 %v1895, %v66
  %v2058 = vmul.f32 %v1900, %v67
  %v2059 = vmul.f32 %v1903, %v68
  %v2061 = vsel %vm380, %v1884, 0
  %v2064 = vsel %vm380, %v1887, 0
  %v2067 = vsel %vm380, %v1892, 0
  %v2070 = vsel %vm380, %v1895, 0
  %v2073 = vsel %vm380, %v1900, 0
  %v2076 = vsel %vm380, %v1903, 0
  %2078 = vmatprep.subr.mxu0 0.0
  %2079 = vmatpush1.msra.mxu0 %v75
  %2080 = vmatprep.subr.mxu0 0.0
  %2081 = vmatpush1.msra.mxu0 0.0
  %2082 = vmatprep.subr.mxu0 0.0
  %2083 = vmatpush1.msra.mxu0 0.0
  %2084 = vmatprep.subr.mxu0 0.0
  %2085 = vmatpush1.msra.mxu0 0.0
  %2086 = vmatprep.subr.mxu0 0.0
  %2087 = vmatpush1.msra.mxu0 0.0
  %2088 = vmatprep.subr.mxu0 0.0
  %2089 = vmatpush1.msra.mxu0 0.0
  %2090 = vmatprep.subr.mxu0 0.0
  %2091 = vmatpush1.msra.mxu0 0.0
  %2092 = vmatprep.subr.mxu0 0.0
  %2093 = vmatpush1.msra.mxu0 0.0
  %2094 = vmatprep.subr.mxu0 0.0
  %2095 = vmatpush1.msra.mxu0 0.0
  %2096 = vmatprep.subr.mxu0 0.0
  %2097 = vmatpush1.msra.mxu0 0.0
  %2098 = vmatprep.subr.mxu0 0.0
  %2099 = vmatpush1.msra.mxu0 0.0
  %2100 = vmatprep.subr.mxu0 0.0
  %2101 = vmatpush1.msra.mxu0 0.0
  %2102 = vmatprep.subr.mxu0 0.0
  %2103 = vmatpush1.msra.mxu0 0.0
  %2104 = vmatprep.subr.mxu0 0.0
  %2105 = vmatpush1.msra.mxu0 0.0
  %2106 = vmatprep.subr.mxu0 0.0
  %2107 = vmatpush1.msra.mxu0 0.0
  %2108 = vmatprep.subr.mxu0 0.0
  %2109 = vmatpush1.msra.mxu0 0.0
  %2110 = vmatprep.subr.mxu0 0.0
  %2111 = vmatpush1.msra.mxu0 0.0
  %2112 = vmatprep.subr.mxu0 0.0
  %2113 = vmatpush1.msra.mxu0 0.0
  %2114 = vmatprep.subr.mxu0 0.0
  %2115 = vmatpush1.msra.mxu0 0.0
  %2116 = vmatprep.subr.mxu0 0.0
  %2117 = vmatpush1.msra.mxu0 0.0
  %2118 = vmatprep.subr.mxu0 0.0
  %2119 = vmatpush1.msra.mxu0 0.0
  %2120 = vmatprep.subr.mxu0 0.0
  %2121 = vmatpush1.msra.mxu0 0.0
  %2122 = vmatprep.subr.mxu0 0.0
  %2123 = vmatpush1.msra.mxu0 0.0
  %2124 = vmatprep.subr.mxu0 0.0
  %2125 = vmatpush1.msra.mxu0 0.0
  %2126 = vmatprep.subr.mxu0 0.0
  %2127 = vmatpush1.msra.mxu0 0.0
  %2128 = vmatprep.subr.mxu0 0.0
  %2129 = vmatpush1.msra.mxu0 0.0
  %2130 = vmatprep.subr.mxu0 0.0
  %2131 = vmatpush1.msra.mxu0 0.0
  %2132 = vmatprep.subr.mxu0 0.0
  %2133 = vmatpush1.msra.mxu0 0.0
  %2134 = vmatprep.subr.mxu0 0.0
  %2135 = vmatpush1.msra.mxu0 0.0
  %2136 = vmatprep.subr.mxu0 0.0
  %2137 = vmatpush1.msra.mxu0 0.0
  %2138 = vmatprep.subr.mxu0 0.0
  %2139 = vmatpush1.msra.mxu0 0.0
  %2140 = vmatprep.subr.mxu0 0.0
  %2141 = vmatpush1.msra.mxu0 0.0
  %2142 = vmatprep.mubr.f32.mxu0 0.0
  %2143 = vmatmul.mubr.f32.gmra.mrb[0].mxu0 %v2061
  %v2144 = vpop.f32.mrb[0].mxu0
  %v2145 = vadd.f32 0.0, %v2144
  %v2146 = vpop.f32.mrb[0].mxu0
  %2147 = vmatprep.mubr.f32.mxu0 0.0
  %2148 = vmatmul.mubr.f32.gmra.mrb[0].mxu0 %v2064
  %v2149 = vpop.f32.mrb[0].mxu0
  %v2150 = vadd.f32 0.0, %v2149
  %v2151 = vpop.f32.mrb[0].mxu0
  %2152 = vmatprep.mubr.f32.mxu0 0.0
  %2153 = vmatmul.mubr.f32.gmra.mrb[0].mxu0 %v2067
  %v2154 = vpop.f32.mrb[0].mxu0
  %v2155 = vadd.f32 0.0, %v2154
  %v2156 = vpop.f32.mrb[0].mxu0
  %2157 = vmatprep.mubr.f32.mxu0 0.0
  %2158 = vmatmul.mubr.f32.gmra.mrb[0].mxu0 %v2070
  %v2159 = vpop.f32.mrb[0].mxu0
  %v2160 = vadd.f32 0.0, %v2159
  %v2161 = vpop.f32.mrb[0].mxu0
  %2162 = vmatprep.mubr.f32.mxu0 0.0
  %2163 = vmatmul.mubr.f32.gmra.mrb[0].mxu0 %v2073
  %v2164 = vpop.f32.mrb[0].mxu0
  %v2165 = vadd.f32 0.0, %v2164
  %v2166 = vpop.f32.mrb[0].mxu0
  %2167 = vmatprep.mubr.f32.mxu0 0.0
  %2168 = vmatmul.mubr.f32.gmra.mrb[0].mxu0 %v2076
  %v2169 = vpop.f32.mrb[0].mxu0
  %v2170 = vadd.f32 0.0, %v2169
  %v2171 = vpop.f32.mrb[0].mxu0
  %2172 = vdwg.mxu0
  %v2173 = vmul.f32 %v2145, %v69
  %v2174 = vmul.f32 %v2150, %v70
  %v2175 = vmul.f32 %v2155, %v71
  %v2176 = vmul.f32 %v2160, %v72
  %v2177 = vmul.f32 %v2165, %v73
  %v2178 = vmul.f32 %v2170, %v74
  %v2179 = vadd.f32 %v2054, %v2173
  %v2180 = vadd.f32 %v2055, %v2174
  %v2181 = vadd.f32 %v2056, %v2175
  %v2182 = vadd.f32 %v2057, %v2176
  %v2183 = vadd.f32 %v2058, %v2177
  %v2184 = vadd.f32 %v2059, %v2178
  %v2185 = vmul.f32 %v1958, %v63
  %v2186 = vmul.f32 %v1961, %v64
  %v2187 = vmul.f32 %v1966, %v65
  %v2188 = vmul.f32 %v1969, %v66
  %v2189 = vmul.f32 %v1974, %v67
  %v2190 = vmul.f32 %v1977, %v68
  %v2192 = vsel %vm380, %v1958, 0
  %v2195 = vsel %vm380, %v1961, 0
  %v2198 = vsel %vm380, %v1966, 0
  %v2201 = vsel %vm380, %v1969, 0
  %v2204 = vsel %vm380, %v1974, 0
  %v2207 = vsel %vm380, %v1977, 0
  %2209 = vmatprep.subr.mxu0 0.0
  %2210 = vmatpush1.msra.mxu0 %v75
  %2211 = vmatprep.subr.mxu0 0.0
  %2212 = vmatpush1.msra.mxu0 0.0
  %2213 = vmatprep.subr.mxu0 0.0
  %2214 = vmatpush1.msra.mxu0 0.0
  %2215 = vmatprep.subr.mxu0 0.0
  %2216 = vmatpush1.msra.mxu0 0.0
  %2217 = vmatprep.subr.mxu0 0.0
  %2218 = vmatpush1.msra.mxu0 0.0
  %2219 = vmatprep.subr.mxu0 0.0
  %2220 = vmatpush1.msra.mxu0 0.0
  %2221 = vmatprep.subr.mxu0 0.0
  %2222 = vmatpush1.msra.mxu0 0.0
  %2223 = vmatprep.subr.mxu0 0.0
  %2224 = vmatpush1.msra.mxu0 0.0
  %2225 = vmatprep.subr.mxu0 0.0
  %2226 = vmatpush1.msra.mxu0 0.0
  %2227 = vmatprep.subr.mxu0 0.0
  %2228 = vmatpush1.msra.mxu0 0.0
  %2229 = vmatprep.subr.mxu0 0.0
  %2230 = vmatpush1.msra.mxu0 0.0
  %2231 = vmatprep.subr.mxu0 0.0
  %2232 = vmatpush1.msra.mxu0 0.0
  %2233 = vmatprep.subr.mxu0 0.0
  %2234 = vmatpush1.msra.mxu0 0.0
  %2235 = vmatprep.subr.mxu0 0.0
  %2236 = vmatpush1.msra.mxu0 0.0
  %2237 = vmatprep.subr.mxu0 0.0
  %2238 = vmatpush1.msra.mxu0 0.0
  %2239 = vmatprep.subr.mxu0 0.0
  %2240 = vmatpush1.msra.mxu0 0.0
  %2241 = vmatprep.subr.mxu0 0.0
  %2242 = vmatpush1.msra.mxu0 0.0
  %2243 = vmatprep.subr.mxu0 0.0
  %2244 = vmatpush1.msra.mxu0 0.0
  %2245 = vmatprep.subr.mxu0 0.0
  %2246 = vmatpush1.msra.mxu0 0.0
  %2247 = vmatprep.subr.mxu0 0.0
  %2248 = vmatpush1.msra.mxu0 0.0
  %2249 = vmatprep.subr.mxu0 0.0
  %2250 = vmatpush1.msra.mxu0 0.0
  %2251 = vmatprep.subr.mxu0 0.0
  %2252 = vmatpush1.msra.mxu0 0.0
  %2253 = vmatprep.subr.mxu0 0.0
  %2254 = vmatpush1.msra.mxu0 0.0
  %2255 = vmatprep.subr.mxu0 0.0
  %2256 = vmatpush1.msra.mxu0 0.0
  %2257 = vmatprep.subr.mxu0 0.0
  %2258 = vmatpush1.msra.mxu0 0.0
  %2259 = vmatprep.subr.mxu0 0.0
  %2260 = vmatpush1.msra.mxu0 0.0
  %2261 = vmatprep.subr.mxu0 0.0
  %2262 = vmatpush1.msra.mxu0 0.0
  %2263 = vmatprep.subr.mxu0 0.0
  %2264 = vmatpush1.msra.mxu0 0.0
  %2265 = vmatprep.subr.mxu0 0.0
  %2266 = vmatpush1.msra.mxu0 0.0
  %2267 = vmatprep.subr.mxu0 0.0
  %2268 = vmatpush1.msra.mxu0 0.0
  %2269 = vmatprep.subr.mxu0 0.0
  %2270 = vmatpush1.msra.mxu0 0.0
  %2271 = vmatprep.subr.mxu0 0.0
  %2272 = vmatpush1.msra.mxu0 0.0
  %2273 = vmatprep.mubr.f32.mxu0 0.0
  %2274 = vmatmul.mubr.f32.gmra.mrb[0].mxu0 %v2192
  %v2275 = vpop.f32.mrb[0].mxu0
  %v2276 = vadd.f32 0.0, %v2275
  %v2277 = vpop.f32.mrb[0].mxu0
  %2278 = vmatprep.mubr.f32.mxu0 0.0
  %2279 = vmatmul.mubr.f32.gmra.mrb[0].mxu0 %v2195
  %v2280 = vpop.f32.mrb[0].mxu0
  %v2281 = vadd.f32 0.0, %v2280
  %v2282 = vpop.f32.mrb[0].mxu0
  %2283 = vmatprep.mubr.f32.mxu0 0.0
  %2284 = vmatmul.mubr.f32.gmra.mrb[0].mxu0 %v2198
  %v2285 = vpop.f32.mrb[0].mxu0
  %v2286 = vadd.f32 0.0, %v2285
  %v2287 = vpop.f32.mrb[0].mxu0
  %2288 = vmatprep.mubr.f32.mxu0 0.0
  %2289 = vmatmul.mubr.f32.gmra.mrb[0].mxu0 %v2201
  %v2290 = vpop.f32.mrb[0].mxu0
  %v2291 = vadd.f32 0.0, %v2290
  %v2292 = vpop.f32.mrb[0].mxu0
  %2293 = vmatprep.mubr.f32.mxu0 0.0
  %2294 = vmatmul.mubr.f32.gmra.mrb[0].mxu0 %v2204
  %v2295 = vpop.f32.mrb[0].mxu0
  %v2296 = vadd.f32 0.0, %v2295
  %v2297 = vpop.f32.mrb[0].mxu0
  %2298 = vmatprep.mubr.f32.mxu0 0.0
  %2299 = vmatmul.mubr.f32.gmra.mrb[0].mxu0 %v2207
  %v2300 = vpop.f32.mrb[0].mxu0
  %v2301 = vadd.f32 0.0, %v2300
  %v2302 = vpop.f32.mrb[0].mxu0
  %2303 = vdwg.mxu0
  %v2304 = vmul.f32 %v2276, %v69
  %v2305 = vmul.f32 %v2281, %v70
  %v2306 = vmul.f32 %v2286, %v71
  %v2307 = vmul.f32 %v2291, %v72
  %v2308 = vmul.f32 %v2296, %v73
  %v2309 = vmul.f32 %v2301, %v74
  %v2310 = vadd.f32 %v2185, %v2304
  %v2311 = vadd.f32 %v2186, %v2305
  %v2312 = vadd.f32 %v2187, %v2306
  %v2313 = vadd.f32 %v2188, %v2307
  %v2314 = vadd.f32 %v2189, %v2308
  %v2315 = vadd.f32 %v2190, %v2309
  %v2317 = vsel %vm380, %v2179, 0
  %v2320 = vsel %vm380, %v2180, 0
  %v2323 = vsel %vm380, %v2181, 0
  %v2326 = vsel %vm380, %v2182, 0
  %v2329 = vsel %vm380, %v2183, 0
  %v2332 = vsel %vm380, %v2184, 0
  %v2335 = vsel %vm380, %v2310, 0
  %v2338 = vsel %vm380, %v2311, 0
  %v2341 = vsel %vm380, %v2312, 0
  %v2344 = vsel %vm380, %v2313, 0
  %v2347 = vsel %vm380, %v2314, 0
  %v2350 = vsel %vm380, %v2315, 0
  %2352 = vmatprep.subr.mxu0 0.0
  %2353 = vmatpush1.xpose.msra.mxu0 %v2335
  %2354 = vmatprep.subr.mxu0 0.0
  %2355 = vmatpush1.xpose.msra.mxu0 %v2338
  %2356 = vmatprep.subr.mxu0 0.0
  %2357 = vmatpush1.xpose.msra.mxu0 %v2341
  %2358 = vmatprep.subr.mxu0 0.0
  %2359 = vmatpush1.xpose.msra.mxu0 %v2344
  %2360 = vmatprep.subr.mxu0 0.0
  %2361 = vmatpush1.xpose.msra.mxu0 %v2347
  %2362 = vmatprep.subr.mxu0 0.0
  %2363 = vmatpush1.xpose.msra.mxu0 %v2350
  %2364 = vmatprep.subr.mxu0 0.0
  %2365 = vmatpush1.xpose.msra.mxu0 0.0
  %2366 = vmatprep.subr.mxu0 0.0
  %2367 = vmatpush1.xpose.msra.mxu0 0.0
  %2368 = vmatprep.subr.mxu0 0.0
  %2369 = vmatpush1.xpose.msra.mxu0 0.0
  %2370 = vmatprep.subr.mxu0 0.0
  %2371 = vmatpush1.xpose.msra.mxu0 0.0
  %2372 = vmatprep.subr.mxu0 0.0
  %2373 = vmatpush1.xpose.msra.mxu0 0.0
  %2374 = vmatprep.subr.mxu0 0.0
  %2375 = vmatpush1.xpose.msra.mxu0 0.0
  %2376 = vmatprep.subr.mxu0 0.0
  %2377 = vmatpush1.xpose.msra.mxu0 0.0
  %2378 = vmatprep.subr.mxu0 0.0
  %2379 = vmatpush1.xpose.msra.mxu0 0.0
  %2380 = vmatprep.subr.mxu0 0.0
  %2381 = vmatpush1.xpose.msra.mxu0 0.0
  %2382 = vmatprep.subr.mxu0 0.0
  %2383 = vmatpush1.xpose.msra.mxu0 0.0
  %2384 = vmatprep.subr.mxu0 0.0
  %2385 = vmatpush1.xpose.msra.mxu0 0.0
  %2386 = vmatprep.subr.mxu0 0.0
  %2387 = vmatpush1.xpose.msra.mxu0 0.0
  %2388 = vmatprep.subr.mxu0 0.0
  %2389 = vmatpush1.xpose.msra.mxu0 0.0
  %2390 = vmatprep.subr.mxu0 0.0
  %2391 = vmatpush1.xpose.msra.mxu0 0.0
  %2392 = vmatprep.subr.mxu0 0.0
  %2393 = vmatpush1.xpose.msra.mxu0 0.0
  %2394 = vmatprep.subr.mxu0 0.0
  %2395 = vmatpush1.xpose.msra.mxu0 0.0
  %2396 = vmatprep.subr.mxu0 0.0
  %2397 = vmatpush1.xpose.msra.mxu0 0.0
  %2398 = vmatprep.subr.mxu0 0.0
  %2399 = vmatpush1.xpose.msra.mxu0 0.0
  %2400 = vmatprep.subr.mxu0 0.0
  %2401 = vmatpush1.xpose.msra.mxu0 0.0
  %2402 = vmatprep.subr.mxu0 0.0
  %2403 = vmatpush1.xpose.msra.mxu0 0.0
  %2404 = vmatprep.subr.mxu0 0.0
  %2405 = vmatpush1.xpose.msra.mxu0 0.0
  %2406 = vmatprep.subr.mxu0 0.0
  %2407 = vmatpush1.xpose.msra.mxu0 0.0
  %2408 = vmatprep.subr.mxu0 0.0
  %2409 = vmatpush1.xpose.msra.mxu0 0.0
  %2410 = vmatprep.subr.mxu0 0.0
  %2411 = vmatpush1.xpose.msra.mxu0 0.0
  %2412 = vmatprep.subr.mxu0 0.0
  %2413 = vmatpush1.xpose.msra.mxu0 0.0
  %2414 = vmatprep.subr.mxu0 0.0
  %2415 = vmatpush1.xpose.msra.mxu0 0.0
  %2416 = vmatprep.mubr.f32.mxu0 0.0
  %2417 = vmatmul.mubr.f32.gmra.mrb[0].mxu0 %v2317
  %v2418 = vpop.f32.mrb[0].mxu0
  %v2419 = vadd.f32 0.0, %v2418
  %v2420 = vpop.f32.mrb[0].mxu0
  %2421 = vmatprep.mubr.f32.mxu0 0.0
  %2422 = vmatmul.mubr.f32.gmra.mrb[0].mxu0 %v2320
  %v2423 = vpop.f32.mrb[0].mxu0
  %v2424 = vadd.f32 0.0, %v2423
  %v2425 = vpop.f32.mrb[0].mxu0
  %2426 = vmatprep.mubr.f32.mxu0 0.0
  %2427 = vmatmul.mubr.f32.gmra.mrb[0].mxu0 %v2323
  %v2428 = vpop.f32.mrb[0].mxu0
  %v2429 = vadd.f32 0.0, %v2428
  %v2430 = vpop.f32.mrb[0].mxu0
  %2431 = vmatprep.mubr.f32.mxu0 0.0
  %2432 = vmatmul.mubr.f32.gmra.mrb[0].mxu0 %v2326
  %v2433 = vpop.f32.mrb[0].mxu0
  %v2434 = vadd.f32 0.0, %v2433
  %v2435 = vpop.f32.mrb[0].mxu0
  %2436 = vmatprep.mubr.f32.mxu0 0.0
  %2437 = vmatmul.mubr.f32.gmra.mrb[0].mxu0 %v2329
  %v2438 = vpop.f32.mrb[0].mxu0
  %v2439 = vadd.f32 0.0, %v2438
  %v2440 = vpop.f32.mrb[0].mxu0
  %2441 = vmatprep.mubr.f32.mxu0 0.0
  %2442 = vmatmul.mubr.f32.gmra.mrb[0].mxu0 %v2332
  %v2443 = vpop.f32.mrb[0].mxu0
  %v2444 = vadd.f32 0.0, %v2443
  %v2445 = vpop.f32.mrb[0].mxu0
  %2446 = vdwg.mxu0
  %v2447 = vmul.f32 %v2419, 0.35355338
  %v2448 = vmul.f32 %v2424, 0.35355338
  %v2449 = vmul.f32 %v2429, 0.35355338
  %v2450 = vmul.f32 %v2434, 0.35355338
  %v2451 = vmul.f32 %v2439, 0.35355338
  %v2452 = vmul.f32 %v2444, 0.35355338
  %v2453 = vadd.f32 %v2447, %v76
  %v2454 = vadd.f32 %v2448, %v77
  %v2455 = vadd.f32 %v2449, %v78
  %v2456 = vadd.f32 %v2450, %v79
  %v2457 = vadd.f32 %v2451, %v80
  %v2458 = vadd.f32 %v2452, %v81
  %v2459 = vsel %vm780, %v2453, -inf
  %2460 = vmax.xlane.f32.xlu0 %v2459
  %v2461 = vpop.xlane.xlu0 %2460
  %v2462 = vsel %vm780, %v2454, -inf
  %2463 = vmax.xlane.f32.xlu0 %v2462
  %v2464 = vpop.xlane.xlu0 %2463
  %v2465 = vsel %vm780, %v2455, -inf
  %2466 = vmax.xlane.f32.xlu0 %v2465
  %v2467 = vpop.xlane.xlu0 %2466
  %v2468 = vsel %vm780, %v2456, -inf
  %2469 = vmax.xlane.f32.xlu0 %v2468
  %v2470 = vpop.xlane.xlu0 %2469
  %v2471 = vsel %vm780, %v2457, -inf
  %2472 = vmax.xlane.f32.xlu0 %v2471
  %v2473 = vpop.xlane.xlu0 %2472
  %v2474 = vsel %vm780, %v2458, -inf
  %2475 = vmax.xlane.f32.xlu0 %v2474
  %v2476 = vpop.xlane.xlu0 %2475
  %v2477 = vsub.f32 %v2453, %v2461
  %v2478 = vsub.f32 %v2454, %v2464
  %v2479 = vsub.f32 %v2455, %v2467
  %v2480 = vsub.f32 %v2456, %v2470
  %v2481 = vsub.f32 %v2457, %v2473
  %v2482 = vsub.f32 %v2458, %v2476
  %v2483 = vmul.f32 %v2477, 1.442695
  %v2484 = vpow.pop %v2483
  %v2485 = vmul.f32 %v2478, 1.442695
  %v2486 = vpow.pop %v2485
  %v2487 = vmul.f32 %v2479, 1.442695
  %v2488 = vpow.pop %v2487
  %v2489 = vmul.f32 %v2480, 1.442695
  %v2490 = vpow.pop %v2489
  %v2491 = vmul.f32 %v2481, 1.442695
  %v2492 = vpow.pop %v2491
  %v2493 = vmul.f32 %v2482, 1.442695
  %v2494 = vpow.pop %v2493
  %v2495 = vsel %vm780, %v2484, 0.0
  %2496 = vadd.xlane.f32.xlu0 %v2495
  %v2497 = vpop.xlane.xlu0 %2496
  %v2498 = vsel %vm780, %v2486, 0.0
  %2499 = vadd.xlane.f32.xlu0 %v2498
  %v2500 = vpop.xlane.xlu0 %2499
  %v2501 = vsel %vm780, %v2488, 0.0
  %2502 = vadd.xlane.f32.xlu0 %v2501
  %v2503 = vpop.xlane.xlu0 %2502
  %v2504 = vsel %vm780, %v2490, 0.0
  %2505 = vadd.xlane.f32.xlu0 %v2504
  %v2506 = vpop.xlane.xlu0 %2505
  %v2507 = vsel %vm780, %v2492, 0.0
  %2508 = vadd.xlane.f32.xlu0 %v2507
  %v2509 = vpop.xlane.xlu0 %2508
  %v2510 = vsel %vm780, %v2494, 0.0
  %2511 = vadd.xlane.f32.xlu0 %v2510
  %v2512 = vpop.xlane.xlu0 %2511
  %v2513 = vrcp.pop %v2497
  %v2514 = vmul.f32 %v2484, %v2513
  %v2515 = vrcp.pop %v2500
  %v2516 = vmul.f32 %v2486, %v2515
  %v2517 = vrcp.pop %v2503
  %v2518 = vmul.f32 %v2488, %v2517
  %v2519 = vrcp.pop %v2506
  %v2520 = vmul.f32 %v2490, %v2519
  %v2521 = vrcp.pop %v2509
  %v2522 = vmul.f32 %v2492, %v2521
  %v2523 = vrcp.pop %v2512
  %v2524 = vmul.f32 %v2494, %v2523
  %v2525 = vpack.c.bf16 %v2516, %v2514
  %v2526 = vpack.c.bf16 %v2520, %v2518
  %v2527 = vpack.c.bf16 %v2524, %v2522
  %v2528 = vpack.c.bf16 %v2035, %v2032
  %v2529 = vpack.c.bf16 %v2043, %v2040
  %v2530 = vpack.c.bf16 %v2051, %v2048
  %v2532 = vsel %vm780, %v2525, 0
  %v2535 = vsel %vm780, %v2526, 0
  %v2538 = vsel %vm780, %v2527, 0
  %2540 = vmatprep.subr.bf16.mxu0 0
  %2541 = vmatpush1.bf16.msra.mxu0 %v2528
  %2542 = vmatprep.subr.bf16.mxu0 0
  %2543 = vmatpush1.bf16.msra.mxu0 %v2529
  %2544 = vmatprep.subr.bf16.mxu0 0
  %2545 = vmatpush1.bf16.msra.mxu0 %v2530
  %2546 = vmatprep.subr.bf16.mxu0 0
  %2547 = vmatpush1.bf16.msra.mxu0 0
  %2548 = vmatprep.subr.bf16.mxu0 0
  %2549 = vmatpush1.bf16.msra.mxu0 0
  %2550 = vmatprep.subr.bf16.mxu0 0
  %2551 = vmatpush1.bf16.msra.mxu0 0
  %2552 = vmatprep.subr.bf16.mxu0 0
  %2553 = vmatpush1.bf16.msra.mxu0 0
  %2554 = vmatprep.subr.bf16.mxu0 0
  %2555 = vmatpush1.bf16.msra.mxu0 0
  %2556 = vmatprep.subr.bf16.mxu0 0
  %2557 = vmatpush1.bf16.msra.mxu0 0
  %2558 = vmatprep.subr.bf16.mxu0 0
  %2559 = vmatpush1.bf16.msra.mxu0 0
  %2560 = vmatprep.subr.bf16.mxu0 0
  %2561 = vmatpush1.bf16.msra.mxu0 0
  %2562 = vmatprep.subr.bf16.mxu0 0
  %2563 = vmatpush1.bf16.msra.mxu0 0
  %2564 = vmatprep.subr.bf16.mxu0 0
  %2565 = vmatpush1.bf16.msra.mxu0 0
  %2566 = vmatprep.subr.bf16.mxu0 0
  %2567 = vmatpush1.bf16.msra.mxu0 0
  %2568 = vmatprep.subr.bf16.mxu0 0
  %2569 = vmatpush1.bf16.msra.mxu0 0
  %2570 = vmatprep.subr.bf16.mxu0 0
  %2571 = vmatpush1.bf16.msra.mxu0 0
  %2572 = vmatprep.mubr.bf16.mxu0 0
  %2573 = vmatmul.mubr.bf16.gmra.mrb[0].mxu0 %v2532
  %v2574 = vpop.f32.mrb[0].mxu0
  %v2575 = vadd.f32 0.0, %v2574
  %v2576 = vpop.f32.mrb[0].mxu0
  %v2577 = vpop.f32.mrb[0].mxu0
  %v2578 = vadd.f32 0.0, %v2577
  %v2579 = vpop.f32.mrb[0].mxu0
  %2580 = vmatprep.mubr.bf16.mxu0 0
  %2581 = vmatmul.mubr.bf16.gmra.mrb[0].mxu0 %v2535
  %v2582 = vpop.f32.mrb[0].mxu0
  %v2583 = vadd.f32 0.0, %v2582
  %v2584 = vpop.f32.mrb[0].mxu0
  %v2585 = vpop.f32.mrb[0].mxu0
  %v2586 = vadd.f32 0.0, %v2585
  %v2587 = vpop.f32.mrb[0].mxu0
  %2588 = vmatprep.mubr.bf16.mxu0 0
  %2589 = vmatmul.mubr.bf16.gmra.mrb[0].mxu0 %v2538
  %v2590 = vpop.f32.mrb[0].mxu0
  %v2591 = vadd.f32 0.0, %v2590
  %v2592 = vpop.f32.mrb[0].mxu0
  %v2593 = vpop.f32.mrb[0].mxu0
  %v2594 = vadd.f32 0.0, %v2593
  %v2595 = vpop.f32.mrb[0].mxu0
  %2596 = vdwg.mxu0
  %v2597 = vpack.c.bf16 %v2578, %v2575
  %v2598 = vpack.c.bf16 %v2586, %v2583
  %v2599 = vpack.c.bf16 %v2594, %v2591
  %s2600 = scalar_lea.vmem %s4, 8
  %v2601 = vld [vmem:[%s2600] sm:$0xf]
  %v2603 = vsel %vm380, %v2597, 0
  %v2606 = vsel %vm380, %v2598, 0
  %v2609 = vsel %vm380, %v2599, 0
  %v2612 = vsel %vm1702, %v2601, 0
  %2614 = vmatprep.subr.bf16.mxu0 0
  %2615 = vmatpush1.bf16.msra.mxu0 %v2612
  %2616 = vmatprep.subr.bf16.mxu0 0
  %2617 = vmatpush1.bf16.msra.mxu0 0
  %2618 = vmatprep.subr.bf16.mxu0 0
  %2619 = vmatpush1.bf16.msra.mxu0 0
  %2620 = vmatprep.subr.bf16.mxu0 0
  %2621 = vmatpush1.bf16.msra.mxu0 0
  %2622 = vmatprep.subr.bf16.mxu0 0
  %2623 = vmatpush1.bf16.msra.mxu0 0
  %2624 = vmatprep.subr.bf16.mxu0 0
  %2625 = vmatpush1.bf16.msra.mxu0 0
  %2626 = vmatprep.subr.bf16.mxu0 0
  %2627 = vmatpush1.bf16.msra.mxu0 0
  %2628 = vmatprep.subr.bf16.mxu0 0
  %2629 = vmatpush1.bf16.msra.mxu0 0
  %2630 = vmatprep.subr.bf16.mxu0 0
  %2631 = vmatpush1.bf16.msra.mxu0 0
  %2632 = vmatprep.subr.bf16.mxu0 0
  %2633 = vmatpush1.bf16.msra.mxu0 0
  %2634 = vmatprep.subr.bf16.mxu0 0
  %2635 = vmatpush1.bf16.msra.mxu0 0
  %2636 = vmatprep.subr.bf16.mxu0 0
  %2637 = vmatpush1.bf16.msra.mxu0 0
  %2638 = vmatprep.subr.bf16.mxu0 0
  %2639 = vmatpush1.bf16.msra.mxu0 0
  %2640 = vmatprep.subr.bf16.mxu0 0
  %2641 = vmatpush1.bf16.msra.mxu0 0
  %2642 = vmatprep.subr.bf16.mxu0 0
  %2643 = vmatpush1.bf16.msra.mxu0 0
  %2644 = vmatprep.subr.bf16.mxu0 0
  %2645 = vmatpush1.bf16.msra.mxu0 0
  %2646 = vmatprep.mubr.bf16.mxu0 0
  %2647 = vmatmul.mubr.bf16.gmra.mrb[0].mxu0 %v2603
  %v2648 = vpop.f32.mrb[0].mxu0
  %v2649 = vadd.f32 0.0, %v2648
  %v2650 = vpop.f32.mrb[0].mxu0
  %v2651 = vpop.f32.mrb[0].mxu0
  %v2652 = vadd.f32 0.0, %v2651
  %v2653 = vpop.f32.mrb[0].mxu0
  %2654 = vmatprep.mubr.bf16.mxu0 0
  %2655 = vmatmul.mubr.bf16.gmra.mrb[0].mxu0 %v2606
  %v2656 = vpop.f32.mrb[0].mxu0
  %v2657 = vadd.f32 0.0, %v2656
  %v2658 = vpop.f32.mrb[0].mxu0
  %v2659 = vpop.f32.mrb[0].mxu0
  %v2660 = vadd.f32 0.0, %v2659
  %v2661 = vpop.f32.mrb[0].mxu0
  %2662 = vmatprep.mubr.bf16.mxu0 0
  %2663 = vmatmul.mubr.bf16.gmra.mrb[0].mxu0 %v2609
  %v2664 = vpop.f32.mrb[0].mxu0
  %v2665 = vadd.f32 0.0, %v2664
  %v2666 = vpop.f32.mrb[0].mxu0
  %v2667 = vpop.f32.mrb[0].mxu0
  %v2668 = vadd.f32 0.0, %v2667
  %v2669 = vpop.f32.mrb[0].mxu0
  %2670 = vdwg.mxu0
  %v2671 = vadd.f32 %v1810, %v2649
  %v2672 = vadd.f32 %v1813, %v2652
  %v2673 = vadd.f32 %v1818, %v2657
  %v2674 = vadd.f32 %v1821, %v2660
  %v2675 = vadd.f32 %v1826, %v2665
  %v2676 = vadd.f32 %v1829, %v2668
  %s2677 = scalar_lea.vmem %s1, 48
  %v2678 = vld [vmem:[%s2677] sm:$0xf]
  %v2679 = vld [vmem:[%s2677 + $0x4] sm:$0xf]
  %v2680 = vld [vmem:[%s2677 + $0x8] sm:$0xf]
  %v2681 = vld [vmem:[%s2677 + $0xc] sm:$0xf]
  %v2686 = vunpack.c.l.b16 %v2678
  %v2687 = vunpack.c.l.b16 %v2679
  %v2688 = vunpack.c.l.b16 %v2680
  %v2689 = vunpack.c.l.b16 %v2681
  %v2690 = vpack.c.b16 %v2687, %v2686
  %v2691 = vpack.c.b16 %v2689, %v2688
  %2694 = vmatprep.subr.bf16.mxu0 0
  %2695 = vmatpush1.bf16.msra.mxu0 %v2690
  %2696 = vmatprep.subr.bf16.mxu0 0
  %2697 = vmatpush1.bf16.msra.mxu0 %v2691
  %2698 = vmatprep.subr.bf16.mxu0 0
  %2699 = vmatpush1.bf16.msra.mxu0 0
  %2700 = vmatprep.subr.bf16.mxu0 0
  %2701 = vmatpush1.bf16.msra.mxu0 0
  %2702 = vmatprep.subr.bf16.mxu0 0
  %2703 = vmatpush1.bf16.msra.mxu0 0
  %2704 = vmatprep.subr.bf16.mxu0 0
  %2705 = vmatpush1.bf16.msra.mxu0 0
  %2706 = vmatprep.subr.bf16.mxu0 0
  %2707 = vmatpush1.bf16.msra.mxu0 0
  %2708 = vmatprep.subr.bf16.mxu0 0
  %2709 = vmatpush1.bf16.msra.mxu0 0
  %2710 = vmatprep.subr.bf16.mxu0 0
  %2711 = vmatpush1.bf16.msra.mxu0 0
  %2712 = vmatprep.subr.bf16.mxu0 0
  %2713 = vmatpush1.bf16.msra.mxu0 0
  %2714 = vmatprep.subr.bf16.mxu0 0
  %2715 = vmatpush1.bf16.msra.mxu0 0
  %2716 = vmatprep.subr.bf16.mxu0 0
  %2717 = vmatpush1.bf16.msra.mxu0 0
  %2718 = vmatprep.subr.bf16.mxu0 0
  %2719 = vmatpush1.bf16.msra.mxu0 0
  %2720 = vmatprep.subr.bf16.mxu0 0
  %2721 = vmatpush1.bf16.msra.mxu0 0
  %2722 = vmatprep.subr.bf16.mxu0 0
  %2723 = vmatpush1.bf16.msra.mxu0 0
  %2724 = vmatprep.subr.bf16.mxu0 0
  %2725 = vmatpush1.bf16.msra.mxu0 0
  %2726 = vmatprep.mubr.bf16.mxu0 0
  %2727 = vmatmul.mubr.bf16.gmra.mrb[0].mxu0 %v163
  %v2728 = vpop.f32.mrb[0].mxu0
  %v2729 = vadd.f32 0.0, %v2728
  %v2730 = vpop.f32.mrb[0].mxu0
  %v2731 = vpop.f32.mrb[0].mxu0
  %v2732 = vadd.f32 0.0, %v2731
  %v2733 = vpop.f32.mrb[0].mxu0
  %2734 = vmatprep.mubr.bf16.mxu0 0
  %2735 = vmatmul.mubr.bf16.gmra.mrb[0].mxu0 %v166
  %v2736 = vpop.f32.mrb[0].mxu0
  %v2737 = vadd.f32 0.0, %v2736
  %v2738 = vpop.f32.mrb[0].mxu0
  %v2739 = vpop.f32.mrb[0].mxu0
  %v2740 = vadd.f32 0.0, %v2739
  %v2741 = vpop.f32.mrb[0].mxu0
  %2742 = vmatprep.mubr.bf16.mxu0 0
  %2743 = vmatmul.mubr.bf16.gmra.mrb[0].mxu0 %v169
  %v2744 = vpop.f32.mrb[0].mxu0
  %v2745 = vadd.f32 0.0, %v2744
  %v2746 = vpop.f32.mrb[0].mxu0
  %v2747 = vpop.f32.mrb[0].mxu0
  %v2748 = vadd.f32 0.0, %v2747
  %v2749 = vpop.f32.mrb[0].mxu0
  %2750 = vdwg.mxu0
  %s2751 = scalar_lea.vmem %s2, 48
  %v2752 = vld [vmem:[%s2751] sm:$0xf]
  %v2753 = vld [vmem:[%s2751 + $0x4] sm:$0xf]
  %v2754 = vld [vmem:[%s2751 + $0x8] sm:$0xf]
  %v2755 = vld [vmem:[%s2751 + $0xc] sm:$0xf]
  %v2760 = vunpack.c.l.b16 %v2752
  %v2761 = vunpack.c.l.b16 %v2753
  %v2762 = vunpack.c.l.b16 %v2754
  %v2763 = vunpack.c.l.b16 %v2755
  %v2764 = vpack.c.b16 %v2761, %v2760
  %v2765 = vpack.c.b16 %v2763, %v2762
  %2768 = vmatprep.subr.bf16.mxu0 0
  %2769 = vmatpush1.bf16.msra.mxu0 %v2764
  %2770 = vmatprep.subr.bf16.mxu0 0
  %2771 = vmatpush1.bf16.msra.mxu0 %v2765
  %2772 = vmatprep.subr.bf16.mxu0 0
  %2773 = vmatpush1.bf16.msra.mxu0 0
  %2774 = vmatprep.subr.bf16.mxu0 0
  %2775 = vmatpush1.bf16.msra.mxu0 0
  %2776 = vmatprep.subr.bf16.mxu0 0
  %2777 = vmatpush1.bf16.msra.mxu0 0
  %2778 = vmatprep.subr.bf16.mxu0 0
  %2779 = vmatpush1.bf16.msra.mxu0 0
  %2780 = vmatprep.subr.bf16.mxu0 0
  %2781 = vmatpush1.bf16.msra.mxu0 0
  %2782 = vmatprep.subr.bf16.mxu0 0
  %2783 = vmatpush1.bf16.msra.mxu0 0
  %2784 = vmatprep.subr.bf16.mxu0 0
  %2785 = vmatpush1.bf16.msra.mxu0 0
  %2786 = vmatprep.subr.bf16.mxu0 0
  %2787 = vmatpush1.bf16.msra.mxu0 0
  %2788 = vmatprep.subr.bf16.mxu0 0
  %2789 = vmatpush1.bf16.msra.mxu0 0
  %2790 = vmatprep.subr.bf16.mxu0 0
  %2791 = vmatpush1.bf16.msra.mxu0 0
  %2792 = vmatprep.subr.bf16.mxu0 0
  %2793 = vmatpush1.bf16.msra.mxu0 0
  %2794 = vmatprep.subr.bf16.mxu0 0
  %2795 = vmatpush1.bf16.msra.mxu0 0
  %2796 = vmatprep.subr.bf16.mxu0 0
  %2797 = vmatpush1.bf16.msra.mxu0 0
  %2798 = vmatprep.subr.bf16.mxu0 0
  %2799 = vmatpush1.bf16.msra.mxu0 0
  %2800 = vmatprep.mubr.bf16.mxu0 0
  %2801 = vmatmul.mubr.bf16.gmra.mrb[0].mxu0 %v163
  %v2802 = vpop.f32.mrb[0].mxu0
  %v2803 = vadd.f32 0.0, %v2802
  %v2804 = vpop.f32.mrb[0].mxu0
  %v2805 = vpop.f32.mrb[0].mxu0
  %v2806 = vadd.f32 0.0, %v2805
  %v2807 = vpop.f32.mrb[0].mxu0
  %2808 = vmatprep.mubr.bf16.mxu0 0
  %2809 = vmatmul.mubr.bf16.gmra.mrb[0].mxu0 %v166
  %v2810 = vpop.f32.mrb[0].mxu0
  %v2811 = vadd.f32 0.0, %v2810
  %v2812 = vpop.f32.mrb[0].mxu0
  %v2813 = vpop.f32.mrb[0].mxu0
  %v2814 = vadd.f32 0.0, %v2813
  %v2815 = vpop.f32.mrb[0].mxu0
  %2816 = vmatprep.mubr.bf16.mxu0 0
  %2817 = vmatmul.mubr.bf16.gmra.mrb[0].mxu0 %v169
  %v2818 = vpop.f32.mrb[0].mxu0
  %v2819 = vadd.f32 0.0, %v2818
  %v2820 = vpop.f32.mrb[0].mxu0
  %v2821 = vpop.f32.mrb[0].mxu0
  %v2822 = vadd.f32 0.0, %v2821
  %v2823 = vpop.f32.mrb[0].mxu0
  %2824 = vdwg.mxu0
  %s2825 = scalar_lea.vmem %s3, 48
  %v2826 = vld [vmem:[%s2825] sm:$0xf]
  %v2827 = vld [vmem:[%s2825 + $0x4] sm:$0xf]
  %v2828 = vld [vmem:[%s2825 + $0x8] sm:$0xf]
  %v2829 = vld [vmem:[%s2825 + $0xc] sm:$0xf]
  %v2834 = vunpack.c.l.b16 %v2826
  %v2835 = vunpack.c.l.b16 %v2827
  %v2836 = vunpack.c.l.b16 %v2828
  %v2837 = vunpack.c.l.b16 %v2829
  %v2838 = vpack.c.b16 %v2835, %v2834
  %v2839 = vpack.c.b16 %v2837, %v2836
  %2842 = vmatprep.subr.bf16.mxu0 0
  %2843 = vmatpush1.bf16.msra.mxu0 %v2838
  %2844 = vmatprep.subr.bf16.mxu0 0
  %2845 = vmatpush1.bf16.msra.mxu0 %v2839
  %2846 = vmatprep.subr.bf16.mxu0 0
  %2847 = vmatpush1.bf16.msra.mxu0 0
  %2848 = vmatprep.subr.bf16.mxu0 0
  %2849 = vmatpush1.bf16.msra.mxu0 0
  %2850 = vmatprep.subr.bf16.mxu0 0
  %2851 = vmatpush1.bf16.msra.mxu0 0
  %2852 = vmatprep.subr.bf16.mxu0 0
  %2853 = vmatpush1.bf16.msra.mxu0 0
  %2854 = vmatprep.subr.bf16.mxu0 0
  %2855 = vmatpush1.bf16.msra.mxu0 0
  %2856 = vmatprep.subr.bf16.mxu0 0
  %2857 = vmatpush1.bf16.msra.mxu0 0
  %2858 = vmatprep.subr.bf16.mxu0 0
  %2859 = vmatpush1.bf16.msra.mxu0 0
  %2860 = vmatprep.subr.bf16.mxu0 0
  %2861 = vmatpush1.bf16.msra.mxu0 0
  %2862 = vmatprep.subr.bf16.mxu0 0
  %2863 = vmatpush1.bf16.msra.mxu0 0
  %2864 = vmatprep.subr.bf16.mxu0 0
  %2865 = vmatpush1.bf16.msra.mxu0 0
  %2866 = vmatprep.subr.bf16.mxu0 0
  %2867 = vmatpush1.bf16.msra.mxu0 0
  %2868 = vmatprep.subr.bf16.mxu0 0
  %2869 = vmatpush1.bf16.msra.mxu0 0
  %2870 = vmatprep.subr.bf16.mxu0 0
  %2871 = vmatpush1.bf16.msra.mxu0 0
  %2872 = vmatprep.subr.bf16.mxu0 0
  %2873 = vmatpush1.bf16.msra.mxu0 0
  %2874 = vmatprep.mubr.bf16.mxu0 0
  %2875 = vmatmul.mubr.bf16.gmra.mrb[0].mxu0 %v163
  %v2876 = vpop.f32.mrb[0].mxu0
  %v2877 = vadd.f32 0.0, %v2876
  %v2878 = vpop.f32.mrb[0].mxu0
  %v2879 = vpop.f32.mrb[0].mxu0
  %v2880 = vadd.f32 0.0, %v2879
  %v2881 = vpop.f32.mrb[0].mxu0
  %2882 = vmatprep.mubr.bf16.mxu0 0
  %2883 = vmatmul.mubr.bf16.gmra.mrb[0].mxu0 %v166
  %v2884 = vpop.f32.mrb[0].mxu0
  %v2885 = vadd.f32 0.0, %v2884
  %v2886 = vpop.f32.mrb[0].mxu0
  %v2887 = vpop.f32.mrb[0].mxu0
  %v2888 = vadd.f32 0.0, %v2887
  %v2889 = vpop.f32.mrb[0].mxu0
  %2890 = vmatprep.mubr.bf16.mxu0 0
  %2891 = vmatmul.mubr.bf16.gmra.mrb[0].mxu0 %v169
  %v2892 = vpop.f32.mrb[0].mxu0
  %v2893 = vadd.f32 0.0, %v2892
  %v2894 = vpop.f32.mrb[0].mxu0
  %v2895 = vpop.f32.mrb[0].mxu0
  %v2896 = vadd.f32 0.0, %v2895
  %v2897 = vpop.f32.mrb[0].mxu0
  %2898 = vdwg.mxu0
  %v2899 = vmul.f32 %v2729, %v63
  %v2900 = vmul.f32 %v2732, %v64
  %v2901 = vmul.f32 %v2737, %v65
  %v2902 = vmul.f32 %v2740, %v66
  %v2903 = vmul.f32 %v2745, %v67
  %v2904 = vmul.f32 %v2748, %v68
  %v2906 = vsel %vm380, %v2729, 0
  %v2909 = vsel %vm380, %v2732, 0
  %v2912 = vsel %vm380, %v2737, 0
  %v2915 = vsel %vm380, %v2740, 0
  %v2918 = vsel %vm380, %v2745, 0
  %v2921 = vsel %vm380, %v2748, 0
  %2923 = vmatprep.subr.mxu0 0.0
  %2924 = vmatpush1.msra.mxu0 %v75
  %2925 = vmatprep.subr.mxu0 0.0
  %2926 = vmatpush1.msra.mxu0 0.0
  %2927 = vmatprep.subr.mxu0 0.0
  %2928 = vmatpush1.msra.mxu0 0.0
  %2929 = vmatprep.subr.mxu0 0.0
  %2930 = vmatpush1.msra.mxu0 0.0
  %2931 = vmatprep.subr.mxu0 0.0
  %2932 = vmatpush1.msra.mxu0 0.0
  %2933 = vmatprep.subr.mxu0 0.0
  %2934 = vmatpush1.msra.mxu0 0.0
  %2935 = vmatprep.subr.mxu0 0.0
  %2936 = vmatpush1.msra.mxu0 0.0
  %2937 = vmatprep.subr.mxu0 0.0
  %2938 = vmatpush1.msra.mxu0 0.0
  %2939 = vmatprep.subr.mxu0 0.0
  %2940 = vmatpush1.msra.mxu0 0.0
  %2941 = vmatprep.subr.mxu0 0.0
  %2942 = vmatpush1.msra.mxu0 0.0
  %2943 = vmatprep.subr.mxu0 0.0
  %2944 = vmatpush1.msra.mxu0 0.0
  %2945 = vmatprep.subr.mxu0 0.0
  %2946 = vmatpush1.msra.mxu0 0.0
  %2947 = vmatprep.subr.mxu0 0.0
  %2948 = vmatpush1.msra.mxu0 0.0
  %2949 = vmatprep.subr.mxu0 0.0
  %2950 = vmatpush1.msra.mxu0 0.0
  %2951 = vmatprep.subr.mxu0 0.0
  %2952 = vmatpush1.msra.mxu0 0.0
  %2953 = vmatprep.subr.mxu0 0.0
  %2954 = vmatpush1.msra.mxu0 0.0
  %2955 = vmatprep.subr.mxu0 0.0
  %2956 = vmatpush1.msra.mxu0 0.0
  %2957 = vmatprep.subr.mxu0 0.0
  %2958 = vmatpush1.msra.mxu0 0.0
  %2959 = vmatprep.subr.mxu0 0.0
  %2960 = vmatpush1.msra.mxu0 0.0
  %2961 = vmatprep.subr.mxu0 0.0
  %2962 = vmatpush1.msra.mxu0 0.0
  %2963 = vmatprep.subr.mxu0 0.0
  %2964 = vmatpush1.msra.mxu0 0.0
  %2965 = vmatprep.subr.mxu0 0.0
  %2966 = vmatpush1.msra.mxu0 0.0
  %2967 = vmatprep.subr.mxu0 0.0
  %2968 = vmatpush1.msra.mxu0 0.0
  %2969 = vmatprep.subr.mxu0 0.0
  %2970 = vmatpush1.msra.mxu0 0.0
  %2971 = vmatprep.subr.mxu0 0.0
  %2972 = vmatpush1.msra.mxu0 0.0
  %2973 = vmatprep.subr.mxu0 0.0
  %2974 = vmatpush1.msra.mxu0 0.0
  %2975 = vmatprep.subr.mxu0 0.0
  %2976 = vmatpush1.msra.mxu0 0.0
  %2977 = vmatprep.subr.mxu0 0.0
  %2978 = vmatpush1.msra.mxu0 0.0
  %2979 = vmatprep.subr.mxu0 0.0
  %2980 = vmatpush1.msra.mxu0 0.0
  %2981 = vmatprep.subr.mxu0 0.0
  %2982 = vmatpush1.msra.mxu0 0.0
  %2983 = vmatprep.subr.mxu0 0.0
  %2984 = vmatpush1.msra.mxu0 0.0
  %2985 = vmatprep.subr.mxu0 0.0
  %2986 = vmatpush1.msra.mxu0 0.0
  %2987 = vmatprep.mubr.f32.mxu0 0.0
  %2988 = vmatmul.mubr.f32.gmra.mrb[0].mxu0 %v2906
  %v2989 = vpop.f32.mrb[0].mxu0
  %v2990 = vadd.f32 0.0, %v2989
  %v2991 = vpop.f32.mrb[0].mxu0
  %2992 = vmatprep.mubr.f32.mxu0 0.0
  %2993 = vmatmul.mubr.f32.gmra.mrb[0].mxu0 %v2909
  %v2994 = vpop.f32.mrb[0].mxu0
  %v2995 = vadd.f32 0.0, %v2994
  %v2996 = vpop.f32.mrb[0].mxu0
  %2997 = vmatprep.mubr.f32.mxu0 0.0
  %2998 = vmatmul.mubr.f32.gmra.mrb[0].mxu0 %v2912
  %v2999 = vpop.f32.mrb[0].mxu0
  %v3000 = vadd.f32 0.0, %v2999
  %v3001 = vpop.f32.mrb[0].mxu0
  %3002 = vmatprep.mubr.f32.mxu0 0.0
  %3003 = vmatmul.mubr.f32.gmra.mrb[0].mxu0 %v2915
  %v3004 = vpop.f32.mrb[0].mxu0
  %v3005 = vadd.f32 0.0, %v3004
  %v3006 = vpop.f32.mrb[0].mxu0
  %3007 = vmatprep.mubr.f32.mxu0 0.0
  %3008 = vmatmul.mubr.f32.gmra.mrb[0].mxu0 %v2918
  %v3009 = vpop.f32.mrb[0].mxu0
  %v3010 = vadd.f32 0.0, %v3009
  %v3011 = vpop.f32.mrb[0].mxu0
  %3012 = vmatprep.mubr.f32.mxu0 0.0
  %3013 = vmatmul.mubr.f32.gmra.mrb[0].mxu0 %v2921
  %v3014 = vpop.f32.mrb[0].mxu0
  %v3015 = vadd.f32 0.0, %v3014
  %v3016 = vpop.f32.mrb[0].mxu0
  %3017 = vdwg.mxu0
  %v3018 = vmul.f32 %v2990, %v69
  %v3019 = vmul.f32 %v2995, %v70
  %v3020 = vmul.f32 %v3000, %v71
  %v3021 = vmul.f32 %v3005, %v72
  %v3022 = vmul.f32 %v3010, %v73
  %v3023 = vmul.f32 %v3015, %v74
  %v3024 = vadd.f32 %v2899, %v3018
  %v3025 = vadd.f32 %v2900, %v3019
  %v3026 = vadd.f32 %v2901, %v3020
  %v3027 = vadd.f32 %v2902, %v3021
  %v3028 = vadd.f32 %v2903, %v3022
  %v3029 = vadd.f32 %v2904, %v3023
  %v3030 = vmul.f32 %v2803, %v63
  %v3031 = vmul.f32 %v2806, %v64
  %v3032 = vmul.f32 %v2811, %v65
  %v3033 = vmul.f32 %v2814, %v66
  %v3034 = vmul.f32 %v2819, %v67
  %v3035 = vmul.f32 %v2822, %v68
  %v3037 = vsel %vm380, %v2803, 0
  %v3040 = vsel %vm380, %v2806, 0
  %v3043 = vsel %vm380, %v2811, 0
  %v3046 = vsel %vm380, %v2814, 0
  %v3049 = vsel %vm380, %v2819, 0
  %v3052 = vsel %vm380, %v2822, 0
  %3054 = vmatprep.subr.mxu0 0.0
  %3055 = vmatpush1.msra.mxu0 %v75
  %3056 = vmatprep.subr.mxu0 0.0
  %3057 = vmatpush1.msra.mxu0 0.0
  %3058 = vmatprep.subr.mxu0 0.0
  %3059 = vmatpush1.msra.mxu0 0.0
  %3060 = vmatprep.subr.mxu0 0.0
  %3061 = vmatpush1.msra.mxu0 0.0
  %3062 = vmatprep.subr.mxu0 0.0
  %3063 = vmatpush1.msra.mxu0 0.0
  %3064 = vmatprep.subr.mxu0 0.0
  %3065 = vmatpush1.msra.mxu0 0.0
  %3066 = vmatprep.subr.mxu0 0.0
  %3067 = vmatpush1.msra.mxu0 0.0
  %3068 = vmatprep.subr.mxu0 0.0
  %3069 = vmatpush1.msra.mxu0 0.0
  %3070 = vmatprep.subr.mxu0 0.0
  %3071 = vmatpush1.msra.mxu0 0.0
  %3072 = vmatprep.subr.mxu0 0.0
  %3073 = vmatpush1.msra.mxu0 0.0
  %3074 = vmatprep.subr.mxu0 0.0
  %3075 = vmatpush1.msra.mxu0 0.0
  %3076 = vmatprep.subr.mxu0 0.0
  %3077 = vmatpush1.msra.mxu0 0.0
  %3078 = vmatprep.subr.mxu0 0.0
  %3079 = vmatpush1.msra.mxu0 0.0
  %3080 = vmatprep.subr.mxu0 0.0
  %3081 = vmatpush1.msra.mxu0 0.0
  %3082 = vmatprep.subr.mxu0 0.0
  %3083 = vmatpush1.msra.mxu0 0.0
  %3084 = vmatprep.subr.mxu0 0.0
  %3085 = vmatpush1.msra.mxu0 0.0
  %3086 = vmatprep.subr.mxu0 0.0
  %3087 = vmatpush1.msra.mxu0 0.0
  %3088 = vmatprep.subr.mxu0 0.0
  %3089 = vmatpush1.msra.mxu0 0.0
  %3090 = vmatprep.subr.mxu0 0.0
  %3091 = vmatpush1.msra.mxu0 0.0
  %3092 = vmatprep.subr.mxu0 0.0
  %3093 = vmatpush1.msra.mxu0 0.0
  %3094 = vmatprep.subr.mxu0 0.0
  %3095 = vmatpush1.msra.mxu0 0.0
  %3096 = vmatprep.subr.mxu0 0.0
  %3097 = vmatpush1.msra.mxu0 0.0
  %3098 = vmatprep.subr.mxu0 0.0
  %3099 = vmatpush1.msra.mxu0 0.0
  %3100 = vmatprep.subr.mxu0 0.0
  %3101 = vmatpush1.msra.mxu0 0.0
  %3102 = vmatprep.subr.mxu0 0.0
  %3103 = vmatpush1.msra.mxu0 0.0
  %3104 = vmatprep.subr.mxu0 0.0
  %3105 = vmatpush1.msra.mxu0 0.0
  %3106 = vmatprep.subr.mxu0 0.0
  %3107 = vmatpush1.msra.mxu0 0.0
  %3108 = vmatprep.subr.mxu0 0.0
  %3109 = vmatpush1.msra.mxu0 0.0
  %3110 = vmatprep.subr.mxu0 0.0
  %3111 = vmatpush1.msra.mxu0 0.0
  %3112 = vmatprep.subr.mxu0 0.0
  %3113 = vmatpush1.msra.mxu0 0.0
  %3114 = vmatprep.subr.mxu0 0.0
  %3115 = vmatpush1.msra.mxu0 0.0
  %3116 = vmatprep.subr.mxu0 0.0
  %3117 = vmatpush1.msra.mxu0 0.0
  %3118 = vmatprep.mubr.f32.mxu0 0.0
  %3119 = vmatmul.mubr.f32.gmra.mrb[0].mxu0 %v3037
  %v3120 = vpop.f32.mrb[0].mxu0
  %v3121 = vadd.f32 0.0, %v3120
  %v3122 = vpop.f32.mrb[0].mxu0
  %3123 = vmatprep.mubr.f32.mxu0 0.0
  %3124 = vmatmul.mubr.f32.gmra.mrb[0].mxu0 %v3040
  %v3125 = vpop.f32.mrb[0].mxu0
  %v3126 = vadd.f32 0.0, %v3125
  %v3127 = vpop.f32.mrb[0].mxu0
  %3128 = vmatprep.mubr.f32.mxu0 0.0
  %3129 = vmatmul.mubr.f32.gmra.mrb[0].mxu0 %v3043
  %v3130 = vpop.f32.mrb[0].mxu0
  %v3131 = vadd.f32 0.0, %v3130
  %v3132 = vpop.f32.mrb[0].mxu0
  %3133 = vmatprep.mubr.f32.mxu0 0.0
  %3134 = vmatmul.mubr.f32.gmra.mrb[0].mxu0 %v3046
  %v3135 = vpop.f32.mrb[0].mxu0
  %v3136 = vadd.f32 0.0, %v3135
  %v3137 = vpop.f32.mrb[0].mxu0
  %3138 = vmatprep.mubr.f32.mxu0 0.0
  %3139 = vmatmul.mubr.f32.gmra.mrb[0].mxu0 %v3049
  %v3140 = vpop.f32.mrb[0].mxu0
  %v3141 = vadd.f32 0.0, %v3140
  %v3142 = vpop.f32.mrb[0].mxu0
  %3143 = vmatprep.mubr.f32.mxu0 0.0
  %3144 = vmatmul.mubr.f32.gmra.mrb[0].mxu0 %v3052
  %v3145 = vpop.f32.mrb[0].mxu0
  %v3146 = vadd.f32 0.0, %v3145
  %v3147 = vpop.f32.mrb[0].mxu0
  %3148 = vdwg.mxu0
  %v3149 = vmul.f32 %v3121, %v69
  %v3150 = vmul.f32 %v3126, %v70
  %v3151 = vmul.f32 %v3131, %v71
  %v3152 = vmul.f32 %v3136, %v72
  %v3153 = vmul.f32 %v3141, %v73
  %v3154 = vmul.f32 %v3146, %v74
  %v3155 = vadd.f32 %v3030, %v3149
  %v3156 = vadd.f32 %v3031, %v3150
  %v3157 = vadd.f32 %v3032, %v3151
  %v3158 = vadd.f32 %v3033, %v3152
  %v3159 = vadd.f32 %v3034, %v3153
  %v3160 = vadd.f32 %v3035, %v3154
  %v3162 = vsel %vm380, %v3024, 0
  %v3165 = vsel %vm380, %v3025, 0
  %v3168 = vsel %vm380, %v3026, 0
  %v3171 = vsel %vm380, %v3027, 0
  %v3174 = vsel %vm380, %v3028, 0
  %v3177 = vsel %vm380, %v3029, 0
  %v3180 = vsel %vm380, %v3155, 0
  %v3183 = vsel %vm380, %v3156, 0
  %v3186 = vsel %vm380, %v3157, 0
  %v3189 = vsel %vm380, %v3158, 0
  %v3192 = vsel %vm380, %v3159, 0
  %v3195 = vsel %vm380, %v3160, 0
  %3197 = vmatprep.subr.mxu0 0.0
  %3198 = vmatpush1.xpose.msra.mxu0 %v3180
  %3199 = vmatprep.subr.mxu0 0.0
  %3200 = vmatpush1.xpose.msra.mxu0 %v3183
  %3201 = vmatprep.subr.mxu0 0.0
  %3202 = vmatpush1.xpose.msra.mxu0 %v3186
  %3203 = vmatprep.subr.mxu0 0.0
  %3204 = vmatpush1.xpose.msra.mxu0 %v3189
  %3205 = vmatprep.subr.mxu0 0.0
  %3206 = vmatpush1.xpose.msra.mxu0 %v3192
  %3207 = vmatprep.subr.mxu0 0.0
  %3208 = vmatpush1.xpose.msra.mxu0 %v3195
  %3209 = vmatprep.subr.mxu0 0.0
  %3210 = vmatpush1.xpose.msra.mxu0 0.0
  %3211 = vmatprep.subr.mxu0 0.0
  %3212 = vmatpush1.xpose.msra.mxu0 0.0
  %3213 = vmatprep.subr.mxu0 0.0
  %3214 = vmatpush1.xpose.msra.mxu0 0.0
  %3215 = vmatprep.subr.mxu0 0.0
  %3216 = vmatpush1.xpose.msra.mxu0 0.0
  %3217 = vmatprep.subr.mxu0 0.0
  %3218 = vmatpush1.xpose.msra.mxu0 0.0
  %3219 = vmatprep.subr.mxu0 0.0
  %3220 = vmatpush1.xpose.msra.mxu0 0.0
  %3221 = vmatprep.subr.mxu0 0.0
  %3222 = vmatpush1.xpose.msra.mxu0 0.0
  %3223 = vmatprep.subr.mxu0 0.0
  %3224 = vmatpush1.xpose.msra.mxu0 0.0
  %3225 = vmatprep.subr.mxu0 0.0
  %3226 = vmatpush1.xpose.msra.mxu0 0.0
  %3227 = vmatprep.subr.mxu0 0.0
  %3228 = vmatpush1.xpose.msra.mxu0 0.0
  %3229 = vmatprep.subr.mxu0 0.0
  %3230 = vmatpush1.xpose.msra.mxu0 0.0
  %3231 = vmatprep.subr.mxu0 0.0
  %3232 = vmatpush1.xpose.msra.mxu0 0.0
  %3233 = vmatprep.subr.mxu0 0.0
  %3234 = vmatpush1.xpose.msra.mxu0 0.0
  %3235 = vmatprep.subr.mxu0 0.0
  %3236 = vmatpush1.xpose.msra.mxu0 0.0
  %3237 = vmatprep.subr.mxu0 0.0
  %3238 = vmatpush1.xpose.msra.mxu0 0.0
  %3239 = vmatprep.subr.mxu0 0.0
  %3240 = vmatpush1.xpose.msra.mxu0 0.0
  %3241 = vmatprep.subr.mxu0 0.0
  %3242 = vmatpush1.xpose.msra.mxu0 0.0
  %3243 = vmatprep.subr.mxu0 0.0
  %3244 = vmatpush1.xpose.msra.mxu0 0.0
  %3245 = vmatprep.subr.mxu0 0.0
  %3246 = vmatpush1.xpose.msra.mxu0 0.0
  %3247 = vmatprep.subr.mxu0 0.0
  %3248 = vmatpush1.xpose.msra.mxu0 0.0
  %3249 = vmatprep.subr.mxu0 0.0
  %3250 = vmatpush1.xpose.msra.mxu0 0.0
  %3251 = vmatprep.subr.mxu0 0.0
  %3252 = vmatpush1.xpose.msra.mxu0 0.0
  %3253 = vmatprep.subr.mxu0 0.0
  %3254 = vmatpush1.xpose.msra.mxu0 0.0
  %3255 = vmatprep.subr.mxu0 0.0
  %3256 = vmatpush1.xpose.msra.mxu0 0.0
  %3257 = vmatprep.subr.mxu0 0.0
  %3258 = vmatpush1.xpose.msra.mxu0 0.0
  %3259 = vmatprep.subr.mxu0 0.0
  %3260 = vmatpush1.xpose.msra.mxu0 0.0
  %3261 = vmatprep.mubr.f32.mxu0 0.0
  %3262 = vmatmul.mubr.f32.gmra.mrb[0].mxu0 %v3162
  %v3263 = vpop.f32.mrb[0].mxu0
  %v3264 = vadd.f32 0.0, %v3263
  %v3265 = vpop.f32.mrb[0].mxu0
  %3266 = vmatprep.mubr.f32.mxu0 0.0
  %3267 = vmatmul.mubr.f32.gmra.mrb[0].mxu0 %v3165
  %v3268 = vpop.f32.mrb[0].mxu0
  %v3269 = vadd.f32 0.0, %v3268
  %v3270 = vpop.f32.mrb[0].mxu0
  %3271 = vmatprep.mubr.f32.mxu0 0.0
  %3272 = vmatmul.mubr.f32.gmra.mrb[0].mxu0 %v3168
  %v3273 = vpop.f32.mrb[0].mxu0
  %v3274 = vadd.f32 0.0, %v3273
  %v3275 = vpop.f32.mrb[0].mxu0
  %3276 = vmatprep.mubr.f32.mxu0 0.0
  %3277 = vmatmul.mubr.f32.gmra.mrb[0].mxu0 %v3171
  %v3278 = vpop.f32.mrb[0].mxu0
  %v3279 = vadd.f32 0.0, %v3278
  %v3280 = vpop.f32.mrb[0].mxu0
  %3281 = vmatprep.mubr.f32.mxu0 0.0
  %3282 = vmatmul.mubr.f32.gmra.mrb[0].mxu0 %v3174
  %v3283 = vpop.f32.mrb[0].mxu0
  %v3284 = vadd.f32 0.0, %v3283
  %v3285 = vpop.f32.mrb[0].mxu0
  %3286 = vmatprep.mubr.f32.mxu0 0.0
  %3287 = vmatmul.mubr.f32.gmra.mrb[0].mxu0 %v3177
  %v3288 = vpop.f32.mrb[0].mxu0
  %v3289 = vadd.f32 0.0, %v3288
  %v3290 = vpop.f32.mrb[0].mxu0
  %3291 = vdwg.mxu0
  %v3292 = vmul.f32 %v3264, 0.35355338
  %v3293 = vmul.f32 %v3269, 0.35355338
  %v3294 = vmul.f32 %v3274, 0.35355338
  %v3295 = vmul.f32 %v3279, 0.35355338
  %v3296 = vmul.f32 %v3284, 0.35355338
  %v3297 = vmul.f32 %v3289, 0.35355338
  %v3298 = vadd.f32 %v3292, %v76
  %v3299 = vadd.f32 %v3293, %v77
  %v3300 = vadd.f32 %v3294, %v78
  %v3301 = vadd.f32 %v3295, %v79
  %v3302 = vadd.f32 %v3296, %v80
  %v3303 = vadd.f32 %v3297, %v81
  %v3304 = vsel %vm780, %v3298, -inf
  %3305 = vmax.xlane.f32.xlu0 %v3304
  %v3306 = vpop.xlane.xlu0 %3305
  %v3307 = vsel %vm780, %v3299, -inf
  %3308 = vmax.xlane.f32.xlu0 %v3307
  %v3309 = vpop.xlane.xlu0 %3308
  %v3310 = vsel %vm780, %v3300, -inf
  %3311 = vmax.xlane.f32.xlu0 %v3310
  %v3312 = vpop.xlane.xlu0 %3311
  %v3313 = vsel %vm780, %v3301, -inf
  %3314 = vmax.xlane.f32.xlu0 %v3313
  %v3315 = vpop.xlane.xlu0 %3314
  %v3316 = vsel %vm780, %v3302, -inf
  %3317 = vmax.xlane.f32.xlu0 %v3316
  %v3318 = vpop.xlane.xlu0 %3317
  %v3319 = vsel %vm780, %v3303, -inf
  %3320 = vmax.xlane.f32.xlu0 %v3319
  %v3321 = vpop.xlane.xlu0 %3320
  %v3322 = vsub.f32 %v3298, %v3306
  %v3323 = vsub.f32 %v3299, %v3309
  %v3324 = vsub.f32 %v3300, %v3312
  %v3325 = vsub.f32 %v3301, %v3315
  %v3326 = vsub.f32 %v3302, %v3318
  %v3327 = vsub.f32 %v3303, %v3321
  %v3328 = vmul.f32 %v3322, 1.442695
  %v3329 = vpow.pop %v3328
  %v3330 = vmul.f32 %v3323, 1.442695
  %v3331 = vpow.pop %v3330
  %v3332 = vmul.f32 %v3324, 1.442695
  %v3333 = vpow.pop %v3332
  %v3334 = vmul.f32 %v3325, 1.442695
  %v3335 = vpow.pop %v3334
  %v3336 = vmul.f32 %v3326, 1.442695
  %v3337 = vpow.pop %v3336
  %v3338 = vmul.f32 %v3327, 1.442695
  %v3339 = vpow.pop %v3338
  %v3340 = vsel %vm780, %v3329, 0.0
  %3341 = vadd.xlane.f32.xlu0 %v3340
  %v3342 = vpop.xlane.xlu0 %3341
  %v3343 = vsel %vm780, %v3331, 0.0
  %3344 = vadd.xlane.f32.xlu0 %v3343
  %v3345 = vpop.xlane.xlu0 %3344
  %v3346 = vsel %vm780, %v3333, 0.0
  %3347 = vadd.xlane.f32.xlu0 %v3346
  %v3348 = vpop.xlane.xlu0 %3347
  %v3349 = vsel %vm780, %v3335, 0.0
  %3350 = vadd.xlane.f32.xlu0 %v3349
  %v3351 = vpop.xlane.xlu0 %3350
  %v3352 = vsel %vm780, %v3337, 0.0
  %3353 = vadd.xlane.f32.xlu0 %v3352
  %v3354 = vpop.xlane.xlu0 %3353
  %v3355 = vsel %vm780, %v3339, 0.0
  %3356 = vadd.xlane.f32.xlu0 %v3355
  %v3357 = vpop.xlane.xlu0 %3356
  %v3358 = vrcp.pop %v3342
  %v3359 = vmul.f32 %v3329, %v3358
  %v3360 = vrcp.pop %v3345
  %v3361 = vmul.f32 %v3331, %v3360
  %v3362 = vrcp.pop %v3348
  %v3363 = vmul.f32 %v3333, %v3362
  %v3364 = vrcp.pop %v3351
  %v3365 = vmul.f32 %v3335, %v3364
  %v3366 = vrcp.pop %v3354
  %v3367 = vmul.f32 %v3337, %v3366
  %v3368 = vrcp.pop %v3357
  %v3369 = vmul.f32 %v3339, %v3368
  %v3370 = vpack.c.bf16 %v3361, %v3359
  %v3371 = vpack.c.bf16 %v3365, %v3363
  %v3372 = vpack.c.bf16 %v3369, %v3367
  %v3373 = vpack.c.bf16 %v2880, %v2877
  %v3374 = vpack.c.bf16 %v2888, %v2885
  %v3375 = vpack.c.bf16 %v2896, %v2893
  %v3377 = vsel %vm780, %v3370, 0
  %v3380 = vsel %vm780, %v3371, 0
  %v3383 = vsel %vm780, %v3372, 0
  %3385 = vmatprep.subr.bf16.mxu0 0
  %3386 = vmatpush1.bf16.msra.mxu0 %v3373
  %3387 = vmatprep.subr.bf16.mxu0 0
  %3388 = vmatpush1.bf16.msra.mxu0 %v3374
  %3389 = vmatprep.subr.bf16.mxu0 0
  %3390 = vmatpush1.bf16.msra.mxu0 %v3375
  %3391 = vmatprep.subr.bf16.mxu0 0
  %3392 = vmatpush1.bf16.msra.mxu0 0
  %3393 = vmatprep.subr.bf16.mxu0 0
  %3394 = vmatpush1.bf16.msra.mxu0 0
  %3395 = vmatprep.subr.bf16.mxu0 0
  %3396 = vmatpush1.bf16.msra.mxu0 0
  %3397 = vmatprep.subr.bf16.mxu0 0
  %3398 = vmatpush1.bf16.msra.mxu0 0
  %3399 = vmatprep.subr.bf16.mxu0 0
  %3400 = vmatpush1.bf16.msra.mxu0 0
  %3401 = vmatprep.subr.bf16.mxu0 0
  %3402 = vmatpush1.bf16.msra.mxu0 0
  %3403 = vmatprep.subr.bf16.mxu0 0
  %3404 = vmatpush1.bf16.msra.mxu0 0
  %3405 = vmatprep.subr.bf16.mxu0 0
  %3406 = vmatpush1.bf16.msra.mxu0 0
  %3407 = vmatprep.subr.bf16.mxu0 0
  %3408 = vmatpush1.bf16.msra.mxu0 0
  %3409 = vmatprep.subr.bf16.mxu0 0
  %3410 = vmatpush1.bf16.msra.mxu0 0
  %3411 = vmatprep.subr.bf16.mxu0 0
  %3412 = vmatpush1.bf16.msra.mxu0 0
  %3413 = vmatprep.subr.bf16.mxu0 0
  %3414 = vmatpush1.bf16.msra.mxu0 0
  %3415 = vmatprep.subr.bf16.mxu0 0
  %3416 = vmatpush1.bf16.msra.mxu0 0
  %3417 = vmatprep.mubr.bf16.mxu0 0
  %3418 = vmatmul.mubr.bf16.gmra.mrb[0].mxu0 %v3377
  %v3419 = vpop.f32.mrb[0].mxu0
  %v3420 = vadd.f32 0.0, %v3419
  %v3421 = vpop.f32.mrb[0].mxu0
  %v3422 = vpop.f32.mrb[0].mxu0
  %v3423 = vadd.f32 0.0, %v3422
  %v3424 = vpop.f32.mrb[0].mxu0
  %3425 = vmatprep.mubr.bf16.mxu0 0
  %3426 = vmatmul.mubr.bf16.gmra.mrb[0].mxu0 %v3380
  %v3427 = vpop.f32.mrb[0].mxu0
  %v3428 = vadd.f32 0.0, %v3427
  %v3429 = vpop.f32.mrb[0].mxu0
  %v3430 = vpop.f32.mrb[0].mxu0
  %v3431 = vadd.f32 0.0, %v3430
  %v3432 = vpop.f32.mrb[0].mxu0
  %3433 = vmatprep.mubr.bf16.mxu0 0
  %3434 = vmatmul.mubr.bf16.gmra.mrb[0].mxu0 %v3383
  %v3435 = vpop.f32.mrb[0].mxu0
  %v3436 = vadd.f32 0.0, %v3435
  %v3437 = vpop.f32.mrb[0].mxu0
  %v3438 = vpop.f32.mrb[0].mxu0
  %v3439 = vadd.f32 0.0, %v3438
  %v3440 = vpop.f32.mrb[0].mxu0
  %3441 = vdwg.mxu0
  %v3442 = vpack.c.bf16 %v3423, %v3420
  %v3443 = vpack.c.bf16 %v3431, %v3428
  %v3444 = vpack.c.bf16 %v3439, %v3436
  %s3445 = scalar_lea.vmem %s4, 12
  %v3446 = vld [vmem:[%s3445] sm:$0xf]
  %v3448 = vsel %vm380, %v3442, 0
  %v3451 = vsel %vm380, %v3443, 0
  %v3454 = vsel %vm380, %v3444, 0
  %v3457 = vsel %vm1702, %v3446, 0
  %3459 = vmatprep.subr.bf16.mxu0 0
  %3460 = vmatpush1.bf16.msra.mxu0 %v3457
  %3461 = vmatprep.subr.bf16.mxu0 0
  %3462 = vmatpush1.bf16.msra.mxu0 0
  %3463 = vmatprep.subr.bf16.mxu0 0
  %3464 = vmatpush1.bf16.msra.mxu0 0
  %3465 = vmatprep.subr.bf16.mxu0 0
  %3466 = vmatpush1.bf16.msra.mxu0 0
  %3467 = vmatprep.subr.bf16.mxu0 0
  %3468 = vmatpush1.bf16.msra.mxu0 0
  %3469 = vmatprep.subr.bf16.mxu0 0
  %3470 = vmatpush1.bf16.msra.mxu0 0
  %3471 = vmatprep.subr.bf16.mxu0 0
  %3472 = vmatpush1.bf16.msra.mxu0 0
  %3473 = vmatprep.subr.bf16.mxu0 0
  %3474 = vmatpush1.bf16.msra.mxu0 0
  %3475 = vmatprep.subr.bf16.mxu0 0
  %3476 = vmatpush1.bf16.msra.mxu0 0
  %3477 = vmatprep.subr.bf16.mxu0 0
  %3478 = vmatpush1.bf16.msra.mxu0 0
  %3479 = vmatprep.subr.bf16.mxu0 0
  %3480 = vmatpush1.bf16.msra.mxu0 0
  %3481 = vmatprep.subr.bf16.mxu0 0
  %3482 = vmatpush1.bf16.msra.mxu0 0
  %3483 = vmatprep.subr.bf16.mxu0 0
  %3484 = vmatpush1.bf16.msra.mxu0 0
  %3485 = vmatprep.subr.bf16.mxu0 0
  %3486 = vmatpush1.bf16.msra.mxu0 0
  %3487 = vmatprep.subr.bf16.mxu0 0
  %3488 = vmatpush1.bf16.msra.mxu0 0
  %3489 = vmatprep.subr.bf16.mxu0 0
  %3490 = vmatpush1.bf16.msra.mxu0 0
  %3491 = vmatprep.mubr.bf16.mxu0 0
  %3492 = vmatmul.mubr.bf16.gmra.mrb[0].mxu0 %v3448
  %v3493 = vpop.f32.mrb[0].mxu0
  %v3494 = vadd.f32 0.0, %v3493
  %v3495 = vpop.f32.mrb[0].mxu0
  %v3496 = vpop.f32.mrb[0].mxu0
  %v3497 = vadd.f32 0.0, %v3496
  %v3498 = vpop.f32.mrb[0].mxu0
  %3499 = vmatprep.mubr.bf16.mxu0 0
  %3500 = vmatmul.mubr.bf16.gmra.mrb[0].mxu0 %v3451
  %v3501 = vpop.f32.mrb[0].mxu0
  %v3502 = vadd.f32 0.0, %v3501
  %v3503 = vpop.f32.mrb[0].mxu0
  %v3504 = vpop.f32.mrb[0].mxu0
  %v3505 = vadd.f32 0.0, %v3504
  %v3506 = vpop.f32.mrb[0].mxu0
  %3507 = vmatprep.mubr.bf16.mxu0 0
  %3508 = vmatmul.mubr.bf16.gmra.mrb[0].mxu0 %v3454
  %v3509 = vpop.f32.mrb[0].mxu0
  %v3510 = vadd.f32 0.0, %v3509
  %v3511 = vpop.f32.mrb[0].mxu0
  %v3512 = vpop.f32.mrb[0].mxu0
  %v3513 = vadd.f32 0.0, %v3512
  %v3514 = vpop.f32.mrb[0].mxu0
  %3515 = vdwg.mxu0
  %v3516 = vadd.f32 %v2671, %v3494
  %v3517 = vadd.f32 %v2672, %v3497
  %v3518 = vadd.f32 %v2673, %v3502
  %v3519 = vadd.f32 %v2674, %v3505
  %v3520 = vadd.f32 %v2675, %v3510
  %v3521 = vadd.f32 %v2676, %v3513
  %v3522 = vadd.f32 %v57, %v3516
  %v3523 = vadd.f32 %v58, %v3517
  %v3524 = vadd.f32 %v59, %v3518
  %v3525 = vadd.f32 %v60, %v3519
  %v3526 = vadd.f32 %v61, %v3520
  %v3527 = vadd.f32 %v62, %v3521
  %v3528 = vld [vmem:[%s9] sm:$0x1]
  %v3529 = vmul.f32 %v3522, %v3522
  %v3530 = vmul.f32 %v3523, %v3523
  %v3531 = vmul.f32 %v3524, %v3524
  %v3532 = vmul.f32 %v3525, %v3525
  %v3533 = vmul.f32 %v3526, %v3526
  %v3534 = vmul.f32 %v3527, %v3527
  %v3535 = vsel %vm89, %v3529, 0.0
  %3536 = vadd.xlane.f32.xlu0 %v3535
  %v3537 = vpop.xlane.xlu0 %3536
  %v3538 = vsel %vm89, %v3530, 0.0
  %3539 = vadd.xlane.f32.xlu0 %v3538
  %v3540 = vpop.xlane.xlu0 %3539
  %v3541 = vsel %vm89, %v3531, 0.0
  %3542 = vadd.xlane.f32.xlu0 %v3541
  %v3543 = vpop.xlane.xlu0 %3542
  %v3544 = vsel %vm89, %v3532, 0.0
  %3545 = vadd.xlane.f32.xlu0 %v3544
  %v3546 = vpop.xlane.xlu0 %3545
  %v3547 = vsel %vm89, %v3533, 0.0
  %3548 = vadd.xlane.f32.xlu0 %v3547
  %v3549 = vpop.xlane.xlu0 %3548
  %v3550 = vsel %vm89, %v3534, 0.0
  %3551 = vadd.xlane.f32.xlu0 %v3550
  %v3552 = vpop.xlane.xlu0 %3551
  %v3553 = vmul.f32 %v3537, %v108
  %v3554 = vmul.f32 %v3540, %v108
  %v3555 = vmul.f32 %v3543, %v108
  %v3556 = vmul.f32 %v3546, %v108
  %v3557 = vmul.f32 %v3549, %v108
  %v3558 = vmul.f32 %v3552, %v108
  %v3559 = vadd.f32 %v3553, 1e-06
  %v3560 = vadd.f32 %v3554, 1e-06
  %v3561 = vadd.f32 %v3555, 1e-06
  %v3562 = vadd.f32 %v3556, 1e-06
  %v3563 = vadd.f32 %v3557, 1e-06
  %v3564 = vadd.f32 %v3558, 1e-06
  %v3565 = vrsqrt.pop %v3559
  %v3566 = vrsqrt.pop %v3560
  %v3567 = vrsqrt.pop %v3561
  %v3568 = vrsqrt.pop %v3562
  %v3569 = vrsqrt.pop %v3563
  %v3570 = vrsqrt.pop %v3564
  %v3571 = vmul.f32 %v3522, %v3565
  %v3572 = vmul.f32 %v3523, %v3566
  %v3573 = vmul.f32 %v3524, %v3567
  %v3574 = vmul.f32 %v3525, %v3568
  %v3575 = vmul.f32 %v3526, %v3569
  %v3576 = vmul.f32 %v3527, %v3570
  %v3577 = vpack.c.bf16 %v3572, %v3571
  %v3578 = vpack.c.bf16 %v3574, %v3573
  %v3579 = vpack.c.bf16 %v3576, %v3575
  %v3581 = vpack.i.b16 %v3528, %v3528
  %v3583 = vlaneseq
  %v3584 = vshrl.u32 %v3583, 7
  %v3585 = vsub.s32 0, %v3584
  %v3586 = vrot.slane %v3581, %v3585
  %v3587 = vmul.bf16 %v3577, %v3586
  %v3588 = vmul.bf16 %v3578, %v3586
  %v3589 = vmul.bf16 %v3579, %v3586
  %v3590 = vld [vmem:[%s5] sm:$0xf]
  %v3591 = vld [vmem:[%s5 + $0x4] sm:$0xf]
  %v3592 = vld [vmem:[%s5 + $0x8] sm:$0xf]
  %v3593 = vld [vmem:[%s5 + $0xc] sm:$0xf]
  %v3598 = vunpack.c.l.b16 %v3590
  %v3599 = vunpack.c.l.b16 %v3591
  %v3600 = vunpack.c.l.b16 %v3592
  %v3601 = vunpack.c.l.b16 %v3593
  %v3602 = vpack.c.b16 %v3599, %v3598
  %v3603 = vpack.c.b16 %v3601, %v3600
  %v3607 = vsel %vm89, %v3587, 0
  %v3610 = vsel %vm89, %v3588, 0
  %v3613 = vsel %vm89, %v3589, 0
  %3615 = vmatprep.subr.bf16.mxu0 0
  %3616 = vmatpush1.bf16.msra.mxu0 %v3602
  %3617 = vmatprep.subr.bf16.mxu0 0
  %3618 = vmatpush1.bf16.msra.mxu0 %v3603
  %3619 = vmatprep.subr.bf16.mxu0 0
  %3620 = vmatpush1.bf16.msra.mxu0 0
  %3621 = vmatprep.subr.bf16.mxu0 0
  %3622 = vmatpush1.bf16.msra.mxu0 0
  %3623 = vmatprep.subr.bf16.mxu0 0
  %3624 = vmatpush1.bf16.msra.mxu0 0
  %3625 = vmatprep.subr.bf16.mxu0 0
  %3626 = vmatpush1.bf16.msra.mxu0 0
  %3627 = vmatprep.subr.bf16.mxu0 0
  %3628 = vmatpush1.bf16.msra.mxu0 0
  %3629 = vmatprep.subr.bf16.mxu0 0
  %3630 = vmatpush1.bf16.msra.mxu0 0
  %3631 = vmatprep.subr.bf16.mxu0 0
  %3632 = vmatpush1.bf16.msra.mxu0 0
  %3633 = vmatprep.subr.bf16.mxu0 0
  %3634 = vmatpush1.bf16.msra.mxu0 0
  %3635 = vmatprep.subr.bf16.mxu0 0
  %3636 = vmatpush1.bf16.msra.mxu0 0
  %3637 = vmatprep.subr.bf16.mxu0 0
  %3638 = vmatpush1.bf16.msra.mxu0 0
  %3639 = vmatprep.subr.bf16.mxu0 0
  %3640 = vmatpush1.bf16.msra.mxu0 0
  %3641 = vmatprep.subr.bf16.mxu0 0
  %3642 = vmatpush1.bf16.msra.mxu0 0
  %3643 = vmatprep.subr.bf16.mxu0 0
  %3644 = vmatpush1.bf16.msra.mxu0 0
  %3645 = vmatprep.subr.bf16.mxu0 0
  %3646 = vmatpush1.bf16.msra.mxu0 0
  %3647 = vmatprep.mubr.bf16.mxu0 0
  %3648 = vmatmul.mubr.bf16.gmra.mrb[0].mxu0 %v3607
  %v3649 = vpop.f32.mrb[0].mxu0
  %v3650 = vadd.f32 0.0, %v3649
  %v3651 = vpop.f32.mrb[0].mxu0
  %v3652 = vpop.f32.mrb[0].mxu0
  %v3653 = vadd.f32 0.0, %v3652
  %v3654 = vpop.f32.mrb[0].mxu0
  %3655 = vmatprep.mubr.bf16.mxu0 0
  %3656 = vmatmul.mubr.bf16.gmra.mrb[0].mxu0 %v3610
  %v3657 = vpop.f32.mrb[0].mxu0
  %v3658 = vadd.f32 0.0, %v3657
  %v3659 = vpop.f32.mrb[0].mxu0
  %v3660 = vpop.f32.mrb[0].mxu0
  %v3661 = vadd.f32 0.0, %v3660
  %v3662 = vpop.f32.mrb[0].mxu0
  %3663 = vmatprep.mubr.bf16.mxu0 0
  %3664 = vmatmul.mubr.bf16.gmra.mrb[0].mxu0 %v3613
  %v3665 = vpop.f32.mrb[0].mxu0
  %v3666 = vadd.f32 0.0, %v3665
  %v3667 = vpop.f32.mrb[0].mxu0
  %v3668 = vpop.f32.mrb[0].mxu0
  %v3669 = vadd.f32 0.0, %v3668
  %v3670 = vpop.f32.mrb[0].mxu0
  %3671 = vdwg.mxu0
  %v3672 = vld [vmem:[%s6] sm:$0xf]
  %v3673 = vld [vmem:[%s6 + $0x4] sm:$0xf]
  %v3674 = vld [vmem:[%s6 + $0x8] sm:$0xf]
  %v3675 = vld [vmem:[%s6 + $0xc] sm:$0xf]
  %v3680 = vunpack.c.l.b16 %v3672
  %v3681 = vunpack.c.l.b16 %v3673
  %v3682 = vunpack.c.l.b16 %v3674
  %v3683 = vunpack.c.l.b16 %v3675
  %v3684 = vpack.c.b16 %v3681, %v3680
  %v3685 = vpack.c.b16 %v3683, %v3682
  %3688 = vmatprep.subr.bf16.mxu0 0
  %3689 = vmatpush1.bf16.msra.mxu0 %v3684
  %3690 = vmatprep.subr.bf16.mxu0 0
  %3691 = vmatpush1.bf16.msra.mxu0 %v3685
  %3692 = vmatprep.subr.bf16.mxu0 0
  %3693 = vmatpush1.bf16.msra.mxu0 0
  %3694 = vmatprep.subr.bf16.mxu0 0
  %3695 = vmatpush1.bf16.msra.mxu0 0
  %3696 = vmatprep.subr.bf16.mxu0 0
  %3697 = vmatpush1.bf16.msra.mxu0 0
  %3698 = vmatprep.subr.bf16.mxu0 0
  %3699 = vmatpush1.bf16.msra.mxu0 0
  %3700 = vmatprep.subr.bf16.mxu0 0
  %3701 = vmatpush1.bf16.msra.mxu0 0
  %3702 = vmatprep.subr.bf16.mxu0 0
  %3703 = vmatpush1.bf16.msra.mxu0 0
  %3704 = vmatprep.subr.bf16.mxu0 0
  %3705 = vmatpush1.bf16.msra.mxu0 0
  %3706 = vmatprep.subr.bf16.mxu0 0
  %3707 = vmatpush1.bf16.msra.mxu0 0
  %3708 = vmatprep.subr.bf16.mxu0 0
  %3709 = vmatpush1.bf16.msra.mxu0 0
  %3710 = vmatprep.subr.bf16.mxu0 0
  %3711 = vmatpush1.bf16.msra.mxu0 0
  %3712 = vmatprep.subr.bf16.mxu0 0
  %3713 = vmatpush1.bf16.msra.mxu0 0
  %3714 = vmatprep.subr.bf16.mxu0 0
  %3715 = vmatpush1.bf16.msra.mxu0 0
  %3716 = vmatprep.subr.bf16.mxu0 0
  %3717 = vmatpush1.bf16.msra.mxu0 0
  %3718 = vmatprep.subr.bf16.mxu0 0
  %3719 = vmatpush1.bf16.msra.mxu0 0
  %3720 = vmatprep.mubr.bf16.mxu0 0
  %3721 = vmatmul.mubr.bf16.gmra.mrb[0].mxu0 %v3607
  %v3722 = vpop.f32.mrb[0].mxu0
  %v3723 = vadd.f32 0.0, %v3722
  %v3724 = vpop.f32.mrb[0].mxu0
  %v3725 = vpop.f32.mrb[0].mxu0
  %v3726 = vadd.f32 0.0, %v3725
  %v3727 = vpop.f32.mrb[0].mxu0
  %3728 = vmatprep.mubr.bf16.mxu0 0
  %3729 = vmatmul.mubr.bf16.gmra.mrb[0].mxu0 %v3610
  %v3730 = vpop.f32.mrb[0].mxu0
  %v3731 = vadd.f32 0.0, %v3730
  %v3732 = vpop.f32.mrb[0].mxu0
  %v3733 = vpop.f32.mrb[0].mxu0
  %v3734 = vadd.f32 0.0, %v3733
  %v3735 = vpop.f32.mrb[0].mxu0
  %3736 = vmatprep.mubr.bf16.mxu0 0
  %3737 = vmatmul.mubr.bf16.gmra.mrb[0].mxu0 %v3613
  %v3738 = vpop.f32.mrb[0].mxu0
  %v3739 = vadd.f32 0.0, %v3738
  %v3740 = vpop.f32.mrb[0].mxu0
  %v3741 = vpop.f32.mrb[0].mxu0
  %v3742 = vadd.f32 0.0, %v3741
  %v3743 = vpop.f32.mrb[0].mxu0
  %3744 = vdwg.mxu0
  %v3745 = vsub.f32 0.0, %v3650
  %v3746 = vsub.f32 0.0, %v3653
  %v3747 = vsub.f32 0.0, %v3658
  %v3748 = vsub.f32 0.0, %v3661
  %v3749 = vsub.f32 0.0, %v3666
  %v3750 = vsub.f32 0.0, %v3669
  %v3751 = vmul.f32 %v3745, 1.442695
  %v3752 = vpow.pop %v3751
  %v3753 = vmul.f32 %v3746, 1.442695
  %v3754 = vpow.pop %v3753
  %v3755 = vmul.f32 %v3747, 1.442695
  %v3756 = vpow.pop %v3755
  %v3757 = vmul.f32 %v3748, 1.442695
  %v3758 = vpow.pop %v3757
  %v3759 = vmul.f32 %v3749, 1.442695
  %v3760 = vpow.pop %v3759
  %v3761 = vmul.f32 %v3750, 1.442695
  %v3762 = vpow.pop %v3761
  %v3763 = vadd.f32 %v3752, 1.0
  %v3764 = vadd.f32 %v3754, 1.0
  %v3765 = vadd.f32 %v3756, 1.0
  %v3766 = vadd.f32 %v3758, 1.0
  %v3767 = vadd.f32 %v3760, 1.0
  %v3768 = vadd.f32 %v3762, 1.0
  %v3769 = vrcp.pop %v3763
  %v3770 = vmul.f32 %v3650, %v3769
  %v3771 = vrcp.pop %v3764
  %v3772 = vmul.f32 %v3653, %v3771
  %v3773 = vrcp.pop %v3765
  %v3774 = vmul.f32 %v3658, %v3773
  %v3775 = vrcp.pop %v3766
  %v3776 = vmul.f32 %v3661, %v3775
  %v3777 = vrcp.pop %v3767
  %v3778 = vmul.f32 %v3666, %v3777
  %v3779 = vrcp.pop %v3768
  %v3780 = vmul.f32 %v3669, %v3779
  %v3781 = vmul.f32 %v3770, %v3723
  %v3782 = vmul.f32 %v3772, %v3726
  %v3783 = vmul.f32 %v3774, %v3731
  %v3784 = vmul.f32 %v3776, %v3734
  %v3785 = vmul.f32 %v3778, %v3739
  %v3786 = vmul.f32 %v3780, %v3742
  %v3787 = vpack.c.bf16 %v3782, %v3781
  %v3788 = vpack.c.bf16 %v3784, %v3783
  %v3789 = vpack.c.bf16 %v3786, %v3785
  %v3790 = vld [vmem:[%s7] sm:$0xf]
  %v3791 = vld [vmem:[%s7 + $0x4] sm:$0xf]
  %v3792 = vld [vmem:[%s7 + $0x8] sm:$0xf]
  %v3793 = vld [vmem:[%s7 + $0xc] sm:$0xf]
  %v3794 = vld [vmem:[%s7 + $0x10] sm:$0xf]
  %v3795 = vld [vmem:[%s7 + $0x14] sm:$0xf]
  %v3796 = vld [vmem:[%s7 + $0x18] sm:$0xf]
  %v3797 = vld [vmem:[%s7 + $0x1c] sm:$0xf]
  %v3806 = vunpack.c.l.b16 %v3790
  %v3807 = vunpack.c.l.b16 %v3791
  %v3808 = vunpack.c.l.b16 %v3792
  %v3809 = vunpack.c.l.b16 %v3793
  %v3810 = vunpack.c.l.b16 %v3794
  %v3811 = vunpack.c.l.b16 %v3795
  %v3812 = vunpack.c.l.b16 %v3796
  %v3813 = vunpack.c.l.b16 %v3797
  %v3814 = vpack.c.b16 %v3807, %v3806
  %v3815 = vpack.c.b16 %v3809, %v3808
  %v3816 = vpack.c.b16 %v3811, %v3810
  %v3817 = vpack.c.b16 %v3813, %v3812
  %vm3822 = vcmask 523264
  %v3824 = vsel %vm3822, %v3787, 0
  %v3827 = vsel %vm3822, %v3788, 0
  %v3830 = vsel %vm3822, %v3789, 0
  %3832 = vmatprep.subr.bf16.mxu0 0
  %3833 = vmatpush1.bf16.msra.mxu0 %v3814
  %3834 = vmatprep.subr.bf16.mxu0 0
  %3835 = vmatpush1.bf16.msra.mxu0 %v3815
  %3836 = vmatprep.subr.bf16.mxu0 0
  %3837 = vmatpush1.bf16.msra.mxu0 %v3816
  %3838 = vmatprep.subr.bf16.mxu0 0
  %3839 = vmatpush1.bf16.msra.mxu0 %v3817
  %3840 = vmatprep.subr.bf16.mxu0 0
  %3841 = vmatpush1.bf16.msra.mxu0 0
  %3842 = vmatprep.subr.bf16.mxu0 0
  %3843 = vmatpush1.bf16.msra.mxu0 0
  %3844 = vmatprep.subr.bf16.mxu0 0
  %3845 = vmatpush1.bf16.msra.mxu0 0
  %3846 = vmatprep.subr.bf16.mxu0 0
  %3847 = vmatpush1.bf16.msra.mxu0 0
  %3848 = vmatprep.subr.bf16.mxu0 0
  %3849 = vmatpush1.bf16.msra.mxu0 0
  %3850 = vmatprep.subr.bf16.mxu0 0
  %3851 = vmatpush1.bf16.msra.mxu0 0
  %3852 = vmatprep.subr.bf16.mxu0 0
  %3853 = vmatpush1.bf16.msra.mxu0 0
  %3854 = vmatprep.subr.bf16.mxu0 0
  %3855 = vmatpush1.bf16.msra.mxu0 0
  %3856 = vmatprep.subr.bf16.mxu0 0
  %3857 = vmatpush1.bf16.msra.mxu0 0
  %3858 = vmatprep.subr.bf16.mxu0 0
  %3859 = vmatpush1.bf16.msra.mxu0 0
  %3860 = vmatprep.subr.bf16.mxu0 0
  %3861 = vmatpush1.bf16.msra.mxu0 0
  %3862 = vmatprep.subr.bf16.mxu0 0
  %3863 = vmatpush1.bf16.msra.mxu0 0
  %3864 = vmatprep.mubr.bf16.mxu0 0
  %3865 = vmatmul.mubr.bf16.gmra.mrb[0].mxu0 %v3824
  %v3866 = vpop.f32.mrb[0].mxu0
  %v3867 = vadd.f32 0.0, %v3866
  %v3868 = vpop.f32.mrb[0].mxu0
  %v3869 = vpop.f32.mrb[0].mxu0
  %v3870 = vadd.f32 0.0, %v3869
  %v3871 = vpop.f32.mrb[0].mxu0
  %3872 = vmatprep.mubr.bf16.mxu0 0
  %3873 = vmatmul.mubr.bf16.gmra.mrb[0].mxu0 %v3827
  %v3874 = vpop.f32.mrb[0].mxu0
  %v3875 = vadd.f32 0.0, %v3874
  %v3876 = vpop.f32.mrb[0].mxu0
  %v3877 = vpop.f32.mrb[0].mxu0
  %v3878 = vadd.f32 0.0, %v3877
  %v3879 = vpop.f32.mrb[0].mxu0
  %3880 = vmatprep.mubr.bf16.mxu0 0
  %3881 = vmatmul.mubr.bf16.gmra.mrb[0].mxu0 %v3830
  %v3882 = vpop.f32.mrb[0].mxu0
  %v3883 = vadd.f32 0.0, %v3882
  %v3884 = vpop.f32.mrb[0].mxu0
  %v3885 = vpop.f32.mrb[0].mxu0
  %v3886 = vadd.f32 0.0, %v3885
  %v3887 = vpop.f32.mrb[0].mxu0
  %3888 = vdwg.mxu0
  %v3889 = vadd.f32 %v3522, %v3867
  %v3890 = vadd.f32 %v3523, %v3870
  %v3891 = vadd.f32 %v3524, %v3875
  %v3892 = vadd.f32 %v3525, %v3878
  %v3893 = vadd.f32 %v3526, %v3883
  %v3894 = vadd.f32 %v3527, %v3886
  %s3895 = scalar_lea.vmem %s8, 1
  %v3896 = vld [vmem:[%s3895] sm:$0x1]
  %v3897 = vmul.f32 %v3889, %v3889
  %v3898 = vmul.f32 %v3890, %v3890
  %v3899 = vmul.f32 %v3891, %v3891
  %v3900 = vmul.f32 %v3892, %v3892
  %v3901 = vmul.f32 %v3893, %v3893
  %v3902 = vmul.f32 %v3894, %v3894
  %v3903 = vsel %vm89, %v3897, 0.0
  %3904 = vadd.xlane.f32.xlu0 %v3903
  %v3905 = vpop.xlane.xlu0 %3904
  %v3906 = vsel %vm89, %v3898, 0.0
  %3907 = vadd.xlane.f32.xlu0 %v3906
  %v3908 = vpop.xlane.xlu0 %3907
  %v3909 = vsel %vm89, %v3899, 0.0
  %3910 = vadd.xlane.f32.xlu0 %v3909
  %v3911 = vpop.xlane.xlu0 %3910
  %v3912 = vsel %vm89, %v3900, 0.0
  %3913 = vadd.xlane.f32.xlu0 %v3912
  %v3914 = vpop.xlane.xlu0 %3913
  %v3915 = vsel %vm89, %v3901, 0.0
  %3916 = vadd.xlane.f32.xlu0 %v3915
  %v3917 = vpop.xlane.xlu0 %3916
  %v3918 = vsel %vm89, %v3902, 0.0
  %3919 = vadd.xlane.f32.xlu0 %v3918
  %v3920 = vpop.xlane.xlu0 %3919
  %v3921 = vmul.f32 %v3905, %v108
  %v3922 = vmul.f32 %v3908, %v108
  %v3923 = vmul.f32 %v3911, %v108
  %v3924 = vmul.f32 %v3914, %v108
  %v3925 = vmul.f32 %v3917, %v108
  %v3926 = vmul.f32 %v3920, %v108
  %v3927 = vadd.f32 %v3921, 1e-06
  %v3928 = vadd.f32 %v3922, 1e-06
  %v3929 = vadd.f32 %v3923, 1e-06
  %v3930 = vadd.f32 %v3924, 1e-06
  %v3931 = vadd.f32 %v3925, 1e-06
  %v3932 = vadd.f32 %v3926, 1e-06
  %v3933 = vrsqrt.pop %v3927
  %v3934 = vrsqrt.pop %v3928
  %v3935 = vrsqrt.pop %v3929
  %v3936 = vrsqrt.pop %v3930
  %v3937 = vrsqrt.pop %v3931
  %v3938 = vrsqrt.pop %v3932
  %v3939 = vmul.f32 %v3889, %v3933
  %v3940 = vmul.f32 %v3890, %v3934
  %v3941 = vmul.f32 %v3891, %v3935
  %v3942 = vmul.f32 %v3892, %v3936
  %v3943 = vmul.f32 %v3893, %v3937
  %v3944 = vmul.f32 %v3894, %v3938
  %v3945 = vpack.c.bf16 %v3940, %v3939
  %v3946 = vpack.c.bf16 %v3942, %v3941
  %v3947 = vpack.c.bf16 %v3944, %v3943
  %v3949 = vpack.i.b16 %v3896, %v3896
  %v3951 = vlaneseq
  %v3952 = vshrl.u32 %v3951, 7
  %v3953 = vsub.s32 0, %v3952
  %v3954 = vrot.slane %v3949, %v3953
  %v3955 = vmul.bf16 %v3945, %v3954
  %v3956 = vmul.bf16 %v3946, %v3954
  %v3957 = vmul.bf16 %v3947, %v3954
  %s3958 = scalar_lea.vmem %s1, 64
  %v3959 = vld [vmem:[%s3958] sm:$0xf]
  %v3960 = vld [vmem:[%s3958 + $0x4] sm:$0xf]
  %v3961 = vld [vmem:[%s3958 + $0x8] sm:$0xf]
  %v3962 = vld [vmem:[%s3958 + $0xc] sm:$0xf]
  %v3967 = vunpack.c.l.b16 %v3959
  %v3968 = vunpack.c.l.b16 %v3960
  %v3969 = vunpack.c.l.b16 %v3961
  %v3970 = vunpack.c.l.b16 %v3962
  %v3971 = vpack.c.b16 %v3968, %v3967
  %v3972 = vpack.c.b16 %v3970, %v3969
  %v3976 = vsel %vm89, %v3955, 0
  %v3979 = vsel %vm89, %v3956, 0
  %v3982 = vsel %vm89, %v3957, 0
  %3984 = vmatprep.subr.bf16.mxu0 0
  %3985 = vmatpush1.bf16.msra.mxu0 %v3971
  %3986 = vmatprep.subr.bf16.mxu0 0
  %3987 = vmatpush1.bf16.msra.mxu0 %v3972
  %3988 = vmatprep.subr.bf16.mxu0 0
  %3989 = vmatpush1.bf16.msra.mxu0 0
  %3990 = vmatprep.subr.bf16.mxu0 0
  %3991 = vmatpush1.bf16.msra.mxu0 0
  %3992 = vmatprep.subr.bf16.mxu0 0
  %3993 = vmatpush1.bf16.msra.mxu0 0
  %3994 = vmatprep.subr.bf16.mxu0 0
  %3995 = vmatpush1.bf16.msra.mxu0 0
  %3996 = vmatprep.subr.bf16.mxu0 0
  %3997 = vmatpush1.bf16.msra.mxu0 0
  %3998 = vmatprep.subr.bf16.mxu0 0
  %3999 = vmatpush1.bf16.msra.mxu0 0
  %4000 = vmatprep.subr.bf16.mxu0 0
  %4001 = vmatpush1.bf16.msra.mxu0 0
  %4002 = vmatprep.subr.bf16.mxu0 0
  %4003 = vmatpush1.bf16.msra.mxu0 0
  %4004 = vmatprep.subr.bf16.mxu0 0
  %4005 = vmatpush1.bf16.msra.mxu0 0
  %4006 = vmatprep.subr.bf16.mxu0 0
  %4007 = vmatpush1.bf16.msra.mxu0 0
  %4008 = vmatprep.subr.bf16.mxu0 0
  %4009 = vmatpush1.bf16.msra.mxu0 0
  %4010 = vmatprep.subr.bf16.mxu0 0
  %4011 = vmatpush1.bf16.msra.mxu0 0
  %4012 = vmatprep.subr.bf16.mxu0 0
  %4013 = vmatpush1.bf16.msra.mxu0 0
  %4014 = vmatprep.subr.bf16.mxu0 0
  %4015 = vmatpush1.bf16.msra.mxu0 0
  %4016 = vmatprep.mubr.bf16.mxu0 0
  %4017 = vmatmul.mubr.bf16.gmra.mrb[0].mxu0 %v3976
  %v4018 = vpop.f32.mrb[0].mxu0
  %v4019 = vadd.f32 0.0, %v4018
  %v4020 = vpop.f32.mrb[0].mxu0
  %v4021 = vpop.f32.mrb[0].mxu0
  %v4022 = vadd.f32 0.0, %v4021
  %v4023 = vpop.f32.mrb[0].mxu0
  %4024 = vmatprep.mubr.bf16.mxu0 0
  %4025 = vmatmul.mubr.bf16.gmra.mrb[0].mxu0 %v3979
  %v4026 = vpop.f32.mrb[0].mxu0
  %v4027 = vadd.f32 0.0, %v4026
  %v4028 = vpop.f32.mrb[0].mxu0
  %v4029 = vpop.f32.mrb[0].mxu0
  %v4030 = vadd.f32 0.0, %v4029
  %v4031 = vpop.f32.mrb[0].mxu0
  %4032 = vmatprep.mubr.bf16.mxu0 0
  %4033 = vmatmul.mubr.bf16.gmra.mrb[0].mxu0 %v3982
  %v4034 = vpop.f32.mrb[0].mxu0
  %v4035 = vadd.f32 0.0, %v4034
  %v4036 = vpop.f32.mrb[0].mxu0
  %v4037 = vpop.f32.mrb[0].mxu0
  %v4038 = vadd.f32 0.0, %v4037
  %v4039 = vpop.f32.mrb[0].mxu0
  %4040 = vdwg.mxu0
  %s4041 = scalar_lea.vmem %s2, 64
  %v4042 = vld [vmem:[%s4041] sm:$0xf]
  %v4043 = vld [vmem:[%s4041 + $0x4] sm:$0xf]
  %v4044 = vld [vmem:[%s4041 + $0x8] sm:$0xf]
  %v4045 = vld [vmem:[%s4041 + $0xc] sm:$0xf]
  %v4050 = vunpack.c.l.b16 %v4042
  %v4051 = vunpack.c.l.b16 %v4043
  %v4052 = vunpack.c.l.b16 %v4044
  %v4053 = vunpack.c.l.b16 %v4045
  %v4054 = vpack.c.b16 %v4051, %v4050
  %v4055 = vpack.c.b16 %v4053, %v4052
  %4058 = vmatprep.subr.bf16.mxu0 0
  %4059 = vmatpush1.bf16.msra.mxu0 %v4054
  %4060 = vmatprep.subr.bf16.mxu0 0
  %4061 = vmatpush1.bf16.msra.mxu0 %v4055
  %4062 = vmatprep.subr.bf16.mxu0 0
  %4063 = vmatpush1.bf16.msra.mxu0 0
  %4064 = vmatprep.subr.bf16.mxu0 0
  %4065 = vmatpush1.bf16.msra.mxu0 0
  %4066 = vmatprep.subr.bf16.mxu0 0
  %4067 = vmatpush1.bf16.msra.mxu0 0
  %4068 = vmatprep.subr.bf16.mxu0 0
  %4069 = vmatpush1.bf16.msra.mxu0 0
  %4070 = vmatprep.subr.bf16.mxu0 0
  %4071 = vmatpush1.bf16.msra.mxu0 0
  %4072 = vmatprep.subr.bf16.mxu0 0
  %4073 = vmatpush1.bf16.msra.mxu0 0
  %4074 = vmatprep.subr.bf16.mxu0 0
  %4075 = vmatpush1.bf16.msra.mxu0 0
  %4076 = vmatprep.subr.bf16.mxu0 0
  %4077 = vmatpush1.bf16.msra.mxu0 0
  %4078 = vmatprep.subr.bf16.mxu0 0
  %4079 = vmatpush1.bf16.msra.mxu0 0
  %4080 = vmatprep.subr.bf16.mxu0 0
  %4081 = vmatpush1.bf16.msra.mxu0 0
  %4082 = vmatprep.subr.bf16.mxu0 0
  %4083 = vmatpush1.bf16.msra.mxu0 0
  %4084 = vmatprep.subr.bf16.mxu0 0
  %4085 = vmatpush1.bf16.msra.mxu0 0
  %4086 = vmatprep.subr.bf16.mxu0 0
  %4087 = vmatpush1.bf16.msra.mxu0 0
  %4088 = vmatprep.subr.bf16.mxu0 0
  %4089 = vmatpush1.bf16.msra.mxu0 0
  %4090 = vmatprep.mubr.bf16.mxu0 0
  %4091 = vmatmul.mubr.bf16.gmra.mrb[0].mxu0 %v3976
  %v4092 = vpop.f32.mrb[0].mxu0
  %v4093 = vadd.f32 0.0, %v4092
  %v4094 = vpop.f32.mrb[0].mxu0
  %v4095 = vpop.f32.mrb[0].mxu0
  %v4096 = vadd.f32 0.0, %v4095
  %v4097 = vpop.f32.mrb[0].mxu0
  %4098 = vmatprep.mubr.bf16.mxu0 0
  %4099 = vmatmul.mubr.bf16.gmra.mrb[0].mxu0 %v3979
  %v4100 = vpop.f32.mrb[0].mxu0
  %v4101 = vadd.f32 0.0, %v4100
  %v4102 = vpop.f32.mrb[0].mxu0
  %v4103 = vpop.f32.mrb[0].mxu0
  %v4104 = vadd.f32 0.0, %v4103
  %v4105 = vpop.f32.mrb[0].mxu0
  %4106 = vmatprep.mubr.bf16.mxu0 0
  %4107 = vmatmul.mubr.bf16.gmra.mrb[0].mxu0 %v3982
  %v4108 = vpop.f32.mrb[0].mxu0
  %v4109 = vadd.f32 0.0, %v4108
  %v4110 = vpop.f32.mrb[0].mxu0
  %v4111 = vpop.f32.mrb[0].mxu0
  %v4112 = vadd.f32 0.0, %v4111
  %v4113 = vpop.f32.mrb[0].mxu0
  %4114 = vdwg.mxu0
  %s4115 = scalar_lea.vmem %s3, 64
  %v4116 = vld [vmem:[%s4115] sm:$0xf]
  %v4117 = vld [vmem:[%s4115 + $0x4] sm:$0xf]
  %v4118 = vld [vmem:[%s4115 + $0x8] sm:$0xf]
  %v4119 = vld [vmem:[%s4115 + $0xc] sm:$0xf]
  %v4124 = vunpack.c.l.b16 %v4116
  %v4125 = vunpack.c.l.b16 %v4117
  %v4126 = vunpack.c.l.b16 %v4118
  %v4127 = vunpack.c.l.b16 %v4119
  %v4128 = vpack.c.b16 %v4125, %v4124
  %v4129 = vpack.c.b16 %v4127, %v4126
  %4132 = vmatprep.subr.bf16.mxu0 0
  %4133 = vmatpush1.bf16.msra.mxu0 %v4128
  %4134 = vmatprep.subr.bf16.mxu0 0
  %4135 = vmatpush1.bf16.msra.mxu0 %v4129
  %4136 = vmatprep.subr.bf16.mxu0 0
  %4137 = vmatpush1.bf16.msra.mxu0 0
  %4138 = vmatprep.subr.bf16.mxu0 0
  %4139 = vmatpush1.bf16.msra.mxu0 0
  %4140 = vmatprep.subr.bf16.mxu0 0
  %4141 = vmatpush1.bf16.msra.mxu0 0
  %4142 = vmatprep.subr.bf16.mxu0 0
  %4143 = vmatpush1.bf16.msra.mxu0 0
  %4144 = vmatprep.subr.bf16.mxu0 0
  %4145 = vmatpush1.bf16.msra.mxu0 0
  %4146 = vmatprep.subr.bf16.mxu0 0
  %4147 = vmatpush1.bf16.msra.mxu0 0
  %4148 = vmatprep.subr.bf16.mxu0 0
  %4149 = vmatpush1.bf16.msra.mxu0 0
  %4150 = vmatprep.subr.bf16.mxu0 0
  %4151 = vmatpush1.bf16.msra.mxu0 0
  %4152 = vmatprep.subr.bf16.mxu0 0
  %4153 = vmatpush1.bf16.msra.mxu0 0
  %4154 = vmatprep.subr.bf16.mxu0 0
  %4155 = vmatpush1.bf16.msra.mxu0 0
  %4156 = vmatprep.subr.bf16.mxu0 0
  %4157 = vmatpush1.bf16.msra.mxu0 0
  %4158 = vmatprep.subr.bf16.mxu0 0
  %4159 = vmatpush1.bf16.msra.mxu0 0
  %4160 = vmatprep.subr.bf16.mxu0 0
  %4161 = vmatpush1.bf16.msra.mxu0 0
  %4162 = vmatprep.subr.bf16.mxu0 0
  %4163 = vmatpush1.bf16.msra.mxu0 0
  %4164 = vmatprep.mubr.bf16.mxu0 0
  %4165 = vmatmul.mubr.bf16.gmra.mrb[0].mxu0 %v3976
  %v4166 = vpop.f32.mrb[0].mxu0
  %v4167 = vadd.f32 0.0, %v4166
  %v4168 = vpop.f32.mrb[0].mxu0
  %v4169 = vpop.f32.mrb[0].mxu0
  %v4170 = vadd.f32 0.0, %v4169
  %v4171 = vpop.f32.mrb[0].mxu0
  %4172 = vmatprep.mubr.bf16.mxu0 0
  %4173 = vmatmul.mubr.bf16.gmra.mrb[0].mxu0 %v3979
  %v4174 = vpop.f32.mrb[0].mxu0
  %v4175 = vadd.f32 0.0, %v4174
  %v4176 = vpop.f32.mrb[0].mxu0
  %v4177 = vpop.f32.mrb[0].mxu0
  %v4178 = vadd.f32 0.0, %v4177
  %v4179 = vpop.f32.mrb[0].mxu0
  %4180 = vmatprep.mubr.bf16.mxu0 0
  %4181 = vmatmul.mubr.bf16.gmra.mrb[0].mxu0 %v3982
  %v4182 = vpop.f32.mrb[0].mxu0
  %v4183 = vadd.f32 0.0, %v4182
  %v4184 = vpop.f32.mrb[0].mxu0
  %v4185 = vpop.f32.mrb[0].mxu0
  %v4186 = vadd.f32 0.0, %v4185
  %v4187 = vpop.f32.mrb[0].mxu0
  %4188 = vdwg.mxu0
  %v4189 = vmul.f32 %v4019, %v63
  %v4190 = vmul.f32 %v4022, %v64
  %v4191 = vmul.f32 %v4027, %v65
  %v4192 = vmul.f32 %v4030, %v66
  %v4193 = vmul.f32 %v4035, %v67
  %v4194 = vmul.f32 %v4038, %v68
  %v4196 = vsel %vm380, %v4019, 0
  %v4199 = vsel %vm380, %v4022, 0
  %v4202 = vsel %vm380, %v4027, 0
  %v4205 = vsel %vm380, %v4030, 0
  %v4208 = vsel %vm380, %v4035, 0
  %v4211 = vsel %vm380, %v4038, 0
  %4213 = vmatprep.subr.mxu0 0.0
  %4214 = vmatpush1.msra.mxu0 %v75
  %4215 = vmatprep.subr.mxu0 0.0
  %4216 = vmatpush1.msra.mxu0 0.0
  %4217 = vmatprep.subr.mxu0 0.0
  %4218 = vmatpush1.msra.mxu0 0.0
  %4219 = vmatprep.subr.mxu0 0.0
  %4220 = vmatpush1.msra.mxu0 0.0
  %4221 = vmatprep.subr.mxu0 0.0
  %4222 = vmatpush1.msra.mxu0 0.0
  %4223 = vmatprep.subr.mxu0 0.0
  %4224 = vmatpush1.msra.mxu0 0.0
  %4225 = vmatprep.subr.mxu0 0.0
  %4226 = vmatpush1.msra.mxu0 0.0
  %4227 = vmatprep.subr.mxu0 0.0
  %4228 = vmatpush1.msra.mxu0 0.0
  %4229 = vmatprep.subr.mxu0 0.0
  %4230 = vmatpush1.msra.mxu0 0.0
  %4231 = vmatprep.subr.mxu0 0.0
  %4232 = vmatpush1.msra.mxu0 0.0
  %4233 = vmatprep.subr.mxu0 0.0
  %4234 = vmatpush1.msra.mxu0 0.0
  %4235 = vmatprep.subr.mxu0 0.0
  %4236 = vmatpush1.msra.mxu0 0.0
  %4237 = vmatprep.subr.mxu0 0.0
  %4238 = vmatpush1.msra.mxu0 0.0
  %4239 = vmatprep.subr.mxu0 0.0
  %4240 = vmatpush1.msra.mxu0 0.0
  %4241 = vmatprep.subr.mxu0 0.0
  %4242 = vmatpush1.msra.mxu0 0.0
  %4243 = vmatprep.subr.mxu0 0.0
  %4244 = vmatpush1.msra.mxu0 0.0
  %4245 = vmatprep.subr.mxu0 0.0
  %4246 = vmatpush1.msra.mxu0 0.0
  %4247 = vmatprep.subr.mxu0 0.0
  %4248 = vmatpush1.msra.mxu0 0.0
  %4249 = vmatprep.subr.mxu0 0.0
  %4250 = vmatpush1.msra.mxu0 0.0
  %4251 = vmatprep.subr.mxu0 0.0
  %4252 = vmatpush1.msra.mxu0 0.0
  %4253 = vmatprep.subr.mxu0 0.0
  %4254 = vmatpush1.msra.mxu0 0.0
  %4255 = vmatprep.subr.mxu0 0.0
  %4256 = vmatpush1.msra.mxu0 0.0
  %4257 = vmatprep.subr.mxu0 0.0
  %4258 = vmatpush1.msra.mxu0 0.0
  %4259 = vmatprep.subr.mxu0 0.0
  %4260 = vmatpush1.msra.mxu0 0.0
  %4261 = vmatprep.subr.mxu0 0.0
  %4262 = vmatpush1.msra.mxu0 0.0
  %4263 = vmatprep.subr.mxu0 0.0
  %4264 = vmatpush1.msra.mxu0 0.0
  %4265 = vmatprep.subr.mxu0 0.0
  %4266 = vmatpush1.msra.mxu0 0.0
  %4267 = vmatprep.subr.mxu0 0.0
  %4268 = vmatpush1.msra.mxu0 0.0
  %4269 = vmatprep.subr.mxu0 0.0
  %4270 = vmatpush1.msra.mxu0 0.0
  %4271 = vmatprep.subr.mxu0 0.0
  %4272 = vmatpush1.msra.mxu0 0.0
  %4273 = vmatprep.subr.mxu0 0.0
  %4274 = vmatpush1.msra.mxu0 0.0
  %4275 = vmatprep.subr.mxu0 0.0
  %4276 = vmatpush1.msra.mxu0 0.0
  %4277 = vmatprep.mubr.f32.mxu0 0.0
  %4278 = vmatmul.mubr.f32.gmra.mrb[0].mxu0 %v4196
  %v4279 = vpop.f32.mrb[0].mxu0
  %v4280 = vadd.f32 0.0, %v4279
  %v4281 = vpop.f32.mrb[0].mxu0
  %4282 = vmatprep.mubr.f32.mxu0 0.0
  %4283 = vmatmul.mubr.f32.gmra.mrb[0].mxu0 %v4199
  %v4284 = vpop.f32.mrb[0].mxu0
  %v4285 = vadd.f32 0.0, %v4284
  %v4286 = vpop.f32.mrb[0].mxu0
  %4287 = vmatprep.mubr.f32.mxu0 0.0
  %4288 = vmatmul.mubr.f32.gmra.mrb[0].mxu0 %v4202
  %v4289 = vpop.f32.mrb[0].mxu0
  %v4290 = vadd.f32 0.0, %v4289
  %v4291 = vpop.f32.mrb[0].mxu0
  %4292 = vmatprep.mubr.f32.mxu0 0.0
  %4293 = vmatmul.mubr.f32.gmra.mrb[0].mxu0 %v4205
  %v4294 = vpop.f32.mrb[0].mxu0
  %v4295 = vadd.f32 0.0, %v4294
  %v4296 = vpop.f32.mrb[0].mxu0
  %4297 = vmatprep.mubr.f32.mxu0 0.0
  %4298 = vmatmul.mubr.f32.gmra.mrb[0].mxu0 %v4208
  %v4299 = vpop.f32.mrb[0].mxu0
  %v4300 = vadd.f32 0.0, %v4299
  %v4301 = vpop.f32.mrb[0].mxu0
  %4302 = vmatprep.mubr.f32.mxu0 0.0
  %4303 = vmatmul.mubr.f32.gmra.mrb[0].mxu0 %v4211
  %v4304 = vpop.f32.mrb[0].mxu0
  %v4305 = vadd.f32 0.0, %v4304
  %v4306 = vpop.f32.mrb[0].mxu0
  %4307 = vdwg.mxu0
  %v4308 = vmul.f32 %v4280, %v69
  %v4309 = vmul.f32 %v4285, %v70
  %v4310 = vmul.f32 %v4290, %v71
  %v4311 = vmul.f32 %v4295, %v72
  %v4312 = vmul.f32 %v4300, %v73
  %v4313 = vmul.f32 %v4305, %v74
  %v4314 = vadd.f32 %v4189, %v4308
  %v4315 = vadd.f32 %v4190, %v4309
  %v4316 = vadd.f32 %v4191, %v4310
  %v4317 = vadd.f32 %v4192, %v4311
  %v4318 = vadd.f32 %v4193, %v4312
  %v4319 = vadd.f32 %v4194, %v4313
  %v4320 = vmul.f32 %v4093, %v63
  %v4321 = vmul.f32 %v4096, %v64
  %v4322 = vmul.f32 %v4101, %v65
  %v4323 = vmul.f32 %v4104, %v66
  %v4324 = vmul.f32 %v4109, %v67
  %v4325 = vmul.f32 %v4112, %v68
  %v4327 = vsel %vm380, %v4093, 0
  %v4330 = vsel %vm380, %v4096, 0
  %v4333 = vsel %vm380, %v4101, 0
  %v4336 = vsel %vm380, %v4104, 0
  %v4339 = vsel %vm380, %v4109, 0
  %v4342 = vsel %vm380, %v4112, 0
  %4344 = vmatprep.subr.mxu0 0.0
  %4345 = vmatpush1.msra.mxu0 %v75
  %4346 = vmatprep.subr.mxu0 0.0
  %4347 = vmatpush1.msra.mxu0 0.0
  %4348 = vmatprep.subr.mxu0 0.0
  %4349 = vmatpush1.msra.mxu0 0.0
  %4350 = vmatprep.subr.mxu0 0.0
  %4351 = vmatpush1.msra.mxu0 0.0
  %4352 = vmatprep.subr.mxu0 0.0
  %4353 = vmatpush1.msra.mxu0 0.0
  %4354 = vmatprep.subr.mxu0 0.0
  %4355 = vmatpush1.msra.mxu0 0.0
  %4356 = vmatprep.subr.mxu0 0.0
  %4357 = vmatpush1.msra.mxu0 0.0
  %4358 = vmatprep.subr.mxu0 0.0
  %4359 = vmatpush1.msra.mxu0 0.0
  %4360 = vmatprep.subr.mxu0 0.0
  %4361 = vmatpush1.msra.mxu0 0.0
  %4362 = vmatprep.subr.mxu0 0.0
  %4363 = vmatpush1.msra.mxu0 0.0
  %4364 = vmatprep.subr.mxu0 0.0
  %4365 = vmatpush1.msra.mxu0 0.0
  %4366 = vmatprep.subr.mxu0 0.0
  %4367 = vmatpush1.msra.mxu0 0.0
  %4368 = vmatprep.subr.mxu0 0.0
  %4369 = vmatpush1.msra.mxu0 0.0
  %4370 = vmatprep.subr.mxu0 0.0
  %4371 = vmatpush1.msra.mxu0 0.0
  %4372 = vmatprep.subr.mxu0 0.0
  %4373 = vmatpush1.msra.mxu0 0.0
  %4374 = vmatprep.subr.mxu0 0.0
  %4375 = vmatpush1.msra.mxu0 0.0
  %4376 = vmatprep.subr.mxu0 0.0
  %4377 = vmatpush1.msra.mxu0 0.0
  %4378 = vmatprep.subr.mxu0 0.0
  %4379 = vmatpush1.msra.mxu0 0.0
  %4380 = vmatprep.subr.mxu0 0.0
  %4381 = vmatpush1.msra.mxu0 0.0
  %4382 = vmatprep.subr.mxu0 0.0
  %4383 = vmatpush1.msra.mxu0 0.0
  %4384 = vmatprep.subr.mxu0 0.0
  %4385 = vmatpush1.msra.mxu0 0.0
  %4386 = vmatprep.subr.mxu0 0.0
  %4387 = vmatpush1.msra.mxu0 0.0
  %4388 = vmatprep.subr.mxu0 0.0
  %4389 = vmatpush1.msra.mxu0 0.0
  %4390 = vmatprep.subr.mxu0 0.0
  %4391 = vmatpush1.msra.mxu0 0.0
  %4392 = vmatprep.subr.mxu0 0.0
  %4393 = vmatpush1.msra.mxu0 0.0
  %4394 = vmatprep.subr.mxu0 0.0
  %4395 = vmatpush1.msra.mxu0 0.0
  %4396 = vmatprep.subr.mxu0 0.0
  %4397 = vmatpush1.msra.mxu0 0.0
  %4398 = vmatprep.subr.mxu0 0.0
  %4399 = vmatpush1.msra.mxu0 0.0
  %4400 = vmatprep.subr.mxu0 0.0
  %4401 = vmatpush1.msra.mxu0 0.0
  %4402 = vmatprep.subr.mxu0 0.0
  %4403 = vmatpush1.msra.mxu0 0.0
  %4404 = vmatprep.subr.mxu0 0.0
  %4405 = vmatpush1.msra.mxu0 0.0
  %4406 = vmatprep.subr.mxu0 0.0
  %4407 = vmatpush1.msra.mxu0 0.0
  %4408 = vmatprep.mubr.f32.mxu0 0.0
  %4409 = vmatmul.mubr.f32.gmra.mrb[0].mxu0 %v4327
  %v4410 = vpop.f32.mrb[0].mxu0
  %v4411 = vadd.f32 0.0, %v4410
  %v4412 = vpop.f32.mrb[0].mxu0
  %4413 = vmatprep.mubr.f32.mxu0 0.0
  %4414 = vmatmul.mubr.f32.gmra.mrb[0].mxu0 %v4330
  %v4415 = vpop.f32.mrb[0].mxu0
  %v4416 = vadd.f32 0.0, %v4415
  %v4417 = vpop.f32.mrb[0].mxu0
  %4418 = vmatprep.mubr.f32.mxu0 0.0
  %4419 = vmatmul.mubr.f32.gmra.mrb[0].mxu0 %v4333
  %v4420 = vpop.f32.mrb[0].mxu0
  %v4421 = vadd.f32 0.0, %v4420
  %v4422 = vpop.f32.mrb[0].mxu0
  %4423 = vmatprep.mubr.f32.mxu0 0.0
  %4424 = vmatmul.mubr.f32.gmra.mrb[0].mxu0 %v4336
  %v4425 = vpop.f32.mrb[0].mxu0
  %v4426 = vadd.f32 0.0, %v4425
  %v4427 = vpop.f32.mrb[0].mxu0
  %4428 = vmatprep.mubr.f32.mxu0 0.0
  %4429 = vmatmul.mubr.f32.gmra.mrb[0].mxu0 %v4339
  %v4430 = vpop.f32.mrb[0].mxu0
  %v4431 = vadd.f32 0.0, %v4430
  %v4432 = vpop.f32.mrb[0].mxu0
  %4433 = vmatprep.mubr.f32.mxu0 0.0
  %4434 = vmatmul.mubr.f32.gmra.mrb[0].mxu0 %v4342
  %v4435 = vpop.f32.mrb[0].mxu0
  %v4436 = vadd.f32 0.0, %v4435
  %v4437 = vpop.f32.mrb[0].mxu0
  %4438 = vdwg.mxu0
  %v4439 = vmul.f32 %v4411, %v69
  %v4440 = vmul.f32 %v4416, %v70
  %v4441 = vmul.f32 %v4421, %v71
  %v4442 = vmul.f32 %v4426, %v72
  %v4443 = vmul.f32 %v4431, %v73
  %v4444 = vmul.f32 %v4436, %v74
  %v4445 = vadd.f32 %v4320, %v4439
  %v4446 = vadd.f32 %v4321, %v4440
  %v4447 = vadd.f32 %v4322, %v4441
  %v4448 = vadd.f32 %v4323, %v4442
  %v4449 = vadd.f32 %v4324, %v4443
  %v4450 = vadd.f32 %v4325, %v4444
  %v4452 = vsel %vm380, %v4314, 0
  %v4455 = vsel %vm380, %v4315, 0
  %v4458 = vsel %vm380, %v4316, 0
  %v4461 = vsel %vm380, %v4317, 0
  %v4464 = vsel %vm380, %v4318, 0
  %v4467 = vsel %vm380, %v4319, 0
  %v4470 = vsel %vm380, %v4445, 0
  %v4473 = vsel %vm380, %v4446, 0
  %v4476 = vsel %vm380, %v4447, 0
  %v4479 = vsel %vm380, %v4448, 0
  %v4482 = vsel %vm380, %v4449, 0
  %v4485 = vsel %vm380, %v4450, 0
  %4487 = vmatprep.subr.mxu0 0.0
  %4488 = vmatpush1.xpose.msra.mxu0 %v4470
  %4489 = vmatprep.subr.mxu0 0.0
  %4490 = vmatpush1.xpose.msra.mxu0 %v4473
  %4491 = vmatprep.subr.mxu0 0.0
  %4492 = vmatpush1.xpose.msra.mxu0 %v4476
  %4493 = vmatprep.subr.mxu0 0.0
  %4494 = vmatpush1.xpose.msra.mxu0 %v4479
  %4495 = vmatprep.subr.mxu0 0.0
  %4496 = vmatpush1.xpose.msra.mxu0 %v4482
  %4497 = vmatprep.subr.mxu0 0.0
  %4498 = vmatpush1.xpose.msra.mxu0 %v4485
  %4499 = vmatprep.subr.mxu0 0.0
  %4500 = vmatpush1.xpose.msra.mxu0 0.0
  %4501 = vmatprep.subr.mxu0 0.0
  %4502 = vmatpush1.xpose.msra.mxu0 0.0
  %4503 = vmatprep.subr.mxu0 0.0
  %4504 = vmatpush1.xpose.msra.mxu0 0.0
  %4505 = vmatprep.subr.mxu0 0.0
  %4506 = vmatpush1.xpose.msra.mxu0 0.0
  %4507 = vmatprep.subr.mxu0 0.0
  %4508 = vmatpush1.xpose.msra.mxu0 0.0
  %4509 = vmatprep.subr.mxu0 0.0
  %4510 = vmatpush1.xpose.msra.mxu0 0.0
  %4511 = vmatprep.subr.mxu0 0.0
  %4512 = vmatpush1.xpose.msra.mxu0 0.0
  %4513 = vmatprep.subr.mxu0 0.0
  %4514 = vmatpush1.xpose.msra.mxu0 0.0
  %4515 = vmatprep.subr.mxu0 0.0
  %4516 = vmatpush1.xpose.msra.mxu0 0.0
  %4517 = vmatprep.subr.mxu0 0.0
  %4518 = vmatpush1.xpose.msra.mxu0 0.0
  %4519 = vmatprep.subr.mxu0 0.0
  %4520 = vmatpush1.xpose.msra.mxu0 0.0
  %4521 = vmatprep.subr.mxu0 0.0
  %4522 = vmatpush1.xpose.msra.mxu0 0.0
  %4523 = vmatprep.subr.mxu0 0.0
  %4524 = vmatpush1.xpose.msra.mxu0 0.0
  %4525 = vmatprep.subr.mxu0 0.0
  %4526 = vmatpush1.xpose.msra.mxu0 0.0
  %4527 = vmatprep.subr.mxu0 0.0
  %4528 = vmatpush1.xpose.msra.mxu0 0.0
  %4529 = vmatprep.subr.mxu0 0.0
  %4530 = vmatpush1.xpose.msra.mxu0 0.0
  %4531 = vmatprep.subr.mxu0 0.0
  %4532 = vmatpush1.xpose.msra.mxu0 0.0
  %4533 = vmatprep.subr.mxu0 0.0
  %4534 = vmatpush1.xpose.msra.mxu0 0.0
  %4535 = vmatprep.subr.mxu0 0.0
  %4536 = vmatpush1.xpose.msra.mxu0 0.0
  %4537 = vmatprep.subr.mxu0 0.0
  %4538 = vmatpush1.xpose.msra.mxu0 0.0
  %4539 = vmatprep.subr.mxu0 0.0
  %4540 = vmatpush1.xpose.msra.mxu0 0.0
  %4541 = vmatprep.subr.mxu0 0.0
  %4542 = vmatpush1.xpose.msra.mxu0 0.0
  %4543 = vmatprep.subr.mxu0 0.0
  %4544 = vmatpush1.xpose.msra.mxu0 0.0
  %4545 = vmatprep.subr.mxu0 0.0
  %4546 = vmatpush1.xpose.msra.mxu0 0.0
  %4547 = vmatprep.subr.mxu0 0.0
  %4548 = vmatpush1.xpose.msra.mxu0 0.0
  %4549 = vmatprep.subr.mxu0 0.0
  %4550 = vmatpush1.xpose.msra.mxu0 0.0
  %4551 = vmatprep.mubr.f32.mxu0 0.0
  %4552 = vmatmul.mubr.f32.gmra.mrb[0].mxu0 %v4452
  %v4553 = vpop.f32.mrb[0].mxu0
  %v4554 = vadd.f32 0.0, %v4553
  %v4555 = vpop.f32.mrb[0].mxu0
  %4556 = vmatprep.mubr.f32.mxu0 0.0
  %4557 = vmatmul.mubr.f32.gmra.mrb[0].mxu0 %v4455
  %v4558 = vpop.f32.mrb[0].mxu0
  %v4559 = vadd.f32 0.0, %v4558
  %v4560 = vpop.f32.mrb[0].mxu0
  %4561 = vmatprep.mubr.f32.mxu0 0.0
  %4562 = vmatmul.mubr.f32.gmra.mrb[0].mxu0 %v4458
  %v4563 = vpop.f32.mrb[0].mxu0
  %v4564 = vadd.f32 0.0, %v4563
  %v4565 = vpop.f32.mrb[0].mxu0
  %4566 = vmatprep.mubr.f32.mxu0 0.0
  %4567 = vmatmul.mubr.f32.gmra.mrb[0].mxu0 %v4461
  %v4568 = vpop.f32.mrb[0].mxu0
  %v4569 = vadd.f32 0.0, %v4568
  %v4570 = vpop.f32.mrb[0].mxu0
  %4571 = vmatprep.mubr.f32.mxu0 0.0
  %4572 = vmatmul.mubr.f32.gmra.mrb[0].mxu0 %v4464
  %v4573 = vpop.f32.mrb[0].mxu0
  %v4574 = vadd.f32 0.0, %v4573
  %v4575 = vpop.f32.mrb[0].mxu0
  %4576 = vmatprep.mubr.f32.mxu0 0.0
  %4577 = vmatmul.mubr.f32.gmra.mrb[0].mxu0 %v4467
  %v4578 = vpop.f32.mrb[0].mxu0
  %v4579 = vadd.f32 0.0, %v4578
  %v4580 = vpop.f32.mrb[0].mxu0
  %4581 = vdwg.mxu0
  %v4582 = vmul.f32 %v4554, 0.35355338
  %v4583 = vmul.f32 %v4559, 0.35355338
  %v4584 = vmul.f32 %v4564, 0.35355338
  %v4585 = vmul.f32 %v4569, 0.35355338
  %v4586 = vmul.f32 %v4574, 0.35355338
  %v4587 = vmul.f32 %v4579, 0.35355338
  %v4588 = vadd.f32 %v4582, %v76
  %v4589 = vadd.f32 %v4583, %v77
  %v4590 = vadd.f32 %v4584, %v78
  %v4591 = vadd.f32 %v4585, %v79
  %v4592 = vadd.f32 %v4586, %v80
  %v4593 = vadd.f32 %v4587, %v81
  %v4594 = vsel %vm780, %v4588, -inf
  %4595 = vmax.xlane.f32.xlu0 %v4594
  %v4596 = vpop.xlane.xlu0 %4595
  %v4597 = vsel %vm780, %v4589, -inf
  %4598 = vmax.xlane.f32.xlu0 %v4597
  %v4599 = vpop.xlane.xlu0 %4598
  %v4600 = vsel %vm780, %v4590, -inf
  %4601 = vmax.xlane.f32.xlu0 %v4600
  %v4602 = vpop.xlane.xlu0 %4601
  %v4603 = vsel %vm780, %v4591, -inf
  %4604 = vmax.xlane.f32.xlu0 %v4603
  %v4605 = vpop.xlane.xlu0 %4604
  %v4606 = vsel %vm780, %v4592, -inf
  %4607 = vmax.xlane.f32.xlu0 %v4606
  %v4608 = vpop.xlane.xlu0 %4607
  %v4609 = vsel %vm780, %v4593, -inf
  %4610 = vmax.xlane.f32.xlu0 %v4609
  %v4611 = vpop.xlane.xlu0 %4610
  %v4612 = vsub.f32 %v4588, %v4596
  %v4613 = vsub.f32 %v4589, %v4599
  %v4614 = vsub.f32 %v4590, %v4602
  %v4615 = vsub.f32 %v4591, %v4605
  %v4616 = vsub.f32 %v4592, %v4608
  %v4617 = vsub.f32 %v4593, %v4611
  %v4618 = vmul.f32 %v4612, 1.442695
  %v4619 = vpow.pop %v4618
  %v4620 = vmul.f32 %v4613, 1.442695
  %v4621 = vpow.pop %v4620
  %v4622 = vmul.f32 %v4614, 1.442695
  %v4623 = vpow.pop %v4622
  %v4624 = vmul.f32 %v4615, 1.442695
  %v4625 = vpow.pop %v4624
  %v4626 = vmul.f32 %v4616, 1.442695
  %v4627 = vpow.pop %v4626
  %v4628 = vmul.f32 %v4617, 1.442695
  %v4629 = vpow.pop %v4628
  %v4630 = vsel %vm780, %v4619, 0.0
  %4631 = vadd.xlane.f32.xlu0 %v4630
  %v4632 = vpop.xlane.xlu0 %4631
  %v4633 = vsel %vm780, %v4621, 0.0
  %4634 = vadd.xlane.f32.xlu0 %v4633
  %v4635 = vpop.xlane.xlu0 %4634
  %v4636 = vsel %vm780, %v4623, 0.0
  %4637 = vadd.xlane.f32.xlu0 %v4636
  %v4638 = vpop.xlane.xlu0 %4637
  %v4639 = vsel %vm780, %v4625, 0.0
  %4640 = vadd.xlane.f32.xlu0 %v4639
  %v4641 = vpop.xlane.xlu0 %4640
  %v4642 = vsel %vm780, %v4627, 0.0
  %4643 = vadd.xlane.f32.xlu0 %v4642
  %v4644 = vpop.xlane.xlu0 %4643
  %v4645 = vsel %vm780, %v4629, 0.0
  %4646 = vadd.xlane.f32.xlu0 %v4645
  %v4647 = vpop.xlane.xlu0 %4646
  %v4648 = vrcp.pop %v4632
  %v4649 = vmul.f32 %v4619, %v4648
  %v4650 = vrcp.pop %v4635
  %v4651 = vmul.f32 %v4621, %v4650
  %v4652 = vrcp.pop %v4638
  %v4653 = vmul.f32 %v4623, %v4652
  %v4654 = vrcp.pop %v4641
  %v4655 = vmul.f32 %v4625, %v4654
  %v4656 = vrcp.pop %v4644
  %v4657 = vmul.f32 %v4627, %v4656
  %v4658 = vrcp.pop %v4647
  %v4659 = vmul.f32 %v4629, %v4658
  %v4660 = vpack.c.bf16 %v4651, %v4649
  %v4661 = vpack.c.bf16 %v4655, %v4653
  %v4662 = vpack.c.bf16 %v4659, %v4657
  %v4663 = vpack.c.bf16 %v4170, %v4167
  %v4664 = vpack.c.bf16 %v4178, %v4175
  %v4665 = vpack.c.bf16 %v4186, %v4183
  %v4667 = vsel %vm780, %v4660, 0
  %v4670 = vsel %vm780, %v4661, 0
  %v4673 = vsel %vm780, %v4662, 0
  %4675 = vmatprep.subr.bf16.mxu0 0
  %4676 = vmatpush1.bf16.msra.mxu0 %v4663
  %4677 = vmatprep.subr.bf16.mxu0 0
  %4678 = vmatpush1.bf16.msra.mxu0 %v4664
  %4679 = vmatprep.subr.bf16.mxu0 0
  %4680 = vmatpush1.bf16.msra.mxu0 %v4665
  %4681 = vmatprep.subr.bf16.mxu0 0
  %4682 = vmatpush1.bf16.msra.mxu0 0
  %4683 = vmatprep.subr.bf16.mxu0 0
  %4684 = vmatpush1.bf16.msra.mxu0 0
  %4685 = vmatprep.subr.bf16.mxu0 0
  %4686 = vmatpush1.bf16.msra.mxu0 0
  %4687 = vmatprep.subr.bf16.mxu0 0
  %4688 = vmatpush1.bf16.msra.mxu0 0
  %4689 = vmatprep.subr.bf16.mxu0 0
  %4690 = vmatpush1.bf16.msra.mxu0 0
  %4691 = vmatprep.subr.bf16.mxu0 0
  %4692 = vmatpush1.bf16.msra.mxu0 0
  %4693 = vmatprep.subr.bf16.mxu0 0
  %4694 = vmatpush1.bf16.msra.mxu0 0
  %4695 = vmatprep.subr.bf16.mxu0 0
  %4696 = vmatpush1.bf16.msra.mxu0 0
  %4697 = vmatprep.subr.bf16.mxu0 0
  %4698 = vmatpush1.bf16.msra.mxu0 0
  %4699 = vmatprep.subr.bf16.mxu0 0
  %4700 = vmatpush1.bf16.msra.mxu0 0
  %4701 = vmatprep.subr.bf16.mxu0 0
  %4702 = vmatpush1.bf16.msra.mxu0 0
  %4703 = vmatprep.subr.bf16.mxu0 0
  %4704 = vmatpush1.bf16.msra.mxu0 0
  %4705 = vmatprep.subr.bf16.mxu0 0
  %4706 = vmatpush1.bf16.msra.mxu0 0
  %4707 = vmatprep.mubr.bf16.mxu0 0
  %4708 = vmatmul.mubr.bf16.gmra.mrb[0].mxu0 %v4667
  %v4709 = vpop.f32.mrb[0].mxu0
  %v4710 = vadd.f32 0.0, %v4709
  %v4711 = vpop.f32.mrb[0].mxu0
  %v4712 = vpop.f32.mrb[0].mxu0
  %v4713 = vadd.f32 0.0, %v4712
  %v4714 = vpop.f32.mrb[0].mxu0
  %4715 = vmatprep.mubr.bf16.mxu0 0
  %4716 = vmatmul.mubr.bf16.gmra.mrb[0].mxu0 %v4670
  %v4717 = vpop.f32.mrb[0].mxu0
  %v4718 = vadd.f32 0.0, %v4717
  %v4719 = vpop.f32.mrb[0].mxu0
  %v4720 = vpop.f32.mrb[0].mxu0
  %v4721 = vadd.f32 0.0, %v4720
  %v4722 = vpop.f32.mrb[0].mxu0
  %4723 = vmatprep.mubr.bf16.mxu0 0
  %4724 = vmatmul.mubr.bf16.gmra.mrb[0].mxu0 %v4673
  %v4725 = vpop.f32.mrb[0].mxu0
  %v4726 = vadd.f32 0.0, %v4725
  %v4727 = vpop.f32.mrb[0].mxu0
  %v4728 = vpop.f32.mrb[0].mxu0
  %v4729 = vadd.f32 0.0, %v4728
  %v4730 = vpop.f32.mrb[0].mxu0
  %4731 = vdwg.mxu0
  %v4732 = vpack.c.bf16 %v4713, %v4710
  %v4733 = vpack.c.bf16 %v4721, %v4718
  %v4734 = vpack.c.bf16 %v4729, %v4726
  %s4735 = scalar_lea.vmem %s4, 16
  %v4736 = vld [vmem:[%s4735] sm:$0xf]
  %s4737 = scalar_lea.vmem %s1, 80
  %v4738 = vld [vmem:[%s4737] sm:$0xf]
  %v4739 = vld [vmem:[%s4737 + $0x4] sm:$0xf]
  %v4740 = vld [vmem:[%s4737 + $0x8] sm:$0xf]
  %v4741 = vld [vmem:[%s4737 + $0xc] sm:$0xf]
  %v4746 = vunpack.c.l.b16 %v4738
  %v4747 = vunpack.c.l.b16 %v4739
  %v4748 = vunpack.c.l.b16 %v4740
  %v4749 = vunpack.c.l.b16 %v4741
  %v4750 = vpack.c.b16 %v4747, %v4746
  %v4751 = vpack.c.b16 %v4749, %v4748
  %4754 = vmatprep.subr.bf16.mxu0 0
  %4755 = vmatpush1.bf16.msra.mxu0 %v4750
  %4756 = vmatprep.subr.bf16.mxu0 0
  %4757 = vmatpush1.bf16.msra.mxu0 %v4751
  %4758 = vmatprep.subr.bf16.mxu0 0
  %4759 = vmatpush1.bf16.msra.mxu0 0
  %4760 = vmatprep.subr.bf16.mxu0 0
  %4761 = vmatpush1.bf16.msra.mxu0 0
  %4762 = vmatprep.subr.bf16.mxu0 0
  %4763 = vmatpush1.bf16.msra.mxu0 0
  %4764 = vmatprep.subr.bf16.mxu0 0
  %4765 = vmatpush1.bf16.msra.mxu0 0
  %4766 = vmatprep.subr.bf16.mxu0 0
  %4767 = vmatpush1.bf16.msra.mxu0 0
  %4768 = vmatprep.subr.bf16.mxu0 0
  %4769 = vmatpush1.bf16.msra.mxu0 0
  %4770 = vmatprep.subr.bf16.mxu0 0
  %4771 = vmatpush1.bf16.msra.mxu0 0
  %4772 = vmatprep.subr.bf16.mxu0 0
  %4773 = vmatpush1.bf16.msra.mxu0 0
  %4774 = vmatprep.subr.bf16.mxu0 0
  %4775 = vmatpush1.bf16.msra.mxu0 0
  %4776 = vmatprep.subr.bf16.mxu0 0
  %4777 = vmatpush1.bf16.msra.mxu0 0
  %4778 = vmatprep.subr.bf16.mxu0 0
  %4779 = vmatpush1.bf16.msra.mxu0 0
  %4780 = vmatprep.subr.bf16.mxu0 0
  %4781 = vmatpush1.bf16.msra.mxu0 0
  %4782 = vmatprep.subr.bf16.mxu0 0
  %4783 = vmatpush1.bf16.msra.mxu0 0
  %4784 = vmatprep.subr.bf16.mxu0 0
  %4785 = vmatpush1.bf16.msra.mxu0 0
  %4786 = vmatprep.mubr.bf16.mxu0 0
  %4787 = vmatmul.mubr.bf16.gmra.mrb[0].mxu0 %v3976
  %v4788 = vpop.f32.mrb[0].mxu0
  %v4789 = vadd.f32 0.0, %v4788
  %v4790 = vpop.f32.mrb[0].mxu0
  %v4791 = vpop.f32.mrb[0].mxu0
  %v4792 = vadd.f32 0.0, %v4791
  %v4793 = vpop.f32.mrb[0].mxu0
  %4794 = vmatprep.mubr.bf16.mxu0 0
  %4795 = vmatmul.mubr.bf16.gmra.mrb[0].mxu0 %v3979
  %v4796 = vpop.f32.mrb[0].mxu0
  %v4797 = vadd.f32 0.0, %v4796
  %v4798 = vpop.f32.mrb[0].mxu0
  %v4799 = vpop.f32.mrb[0].mxu0
  %v4800 = vadd.f32 0.0, %v4799
  %v4801 = vpop.f32.mrb[0].mxu0
  %4802 = vmatprep.mubr.bf16.mxu0 0
  %4803 = vmatmul.mubr.bf16.gmra.mrb[0].mxu0 %v3982
  %v4804 = vpop.f32.mrb[0].mxu0
  %v4805 = vadd.f32 0.0, %v4804
  %v4806 = vpop.f32.mrb[0].mxu0
  %v4807 = vpop.f32.mrb[0].mxu0
  %v4808 = vadd.f32 0.0, %v4807
  %v4809 = vpop.f32.mrb[0].mxu0
  %4810 = vdwg.mxu0
  %s4811 = scalar_lea.vmem %s2, 80
  %v4812 = vld [vmem:[%s4811] sm:$0xf]
  %v4813 = vld [vmem:[%s4811 + $0x4] sm:$0xf]
  %v4814 = vld [vmem:[%s4811 + $0x8] sm:$0xf]
  %v4815 = vld [vmem:[%s4811 + $0xc] sm:$0xf]
  %v4820 = vunpack.c.l.b16 %v4812
  %v4821 = vunpack.c.l.b16 %v4813
  %v4822 = vunpack.c.l.b16 %v4814
  %v4823 = vunpack.c.l.b16 %v4815
  %v4824 = vpack.c.b16 %v4821, %v4820
  %v4825 = vpack.c.b16 %v4823, %v4822
  %4828 = vmatprep.subr.bf16.mxu0 0
  %4829 = vmatpush1.bf16.msra.mxu0 %v4824
  %4830 = vmatprep.subr.bf16.mxu0 0
  %4831 = vmatpush1.bf16.msra.mxu0 %v4825
  %4832 = vmatprep.subr.bf16.mxu0 0
  %4833 = vmatpush1.bf16.msra.mxu0 0
  %4834 = vmatprep.subr.bf16.mxu0 0
  %4835 = vmatpush1.bf16.msra.mxu0 0
  %4836 = vmatprep.subr.bf16.mxu0 0
  %4837 = vmatpush1.bf16.msra.mxu0 0
  %4838 = vmatprep.subr.bf16.mxu0 0
  %4839 = vmatpush1.bf16.msra.mxu0 0
  %4840 = vmatprep.subr.bf16.mxu0 0
  %4841 = vmatpush1.bf16.msra.mxu0 0
  %4842 = vmatprep.subr.bf16.mxu0 0
  %4843 = vmatpush1.bf16.msra.mxu0 0
  %4844 = vmatprep.subr.bf16.mxu0 0
  %4845 = vmatpush1.bf16.msra.mxu0 0
  %4846 = vmatprep.subr.bf16.mxu0 0
  %4847 = vmatpush1.bf16.msra.mxu0 0
  %4848 = vmatprep.subr.bf16.mxu0 0
  %4849 = vmatpush1.bf16.msra.mxu0 0
  %4850 = vmatprep.subr.bf16.mxu0 0
  %4851 = vmatpush1.bf16.msra.mxu0 0
  %4852 = vmatprep.subr.bf16.mxu0 0
  %4853 = vmatpush1.bf16.msra.mxu0 0
  %4854 = vmatprep.subr.bf16.mxu0 0
  %4855 = vmatpush1.bf16.msra.mxu0 0
  %4856 = vmatprep.subr.bf16.mxu0 0
  %4857 = vmatpush1.bf16.msra.mxu0 0
  %4858 = vmatprep.subr.bf16.mxu0 0
  %4859 = vmatpush1.bf16.msra.mxu0 0
  %4860 = vmatprep.mubr.bf16.mxu0 0
  %4861 = vmatmul.mubr.bf16.gmra.mrb[0].mxu0 %v3976
  %v4862 = vpop.f32.mrb[0].mxu0
  %v4863 = vadd.f32 0.0, %v4862
  %v4864 = vpop.f32.mrb[0].mxu0
  %v4865 = vpop.f32.mrb[0].mxu0
  %v4866 = vadd.f32 0.0, %v4865
  %v4867 = vpop.f32.mrb[0].mxu0
  %4868 = vmatprep.mubr.bf16.mxu0 0
  %4869 = vmatmul.mubr.bf16.gmra.mrb[0].mxu0 %v3979
  %v4870 = vpop.f32.mrb[0].mxu0
  %v4871 = vadd.f32 0.0, %v4870
  %v4872 = vpop.f32.mrb[0].mxu0
  %v4873 = vpop.f32.mrb[0].mxu0
  %v4874 = vadd.f32 0.0, %v4873
  %v4875 = vpop.f32.mrb[0].mxu0
  %4876 = vmatprep.mubr.bf16.mxu0 0
  %4877 = vmatmul.mubr.bf16.gmra.mrb[0].mxu0 %v3982
  %v4878 = vpop.f32.mrb[0].mxu0
  %v4879 = vadd.f32 0.0, %v4878
  %v4880 = vpop.f32.mrb[0].mxu0
  %v4881 = vpop.f32.mrb[0].mxu0
  %v4882 = vadd.f32 0.0, %v4881
  %v4883 = vpop.f32.mrb[0].mxu0
  %4884 = vdwg.mxu0
  %s4885 = scalar_lea.vmem %s3, 80
  %v4886 = vld [vmem:[%s4885] sm:$0xf]
  %v4887 = vld [vmem:[%s4885 + $0x4] sm:$0xf]
  %v4888 = vld [vmem:[%s4885 + $0x8] sm:$0xf]
  %v4889 = vld [vmem:[%s4885 + $0xc] sm:$0xf]
  %v4894 = vunpack.c.l.b16 %v4886
  %v4895 = vunpack.c.l.b16 %v4887
  %v4896 = vunpack.c.l.b16 %v4888
  %v4897 = vunpack.c.l.b16 %v4889
  %v4898 = vpack.c.b16 %v4895, %v4894
  %v4899 = vpack.c.b16 %v4897, %v4896
  %4902 = vmatprep.subr.bf16.mxu0 0
  %4903 = vmatpush1.bf16.msra.mxu0 %v4898
  %4904 = vmatprep.subr.bf16.mxu0 0
  %4905 = vmatpush1.bf16.msra.mxu0 %v4899
  %4906 = vmatprep.subr.bf16.mxu0 0
  %4907 = vmatpush1.bf16.msra.mxu0 0
  %4908 = vmatprep.subr.bf16.mxu0 0
  %4909 = vmatpush1.bf16.msra.mxu0 0
  %4910 = vmatprep.subr.bf16.mxu0 0
  %4911 = vmatpush1.bf16.msra.mxu0 0
  %4912 = vmatprep.subr.bf16.mxu0 0
  %4913 = vmatpush1.bf16.msra.mxu0 0
  %4914 = vmatprep.subr.bf16.mxu0 0
  %4915 = vmatpush1.bf16.msra.mxu0 0
  %4916 = vmatprep.subr.bf16.mxu0 0
  %4917 = vmatpush1.bf16.msra.mxu0 0
  %4918 = vmatprep.subr.bf16.mxu0 0
  %4919 = vmatpush1.bf16.msra.mxu0 0
  %4920 = vmatprep.subr.bf16.mxu0 0
  %4921 = vmatpush1.bf16.msra.mxu0 0
  %4922 = vmatprep.subr.bf16.mxu0 0
  %4923 = vmatpush1.bf16.msra.mxu0 0
  %4924 = vmatprep.subr.bf16.mxu0 0
  %4925 = vmatpush1.bf16.msra.mxu0 0
  %4926 = vmatprep.subr.bf16.mxu0 0
  %4927 = vmatpush1.bf16.msra.mxu0 0
  %4928 = vmatprep.subr.bf16.mxu0 0
  %4929 = vmatpush1.bf16.msra.mxu0 0
  %4930 = vmatprep.subr.bf16.mxu0 0
  %4931 = vmatpush1.bf16.msra.mxu0 0
  %4932 = vmatprep.subr.bf16.mxu0 0
  %4933 = vmatpush1.bf16.msra.mxu0 0
  %4934 = vmatprep.mubr.bf16.mxu0 0
  %4935 = vmatmul.mubr.bf16.gmra.mrb[0].mxu0 %v3976
  %v4936 = vpop.f32.mrb[0].mxu0
  %v4937 = vadd.f32 0.0, %v4936
  %v4938 = vpop.f32.mrb[0].mxu0
  %v4939 = vpop.f32.mrb[0].mxu0
  %v4940 = vadd.f32 0.0, %v4939
  %v4941 = vpop.f32.mrb[0].mxu0
  %4942 = vmatprep.mubr.bf16.mxu0 0
  %4943 = vmatmul.mubr.bf16.gmra.mrb[0].mxu0 %v3979
  %v4944 = vpop.f32.mrb[0].mxu0
  %v4945 = vadd.f32 0.0, %v4944
  %v4946 = vpop.f32.mrb[0].mxu0
  %v4947 = vpop.f32.mrb[0].mxu0
  %v4948 = vadd.f32 0.0, %v4947
  %v4949 = vpop.f32.mrb[0].mxu0
  %4950 = vmatprep.mubr.bf16.mxu0 0
  %4951 = vmatmul.mubr.bf16.gmra.mrb[0].mxu0 %v3982
  %v4952 = vpop.f32.mrb[0].mxu0
  %v4953 = vadd.f32 0.0, %v4952
  %v4954 = vpop.f32.mrb[0].mxu0
  %v4955 = vpop.f32.mrb[0].mxu0
  %v4956 = vadd.f32 0.0, %v4955
  %v4957 = vpop.f32.mrb[0].mxu0
  %4958 = vdwg.mxu0
  %v4959 = vmul.f32 %v4789, %v63
  %v4960 = vmul.f32 %v4792, %v64
  %v4961 = vmul.f32 %v4797, %v65
  %v4962 = vmul.f32 %v4800, %v66
  %v4963 = vmul.f32 %v4805, %v67
  %v4964 = vmul.f32 %v4808, %v68
  %v4966 = vsel %vm380, %v4789, 0
  %v4969 = vsel %vm380, %v4792, 0
  %v4972 = vsel %vm380, %v4797, 0
  %v4975 = vsel %vm380, %v4800, 0
  %v4978 = vsel %vm380, %v4805, 0
  %v4981 = vsel %vm380, %v4808, 0
  %4983 = vmatprep.subr.mxu0 0.0
  %4984 = vmatpush1.msra.mxu0 %v75
  %4985 = vmatprep.subr.mxu0 0.0
  %4986 = vmatpush1.msra.mxu0 0.0
  %4987 = vmatprep.subr.mxu0 0.0
  %4988 = vmatpush1.msra.mxu0 0.0
  %4989 = vmatprep.subr.mxu0 0.0
  %4990 = vmatpush1.msra.mxu0 0.0
  %4991 = vmatprep.subr.mxu0 0.0
  %4992 = vmatpush1.msra.mxu0 0.0
  %4993 = vmatprep.subr.mxu0 0.0
  %4994 = vmatpush1.msra.mxu0 0.0
  %4995 = vmatprep.subr.mxu0 0.0
  %4996 = vmatpush1.msra.mxu0 0.0
  %4997 = vmatprep.subr.mxu0 0.0
  %4998 = vmatpush1.msra.mxu0 0.0
  %4999 = vmatprep.subr.mxu0 0.0
  %5000 = vmatpush1.msra.mxu0 0.0
  %5001 = vmatprep.subr.mxu0 0.0
  %5002 = vmatpush1.msra.mxu0 0.0
  %5003 = vmatprep.subr.mxu0 0.0
  %5004 = vmatpush1.msra.mxu0 0.0
  %5005 = vmatprep.subr.mxu0 0.0
  %5006 = vmatpush1.msra.mxu0 0.0
  %5007 = vmatprep.subr.mxu0 0.0
  %5008 = vmatpush1.msra.mxu0 0.0
  %5009 = vmatprep.subr.mxu0 0.0
  %5010 = vmatpush1.msra.mxu0 0.0
  %5011 = vmatprep.subr.mxu0 0.0
  %5012 = vmatpush1.msra.mxu0 0.0
  %5013 = vmatprep.subr.mxu0 0.0
  %5014 = vmatpush1.msra.mxu0 0.0
  %5015 = vmatprep.subr.mxu0 0.0
  %5016 = vmatpush1.msra.mxu0 0.0
  %5017 = vmatprep.subr.mxu0 0.0
  %5018 = vmatpush1.msra.mxu0 0.0
  %5019 = vmatprep.subr.mxu0 0.0
  %5020 = vmatpush1.msra.mxu0 0.0
  %5021 = vmatprep.subr.mxu0 0.0
  %5022 = vmatpush1.msra.mxu0 0.0
  %5023 = vmatprep.subr.mxu0 0.0
  %5024 = vmatpush1.msra.mxu0 0.0
  %5025 = vmatprep.subr.mxu0 0.0
  %5026 = vmatpush1.msra.mxu0 0.0
  %5027 = vmatprep.subr.mxu0 0.0
  %5028 = vmatpush1.msra.mxu0 0.0
  %5029 = vmatprep.subr.mxu0 0.0
  %5030 = vmatpush1.msra.mxu0 0.0
  %5031 = vmatprep.subr.mxu0 0.0
  %5032 = vmatpush1.msra.mxu0 0.0
  %5033 = vmatprep.subr.mxu0 0.0
  %5034 = vmatpush1.msra.mxu0 0.0
  %5035 = vmatprep.subr.mxu0 0.0
  %5036 = vmatpush1.msra.mxu0 0.0
  %5037 = vmatprep.subr.mxu0 0.0
  %5038 = vmatpush1.msra.mxu0 0.0
  %5039 = vmatprep.subr.mxu0 0.0
  %5040 = vmatpush1.msra.mxu0 0.0
  %5041 = vmatprep.subr.mxu0 0.0
  %5042 = vmatpush1.msra.mxu0 0.0
  %5043 = vmatprep.subr.mxu0 0.0
  %5044 = vmatpush1.msra.mxu0 0.0
  %5045 = vmatprep.subr.mxu0 0.0
  %5046 = vmatpush1.msra.mxu0 0.0
  %5047 = vmatprep.mubr.f32.mxu0 0.0
  %5048 = vmatmul.mubr.f32.gmra.mrb[0].mxu0 %v4966
  %v5049 = vpop.f32.mrb[0].mxu0
  %v5050 = vadd.f32 0.0, %v5049
  %v5051 = vpop.f32.mrb[0].mxu0
  %5052 = vmatprep.mubr.f32.mxu0 0.0
  %5053 = vmatmul.mubr.f32.gmra.mrb[0].mxu0 %v4969
  %v5054 = vpop.f32.mrb[0].mxu0
  %v5055 = vadd.f32 0.0, %v5054
  %v5056 = vpop.f32.mrb[0].mxu0
  %5057 = vmatprep.mubr.f32.mxu0 0.0
  %5058 = vmatmul.mubr.f32.gmra.mrb[0].mxu0 %v4972
  %v5059 = vpop.f32.mrb[0].mxu0
  %v5060 = vadd.f32 0.0, %v5059
  %v5061 = vpop.f32.mrb[0].mxu0
  %5062 = vmatprep.mubr.f32.mxu0 0.0
  %5063 = vmatmul.mubr.f32.gmra.mrb[0].mxu0 %v4975
  %v5064 = vpop.f32.mrb[0].mxu0
  %v5065 = vadd.f32 0.0, %v5064
  %v5066 = vpop.f32.mrb[0].mxu0
  %5067 = vmatprep.mubr.f32.mxu0 0.0
  %5068 = vmatmul.mubr.f32.gmra.mrb[0].mxu0 %v4978
  %v5069 = vpop.f32.mrb[0].mxu0
  %v5070 = vadd.f32 0.0, %v5069
  %v5071 = vpop.f32.mrb[0].mxu0
  %5072 = vmatprep.mubr.f32.mxu0 0.0
  %5073 = vmatmul.mubr.f32.gmra.mrb[0].mxu0 %v4981
  %v5074 = vpop.f32.mrb[0].mxu0
  %v5075 = vadd.f32 0.0, %v5074
  %v5076 = vpop.f32.mrb[0].mxu0
  %5077 = vdwg.mxu0
  %v5078 = vmul.f32 %v5050, %v69
  %v5079 = vmul.f32 %v5055, %v70
  %v5080 = vmul.f32 %v5060, %v71
  %v5081 = vmul.f32 %v5065, %v72
  %v5082 = vmul.f32 %v5070, %v73
  %v5083 = vmul.f32 %v5075, %v74
  %v5084 = vadd.f32 %v4959, %v5078
  %v5085 = vadd.f32 %v4960, %v5079
  %v5086 = vadd.f32 %v4961, %v5080
  %v5087 = vadd.f32 %v4962, %v5081
  %v5088 = vadd.f32 %v4963, %v5082
  %v5089 = vadd.f32 %v4964, %v5083
  %v5090 = vmul.f32 %v4863, %v63
  %v5091 = vmul.f32 %v4866, %v64
  %v5092 = vmul.f32 %v4871, %v65
  %v5093 = vmul.f32 %v4874, %v66
  %v5094 = vmul.f32 %v4879, %v67
  %v5095 = vmul.f32 %v4882, %v68
  %v5097 = vsel %vm380, %v4863, 0
  %v5100 = vsel %vm380, %v4866, 0
  %v5103 = vsel %vm380, %v4871, 0
  %v5106 = vsel %vm380, %v4874, 0
  %v5109 = vsel %vm380, %v4879, 0
  %v5112 = vsel %vm380, %v4882, 0
  %5114 = vmatprep.subr.mxu0 0.0
  %5115 = vmatpush1.msra.mxu0 %v75
  %5116 = vmatprep.subr.mxu0 0.0
  %5117 = vmatpush1.msra.mxu0 0.0
  %5118 = vmatprep.subr.mxu0 0.0
  %5119 = vmatpush1.msra.mxu0 0.0
  %5120 = vmatprep.subr.mxu0 0.0
  %5121 = vmatpush1.msra.mxu0 0.0
  %5122 = vmatprep.subr.mxu0 0.0
  %5123 = vmatpush1.msra.mxu0 0.0
  %5124 = vmatprep.subr.mxu0 0.0
  %5125 = vmatpush1.msra.mxu0 0.0
  %5126 = vmatprep.subr.mxu0 0.0
  %5127 = vmatpush1.msra.mxu0 0.0
  %5128 = vmatprep.subr.mxu0 0.0
  %5129 = vmatpush1.msra.mxu0 0.0
  %5130 = vmatprep.subr.mxu0 0.0
  %5131 = vmatpush1.msra.mxu0 0.0
  %5132 = vmatprep.subr.mxu0 0.0
  %5133 = vmatpush1.msra.mxu0 0.0
  %5134 = vmatprep.subr.mxu0 0.0
  %5135 = vmatpush1.msra.mxu0 0.0
  %5136 = vmatprep.subr.mxu0 0.0
  %5137 = vmatpush1.msra.mxu0 0.0
  %5138 = vmatprep.subr.mxu0 0.0
  %5139 = vmatpush1.msra.mxu0 0.0
  %5140 = vmatprep.subr.mxu0 0.0
  %5141 = vmatpush1.msra.mxu0 0.0
  %5142 = vmatprep.subr.mxu0 0.0
  %5143 = vmatpush1.msra.mxu0 0.0
  %5144 = vmatprep.subr.mxu0 0.0
  %5145 = vmatpush1.msra.mxu0 0.0
  %5146 = vmatprep.subr.mxu0 0.0
  %5147 = vmatpush1.msra.mxu0 0.0
  %5148 = vmatprep.subr.mxu0 0.0
  %5149 = vmatpush1.msra.mxu0 0.0
  %5150 = vmatprep.subr.mxu0 0.0
  %5151 = vmatpush1.msra.mxu0 0.0
  %5152 = vmatprep.subr.mxu0 0.0
  %5153 = vmatpush1.msra.mxu0 0.0
  %5154 = vmatprep.subr.mxu0 0.0
  %5155 = vmatpush1.msra.mxu0 0.0
  %5156 = vmatprep.subr.mxu0 0.0
  %5157 = vmatpush1.msra.mxu0 0.0
  %5158 = vmatprep.subr.mxu0 0.0
  %5159 = vmatpush1.msra.mxu0 0.0
  %5160 = vmatprep.subr.mxu0 0.0
  %5161 = vmatpush1.msra.mxu0 0.0
  %5162 = vmatprep.subr.mxu0 0.0
  %5163 = vmatpush1.msra.mxu0 0.0
  %5164 = vmatprep.subr.mxu0 0.0
  %5165 = vmatpush1.msra.mxu0 0.0
  %5166 = vmatprep.subr.mxu0 0.0
  %5167 = vmatpush1.msra.mxu0 0.0
  %5168 = vmatprep.subr.mxu0 0.0
  %5169 = vmatpush1.msra.mxu0 0.0
  %5170 = vmatprep.subr.mxu0 0.0
  %5171 = vmatpush1.msra.mxu0 0.0
  %5172 = vmatprep.subr.mxu0 0.0
  %5173 = vmatpush1.msra.mxu0 0.0
  %5174 = vmatprep.subr.mxu0 0.0
  %5175 = vmatpush1.msra.mxu0 0.0
  %5176 = vmatprep.subr.mxu0 0.0
  %5177 = vmatpush1.msra.mxu0 0.0
  %5178 = vmatprep.mubr.f32.mxu0 0.0
  %5179 = vmatmul.mubr.f32.gmra.mrb[0].mxu0 %v5097
  %v5180 = vpop.f32.mrb[0].mxu0
  %v5181 = vadd.f32 0.0, %v5180
  %v5182 = vpop.f32.mrb[0].mxu0
  %5183 = vmatprep.mubr.f32.mxu0 0.0
  %5184 = vmatmul.mubr.f32.gmra.mrb[0].mxu0 %v5100
  %v5185 = vpop.f32.mrb[0].mxu0
  %v5186 = vadd.f32 0.0, %v5185
  %v5187 = vpop.f32.mrb[0].mxu0
  %5188 = vmatprep.mubr.f32.mxu0 0.0
  %5189 = vmatmul.mubr.f32.gmra.mrb[0].mxu0 %v5103
  %v5190 = vpop.f32.mrb[0].mxu0
  %v5191 = vadd.f32 0.0, %v5190
  %v5192 = vpop.f32.mrb[0].mxu0
  %5193 = vmatprep.mubr.f32.mxu0 0.0
  %5194 = vmatmul.mubr.f32.gmra.mrb[0].mxu0 %v5106
  %v5195 = vpop.f32.mrb[0].mxu0
  %v5196 = vadd.f32 0.0, %v5195
  %v5197 = vpop.f32.mrb[0].mxu0
  %5198 = vmatprep.mubr.f32.mxu0 0.0
  %5199 = vmatmul.mubr.f32.gmra.mrb[0].mxu0 %v5109
  %v5200 = vpop.f32.mrb[0].mxu0
  %v5201 = vadd.f32 0.0, %v5200
  %v5202 = vpop.f32.mrb[0].mxu0
  %5203 = vmatprep.mubr.f32.mxu0 0.0
  %5204 = vmatmul.mubr.f32.gmra.mrb[0].mxu0 %v5112
  %v5205 = vpop.f32.mrb[0].mxu0
  %v5206 = vadd.f32 0.0, %v5205
  %v5207 = vpop.f32.mrb[0].mxu0
  %5208 = vdwg.mxu0
  %v5209 = vmul.f32 %v5181, %v69
  %v5210 = vmul.f32 %v5186, %v70
  %v5211 = vmul.f32 %v5191, %v71
  %v5212 = vmul.f32 %v5196, %v72
  %v5213 = vmul.f32 %v5201, %v73
  %v5214 = vmul.f32 %v5206, %v74
  %v5215 = vadd.f32 %v5090, %v5209
  %v5216 = vadd.f32 %v5091, %v5210
  %v5217 = vadd.f32 %v5092, %v5211
  %v5218 = vadd.f32 %v5093, %v5212
  %v5219 = vadd.f32 %v5094, %v5213
  %v5220 = vadd.f32 %v5095, %v5214
  %v5222 = vsel %vm380, %v5084, 0
  %v5225 = vsel %vm380, %v5085, 0
  %v5228 = vsel %vm380, %v5086, 0
  %v5231 = vsel %vm380, %v5087, 0
  %v5234 = vsel %vm380, %v5088, 0
  %v5237 = vsel %vm380, %v5089, 0
  %v5240 = vsel %vm380, %v5215, 0
  %v5243 = vsel %vm380, %v5216, 0
  %v5246 = vsel %vm380, %v5217, 0
  %v5249 = vsel %vm380, %v5218, 0
  %v5252 = vsel %vm380, %v5219, 0
  %v5255 = vsel %vm380, %v5220, 0
  %5257 = vmatprep.subr.mxu0 0.0
  %5258 = vmatpush1.xpose.msra.mxu0 %v5240
  %5259 = vmatprep.subr.mxu0 0.0
  %5260 = vmatpush1.xpose.msra.mxu0 %v5243
  %5261 = vmatprep.subr.mxu0 0.0
  %5262 = vmatpush1.xpose.msra.mxu0 %v5246
  %5263 = vmatprep.subr.mxu0 0.0
  %5264 = vmatpush1.xpose.msra.mxu0 %v5249
  %5265 = vmatprep.subr.mxu0 0.0
  %5266 = vmatpush1.xpose.msra.mxu0 %v5252
  %5267 = vmatprep.subr.mxu0 0.0
  %5268 = vmatpush1.xpose.msra.mxu0 %v5255
  %5269 = vmatprep.subr.mxu0 0.0
  %5270 = vmatpush1.xpose.msra.mxu0 0.0
  %5271 = vmatprep.subr.mxu0 0.0
  %5272 = vmatpush1.xpose.msra.mxu0 0.0
  %5273 = vmatprep.subr.mxu0 0.0
  %5274 = vmatpush1.xpose.msra.mxu0 0.0
  %5275 = vmatprep.subr.mxu0 0.0
  %5276 = vmatpush1.xpose.msra.mxu0 0.0
  %5277 = vmatprep.subr.mxu0 0.0
  %5278 = vmatpush1.xpose.msra.mxu0 0.0
  %5279 = vmatprep.subr.mxu0 0.0
  %5280 = vmatpush1.xpose.msra.mxu0 0.0
  %5281 = vmatprep.subr.mxu0 0.0
  %5282 = vmatpush1.xpose.msra.mxu0 0.0
  %5283 = vmatprep.subr.mxu0 0.0
  %5284 = vmatpush1.xpose.msra.mxu0 0.0
  %5285 = vmatprep.subr.mxu0 0.0
  %5286 = vmatpush1.xpose.msra.mxu0 0.0
  %5287 = vmatprep.subr.mxu0 0.0
  %5288 = vmatpush1.xpose.msra.mxu0 0.0
  %5289 = vmatprep.subr.mxu0 0.0
  %5290 = vmatpush1.xpose.msra.mxu0 0.0
  %5291 = vmatprep.subr.mxu0 0.0
  %5292 = vmatpush1.xpose.msra.mxu0 0.0
  %5293 = vmatprep.subr.mxu0 0.0
  %5294 = vmatpush1.xpose.msra.mxu0 0.0
  %5295 = vmatprep.subr.mxu0 0.0
  %5296 = vmatpush1.xpose.msra.mxu0 0.0
  %5297 = vmatprep.subr.mxu0 0.0
  %5298 = vmatpush1.xpose.msra.mxu0 0.0
  %5299 = vmatprep.subr.mxu0 0.0
  %5300 = vmatpush1.xpose.msra.mxu0 0.0
  %5301 = vmatprep.subr.mxu0 0.0
  %5302 = vmatpush1.xpose.msra.mxu0 0.0
  %5303 = vmatprep.subr.mxu0 0.0
  %5304 = vmatpush1.xpose.msra.mxu0 0.0
  %5305 = vmatprep.subr.mxu0 0.0
  %5306 = vmatpush1.xpose.msra.mxu0 0.0
  %5307 = vmatprep.subr.mxu0 0.0
  %5308 = vmatpush1.xpose.msra.mxu0 0.0
  %5309 = vmatprep.subr.mxu0 0.0
  %5310 = vmatpush1.xpose.msra.mxu0 0.0
  %5311 = vmatprep.subr.mxu0 0.0
  %5312 = vmatpush1.xpose.msra.mxu0 0.0
  %5313 = vmatprep.subr.mxu0 0.0
  %5314 = vmatpush1.xpose.msra.mxu0 0.0
  %5315 = vmatprep.subr.mxu0 0.0
  %5316 = vmatpush1.xpose.msra.mxu0 0.0
  %5317 = vmatprep.subr.mxu0 0.0
  %5318 = vmatpush1.xpose.msra.mxu0 0.0
  %5319 = vmatprep.subr.mxu0 0.0
  %5320 = vmatpush1.xpose.msra.mxu0 0.0
  %5321 = vmatprep.mubr.f32.mxu0 0.0
  %5322 = vmatmul.mubr.f32.gmra.mrb[0].mxu0 %v5222
  %v5323 = vpop.f32.mrb[0].mxu0
  %v5324 = vadd.f32 0.0, %v5323
  %v5325 = vpop.f32.mrb[0].mxu0
  %5326 = vmatprep.mubr.f32.mxu0 0.0
  %5327 = vmatmul.mubr.f32.gmra.mrb[0].mxu0 %v5225
  %v5328 = vpop.f32.mrb[0].mxu0
  %v5329 = vadd.f32 0.0, %v5328
  %v5330 = vpop.f32.mrb[0].mxu0
  %5331 = vmatprep.mubr.f32.mxu0 0.0
  %5332 = vmatmul.mubr.f32.gmra.mrb[0].mxu0 %v5228
  %v5333 = vpop.f32.mrb[0].mxu0
  %v5334 = vadd.f32 0.0, %v5333
  %v5335 = vpop.f32.mrb[0].mxu0
  %5336 = vmatprep.mubr.f32.mxu0 0.0
  %5337 = vmatmul.mubr.f32.gmra.mrb[0].mxu0 %v5231
  %v5338 = vpop.f32.mrb[0].mxu0
  %v5339 = vadd.f32 0.0, %v5338
  %v5340 = vpop.f32.mrb[0].mxu0
  %5341 = vmatprep.mubr.f32.mxu0 0.0
  %5342 = vmatmul.mubr.f32.gmra.mrb[0].mxu0 %v5234
  %v5343 = vpop.f32.mrb[0].mxu0
  %v5344 = vadd.f32 0.0, %v5343
  %v5345 = vpop.f32.mrb[0].mxu0
  %5346 = vmatprep.mubr.f32.mxu0 0.0
  %5347 = vmatmul.mubr.f32.gmra.mrb[0].mxu0 %v5237
  %v5348 = vpop.f32.mrb[0].mxu0
  %v5349 = vadd.f32 0.0, %v5348
  %v5350 = vpop.f32.mrb[0].mxu0
  %5351 = vdwg.mxu0
  %v5352 = vmul.f32 %v5324, 0.35355338
  %v5353 = vmul.f32 %v5329, 0.35355338
  %v5354 = vmul.f32 %v5334, 0.35355338
  %v5355 = vmul.f32 %v5339, 0.35355338
  %v5356 = vmul.f32 %v5344, 0.35355338
  %v5357 = vmul.f32 %v5349, 0.35355338
  %v5358 = vadd.f32 %v5352, %v76
  %v5359 = vadd.f32 %v5353, %v77
  %v5360 = vadd.f32 %v5354, %v78
  %v5361 = vadd.f32 %v5355, %v79
  %v5362 = vadd.f32 %v5356, %v80
  %v5363 = vadd.f32 %v5357, %v81
  %v5364 = vsel %vm780, %v5358, -inf
  %5365 = vmax.xlane.f32.xlu0 %v5364
  %v5366 = vpop.xlane.xlu0 %5365
  %v5367 = vsel %vm780, %v5359, -inf
  %5368 = vmax.xlane.f32.xlu0 %v5367
  %v5369 = vpop.xlane.xlu0 %5368
  %v5370 = vsel %vm780, %v5360, -inf
  %5371 = vmax.xlane.f32.xlu0 %v5370
  %v5372 = vpop.xlane.xlu0 %5371
  %v5373 = vsel %vm780, %v5361, -inf
  %5374 = vmax.xlane.f32.xlu0 %v5373
  %v5375 = vpop.xlane.xlu0 %5374
  %v5376 = vsel %vm780, %v5362, -inf
  %5377 = vmax.xlane.f32.xlu0 %v5376
  %v5378 = vpop.xlane.xlu0 %5377
  %v5379 = vsel %vm780, %v5363, -inf
  %5380 = vmax.xlane.f32.xlu0 %v5379
  %v5381 = vpop.xlane.xlu0 %5380
  %v5382 = vsub.f32 %v5358, %v5366
  %v5383 = vsub.f32 %v5359, %v5369
  %v5384 = vsub.f32 %v5360, %v5372
  %v5385 = vsub.f32 %v5361, %v5375
  %v5386 = vsub.f32 %v5362, %v5378
  %v5387 = vsub.f32 %v5363, %v5381
  %v5388 = vmul.f32 %v5382, 1.442695
  %v5389 = vpow.pop %v5388
  %v5390 = vmul.f32 %v5383, 1.442695
  %v5391 = vpow.pop %v5390
  %v5392 = vmul.f32 %v5384, 1.442695
  %v5393 = vpow.pop %v5392
  %v5394 = vmul.f32 %v5385, 1.442695
  %v5395 = vpow.pop %v5394
  %v5396 = vmul.f32 %v5386, 1.442695
  %v5397 = vpow.pop %v5396
  %v5398 = vmul.f32 %v5387, 1.442695
  %v5399 = vpow.pop %v5398
  %v5400 = vsel %vm780, %v5389, 0.0
  %5401 = vadd.xlane.f32.xlu0 %v5400
  %v5402 = vpop.xlane.xlu0 %5401
  %v5403 = vsel %vm780, %v5391, 0.0
  %5404 = vadd.xlane.f32.xlu0 %v5403
  %v5405 = vpop.xlane.xlu0 %5404
  %v5406 = vsel %vm780, %v5393, 0.0
  %5407 = vadd.xlane.f32.xlu0 %v5406
  %v5408 = vpop.xlane.xlu0 %5407
  %v5409 = vsel %vm780, %v5395, 0.0
  %5410 = vadd.xlane.f32.xlu0 %v5409
  %v5411 = vpop.xlane.xlu0 %5410
  %v5412 = vsel %vm780, %v5397, 0.0
  %5413 = vadd.xlane.f32.xlu0 %v5412
  %v5414 = vpop.xlane.xlu0 %5413
  %v5415 = vsel %vm780, %v5399, 0.0
  %5416 = vadd.xlane.f32.xlu0 %v5415
  %v5417 = vpop.xlane.xlu0 %5416
  %v5418 = vrcp.pop %v5402
  %v5419 = vmul.f32 %v5389, %v5418
  %v5420 = vrcp.pop %v5405
  %v5421 = vmul.f32 %v5391, %v5420
  %v5422 = vrcp.pop %v5408
  %v5423 = vmul.f32 %v5393, %v5422
  %v5424 = vrcp.pop %v5411
  %v5425 = vmul.f32 %v5395, %v5424
  %v5426 = vrcp.pop %v5414
  %v5427 = vmul.f32 %v5397, %v5426
  %v5428 = vrcp.pop %v5417
  %v5429 = vmul.f32 %v5399, %v5428
  %v5430 = vpack.c.bf16 %v5421, %v5419
  %v5431 = vpack.c.bf16 %v5425, %v5423
  %v5432 = vpack.c.bf16 %v5429, %v5427
  %v5433 = vpack.c.bf16 %v4940, %v4937
  %v5434 = vpack.c.bf16 %v4948, %v4945
  %v5435 = vpack.c.bf16 %v4956, %v4953
  %v5437 = vsel %vm780, %v5430, 0
  %v5440 = vsel %vm780, %v5431, 0
  %v5443 = vsel %vm780, %v5432, 0
  %5445 = vmatprep.subr.bf16.mxu0 0
  %5446 = vmatpush1.bf16.msra.mxu0 %v5433
  %5447 = vmatprep.subr.bf16.mxu0 0
  %5448 = vmatpush1.bf16.msra.mxu0 %v5434
  %5449 = vmatprep.subr.bf16.mxu0 0
  %5450 = vmatpush1.bf16.msra.mxu0 %v5435
  %5451 = vmatprep.subr.bf16.mxu0 0
  %5452 = vmatpush1.bf16.msra.mxu0 0
  %5453 = vmatprep.subr.bf16.mxu0 0
  %5454 = vmatpush1.bf16.msra.mxu0 0
  %5455 = vmatprep.subr.bf16.mxu0 0
  %5456 = vmatpush1.bf16.msra.mxu0 0
  %5457 = vmatprep.subr.bf16.mxu0 0
  %5458 = vmatpush1.bf16.msra.mxu0 0
  %5459 = vmatprep.subr.bf16.mxu0 0
  %5460 = vmatpush1.bf16.msra.mxu0 0
  %5461 = vmatprep.subr.bf16.mxu0 0
  %5462 = vmatpush1.bf16.msra.mxu0 0
  %5463 = vmatprep.subr.bf16.mxu0 0
  %5464 = vmatpush1.bf16.msra.mxu0 0
  %5465 = vmatprep.subr.bf16.mxu0 0
  %5466 = vmatpush1.bf16.msra.mxu0 0
  %5467 = vmatprep.subr.bf16.mxu0 0
  %5468 = vmatpush1.bf16.msra.mxu0 0
  %5469 = vmatprep.subr.bf16.mxu0 0
  %5470 = vmatpush1.bf16.msra.mxu0 0
  %5471 = vmatprep.subr.bf16.mxu0 0
  %5472 = vmatpush1.bf16.msra.mxu0 0
  %5473 = vmatprep.subr.bf16.mxu0 0
  %5474 = vmatpush1.bf16.msra.mxu0 0
  %5475 = vmatprep.subr.bf16.mxu0 0
  %5476 = vmatpush1.bf16.msra.mxu0 0
  %5477 = vmatprep.mubr.bf16.mxu0 0
  %5478 = vmatmul.mubr.bf16.gmra.mrb[0].mxu0 %v5437
  %v5479 = vpop.f32.mrb[0].mxu0
  %v5480 = vadd.f32 0.0, %v5479
  %v5481 = vpop.f32.mrb[0].mxu0
  %v5482 = vpop.f32.mrb[0].mxu0
  %v5483 = vadd.f32 0.0, %v5482
  %v5484 = vpop.f32.mrb[0].mxu0
  %5485 = vmatprep.mubr.bf16.mxu0 0
  %5486 = vmatmul.mubr.bf16.gmra.mrb[0].mxu0 %v5440
  %v5487 = vpop.f32.mrb[0].mxu0
  %v5488 = vadd.f32 0.0, %v5487
  %v5489 = vpop.f32.mrb[0].mxu0
  %v5490 = vpop.f32.mrb[0].mxu0
  %v5491 = vadd.f32 0.0, %v5490
  %v5492 = vpop.f32.mrb[0].mxu0
  %5493 = vmatprep.mubr.bf16.mxu0 0
  %5494 = vmatmul.mubr.bf16.gmra.mrb[0].mxu0 %v5443
  %v5495 = vpop.f32.mrb[0].mxu0
  %v5496 = vadd.f32 0.0, %v5495
  %v5497 = vpop.f32.mrb[0].mxu0
  %v5498 = vpop.f32.mrb[0].mxu0
  %v5499 = vadd.f32 0.0, %v5498
  %v5500 = vpop.f32.mrb[0].mxu0
  %5501 = vdwg.mxu0
  %v5502 = vpack.c.bf16 %v5483, %v5480
  %v5503 = vpack.c.bf16 %v5491, %v5488
  %v5504 = vpack.c.bf16 %v5499, %v5496
  %s5505 = scalar_lea.vmem %s4, 20
  %v5506 = vld [vmem:[%s5505] sm:$0xf]
  %v5508 = vsel %vm380, %v5502, 0
  %v5511 = vsel %vm380, %v5503, 0
  %v5514 = vsel %vm380, %v5504, 0
  %v5517 = vsel %vm1702, %v5506, 0
  %5519 = vmatprep.subr.bf16.mxu0 0
  %5520 = vmatpush1.bf16.msra.mxu0 %v5517
  %5521 = vmatprep.subr.bf16.mxu0 0
  %5522 = vmatpush1.bf16.msra.mxu0 0
  %5523 = vmatprep.subr.bf16.mxu0 0
  %5524 = vmatpush1.bf16.msra.mxu0 0
  %5525 = vmatprep.subr.bf16.mxu0 0
  %5526 = vmatpush1.bf16.msra.mxu0 0
  %5527 = vmatprep.subr.bf16.mxu0 0
  %5528 = vmatpush1.bf16.msra.mxu0 0
  %5529 = vmatprep.subr.bf16.mxu0 0
  %5530 = vmatpush1.bf16.msra.mxu0 0
  %5531 = vmatprep.subr.bf16.mxu0 0
  %5532 = vmatpush1.bf16.msra.mxu0 0
  %5533 = vmatprep.subr.bf16.mxu0 0
  %5534 = vmatpush1.bf16.msra.mxu0 0
  %5535 = vmatprep.subr.bf16.mxu0 0
  %5536 = vmatpush1.bf16.msra.mxu0 0
  %5537 = vmatprep.subr.bf16.mxu0 0
  %5538 = vmatpush1.bf16.msra.mxu0 0
  %5539 = vmatprep.subr.bf16.mxu0 0
  %5540 = vmatpush1.bf16.msra.mxu0 0
  %5541 = vmatprep.subr.bf16.mxu0 0
  %5542 = vmatpush1.bf16.msra.mxu0 0
  %5543 = vmatprep.subr.bf16.mxu0 0
  %5544 = vmatpush1.bf16.msra.mxu0 0
  %5545 = vmatprep.subr.bf16.mxu0 0
  %5546 = vmatpush1.bf16.msra.mxu0 0
  %5547 = vmatprep.subr.bf16.mxu0 0
  %5548 = vmatpush1.bf16.msra.mxu0 0
  %5549 = vmatprep.subr.bf16.mxu0 0
  %5550 = vmatpush1.bf16.msra.mxu0 0
  %5551 = vmatprep.mubr.bf16.mxu0 0
  %5552 = vmatmul.mubr.bf16.gmra.mrb[0].mxu0 %v5508
  %v5553 = vpop.f32.mrb[0].mxu0
  %v5554 = vadd.f32 0.0, %v5553
  %v5555 = vpop.f32.mrb[0].mxu0
  %v5556 = vpop.f32.mrb[0].mxu0
  %v5557 = vadd.f32 0.0, %v5556
  %v5558 = vpop.f32.mrb[0].mxu0
  %5559 = vmatprep.mubr.bf16.mxu0 0
  %5560 = vmatmul.mubr.bf16.gmra.mrb[0].mxu0 %v5511
  %v5561 = vpop.f32.mrb[0].mxu0
  %v5562 = vadd.f32 0.0, %v5561
  %v5563 = vpop.f32.mrb[0].mxu0
  %v5564 = vpop.f32.mrb[0].mxu0
  %v5565 = vadd.f32 0.0, %v5564
  %v5566 = vpop.f32.mrb[0].mxu0
  %5567 = vmatprep.mubr.bf16.mxu0 0
  %5568 = vmatmul.mubr.bf16.gmra.mrb[0].mxu0 %v5514
  %v5569 = vpop.f32.mrb[0].mxu0
  %v5570 = vadd.f32 0.0, %v5569
  %v5571 = vpop.f32.mrb[0].mxu0
  %v5572 = vpop.f32.mrb[0].mxu0
  %v5573 = vadd.f32 0.0, %v5572
  %v5574 = vpop.f32.mrb[0].mxu0
  %5575 = vdwg.mxu0
  %v5577 = vsel %vm380, %v4732, 0
  %v5580 = vsel %vm380, %v4733, 0
  %v5583 = vsel %vm380, %v4734, 0
  %v5586 = vsel %vm1702, %v4736, 0
  %5588 = vmatprep.subr.bf16.mxu0 0
  %5589 = vmatpush1.bf16.msra.mxu0 %v5586
  %5590 = vmatprep.subr.bf16.mxu0 0
  %5591 = vmatpush1.bf16.msra.mxu0 0
  %5592 = vmatprep.subr.bf16.mxu0 0
  %5593 = vmatpush1.bf16.msra.mxu0 0
  %5594 = vmatprep.subr.bf16.mxu0 0
  %5595 = vmatpush1.bf16.msra.mxu0 0
  %5596 = vmatprep.subr.bf16.mxu0 0
  %5597 = vmatpush1.bf16.msra.mxu0 0
  %5598 = vmatprep.subr.bf16.mxu0 0
  %5599 = vmatpush1.bf16.msra.mxu0 0
  %5600 = vmatprep.subr.bf16.mxu0 0
  %5601 = vmatpush1.bf16.msra.mxu0 0
  %5602 = vmatprep.subr.bf16.mxu0 0
  %5603 = vmatpush1.bf16.msra.mxu0 0
  %5604 = vmatprep.subr.bf16.mxu0 0
  %5605 = vmatpush1.bf16.msra.mxu0 0
  %5606 = vmatprep.subr.bf16.mxu0 0
  %5607 = vmatpush1.bf16.msra.mxu0 0
  %5608 = vmatprep.subr.bf16.mxu0 0
  %5609 = vmatpush1.bf16.msra.mxu0 0
  %5610 = vmatprep.subr.bf16.mxu0 0
  %5611 = vmatpush1.bf16.msra.mxu0 0
  %5612 = vmatprep.subr.bf16.mxu0 0
  %5613 = vmatpush1.bf16.msra.mxu0 0
  %5614 = vmatprep.subr.bf16.mxu0 0
  %5615 = vmatpush1.bf16.msra.mxu0 0
  %5616 = vmatprep.subr.bf16.mxu0 0
  %5617 = vmatpush1.bf16.msra.mxu0 0
  %5618 = vmatprep.subr.bf16.mxu0 0
  %5619 = vmatpush1.bf16.msra.mxu0 0
  %5620 = vmatprep.mubr.bf16.mxu0 0
  %5621 = vmatmul.mubr.bf16.gmra.mrb[0].mxu0 %v5577
  %v5622 = vpop.f32.mrb[0].mxu0
  %v5623 = vadd.f32 %v5554, %v5622
  %v5624 = vpop.f32.mrb[0].mxu0
  %v5625 = vpop.f32.mrb[0].mxu0
  %v5626 = vadd.f32 %v5557, %v5625
  %v5627 = vpop.f32.mrb[0].mxu0
  %5628 = vmatprep.mubr.bf16.mxu0 0
  %5629 = vmatmul.mubr.bf16.gmra.mrb[0].mxu0 %v5580
  %v5630 = vpop.f32.mrb[0].mxu0
  %v5631 = vadd.f32 %v5562, %v5630
  %v5632 = vpop.f32.mrb[0].mxu0
  %v5633 = vpop.f32.mrb[0].mxu0
  %v5634 = vadd.f32 %v5565, %v5633
  %v5635 = vpop.f32.mrb[0].mxu0
  %5636 = vmatprep.mubr.bf16.mxu0 0
  %5637 = vmatmul.mubr.bf16.gmra.mrb[0].mxu0 %v5583
  %v5638 = vpop.f32.mrb[0].mxu0
  %v5639 = vadd.f32 %v5570, %v5638
  %v5640 = vpop.f32.mrb[0].mxu0
  %v5641 = vpop.f32.mrb[0].mxu0
  %v5642 = vadd.f32 %v5573, %v5641
  %v5643 = vpop.f32.mrb[0].mxu0
  %5644 = vdwg.mxu0
  %s5645 = scalar_lea.vmem %s1, 96
  %v5646 = vld [vmem:[%s5645] sm:$0xf]
  %v5647 = vld [vmem:[%s5645 + $0x4] sm:$0xf]
  %v5648 = vld [vmem:[%s5645 + $0x8] sm:$0xf]
  %v5649 = vld [vmem:[%s5645 + $0xc] sm:$0xf]
  %v5654 = vunpack.c.l.b16 %v5646
  %v5655 = vunpack.c.l.b16 %v5647
  %v5656 = vunpack.c.l.b16 %v5648
  %v5657 = vunpack.c.l.b16 %v5649
  %v5658 = vpack.c.b16 %v5655, %v5654
  %v5659 = vpack.c.b16 %v5657, %v5656
  %5662 = vmatprep.subr.bf16.mxu0 0
  %5663 = vmatpush1.bf16.msra.mxu0 %v5658
  %5664 = vmatprep.subr.bf16.mxu0 0
  %5665 = vmatpush1.bf16.msra.mxu0 %v5659
  %5666 = vmatprep.subr.bf16.mxu0 0
  %5667 = vmatpush1.bf16.msra.mxu0 0
  %5668 = vmatprep.subr.bf16.mxu0 0
  %5669 = vmatpush1.bf16.msra.mxu0 0
  %5670 = vmatprep.subr.bf16.mxu0 0
  %5671 = vmatpush1.bf16.msra.mxu0 0
  %5672 = vmatprep.subr.bf16.mxu0 0
  %5673 = vmatpush1.bf16.msra.mxu0 0
  %5674 = vmatprep.subr.bf16.mxu0 0
  %5675 = vmatpush1.bf16.msra.mxu0 0
  %5676 = vmatprep.subr.bf16.mxu0 0
  %5677 = vmatpush1.bf16.msra.mxu0 0
  %5678 = vmatprep.subr.bf16.mxu0 0
  %5679 = vmatpush1.bf16.msra.mxu0 0
  %5680 = vmatprep.subr.bf16.mxu0 0
  %5681 = vmatpush1.bf16.msra.mxu0 0
  %5682 = vmatprep.subr.bf16.mxu0 0
  %5683 = vmatpush1.bf16.msra.mxu0 0
  %5684 = vmatprep.subr.bf16.mxu0 0
  %5685 = vmatpush1.bf16.msra.mxu0 0
  %5686 = vmatprep.subr.bf16.mxu0 0
  %5687 = vmatpush1.bf16.msra.mxu0 0
  %5688 = vmatprep.subr.bf16.mxu0 0
  %5689 = vmatpush1.bf16.msra.mxu0 0
  %5690 = vmatprep.subr.bf16.mxu0 0
  %5691 = vmatpush1.bf16.msra.mxu0 0
  %5692 = vmatprep.subr.bf16.mxu0 0
  %5693 = vmatpush1.bf16.msra.mxu0 0
  %5694 = vmatprep.mubr.bf16.mxu0 0
  %5695 = vmatmul.mubr.bf16.gmra.mrb[0].mxu0 %v3976
  %v5696 = vpop.f32.mrb[0].mxu0
  %v5697 = vadd.f32 0.0, %v5696
  %v5698 = vpop.f32.mrb[0].mxu0
  %v5699 = vpop.f32.mrb[0].mxu0
  %v5700 = vadd.f32 0.0, %v5699
  %v5701 = vpop.f32.mrb[0].mxu0
  %5702 = vmatprep.mubr.bf16.mxu0 0
  %5703 = vmatmul.mubr.bf16.gmra.mrb[0].mxu0 %v3979
  %v5704 = vpop.f32.mrb[0].mxu0
  %v5705 = vadd.f32 0.0, %v5704
  %v5706 = vpop.f32.mrb[0].mxu0
  %v5707 = vpop.f32.mrb[0].mxu0
  %v5708 = vadd.f32 0.0, %v5707
  %v5709 = vpop.f32.mrb[0].mxu0
  %5710 = vmatprep.mubr.bf16.mxu0 0
  %5711 = vmatmul.mubr.bf16.gmra.mrb[0].mxu0 %v3982
  %v5712 = vpop.f32.mrb[0].mxu0
  %v5713 = vadd.f32 0.0, %v5712
  %v5714 = vpop.f32.mrb[0].mxu0
  %v5715 = vpop.f32.mrb[0].mxu0
  %v5716 = vadd.f32 0.0, %v5715
  %v5717 = vpop.f32.mrb[0].mxu0
  %5718 = vdwg.mxu0
  %s5719 = scalar_lea.vmem %s2, 96
  %v5720 = vld [vmem:[%s5719] sm:$0xf]
  %v5721 = vld [vmem:[%s5719 + $0x4] sm:$0xf]
  %v5722 = vld [vmem:[%s5719 + $0x8] sm:$0xf]
  %v5723 = vld [vmem:[%s5719 + $0xc] sm:$0xf]
  %v5728 = vunpack.c.l.b16 %v5720
  %v5729 = vunpack.c.l.b16 %v5721
  %v5730 = vunpack.c.l.b16 %v5722
  %v5731 = vunpack.c.l.b16 %v5723
  %v5732 = vpack.c.b16 %v5729, %v5728
  %v5733 = vpack.c.b16 %v5731, %v5730
  %5736 = vmatprep.subr.bf16.mxu0 0
  %5737 = vmatpush1.bf16.msra.mxu0 %v5732
  %5738 = vmatprep.subr.bf16.mxu0 0
  %5739 = vmatpush1.bf16.msra.mxu0 %v5733
  %5740 = vmatprep.subr.bf16.mxu0 0
  %5741 = vmatpush1.bf16.msra.mxu0 0
  %5742 = vmatprep.subr.bf16.mxu0 0
  %5743 = vmatpush1.bf16.msra.mxu0 0
  %5744 = vmatprep.subr.bf16.mxu0 0
  %5745 = vmatpush1.bf16.msra.mxu0 0
  %5746 = vmatprep.subr.bf16.mxu0 0
  %5747 = vmatpush1.bf16.msra.mxu0 0
  %5748 = vmatprep.subr.bf16.mxu0 0
  %5749 = vmatpush1.bf16.msra.mxu0 0
  %5750 = vmatprep.subr.bf16.mxu0 0
  %5751 = vmatpush1.bf16.msra.mxu0 0
  %5752 = vmatprep.subr.bf16.mxu0 0
  %5753 = vmatpush1.bf16.msra.mxu0 0
  %5754 = vmatprep.subr.bf16.mxu0 0
  %5755 = vmatpush1.bf16.msra.mxu0 0
  %5756 = vmatprep.subr.bf16.mxu0 0
  %5757 = vmatpush1.bf16.msra.mxu0 0
  %5758 = vmatprep.subr.bf16.mxu0 0
  %5759 = vmatpush1.bf16.msra.mxu0 0
  %5760 = vmatprep.subr.bf16.mxu0 0
  %5761 = vmatpush1.bf16.msra.mxu0 0
  %5762 = vmatprep.subr.bf16.mxu0 0
  %5763 = vmatpush1.bf16.msra.mxu0 0
  %5764 = vmatprep.subr.bf16.mxu0 0
  %5765 = vmatpush1.bf16.msra.mxu0 0
  %5766 = vmatprep.subr.bf16.mxu0 0
  %5767 = vmatpush1.bf16.msra.mxu0 0
  %5768 = vmatprep.mubr.bf16.mxu0 0
  %5769 = vmatmul.mubr.bf16.gmra.mrb[0].mxu0 %v3976
  %v5770 = vpop.f32.mrb[0].mxu0
  %v5771 = vadd.f32 0.0, %v5770
  %v5772 = vpop.f32.mrb[0].mxu0
  %v5773 = vpop.f32.mrb[0].mxu0
  %v5774 = vadd.f32 0.0, %v5773
  %v5775 = vpop.f32.mrb[0].mxu0
  %5776 = vmatprep.mubr.bf16.mxu0 0
  %5777 = vmatmul.mubr.bf16.gmra.mrb[0].mxu0 %v3979
  %v5778 = vpop.f32.mrb[0].mxu0
  %v5779 = vadd.f32 0.0, %v5778
  %v5780 = vpop.f32.mrb[0].mxu0
  %v5781 = vpop.f32.mrb[0].mxu0
  %v5782 = vadd.f32 0.0, %v5781
  %v5783 = vpop.f32.mrb[0].mxu0
  %5784 = vmatprep.mubr.bf16.mxu0 0
  %5785 = vmatmul.mubr.bf16.gmra.mrb[0].mxu0 %v3982
  %v5786 = vpop.f32.mrb[0].mxu0
  %v5787 = vadd.f32 0.0, %v5786
  %v5788 = vpop.f32.mrb[0].mxu0
  %v5789 = vpop.f32.mrb[0].mxu0
  %v5790 = vadd.f32 0.0, %v5789
  %v5791 = vpop.f32.mrb[0].mxu0
  %5792 = vdwg.mxu0
  %s5793 = scalar_lea.vmem %s3, 96
  %v5794 = vld [vmem:[%s5793] sm:$0xf]
  %v5795 = vld [vmem:[%s5793 + $0x4] sm:$0xf]
  %v5796 = vld [vmem:[%s5793 + $0x8] sm:$0xf]
  %v5797 = vld [vmem:[%s5793 + $0xc] sm:$0xf]
  %v5802 = vunpack.c.l.b16 %v5794
  %v5803 = vunpack.c.l.b16 %v5795
  %v5804 = vunpack.c.l.b16 %v5796
  %v5805 = vunpack.c.l.b16 %v5797
  %v5806 = vpack.c.b16 %v5803, %v5802
  %v5807 = vpack.c.b16 %v5805, %v5804
  %5810 = vmatprep.subr.bf16.mxu0 0
  %5811 = vmatpush1.bf16.msra.mxu0 %v5806
  %5812 = vmatprep.subr.bf16.mxu0 0
  %5813 = vmatpush1.bf16.msra.mxu0 %v5807
  %5814 = vmatprep.subr.bf16.mxu0 0
  %5815 = vmatpush1.bf16.msra.mxu0 0
  %5816 = vmatprep.subr.bf16.mxu0 0
  %5817 = vmatpush1.bf16.msra.mxu0 0
  %5818 = vmatprep.subr.bf16.mxu0 0
  %5819 = vmatpush1.bf16.msra.mxu0 0
  %5820 = vmatprep.subr.bf16.mxu0 0
  %5821 = vmatpush1.bf16.msra.mxu0 0
  %5822 = vmatprep.subr.bf16.mxu0 0
  %5823 = vmatpush1.bf16.msra.mxu0 0
  %5824 = vmatprep.subr.bf16.mxu0 0
  %5825 = vmatpush1.bf16.msra.mxu0 0
  %5826 = vmatprep.subr.bf16.mxu0 0
  %5827 = vmatpush1.bf16.msra.mxu0 0
  %5828 = vmatprep.subr.bf16.mxu0 0
  %5829 = vmatpush1.bf16.msra.mxu0 0
  %5830 = vmatprep.subr.bf16.mxu0 0
  %5831 = vmatpush1.bf16.msra.mxu0 0
  %5832 = vmatprep.subr.bf16.mxu0 0
  %5833 = vmatpush1.bf16.msra.mxu0 0
  %5834 = vmatprep.subr.bf16.mxu0 0
  %5835 = vmatpush1.bf16.msra.mxu0 0
  %5836 = vmatprep.subr.bf16.mxu0 0
  %5837 = vmatpush1.bf16.msra.mxu0 0
  %5838 = vmatprep.subr.bf16.mxu0 0
  %5839 = vmatpush1.bf16.msra.mxu0 0
  %5840 = vmatprep.subr.bf16.mxu0 0
  %5841 = vmatpush1.bf16.msra.mxu0 0
  %5842 = vmatprep.mubr.bf16.mxu0 0
  %5843 = vmatmul.mubr.bf16.gmra.mrb[0].mxu0 %v3976
  %v5844 = vpop.f32.mrb[0].mxu0
  %v5845 = vadd.f32 0.0, %v5844
  %v5846 = vpop.f32.mrb[0].mxu0
  %v5847 = vpop.f32.mrb[0].mxu0
  %v5848 = vadd.f32 0.0, %v5847
  %v5849 = vpop.f32.mrb[0].mxu0
  %5850 = vmatprep.mubr.bf16.mxu0 0
  %5851 = vmatmul.mubr.bf16.gmra.mrb[0].mxu0 %v3979
  %v5852 = vpop.f32.mrb[0].mxu0
  %v5853 = vadd.f32 0.0, %v5852
  %v5854 = vpop.f32.mrb[0].mxu0
  %v5855 = vpop.f32.mrb[0].mxu0
  %v5856 = vadd.f32 0.0, %v5855
  %v5857 = vpop.f32.mrb[0].mxu0
  %5858 = vmatprep.mubr.bf16.mxu0 0
  %5859 = vmatmul.mubr.bf16.gmra.mrb[0].mxu0 %v3982
  %v5860 = vpop.f32.mrb[0].mxu0
  %v5861 = vadd.f32 0.0, %v5860
  %v5862 = vpop.f32.mrb[0].mxu0
  %v5863 = vpop.f32.mrb[0].mxu0
  %v5864 = vadd.f32 0.0, %v5863
  %v5865 = vpop.f32.mrb[0].mxu0
  %5866 = vdwg.mxu0
  %v5867 = vmul.f32 %v5697, %v63
  %v5868 = vmul.f32 %v5700, %v64
  %v5869 = vmul.f32 %v5705, %v65
  %v5870 = vmul.f32 %v5708, %v66
  %v5871 = vmul.f32 %v5713, %v67
  %v5872 = vmul.f32 %v5716, %v68
  %v5874 = vsel %vm380, %v5697, 0
  %v5877 = vsel %vm380, %v5700, 0
  %v5880 = vsel %vm380, %v5705, 0
  %v5883 = vsel %vm380, %v5708, 0
  %v5886 = vsel %vm380, %v5713, 0
  %v5889 = vsel %vm380, %v5716, 0
  %5891 = vmatprep.subr.mxu0 0.0
  %5892 = vmatpush1.msra.mxu0 %v75
  %5893 = vmatprep.subr.mxu0 0.0
  %5894 = vmatpush1.msra.mxu0 0.0
  %5895 = vmatprep.subr.mxu0 0.0
  %5896 = vmatpush1.msra.mxu0 0.0
  %5897 = vmatprep.subr.mxu0 0.0
  %5898 = vmatpush1.msra.mxu0 0.0
  %5899 = vmatprep.subr.mxu0 0.0
  %5900 = vmatpush1.msra.mxu0 0.0
  %5901 = vmatprep.subr.mxu0 0.0
  %5902 = vmatpush1.msra.mxu0 0.0
  %5903 = vmatprep.subr.mxu0 0.0
  %5904 = vmatpush1.msra.mxu0 0.0
  %5905 = vmatprep.subr.mxu0 0.0
  %5906 = vmatpush1.msra.mxu0 0.0
  %5907 = vmatprep.subr.mxu0 0.0
  %5908 = vmatpush1.msra.mxu0 0.0
  %5909 = vmatprep.subr.mxu0 0.0
  %5910 = vmatpush1.msra.mxu0 0.0
  %5911 = vmatprep.subr.mxu0 0.0
  %5912 = vmatpush1.msra.mxu0 0.0
  %5913 = vmatprep.subr.mxu0 0.0
  %5914 = vmatpush1.msra.mxu0 0.0
  %5915 = vmatprep.subr.mxu0 0.0
  %5916 = vmatpush1.msra.mxu0 0.0
  %5917 = vmatprep.subr.mxu0 0.0
  %5918 = vmatpush1.msra.mxu0 0.0
  %5919 = vmatprep.subr.mxu0 0.0
  %5920 = vmatpush1.msra.mxu0 0.0
  %5921 = vmatprep.subr.mxu0 0.0
  %5922 = vmatpush1.msra.mxu0 0.0
  %5923 = vmatprep.subr.mxu0 0.0
  %5924 = vmatpush1.msra.mxu0 0.0
  %5925 = vmatprep.subr.mxu0 0.0
  %5926 = vmatpush1.msra.mxu0 0.0
  %5927 = vmatprep.subr.mxu0 0.0
  %5928 = vmatpush1.msra.mxu0 0.0
  %5929 = vmatprep.subr.mxu0 0.0
  %5930 = vmatpush1.msra.mxu0 0.0
  %5931 = vmatprep.subr.mxu0 0.0
  %5932 = vmatpush1.msra.mxu0 0.0
  %5933 = vmatprep.subr.mxu0 0.0
  %5934 = vmatpush1.msra.mxu0 0.0
  %5935 = vmatprep.subr.mxu0 0.0
  %5936 = vmatpush1.msra.mxu0 0.0
  %5937 = vmatprep.subr.mxu0 0.0
  %5938 = vmatpush1.msra.mxu0 0.0
  %5939 = vmatprep.subr.mxu0 0.0
  %5940 = vmatpush1.msra.mxu0 0.0
  %5941 = vmatprep.subr.mxu0 0.0
  %5942 = vmatpush1.msra.mxu0 0.0
  %5943 = vmatprep.subr.mxu0 0.0
  %5944 = vmatpush1.msra.mxu0 0.0
  %5945 = vmatprep.subr.mxu0 0.0
  %5946 = vmatpush1.msra.mxu0 0.0
  %5947 = vmatprep.subr.mxu0 0.0
  %5948 = vmatpush1.msra.mxu0 0.0
  %5949 = vmatprep.subr.mxu0 0.0
  %5950 = vmatpush1.msra.mxu0 0.0
  %5951 = vmatprep.subr.mxu0 0.0
  %5952 = vmatpush1.msra.mxu0 0.0
  %5953 = vmatprep.subr.mxu0 0.0
  %5954 = vmatpush1.msra.mxu0 0.0
  %5955 = vmatprep.mubr.f32.mxu0 0.0
  %5956 = vmatmul.mubr.f32.gmra.mrb[0].mxu0 %v5874
  %v5957 = vpop.f32.mrb[0].mxu0
  %v5958 = vadd.f32 0.0, %v5957
  %v5959 = vpop.f32.mrb[0].mxu0
  %5960 = vmatprep.mubr.f32.mxu0 0.0
  %5961 = vmatmul.mubr.f32.gmra.mrb[0].mxu0 %v5877
  %v5962 = vpop.f32.mrb[0].mxu0
  %v5963 = vadd.f32 0.0, %v5962
  %v5964 = vpop.f32.mrb[0].mxu0
  %5965 = vmatprep.mubr.f32.mxu0 0.0
  %5966 = vmatmul.mubr.f32.gmra.mrb[0].mxu0 %v5880
  %v5967 = vpop.f32.mrb[0].mxu0
  %v5968 = vadd.f32 0.0, %v5967
  %v5969 = vpop.f32.mrb[0].mxu0
  %5970 = vmatprep.mubr.f32.mxu0 0.0
  %5971 = vmatmul.mubr.f32.gmra.mrb[0].mxu0 %v5883
  %v5972 = vpop.f32.mrb[0].mxu0
  %v5973 = vadd.f32 0.0, %v5972
  %v5974 = vpop.f32.mrb[0].mxu0
  %5975 = vmatprep.mubr.f32.mxu0 0.0
  %5976 = vmatmul.mubr.f32.gmra.mrb[0].mxu0 %v5886
  %v5977 = vpop.f32.mrb[0].mxu0
  %v5978 = vadd.f32 0.0, %v5977
  %v5979 = vpop.f32.mrb[0].mxu0
  %5980 = vmatprep.mubr.f32.mxu0 0.0
  %5981 = vmatmul.mubr.f32.gmra.mrb[0].mxu0 %v5889
  %v5982 = vpop.f32.mrb[0].mxu0
  %v5983 = vadd.f32 0.0, %v5982
  %v5984 = vpop.f32.mrb[0].mxu0
  %5985 = vdwg.mxu0
  %v5986 = vmul.f32 %v5958, %v69
  %v5987 = vmul.f32 %v5963, %v70
  %v5988 = vmul.f32 %v5968, %v71
  %v5989 = vmul.f32 %v5973, %v72
  %v5990 = vmul.f32 %v5978, %v73
  %v5991 = vmul.f32 %v5983, %v74
  %v5992 = vadd.f32 %v5867, %v5986
  %v5993 = vadd.f32 %v5868, %v5987
  %v5994 = vadd.f32 %v5869, %v5988
  %v5995 = vadd.f32 %v5870, %v5989
  %v5996 = vadd.f32 %v5871, %v5990
  %v5997 = vadd.f32 %v5872, %v5991
  %v5998 = vmul.f32 %v5771, %v63
  %v5999 = vmul.f32 %v5774, %v64
  %v6000 = vmul.f32 %v5779, %v65
  %v6001 = vmul.f32 %v5782, %v66
  %v6002 = vmul.f32 %v5787, %v67
  %v6003 = vmul.f32 %v5790, %v68
  %v6005 = vsel %vm380, %v5771, 0
  %v6008 = vsel %vm380, %v5774, 0
  %v6011 = vsel %vm380, %v5779, 0
  %v6014 = vsel %vm380, %v5782, 0
  %v6017 = vsel %vm380, %v5787, 0
  %v6020 = vsel %vm380, %v5790, 0
  %6022 = vmatprep.subr.mxu0 0.0
  %6023 = vmatpush1.msra.mxu0 %v75
  %6024 = vmatprep.subr.mxu0 0.0
  %6025 = vmatpush1.msra.mxu0 0.0
  %6026 = vmatprep.subr.mxu0 0.0
  %6027 = vmatpush1.msra.mxu0 0.0
  %6028 = vmatprep.subr.mxu0 0.0
  %6029 = vmatpush1.msra.mxu0 0.0
  %6030 = vmatprep.subr.mxu0 0.0
  %6031 = vmatpush1.msra.mxu0 0.0
  %6032 = vmatprep.subr.mxu0 0.0
  %6033 = vmatpush1.msra.mxu0 0.0
  %6034 = vmatprep.subr.mxu0 0.0
  %6035 = vmatpush1.msra.mxu0 0.0
  %6036 = vmatprep.subr.mxu0 0.0
  %6037 = vmatpush1.msra.mxu0 0.0
  %6038 = vmatprep.subr.mxu0 0.0
  %6039 = vmatpush1.msra.mxu0 0.0
  %6040 = vmatprep.subr.mxu0 0.0
  %6041 = vmatpush1.msra.mxu0 0.0
  %6042 = vmatprep.subr.mxu0 0.0
  %6043 = vmatpush1.msra.mxu0 0.0
  %6044 = vmatprep.subr.mxu0 0.0
  %6045 = vmatpush1.msra.mxu0 0.0
  %6046 = vmatprep.subr.mxu0 0.0
  %6047 = vmatpush1.msra.mxu0 0.0
  %6048 = vmatprep.subr.mxu0 0.0
  %6049 = vmatpush1.msra.mxu0 0.0
  %6050 = vmatprep.subr.mxu0 0.0
  %6051 = vmatpush1.msra.mxu0 0.0
  %6052 = vmatprep.subr.mxu0 0.0
  %6053 = vmatpush1.msra.mxu0 0.0
  %6054 = vmatprep.subr.mxu0 0.0
  %6055 = vmatpush1.msra.mxu0 0.0
  %6056 = vmatprep.subr.mxu0 0.0
  %6057 = vmatpush1.msra.mxu0 0.0
  %6058 = vmatprep.subr.mxu0 0.0
  %6059 = vmatpush1.msra.mxu0 0.0
  %6060 = vmatprep.subr.mxu0 0.0
  %6061 = vmatpush1.msra.mxu0 0.0
  %6062 = vmatprep.subr.mxu0 0.0
  %6063 = vmatpush1.msra.mxu0 0.0
  %6064 = vmatprep.subr.mxu0 0.0
  %6065 = vmatpush1.msra.mxu0 0.0
  %6066 = vmatprep.subr.mxu0 0.0
  %6067 = vmatpush1.msra.mxu0 0.0
  %6068 = vmatprep.subr.mxu0 0.0
  %6069 = vmatpush1.msra.mxu0 0.0
  %6070 = vmatprep.subr.mxu0 0.0
  %6071 = vmatpush1.msra.mxu0 0.0
  %6072 = vmatprep.subr.mxu0 0.0
  %6073 = vmatpush1.msra.mxu0 0.0
  %6074 = vmatprep.subr.mxu0 0.0
  %6075 = vmatpush1.msra.mxu0 0.0
  %6076 = vmatprep.subr.mxu0 0.0
  %6077 = vmatpush1.msra.mxu0 0.0
  %6078 = vmatprep.subr.mxu0 0.0
  %6079 = vmatpush1.msra.mxu0 0.0
  %6080 = vmatprep.subr.mxu0 0.0
  %6081 = vmatpush1.msra.mxu0 0.0
  %6082 = vmatprep.subr.mxu0 0.0
  %6083 = vmatpush1.msra.mxu0 0.0
  %6084 = vmatprep.subr.mxu0 0.0
  %6085 = vmatpush1.msra.mxu0 0.0
  %6086 = vmatprep.mubr.f32.mxu0 0.0
  %6087 = vmatmul.mubr.f32.gmra.mrb[0].mxu0 %v6005
  %v6088 = vpop.f32.mrb[0].mxu0
  %v6089 = vadd.f32 0.0, %v6088
  %v6090 = vpop.f32.mrb[0].mxu0
  %6091 = vmatprep.mubr.f32.mxu0 0.0
  %6092 = vmatmul.mubr.f32.gmra.mrb[0].mxu0 %v6008
  %v6093 = vpop.f32.mrb[0].mxu0
  %v6094 = vadd.f32 0.0, %v6093
  %v6095 = vpop.f32.mrb[0].mxu0
  %6096 = vmatprep.mubr.f32.mxu0 0.0
  %6097 = vmatmul.mubr.f32.gmra.mrb[0].mxu0 %v6011
  %v6098 = vpop.f32.mrb[0].mxu0
  %v6099 = vadd.f32 0.0, %v6098
  %v6100 = vpop.f32.mrb[0].mxu0
  %6101 = vmatprep.mubr.f32.mxu0 0.0
  %6102 = vmatmul.mubr.f32.gmra.mrb[0].mxu0 %v6014
  %v6103 = vpop.f32.mrb[0].mxu0
  %v6104 = vadd.f32 0.0, %v6103
  %v6105 = vpop.f32.mrb[0].mxu0
  %6106 = vmatprep.mubr.f32.mxu0 0.0
  %6107 = vmatmul.mubr.f32.gmra.mrb[0].mxu0 %v6017
  %v6108 = vpop.f32.mrb[0].mxu0
  %v6109 = vadd.f32 0.0, %v6108
  %v6110 = vpop.f32.mrb[0].mxu0
  %6111 = vmatprep.mubr.f32.mxu0 0.0
  %6112 = vmatmul.mubr.f32.gmra.mrb[0].mxu0 %v6020
  %v6113 = vpop.f32.mrb[0].mxu0
  %v6114 = vadd.f32 0.0, %v6113
  %v6115 = vpop.f32.mrb[0].mxu0
  %6116 = vdwg.mxu0
  %v6117 = vmul.f32 %v6089, %v69
  %v6118 = vmul.f32 %v6094, %v70
  %v6119 = vmul.f32 %v6099, %v71
  %v6120 = vmul.f32 %v6104, %v72
  %v6121 = vmul.f32 %v6109, %v73
  %v6122 = vmul.f32 %v6114, %v74
  %v6123 = vadd.f32 %v5998, %v6117
  %v6124 = vadd.f32 %v5999, %v6118
  %v6125 = vadd.f32 %v6000, %v6119
  %v6126 = vadd.f32 %v6001, %v6120
  %v6127 = vadd.f32 %v6002, %v6121
  %v6128 = vadd.f32 %v6003, %v6122
  %v6130 = vsel %vm380, %v5992, 0
  %v6133 = vsel %vm380, %v5993, 0
  %v6136 = vsel %vm380, %v5994, 0
  %v6139 = vsel %vm380, %v5995, 0
  %v6142 = vsel %vm380, %v5996, 0
  %v6145 = vsel %vm380, %v5997, 0
  %v6148 = vsel %vm380, %v6123, 0
  %v6151 = vsel %vm380, %v6124, 0
  %v6154 = vsel %vm380, %v6125, 0
  %v6157 = vsel %vm380, %v6126, 0
  %v6160 = vsel %vm380, %v6127, 0
  %v6163 = vsel %vm380, %v6128, 0
  %6165 = vmatprep.subr.mxu0 0.0
  %6166 = vmatpush1.xpose.msra.mxu0 %v6148
  %6167 = vmatprep.subr.mxu0 0.0
  %6168 = vmatpush1.xpose.msra.mxu0 %v6151
  %6169 = vmatprep.subr.mxu0 0.0
  %6170 = vmatpush1.xpose.msra.mxu0 %v6154
  %6171 = vmatprep.subr.mxu0 0.0
  %6172 = vmatpush1.xpose.msra.mxu0 %v6157
  %6173 = vmatprep.subr.mxu0 0.0
  %6174 = vmatpush1.xpose.msra.mxu0 %v6160
  %6175 = vmatprep.subr.mxu0 0.0
  %6176 = vmatpush1.xpose.msra.mxu0 %v6163
  %6177 = vmatprep.subr.mxu0 0.0
  %6178 = vmatpush1.xpose.msra.mxu0 0.0
  %6179 = vmatprep.subr.mxu0 0.0
  %6180 = vmatpush1.xpose.msra.mxu0 0.0
  %6181 = vmatprep.subr.mxu0 0.0
  %6182 = vmatpush1.xpose.msra.mxu0 0.0
  %6183 = vmatprep.subr.mxu0 0.0
  %6184 = vmatpush1.xpose.msra.mxu0 0.0
  %6185 = vmatprep.subr.mxu0 0.0
  %6186 = vmatpush1.xpose.msra.mxu0 0.0
  %6187 = vmatprep.subr.mxu0 0.0
  %6188 = vmatpush1.xpose.msra.mxu0 0.0
  %6189 = vmatprep.subr.mxu0 0.0
  %6190 = vmatpush1.xpose.msra.mxu0 0.0
  %6191 = vmatprep.subr.mxu0 0.0
  %6192 = vmatpush1.xpose.msra.mxu0 0.0
  %6193 = vmatprep.subr.mxu0 0.0
  %6194 = vmatpush1.xpose.msra.mxu0 0.0
  %6195 = vmatprep.subr.mxu0 0.0
  %6196 = vmatpush1.xpose.msra.mxu0 0.0
  %6197 = vmatprep.subr.mxu0 0.0
  %6198 = vmatpush1.xpose.msra.mxu0 0.0
  %6199 = vmatprep.subr.mxu0 0.0
  %6200 = vmatpush1.xpose.msra.mxu0 0.0
  %6201 = vmatprep.subr.mxu0 0.0
  %6202 = vmatpush1.xpose.msra.mxu0 0.0
  %6203 = vmatprep.subr.mxu0 0.0
  %6204 = vmatpush1.xpose.msra.mxu0 0.0
  %6205 = vmatprep.subr.mxu0 0.0
  %6206 = vmatpush1.xpose.msra.mxu0 0.0
  %6207 = vmatprep.subr.mxu0 0.0
  %6208 = vmatpush1.xpose.msra.mxu0 0.0
  %6209 = vmatprep.subr.mxu0 0.0
  %6210 = vmatpush1.xpose.msra.mxu0 0.0
  %6211 = vmatprep.subr.mxu0 0.0
  %6212 = vmatpush1.xpose.msra.mxu0 0.0
  %6213 = vmatprep.subr.mxu0 0.0
  %6214 = vmatpush1.xpose.msra.mxu0 0.0
  %6215 = vmatprep.subr.mxu0 0.0
  %6216 = vmatpush1.xpose.msra.mxu0 0.0
  %6217 = vmatprep.subr.mxu0 0.0
  %6218 = vmatpush1.xpose.msra.mxu0 0.0
  %6219 = vmatprep.subr.mxu0 0.0
  %6220 = vmatpush1.xpose.msra.mxu0 0.0
  %6221 = vmatprep.subr.mxu0 0.0
  %6222 = vmatpush1.xpose.msra.mxu0 0.0
  %6223 = vmatprep.subr.mxu0 0.0
  %6224 = vmatpush1.xpose.msra.mxu0 0.0
  %6225 = vmatprep.subr.mxu0 0.0
  %6226 = vmatpush1.xpose.msra.mxu0 0.0
  %6227 = vmatprep.subr.mxu0 0.0
  %6228 = vmatpush1.xpose.msra.mxu0 0.0
  %6229 = vmatprep.mubr.f32.mxu0 0.0
  %6230 = vmatmul.mubr.f32.gmra.mrb[0].mxu0 %v6130
  %v6231 = vpop.f32.mrb[0].mxu0
  %v6232 = vadd.f32 0.0, %v6231
  %v6233 = vpop.f32.mrb[0].mxu0
  %6234 = vmatprep.mubr.f32.mxu0 0.0
  %6235 = vmatmul.mubr.f32.gmra.mrb[0].mxu0 %v6133
  %v6236 = vpop.f32.mrb[0].mxu0
  %v6237 = vadd.f32 0.0, %v6236
  %v6238 = vpop.f32.mrb[0].mxu0
  %6239 = vmatprep.mubr.f32.mxu0 0.0
  %6240 = vmatmul.mubr.f32.gmra.mrb[0].mxu0 %v6136
  %v6241 = vpop.f32.mrb[0].mxu0
  %v6242 = vadd.f32 0.0, %v6241
  %v6243 = vpop.f32.mrb[0].mxu0
  %6244 = vmatprep.mubr.f32.mxu0 0.0
  %6245 = vmatmul.mubr.f32.gmra.mrb[0].mxu0 %v6139
  %v6246 = vpop.f32.mrb[0].mxu0
  %v6247 = vadd.f32 0.0, %v6246
  %v6248 = vpop.f32.mrb[0].mxu0
  %6249 = vmatprep.mubr.f32.mxu0 0.0
  %6250 = vmatmul.mubr.f32.gmra.mrb[0].mxu0 %v6142
  %v6251 = vpop.f32.mrb[0].mxu0
  %v6252 = vadd.f32 0.0, %v6251
  %v6253 = vpop.f32.mrb[0].mxu0
  %6254 = vmatprep.mubr.f32.mxu0 0.0
  %6255 = vmatmul.mubr.f32.gmra.mrb[0].mxu0 %v6145
  %v6256 = vpop.f32.mrb[0].mxu0
  %v6257 = vadd.f32 0.0, %v6256
  %v6258 = vpop.f32.mrb[0].mxu0
  %6259 = vdwg.mxu0
  %v6260 = vmul.f32 %v6232, 0.35355338
  %v6261 = vmul.f32 %v6237, 0.35355338
  %v6262 = vmul.f32 %v6242, 0.35355338
  %v6263 = vmul.f32 %v6247, 0.35355338
  %v6264 = vmul.f32 %v6252, 0.35355338
  %v6265 = vmul.f32 %v6257, 0.35355338
  %v6266 = vadd.f32 %v6260, %v76
  %v6267 = vadd.f32 %v6261, %v77
  %v6268 = vadd.f32 %v6262, %v78
  %v6269 = vadd.f32 %v6263, %v79
  %v6270 = vadd.f32 %v6264, %v80
  %v6271 = vadd.f32 %v6265, %v81
  %v6272 = vsel %vm780, %v6266, -inf
  %6273 = vmax.xlane.f32.xlu0 %v6272
  %v6274 = vpop.xlane.xlu0 %6273
  %v6275 = vsel %vm780, %v6267, -inf
  %6276 = vmax.xlane.f32.xlu0 %v6275
  %v6277 = vpop.xlane.xlu0 %6276
  %v6278 = vsel %vm780, %v6268, -inf
  %6279 = vmax.xlane.f32.xlu0 %v6278
  %v6280 = vpop.xlane.xlu0 %6279
  %v6281 = vsel %vm780, %v6269, -inf
  %6282 = vmax.xlane.f32.xlu0 %v6281
  %v6283 = vpop.xlane.xlu0 %6282
  %v6284 = vsel %vm780, %v6270, -inf
  %6285 = vmax.xlane.f32.xlu0 %v6284
  %v6286 = vpop.xlane.xlu0 %6285
  %v6287 = vsel %vm780, %v6271, -inf
  %6288 = vmax.xlane.f32.xlu0 %v6287
  %v6289 = vpop.xlane.xlu0 %6288
  %v6290 = vsub.f32 %v6266, %v6274
  %v6291 = vsub.f32 %v6267, %v6277
  %v6292 = vsub.f32 %v6268, %v6280
  %v6293 = vsub.f32 %v6269, %v6283
  %v6294 = vsub.f32 %v6270, %v6286
  %v6295 = vsub.f32 %v6271, %v6289
  %v6296 = vmul.f32 %v6290, 1.442695
  %v6297 = vpow.pop %v6296
  %v6298 = vmul.f32 %v6291, 1.442695
  %v6299 = vpow.pop %v6298
  %v6300 = vmul.f32 %v6292, 1.442695
  %v6301 = vpow.pop %v6300
  %v6302 = vmul.f32 %v6293, 1.442695
  %v6303 = vpow.pop %v6302
  %v6304 = vmul.f32 %v6294, 1.442695
  %v6305 = vpow.pop %v6304
  %v6306 = vmul.f32 %v6295, 1.442695
  %v6307 = vpow.pop %v6306
  %v6308 = vsel %vm780, %v6297, 0.0
  %6309 = vadd.xlane.f32.xlu0 %v6308
  %v6310 = vpop.xlane.xlu0 %6309
  %v6311 = vsel %vm780, %v6299, 0.0
  %6312 = vadd.xlane.f32.xlu0 %v6311
  %v6313 = vpop.xlane.xlu0 %6312
  %v6314 = vsel %vm780, %v6301, 0.0
  %6315 = vadd.xlane.f32.xlu0 %v6314
  %v6316 = vpop.xlane.xlu0 %6315
  %v6317 = vsel %vm780, %v6303, 0.0
  %6318 = vadd.xlane.f32.xlu0 %v6317
  %v6319 = vpop.xlane.xlu0 %6318
  %v6320 = vsel %vm780, %v6305, 0.0
  %6321 = vadd.xlane.f32.xlu0 %v6320
  %v6322 = vpop.xlane.xlu0 %6321
  %v6323 = vsel %vm780, %v6307, 0.0
  %6324 = vadd.xlane.f32.xlu0 %v6323
  %v6325 = vpop.xlane.xlu0 %6324
  %v6326 = vrcp.pop %v6310
  %v6327 = vmul.f32 %v6297, %v6326
  %v6328 = vrcp.pop %v6313
  %v6329 = vmul.f32 %v6299, %v6328
  %v6330 = vrcp.pop %v6316
  %v6331 = vmul.f32 %v6301, %v6330
  %v6332 = vrcp.pop %v6319
  %v6333 = vmul.f32 %v6303, %v6332
  %v6334 = vrcp.pop %v6322
  %v6335 = vmul.f32 %v6305, %v6334
  %v6336 = vrcp.pop %v6325
  %v6337 = vmul.f32 %v6307, %v6336
  %v6338 = vpack.c.bf16 %v6329, %v6327
  %v6339 = vpack.c.bf16 %v6333, %v6331
  %v6340 = vpack.c.bf16 %v6337, %v6335
  %v6341 = vpack.c.bf16 %v5848, %v5845
  %v6342 = vpack.c.bf16 %v5856, %v5853
  %v6343 = vpack.c.bf16 %v5864, %v5861
  %v6345 = vsel %vm780, %v6338, 0
  %v6348 = vsel %vm780, %v6339, 0
  %v6351 = vsel %vm780, %v6340, 0
  %6353 = vmatprep.subr.bf16.mxu0 0
  %6354 = vmatpush1.bf16.msra.mxu0 %v6341
  %6355 = vmatprep.subr.bf16.mxu0 0
  %6356 = vmatpush1.bf16.msra.mxu0 %v6342
  %6357 = vmatprep.subr.bf16.mxu0 0
  %6358 = vmatpush1.bf16.msra.mxu0 %v6343
  %6359 = vmatprep.subr.bf16.mxu0 0
  %6360 = vmatpush1.bf16.msra.mxu0 0
  %6361 = vmatprep.subr.bf16.mxu0 0
  %6362 = vmatpush1.bf16.msra.mxu0 0
  %6363 = vmatprep.subr.bf16.mxu0 0
  %6364 = vmatpush1.bf16.msra.mxu0 0
  %6365 = vmatprep.subr.bf16.mxu0 0
  %6366 = vmatpush1.bf16.msra.mxu0 0
  %6367 = vmatprep.subr.bf16.mxu0 0
  %6368 = vmatpush1.bf16.msra.mxu0 0
  %6369 = vmatprep.subr.bf16.mxu0 0
  %6370 = vmatpush1.bf16.msra.mxu0 0
  %6371 = vmatprep.subr.bf16.mxu0 0
  %6372 = vmatpush1.bf16.msra.mxu0 0
  %6373 = vmatprep.subr.bf16.mxu0 0
  %6374 = vmatpush1.bf16.msra.mxu0 0
  %6375 = vmatprep.subr.bf16.mxu0 0
  %6376 = vmatpush1.bf16.msra.mxu0 0
  %6377 = vmatprep.subr.bf16.mxu0 0
  %6378 = vmatpush1.bf16.msra.mxu0 0
  %6379 = vmatprep.subr.bf16.mxu0 0
  %6380 = vmatpush1.bf16.msra.mxu0 0
  %6381 = vmatprep.subr.bf16.mxu0 0
  %6382 = vmatpush1.bf16.msra.mxu0 0
  %6383 = vmatprep.subr.bf16.mxu0 0
  %6384 = vmatpush1.bf16.msra.mxu0 0
  %6385 = vmatprep.mubr.bf16.mxu0 0
  %6386 = vmatmul.mubr.bf16.gmra.mrb[0].mxu0 %v6345
  %v6387 = vpop.f32.mrb[0].mxu0
  %v6388 = vadd.f32 0.0, %v6387
  %v6389 = vpop.f32.mrb[0].mxu0
  %v6390 = vpop.f32.mrb[0].mxu0
  %v6391 = vadd.f32 0.0, %v6390
  %v6392 = vpop.f32.mrb[0].mxu0
  %6393 = vmatprep.mubr.bf16.mxu0 0
  %6394 = vmatmul.mubr.bf16.gmra.mrb[0].mxu0 %v6348
  %v6395 = vpop.f32.mrb[0].mxu0
  %v6396 = vadd.f32 0.0, %v6395
  %v6397 = vpop.f32.mrb[0].mxu0
  %v6398 = vpop.f32.mrb[0].mxu0
  %v6399 = vadd.f32 0.0, %v6398
  %v6400 = vpop.f32.mrb[0].mxu0
  %6401 = vmatprep.mubr.bf16.mxu0 0
  %6402 = vmatmul.mubr.bf16.gmra.mrb[0].mxu0 %v6351
  %v6403 = vpop.f32.mrb[0].mxu0
  %v6404 = vadd.f32 0.0, %v6403
  %v6405 = vpop.f32.mrb[0].mxu0
  %v6406 = vpop.f32.mrb[0].mxu0
  %v6407 = vadd.f32 0.0, %v6406
  %v6408 = vpop.f32.mrb[0].mxu0
  %6409 = vdwg.mxu0
  %v6410 = vpack.c.bf16 %v6391, %v6388
  %v6411 = vpack.c.bf16 %v6399, %v6396
  %v6412 = vpack.c.bf16 %v6407, %v6404
  %s6413 = scalar_lea.vmem %s4, 24
  %v6414 = vld [vmem:[%s6413] sm:$0xf]
  %v6416 = vsel %vm380, %v6410, 0
  %v6419 = vsel %vm380, %v6411, 0
  %v6422 = vsel %vm380, %v6412, 0
  %v6425 = vsel %vm1702, %v6414, 0
  %6427 = vmatprep.subr.bf16.mxu0 0
  %6428 = vmatpush1.bf16.msra.mxu0 %v6425
  %6429 = vmatprep.subr.bf16.mxu0 0
  %6430 = vmatpush1.bf16.msra.mxu0 0
  %6431 = vmatprep.subr.bf16.mxu0 0
  %6432 = vmatpush1.bf16.msra.mxu0 0
  %6433 = vmatprep.subr.bf16.mxu0 0
  %6434 = vmatpush1.bf16.msra.mxu0 0
  %6435 = vmatprep.subr.bf16.mxu0 0
  %6436 = vmatpush1.bf16.msra.mxu0 0
  %6437 = vmatprep.subr.bf16.mxu0 0
  %6438 = vmatpush1.bf16.msra.mxu0 0
  %6439 = vmatprep.subr.bf16.mxu0 0
  %6440 = vmatpush1.bf16.msra.mxu0 0
  %6441 = vmatprep.subr.bf16.mxu0 0
  %6442 = vmatpush1.bf16.msra.mxu0 0
  %6443 = vmatprep.subr.bf16.mxu0 0
  %6444 = vmatpush1.bf16.msra.mxu0 0
  %6445 = vmatprep.subr.bf16.mxu0 0
  %6446 = vmatpush1.bf16.msra.mxu0 0
  %6447 = vmatprep.subr.bf16.mxu0 0
  %6448 = vmatpush1.bf16.msra.mxu0 0
  %6449 = vmatprep.subr.bf16.mxu0 0
  %6450 = vmatpush1.bf16.msra.mxu0 0
  %6451 = vmatprep.subr.bf16.mxu0 0
  %6452 = vmatpush1.bf16.msra.mxu0 0
  %6453 = vmatprep.subr.bf16.mxu0 0
  %6454 = vmatpush1.bf16.msra.mxu0 0
  %6455 = vmatprep.subr.bf16.mxu0 0
  %6456 = vmatpush1.bf16.msra.mxu0 0
  %6457 = vmatprep.subr.bf16.mxu0 0
  %6458 = vmatpush1.bf16.msra.mxu0 0
  %6459 = vmatprep.mubr.bf16.mxu0 0
  %6460 = vmatmul.mubr.bf16.gmra.mrb[0].mxu0 %v6416
  %v6461 = vpop.f32.mrb[0].mxu0
  %v6462 = vadd.f32 0.0, %v6461
  %v6463 = vpop.f32.mrb[0].mxu0
  %v6464 = vpop.f32.mrb[0].mxu0
  %v6465 = vadd.f32 0.0, %v6464
  %v6466 = vpop.f32.mrb[0].mxu0
  %6467 = vmatprep.mubr.bf16.mxu0 0
  %6468 = vmatmul.mubr.bf16.gmra.mrb[0].mxu0 %v6419
  %v6469 = vpop.f32.mrb[0].mxu0
  %v6470 = vadd.f32 0.0, %v6469
  %v6471 = vpop.f32.mrb[0].mxu0
  %v6472 = vpop.f32.mrb[0].mxu0
  %v6473 = vadd.f32 0.0, %v6472
  %v6474 = vpop.f32.mrb[0].mxu0
  %6475 = vmatprep.mubr.bf16.mxu0 0
  %6476 = vmatmul.mubr.bf16.gmra.mrb[0].mxu0 %v6422
  %v6477 = vpop.f32.mrb[0].mxu0
  %v6478 = vadd.f32 0.0, %v6477
  %v6479 = vpop.f32.mrb[0].mxu0
  %v6480 = vpop.f32.mrb[0].mxu0
  %v6481 = vadd.f32 0.0, %v6480
  %v6482 = vpop.f32.mrb[0].mxu0
  %6483 = vdwg.mxu0
  %v6484 = vadd.f32 %v5623, %v6462
  %v6485 = vadd.f32 %v5626, %v6465
  %v6486 = vadd.f32 %v5631, %v6470
  %v6487 = vadd.f32 %v5634, %v6473
  %v6488 = vadd.f32 %v5639, %v6478
  %v6489 = vadd.f32 %v5642, %v6481
  %s6490 = scalar_lea.vmem %s1, 112
  %v6491 = vld [vmem:[%s6490] sm:$0xf]
  %v6492 = vld [vmem:[%s6490 + $0x4] sm:$0xf]
  %v6493 = vld [vmem:[%s6490 + $0x8] sm:$0xf]
  %v6494 = vld [vmem:[%s6490 + $0xc] sm:$0xf]
  %v6499 = vunpack.c.l.b16 %v6491
  %v6500 = vunpack.c.l.b16 %v6492
  %v6501 = vunpack.c.l.b16 %v6493
  %v6502 = vunpack.c.l.b16 %v6494
  %v6503 = vpack.c.b16 %v6500, %v6499
  %v6504 = vpack.c.b16 %v6502, %v6501
  %6507 = vmatprep.subr.bf16.mxu0 0
  %6508 = vmatpush1.bf16.msra.mxu0 %v6503
  %6509 = vmatprep.subr.bf16.mxu0 0
  %6510 = vmatpush1.bf16.msra.mxu0 %v6504
  %6511 = vmatprep.subr.bf16.mxu0 0
  %6512 = vmatpush1.bf16.msra.mxu0 0
  %6513 = vmatprep.subr.bf16.mxu0 0
  %6514 = vmatpush1.bf16.msra.mxu0 0
  %6515 = vmatprep.subr.bf16.mxu0 0
  %6516 = vmatpush1.bf16.msra.mxu0 0
  %6517 = vmatprep.subr.bf16.mxu0 0
  %6518 = vmatpush1.bf16.msra.mxu0 0
  %6519 = vmatprep.subr.bf16.mxu0 0
  %6520 = vmatpush1.bf16.msra.mxu0 0
  %6521 = vmatprep.subr.bf16.mxu0 0
  %6522 = vmatpush1.bf16.msra.mxu0 0
  %6523 = vmatprep.subr.bf16.mxu0 0
  %6524 = vmatpush1.bf16.msra.mxu0 0
  %6525 = vmatprep.subr.bf16.mxu0 0
  %6526 = vmatpush1.bf16.msra.mxu0 0
  %6527 = vmatprep.subr.bf16.mxu0 0
  %6528 = vmatpush1.bf16.msra.mxu0 0
  %6529 = vmatprep.subr.bf16.mxu0 0
  %6530 = vmatpush1.bf16.msra.mxu0 0
  %6531 = vmatprep.subr.bf16.mxu0 0
  %6532 = vmatpush1.bf16.msra.mxu0 0
  %6533 = vmatprep.subr.bf16.mxu0 0
  %6534 = vmatpush1.bf16.msra.mxu0 0
  %6535 = vmatprep.subr.bf16.mxu0 0
  %6536 = vmatpush1.bf16.msra.mxu0 0
  %6537 = vmatprep.subr.bf16.mxu0 0
  %6538 = vmatpush1.bf16.msra.mxu0 0
  %6539 = vmatprep.mubr.bf16.mxu0 0
  %6540 = vmatmul.mubr.bf16.gmra.mrb[0].mxu0 %v3976
  %v6541 = vpop.f32.mrb[0].mxu0
  %v6542 = vadd.f32 0.0, %v6541
  %v6543 = vpop.f32.mrb[0].mxu0
  %v6544 = vpop.f32.mrb[0].mxu0
  %v6545 = vadd.f32 0.0, %v6544
  %v6546 = vpop.f32.mrb[0].mxu0
  %6547 = vmatprep.mubr.bf16.mxu0 0
  %6548 = vmatmul.mubr.bf16.gmra.mrb[0].mxu0 %v3979
  %v6549 = vpop.f32.mrb[0].mxu0
  %v6550 = vadd.f32 0.0, %v6549
  %v6551 = vpop.f32.mrb[0].mxu0
  %v6552 = vpop.f32.mrb[0].mxu0
  %v6553 = vadd.f32 0.0, %v6552
  %v6554 = vpop.f32.mrb[0].mxu0
  %6555 = vmatprep.mubr.bf16.mxu0 0
  %6556 = vmatmul.mubr.bf16.gmra.mrb[0].mxu0 %v3982
  %v6557 = vpop.f32.mrb[0].mxu0
  %v6558 = vadd.f32 0.0, %v6557
  %v6559 = vpop.f32.mrb[0].mxu0
  %v6560 = vpop.f32.mrb[0].mxu0
  %v6561 = vadd.f32 0.0, %v6560
  %v6562 = vpop.f32.mrb[0].mxu0
  %6563 = vdwg.mxu0
  %s6564 = scalar_lea.vmem %s2, 112
  %v6565 = vld [vmem:[%s6564] sm:$0xf]
  %v6566 = vld [vmem:[%s6564 + $0x4] sm:$0xf]
  %v6567 = vld [vmem:[%s6564 + $0x8] sm:$0xf]
  %v6568 = vld [vmem:[%s6564 + $0xc] sm:$0xf]
  %v6573 = vunpack.c.l.b16 %v6565
  %v6574 = vunpack.c.l.b16 %v6566
  %v6575 = vunpack.c.l.b16 %v6567
  %v6576 = vunpack.c.l.b16 %v6568
  %v6577 = vpack.c.b16 %v6574, %v6573
  %v6578 = vpack.c.b16 %v6576, %v6575
  %6581 = vmatprep.subr.bf16.mxu0 0
  %6582 = vmatpush1.bf16.msra.mxu0 %v6577
  %6583 = vmatprep.subr.bf16.mxu0 0
  %6584 = vmatpush1.bf16.msra.mxu0 %v6578
  %6585 = vmatprep.subr.bf16.mxu0 0
  %6586 = vmatpush1.bf16.msra.mxu0 0
  %6587 = vmatprep.subr.bf16.mxu0 0
  %6588 = vmatpush1.bf16.msra.mxu0 0
  %6589 = vmatprep.subr.bf16.mxu0 0
  %6590 = vmatpush1.bf16.msra.mxu0 0
  %6591 = vmatprep.subr.bf16.mxu0 0
  %6592 = vmatpush1.bf16.msra.mxu0 0
  %6593 = vmatprep.subr.bf16.mxu0 0
  %6594 = vmatpush1.bf16.msra.mxu0 0
  %6595 = vmatprep.subr.bf16.mxu0 0
  %6596 = vmatpush1.bf16.msra.mxu0 0
  %6597 = vmatprep.subr.bf16.mxu0 0
  %6598 = vmatpush1.bf16.msra.mxu0 0
  %6599 = vmatprep.subr.bf16.mxu0 0
  %6600 = vmatpush1.bf16.msra.mxu0 0
  %6601 = vmatprep.subr.bf16.mxu0 0
  %6602 = vmatpush1.bf16.msra.mxu0 0
  %6603 = vmatprep.subr.bf16.mxu0 0
  %6604 = vmatpush1.bf16.msra.mxu0 0
  %6605 = vmatprep.subr.bf16.mxu0 0
  %6606 = vmatpush1.bf16.msra.mxu0 0
  %6607 = vmatprep.subr.bf16.mxu0 0
  %6608 = vmatpush1.bf16.msra.mxu0 0
  %6609 = vmatprep.subr.bf16.mxu0 0
  %6610 = vmatpush1.bf16.msra.mxu0 0
  %6611 = vmatprep.subr.bf16.mxu0 0
  %6612 = vmatpush1.bf16.msra.mxu0 0
  %6613 = vmatprep.mubr.bf16.mxu0 0
  %6614 = vmatmul.mubr.bf16.gmra.mrb[0].mxu0 %v3976
  %v6615 = vpop.f32.mrb[0].mxu0
  %v6616 = vadd.f32 0.0, %v6615
  %v6617 = vpop.f32.mrb[0].mxu0
  %v6618 = vpop.f32.mrb[0].mxu0
  %v6619 = vadd.f32 0.0, %v6618
  %v6620 = vpop.f32.mrb[0].mxu0
  %6621 = vmatprep.mubr.bf16.mxu0 0
  %6622 = vmatmul.mubr.bf16.gmra.mrb[0].mxu0 %v3979
  %v6623 = vpop.f32.mrb[0].mxu0
  %v6624 = vadd.f32 0.0, %v6623
  %v6625 = vpop.f32.mrb[0].mxu0
  %v6626 = vpop.f32.mrb[0].mxu0
  %v6627 = vadd.f32 0.0, %v6626
  %v6628 = vpop.f32.mrb[0].mxu0
  %6629 = vmatprep.mubr.bf16.mxu0 0
  %6630 = vmatmul.mubr.bf16.gmra.mrb[0].mxu0 %v3982
  %v6631 = vpop.f32.mrb[0].mxu0
  %v6632 = vadd.f32 0.0, %v6631
  %v6633 = vpop.f32.mrb[0].mxu0
  %v6634 = vpop.f32.mrb[0].mxu0
  %v6635 = vadd.f32 0.0, %v6634
  %v6636 = vpop.f32.mrb[0].mxu0
  %6637 = vdwg.mxu0
  %s6638 = scalar_lea.vmem %s3, 112
  %v6639 = vld [vmem:[%s6638] sm:$0xf]
  %v6640 = vld [vmem:[%s6638 + $0x4] sm:$0xf]
  %v6641 = vld [vmem:[%s6638 + $0x8] sm:$0xf]
  %v6642 = vld [vmem:[%s6638 + $0xc] sm:$0xf]
  %v6647 = vunpack.c.l.b16 %v6639
  %v6648 = vunpack.c.l.b16 %v6640
  %v6649 = vunpack.c.l.b16 %v6641
  %v6650 = vunpack.c.l.b16 %v6642
  %v6651 = vpack.c.b16 %v6648, %v6647
  %v6652 = vpack.c.b16 %v6650, %v6649
  %6655 = vmatprep.subr.bf16.mxu0 0
  %6656 = vmatpush1.bf16.msra.mxu0 %v6651
  %6657 = vmatprep.subr.bf16.mxu0 0
  %6658 = vmatpush1.bf16.msra.mxu0 %v6652
  %6659 = vmatprep.subr.bf16.mxu0 0
  %6660 = vmatpush1.bf16.msra.mxu0 0
  %6661 = vmatprep.subr.bf16.mxu0 0
  %6662 = vmatpush1.bf16.msra.mxu0 0
  %6663 = vmatprep.subr.bf16.mxu0 0
  %6664 = vmatpush1.bf16.msra.mxu0 0
  %6665 = vmatprep.subr.bf16.mxu0 0
  %6666 = vmatpush1.bf16.msra.mxu0 0
  %6667 = vmatprep.subr.bf16.mxu0 0
  %6668 = vmatpush1.bf16.msra.mxu0 0
  %6669 = vmatprep.subr.bf16.mxu0 0
  %6670 = vmatpush1.bf16.msra.mxu0 0
  %6671 = vmatprep.subr.bf16.mxu0 0
  %6672 = vmatpush1.bf16.msra.mxu0 0
  %6673 = vmatprep.subr.bf16.mxu0 0
  %6674 = vmatpush1.bf16.msra.mxu0 0
  %6675 = vmatprep.subr.bf16.mxu0 0
  %6676 = vmatpush1.bf16.msra.mxu0 0
  %6677 = vmatprep.subr.bf16.mxu0 0
  %6678 = vmatpush1.bf16.msra.mxu0 0
  %6679 = vmatprep.subr.bf16.mxu0 0
  %6680 = vmatpush1.bf16.msra.mxu0 0
  %6681 = vmatprep.subr.bf16.mxu0 0
  %6682 = vmatpush1.bf16.msra.mxu0 0
  %6683 = vmatprep.subr.bf16.mxu0 0
  %6684 = vmatpush1.bf16.msra.mxu0 0
  %6685 = vmatprep.subr.bf16.mxu0 0
  %6686 = vmatpush1.bf16.msra.mxu0 0
  %6687 = vmatprep.mubr.bf16.mxu0 0
  %6688 = vmatmul.mubr.bf16.gmra.mrb[0].mxu0 %v3976
  %v6689 = vpop.f32.mrb[0].mxu0
  %v6690 = vadd.f32 0.0, %v6689
  %v6691 = vpop.f32.mrb[0].mxu0
  %v6692 = vpop.f32.mrb[0].mxu0
  %v6693 = vadd.f32 0.0, %v6692
  %v6694 = vpop.f32.mrb[0].mxu0
  %6695 = vmatprep.mubr.bf16.mxu0 0
  %6696 = vmatmul.mubr.bf16.gmra.mrb[0].mxu0 %v3979
  %v6697 = vpop.f32.mrb[0].mxu0
  %v6698 = vadd.f32 0.0, %v6697
  %v6699 = vpop.f32.mrb[0].mxu0
  %v6700 = vpop.f32.mrb[0].mxu0
  %v6701 = vadd.f32 0.0, %v6700
  %v6702 = vpop.f32.mrb[0].mxu0
  %6703 = vmatprep.mubr.bf16.mxu0 0
  %6704 = vmatmul.mubr.bf16.gmra.mrb[0].mxu0 %v3982
  %v6705 = vpop.f32.mrb[0].mxu0
  %v6706 = vadd.f32 0.0, %v6705
  %v6707 = vpop.f32.mrb[0].mxu0
  %v6708 = vpop.f32.mrb[0].mxu0
  %v6709 = vadd.f32 0.0, %v6708
  %v6710 = vpop.f32.mrb[0].mxu0
  %6711 = vdwg.mxu0
  %v6712 = vmul.f32 %v6542, %v63
  %v6713 = vmul.f32 %v6545, %v64
  %v6714 = vmul.f32 %v6550, %v65
  %v6715 = vmul.f32 %v6553, %v66
  %v6716 = vmul.f32 %v6558, %v67
  %v6717 = vmul.f32 %v6561, %v68
  %v6719 = vsel %vm380, %v6542, 0
  %v6722 = vsel %vm380, %v6545, 0
  %v6725 = vsel %vm380, %v6550, 0
  %v6728 = vsel %vm380, %v6553, 0
  %v6731 = vsel %vm380, %v6558, 0
  %v6734 = vsel %vm380, %v6561, 0
  %6736 = vmatprep.subr.mxu0 0.0
  %6737 = vmatpush1.msra.mxu0 %v75
  %6738 = vmatprep.subr.mxu0 0.0
  %6739 = vmatpush1.msra.mxu0 0.0
  %6740 = vmatprep.subr.mxu0 0.0
  %6741 = vmatpush1.msra.mxu0 0.0
  %6742 = vmatprep.subr.mxu0 0.0
  %6743 = vmatpush1.msra.mxu0 0.0
  %6744 = vmatprep.subr.mxu0 0.0
  %6745 = vmatpush1.msra.mxu0 0.0
  %6746 = vmatprep.subr.mxu0 0.0
  %6747 = vmatpush1.msra.mxu0 0.0
  %6748 = vmatprep.subr.mxu0 0.0
  %6749 = vmatpush1.msra.mxu0 0.0
  %6750 = vmatprep.subr.mxu0 0.0
  %6751 = vmatpush1.msra.mxu0 0.0
  %6752 = vmatprep.subr.mxu0 0.0
  %6753 = vmatpush1.msra.mxu0 0.0
  %6754 = vmatprep.subr.mxu0 0.0
  %6755 = vmatpush1.msra.mxu0 0.0
  %6756 = vmatprep.subr.mxu0 0.0
  %6757 = vmatpush1.msra.mxu0 0.0
  %6758 = vmatprep.subr.mxu0 0.0
  %6759 = vmatpush1.msra.mxu0 0.0
  %6760 = vmatprep.subr.mxu0 0.0
  %6761 = vmatpush1.msra.mxu0 0.0
  %6762 = vmatprep.subr.mxu0 0.0
  %6763 = vmatpush1.msra.mxu0 0.0
  %6764 = vmatprep.subr.mxu0 0.0
  %6765 = vmatpush1.msra.mxu0 0.0
  %6766 = vmatprep.subr.mxu0 0.0
  %6767 = vmatpush1.msra.mxu0 0.0
  %6768 = vmatprep.subr.mxu0 0.0
  %6769 = vmatpush1.msra.mxu0 0.0
  %6770 = vmatprep.subr.mxu0 0.0
  %6771 = vmatpush1.msra.mxu0 0.0
  %6772 = vmatprep.subr.mxu0 0.0
  %6773 = vmatpush1.msra.mxu0 0.0
  %6774 = vmatprep.subr.mxu0 0.0
  %6775 = vmatpush1.msra.mxu0 0.0
  %6776 = vmatprep.subr.mxu0 0.0
  %6777 = vmatpush1.msra.mxu0 0.0
  %6778 = vmatprep.subr.mxu0 0.0
  %6779 = vmatpush1.msra.mxu0 0.0
  %6780 = vmatprep.subr.mxu0 0.0
  %6781 = vmatpush1.msra.mxu0 0.0
  %6782 = vmatprep.subr.mxu0 0.0
  %6783 = vmatpush1.msra.mxu0 0.0
  %6784 = vmatprep.subr.mxu0 0.0
  %6785 = vmatpush1.msra.mxu0 0.0
  %6786 = vmatprep.subr.mxu0 0.0
  %6787 = vmatpush1.msra.mxu0 0.0
  %6788 = vmatprep.subr.mxu0 0.0
  %6789 = vmatpush1.msra.mxu0 0.0
  %6790 = vmatprep.subr.mxu0 0.0
  %6791 = vmatpush1.msra.mxu0 0.0
  %6792 = vmatprep.subr.mxu0 0.0
  %6793 = vmatpush1.msra.mxu0 0.0
  %6794 = vmatprep.subr.mxu0 0.0
  %6795 = vmatpush1.msra.mxu0 0.0
  %6796 = vmatprep.subr.mxu0 0.0
  %6797 = vmatpush1.msra.mxu0 0.0
  %6798 = vmatprep.subr.mxu0 0.0
  %6799 = vmatpush1.msra.mxu0 0.0
  %6800 = vmatprep.mubr.f32.mxu0 0.0
  %6801 = vmatmul.mubr.f32.gmra.mrb[0].mxu0 %v6719
  %v6802 = vpop.f32.mrb[0].mxu0
  %v6803 = vadd.f32 0.0, %v6802
  %v6804 = vpop.f32.mrb[0].mxu0
  %6805 = vmatprep.mubr.f32.mxu0 0.0
  %6806 = vmatmul.mubr.f32.gmra.mrb[0].mxu0 %v6722
  %v6807 = vpop.f32.mrb[0].mxu0
  %v6808 = vadd.f32 0.0, %v6807
  %v6809 = vpop.f32.mrb[0].mxu0
  %6810 = vmatprep.mubr.f32.mxu0 0.0
  %6811 = vmatmul.mubr.f32.gmra.mrb[0].mxu0 %v6725
  %v6812 = vpop.f32.mrb[0].mxu0
  %v6813 = vadd.f32 0.0, %v6812
  %v6814 = vpop.f32.mrb[0].mxu0
  %6815 = vmatprep.mubr.f32.mxu0 0.0
  %6816 = vmatmul.mubr.f32.gmra.mrb[0].mxu0 %v6728
  %v6817 = vpop.f32.mrb[0].mxu0
  %v6818 = vadd.f32 0.0, %v6817
  %v6819 = vpop.f32.mrb[0].mxu0
  %6820 = vmatprep.mubr.f32.mxu0 0.0
  %6821 = vmatmul.mubr.f32.gmra.mrb[0].mxu0 %v6731
  %v6822 = vpop.f32.mrb[0].mxu0
  %v6823 = vadd.f32 0.0, %v6822
  %v6824 = vpop.f32.mrb[0].mxu0
  %6825 = vmatprep.mubr.f32.mxu0 0.0
  %6826 = vmatmul.mubr.f32.gmra.mrb[0].mxu0 %v6734
  %v6827 = vpop.f32.mrb[0].mxu0
  %v6828 = vadd.f32 0.0, %v6827
  %v6829 = vpop.f32.mrb[0].mxu0
  %6830 = vdwg.mxu0
  %v6831 = vmul.f32 %v6803, %v69
  %v6832 = vmul.f32 %v6808, %v70
  %v6833 = vmul.f32 %v6813, %v71
  %v6834 = vmul.f32 %v6818, %v72
  %v6835 = vmul.f32 %v6823, %v73
  %v6836 = vmul.f32 %v6828, %v74
  %v6837 = vadd.f32 %v6712, %v6831
  %v6838 = vadd.f32 %v6713, %v6832
  %v6839 = vadd.f32 %v6714, %v6833
  %v6840 = vadd.f32 %v6715, %v6834
  %v6841 = vadd.f32 %v6716, %v6835
  %v6842 = vadd.f32 %v6717, %v6836
  %v6843 = vmul.f32 %v6616, %v63
  %v6844 = vmul.f32 %v6619, %v64
  %v6845 = vmul.f32 %v6624, %v65
  %v6846 = vmul.f32 %v6627, %v66
  %v6847 = vmul.f32 %v6632, %v67
  %v6848 = vmul.f32 %v6635, %v68
  %v6850 = vsel %vm380, %v6616, 0
  %v6853 = vsel %vm380, %v6619, 0
  %v6856 = vsel %vm380, %v6624, 0
  %v6859 = vsel %vm380, %v6627, 0
  %v6862 = vsel %vm380, %v6632, 0
  %v6865 = vsel %vm380, %v6635, 0
  %6867 = vmatprep.subr.mxu0 0.0
  %6868 = vmatpush1.msra.mxu0 %v75
  %6869 = vmatprep.subr.mxu0 0.0
  %6870 = vmatpush1.msra.mxu0 0.0
  %6871 = vmatprep.subr.mxu0 0.0
  %6872 = vmatpush1.msra.mxu0 0.0
  %6873 = vmatprep.subr.mxu0 0.0
  %6874 = vmatpush1.msra.mxu0 0.0
  %6875 = vmatprep.subr.mxu0 0.0
  %6876 = vmatpush1.msra.mxu0 0.0
  %6877 = vmatprep.subr.mxu0 0.0
  %6878 = vmatpush1.msra.mxu0 0.0
  %6879 = vmatprep.subr.mxu0 0.0
  %6880 = vmatpush1.msra.mxu0 0.0
  %6881 = vmatprep.subr.mxu0 0.0
  %6882 = vmatpush1.msra.mxu0 0.0
  %6883 = vmatprep.subr.mxu0 0.0
  %6884 = vmatpush1.msra.mxu0 0.0
  %6885 = vmatprep.subr.mxu0 0.0
  %6886 = vmatpush1.msra.mxu0 0.0
  %6887 = vmatprep.subr.mxu0 0.0
  %6888 = vmatpush1.msra.mxu0 0.0
  %6889 = vmatprep.subr.mxu0 0.0
  %6890 = vmatpush1.msra.mxu0 0.0
  %6891 = vmatprep.subr.mxu0 0.0
  %6892 = vmatpush1.msra.mxu0 0.0
  %6893 = vmatprep.subr.mxu0 0.0
  %6894 = vmatpush1.msra.mxu0 0.0
  %6895 = vmatprep.subr.mxu0 0.0
  %6896 = vmatpush1.msra.mxu0 0.0
  %6897 = vmatprep.subr.mxu0 0.0
  %6898 = vmatpush1.msra.mxu0 0.0
  %6899 = vmatprep.subr.mxu0 0.0
  %6900 = vmatpush1.msra.mxu0 0.0
  %6901 = vmatprep.subr.mxu0 0.0
  %6902 = vmatpush1.msra.mxu0 0.0
  %6903 = vmatprep.subr.mxu0 0.0
  %6904 = vmatpush1.msra.mxu0 0.0
  %6905 = vmatprep.subr.mxu0 0.0
  %6906 = vmatpush1.msra.mxu0 0.0
  %6907 = vmatprep.subr.mxu0 0.0
  %6908 = vmatpush1.msra.mxu0 0.0
  %6909 = vmatprep.subr.mxu0 0.0
  %6910 = vmatpush1.msra.mxu0 0.0
  %6911 = vmatprep.subr.mxu0 0.0
  %6912 = vmatpush1.msra.mxu0 0.0
  %6913 = vmatprep.subr.mxu0 0.0
  %6914 = vmatpush1.msra.mxu0 0.0
  %6915 = vmatprep.subr.mxu0 0.0
  %6916 = vmatpush1.msra.mxu0 0.0
  %6917 = vmatprep.subr.mxu0 0.0
  %6918 = vmatpush1.msra.mxu0 0.0
  %6919 = vmatprep.subr.mxu0 0.0
  %6920 = vmatpush1.msra.mxu0 0.0
  %6921 = vmatprep.subr.mxu0 0.0
  %6922 = vmatpush1.msra.mxu0 0.0
  %6923 = vmatprep.subr.mxu0 0.0
  %6924 = vmatpush1.msra.mxu0 0.0
  %6925 = vmatprep.subr.mxu0 0.0
  %6926 = vmatpush1.msra.mxu0 0.0
  %6927 = vmatprep.subr.mxu0 0.0
  %6928 = vmatpush1.msra.mxu0 0.0
  %6929 = vmatprep.subr.mxu0 0.0
  %6930 = vmatpush1.msra.mxu0 0.0
  %6931 = vmatprep.mubr.f32.mxu0 0.0
  %6932 = vmatmul.mubr.f32.gmra.mrb[0].mxu0 %v6850
  %v6933 = vpop.f32.mrb[0].mxu0
  %v6934 = vadd.f32 0.0, %v6933
  %v6935 = vpop.f32.mrb[0].mxu0
  %6936 = vmatprep.mubr.f32.mxu0 0.0
  %6937 = vmatmul.mubr.f32.gmra.mrb[0].mxu0 %v6853
  %v6938 = vpop.f32.mrb[0].mxu0
  %v6939 = vadd.f32 0.0, %v6938
  %v6940 = vpop.f32.mrb[0].mxu0
  %6941 = vmatprep.mubr.f32.mxu0 0.0
  %6942 = vmatmul.mubr.f32.gmra.mrb[0].mxu0 %v6856
  %v6943 = vpop.f32.mrb[0].mxu0
  %v6944 = vadd.f32 0.0, %v6943
  %v6945 = vpop.f32.mrb[0].mxu0
  %6946 = vmatprep.mubr.f32.mxu0 0.0
  %6947 = vmatmul.mubr.f32.gmra.mrb[0].mxu0 %v6859
  %v6948 = vpop.f32.mrb[0].mxu0
  %v6949 = vadd.f32 0.0, %v6948
  %v6950 = vpop.f32.mrb[0].mxu0
  %6951 = vmatprep.mubr.f32.mxu0 0.0
  %6952 = vmatmul.mubr.f32.gmra.mrb[0].mxu0 %v6862
  %v6953 = vpop.f32.mrb[0].mxu0
  %v6954 = vadd.f32 0.0, %v6953
  %v6955 = vpop.f32.mrb[0].mxu0
  %6956 = vmatprep.mubr.f32.mxu0 0.0
  %6957 = vmatmul.mubr.f32.gmra.mrb[0].mxu0 %v6865
  %v6958 = vpop.f32.mrb[0].mxu0
  %v6959 = vadd.f32 0.0, %v6958
  %v6960 = vpop.f32.mrb[0].mxu0
  %6961 = vdwg.mxu0
  %v6962 = vmul.f32 %v6934, %v69
  %v6963 = vmul.f32 %v6939, %v70
  %v6964 = vmul.f32 %v6944, %v71
  %v6965 = vmul.f32 %v6949, %v72
  %v6966 = vmul.f32 %v6954, %v73
  %v6967 = vmul.f32 %v6959, %v74
  %v6968 = vadd.f32 %v6843, %v6962
  %v6969 = vadd.f32 %v6844, %v6963
  %v6970 = vadd.f32 %v6845, %v6964
  %v6971 = vadd.f32 %v6846, %v6965
  %v6972 = vadd.f32 %v6847, %v6966
  %v6973 = vadd.f32 %v6848, %v6967
  %v6975 = vsel %vm380, %v6837, 0
  %v6978 = vsel %vm380, %v6838, 0
  %v6981 = vsel %vm380, %v6839, 0
  %v6984 = vsel %vm380, %v6840, 0
  %v6987 = vsel %vm380, %v6841, 0
  %v6990 = vsel %vm380, %v6842, 0
  %v6993 = vsel %vm380, %v6968, 0
  %v6996 = vsel %vm380, %v6969, 0
  %v6999 = vsel %vm380, %v6970, 0
  %v7002 = vsel %vm380, %v6971, 0
  %v7005 = vsel %vm380, %v6972, 0
  %v7008 = vsel %vm380, %v6973, 0
  %7010 = vmatprep.subr.mxu0 0.0
  %7011 = vmatpush1.xpose.msra.mxu0 %v6993
  %7012 = vmatprep.subr.mxu0 0.0
  %7013 = vmatpush1.xpose.msra.mxu0 %v6996
  %7014 = vmatprep.subr.mxu0 0.0
  %7015 = vmatpush1.xpose.msra.mxu0 %v6999
  %7016 = vmatprep.subr.mxu0 0.0
  %7017 = vmatpush1.xpose.msra.mxu0 %v7002
  %7018 = vmatprep.subr.mxu0 0.0
  %7019 = vmatpush1.xpose.msra.mxu0 %v7005
  %7020 = vmatprep.subr.mxu0 0.0
  %7021 = vmatpush1.xpose.msra.mxu0 %v7008
  %7022 = vmatprep.subr.mxu0 0.0
  %7023 = vmatpush1.xpose.msra.mxu0 0.0
  %7024 = vmatprep.subr.mxu0 0.0
  %7025 = vmatpush1.xpose.msra.mxu0 0.0
  %7026 = vmatprep.subr.mxu0 0.0
  %7027 = vmatpush1.xpose.msra.mxu0 0.0
  %7028 = vmatprep.subr.mxu0 0.0
  %7029 = vmatpush1.xpose.msra.mxu0 0.0
  %7030 = vmatprep.subr.mxu0 0.0
  %7031 = vmatpush1.xpose.msra.mxu0 0.0
  %7032 = vmatprep.subr.mxu0 0.0
  %7033 = vmatpush1.xpose.msra.mxu0 0.0
  %7034 = vmatprep.subr.mxu0 0.0
  %7035 = vmatpush1.xpose.msra.mxu0 0.0
  %7036 = vmatprep.subr.mxu0 0.0
  %7037 = vmatpush1.xpose.msra.mxu0 0.0
  %7038 = vmatprep.subr.mxu0 0.0
  %7039 = vmatpush1.xpose.msra.mxu0 0.0
  %7040 = vmatprep.subr.mxu0 0.0
  %7041 = vmatpush1.xpose.msra.mxu0 0.0
  %7042 = vmatprep.subr.mxu0 0.0
  %7043 = vmatpush1.xpose.msra.mxu0 0.0
  %7044 = vmatprep.subr.mxu0 0.0
  %7045 = vmatpush1.xpose.msra.mxu0 0.0
  %7046 = vmatprep.subr.mxu0 0.0
  %7047 = vmatpush1.xpose.msra.mxu0 0.0
  %7048 = vmatprep.subr.mxu0 0.0
  %7049 = vmatpush1.xpose.msra.mxu0 0.0
  %7050 = vmatprep.subr.mxu0 0.0
  %7051 = vmatpush1.xpose.msra.mxu0 0.0
  %7052 = vmatprep.subr.mxu0 0.0
  %7053 = vmatpush1.xpose.msra.mxu0 0.0
  %7054 = vmatprep.subr.mxu0 0.0
  %7055 = vmatpush1.xpose.msra.mxu0 0.0
  %7056 = vmatprep.subr.mxu0 0.0
  %7057 = vmatpush1.xpose.msra.mxu0 0.0
  %7058 = vmatprep.subr.mxu0 0.0
  %7059 = vmatpush1.xpose.msra.mxu0 0.0
  %7060 = vmatprep.subr.mxu0 0.0
  %7061 = vmatpush1.xpose.msra.mxu0 0.0
  %7062 = vmatprep.subr.mxu0 0.0
  %7063 = vmatpush1.xpose.msra.mxu0 0.0
  %7064 = vmatprep.subr.mxu0 0.0
  %7065 = vmatpush1.xpose.msra.mxu0 0.0
  %7066 = vmatprep.subr.mxu0 0.0
  %7067 = vmatpush1.xpose.msra.mxu0 0.0
  %7068 = vmatprep.subr.mxu0 0.0
  %7069 = vmatpush1.xpose.msra.mxu0 0.0
  %7070 = vmatprep.subr.mxu0 0.0
  %7071 = vmatpush1.xpose.msra.mxu0 0.0
  %7072 = vmatprep.subr.mxu0 0.0
  %7073 = vmatpush1.xpose.msra.mxu0 0.0
  %7074 = vmatprep.mubr.f32.mxu0 0.0
  %7075 = vmatmul.mubr.f32.gmra.mrb[0].mxu0 %v6975
  %v7076 = vpop.f32.mrb[0].mxu0
  %v7077 = vadd.f32 0.0, %v7076
  %v7078 = vpop.f32.mrb[0].mxu0
  %7079 = vmatprep.mubr.f32.mxu0 0.0
  %7080 = vmatmul.mubr.f32.gmra.mrb[0].mxu0 %v6978
  %v7081 = vpop.f32.mrb[0].mxu0
  %v7082 = vadd.f32 0.0, %v7081
  %v7083 = vpop.f32.mrb[0].mxu0
  %7084 = vmatprep.mubr.f32.mxu0 0.0
  %7085 = vmatmul.mubr.f32.gmra.mrb[0].mxu0 %v6981
  %v7086 = vpop.f32.mrb[0].mxu0
  %v7087 = vadd.f32 0.0, %v7086
  %v7088 = vpop.f32.mrb[0].mxu0
  %7089 = vmatprep.mubr.f32.mxu0 0.0
  %7090 = vmatmul.mubr.f32.gmra.mrb[0].mxu0 %v6984
  %v7091 = vpop.f32.mrb[0].mxu0
  %v7092 = vadd.f32 0.0, %v7091
  %v7093 = vpop.f32.mrb[0].mxu0
  %7094 = vmatprep.mubr.f32.mxu0 0.0
  %7095 = vmatmul.mubr.f32.gmra.mrb[0].mxu0 %v6987
  %v7096 = vpop.f32.mrb[0].mxu0
  %v7097 = vadd.f32 0.0, %v7096
  %v7098 = vpop.f32.mrb[0].mxu0
  %7099 = vmatprep.mubr.f32.mxu0 0.0
  %7100 = vmatmul.mubr.f32.gmra.mrb[0].mxu0 %v6990
  %v7101 = vpop.f32.mrb[0].mxu0
  %v7102 = vadd.f32 0.0, %v7101
  %v7103 = vpop.f32.mrb[0].mxu0
  %7104 = vdwg.mxu0
  %v7105 = vmul.f32 %v7077, 0.35355338
  %v7106 = vmul.f32 %v7082, 0.35355338
  %v7107 = vmul.f32 %v7087, 0.35355338
  %v7108 = vmul.f32 %v7092, 0.35355338
  %v7109 = vmul.f32 %v7097, 0.35355338
  %v7110 = vmul.f32 %v7102, 0.35355338
  %v7111 = vadd.f32 %v7105, %v76
  %v7112 = vadd.f32 %v7106, %v77
  %v7113 = vadd.f32 %v7107, %v78
  %v7114 = vadd.f32 %v7108, %v79
  %v7115 = vadd.f32 %v7109, %v80
  %v7116 = vadd.f32 %v7110, %v81
  %v7117 = vsel %vm780, %v7111, -inf
  %7118 = vmax.xlane.f32.xlu0 %v7117
  %v7119 = vpop.xlane.xlu0 %7118
  %v7120 = vsel %vm780, %v7112, -inf
  %7121 = vmax.xlane.f32.xlu0 %v7120
  %v7122 = vpop.xlane.xlu0 %7121
  %v7123 = vsel %vm780, %v7113, -inf
  %7124 = vmax.xlane.f32.xlu0 %v7123
  %v7125 = vpop.xlane.xlu0 %7124
  %v7126 = vsel %vm780, %v7114, -inf
  %7127 = vmax.xlane.f32.xlu0 %v7126
  %v7128 = vpop.xlane.xlu0 %7127
  %v7129 = vsel %vm780, %v7115, -inf
  %7130 = vmax.xlane.f32.xlu0 %v7129
  %v7131 = vpop.xlane.xlu0 %7130
  %v7132 = vsel %vm780, %v7116, -inf
  %7133 = vmax.xlane.f32.xlu0 %v7132
  %v7134 = vpop.xlane.xlu0 %7133
  %v7135 = vsub.f32 %v7111, %v7119
  %v7136 = vsub.f32 %v7112, %v7122
  %v7137 = vsub.f32 %v7113, %v7125
  %v7138 = vsub.f32 %v7114, %v7128
  %v7139 = vsub.f32 %v7115, %v7131
  %v7140 = vsub.f32 %v7116, %v7134
  %v7141 = vmul.f32 %v7135, 1.442695
  %v7142 = vpow.pop %v7141
  %v7143 = vmul.f32 %v7136, 1.442695
  %v7144 = vpow.pop %v7143
  %v7145 = vmul.f32 %v7137, 1.442695
  %v7146 = vpow.pop %v7145
  %v7147 = vmul.f32 %v7138, 1.442695
  %v7148 = vpow.pop %v7147
  %v7149 = vmul.f32 %v7139, 1.442695
  %v7150 = vpow.pop %v7149
  %v7151 = vmul.f32 %v7140, 1.442695
  %v7152 = vpow.pop %v7151
  %v7153 = vsel %vm780, %v7142, 0.0
  %7154 = vadd.xlane.f32.xlu0 %v7153
  %v7155 = vpop.xlane.xlu0 %7154
  %v7156 = vsel %vm780, %v7144, 0.0
  %7157 = vadd.xlane.f32.xlu0 %v7156
  %v7158 = vpop.xlane.xlu0 %7157
  %v7159 = vsel %vm780, %v7146, 0.0
  %7160 = vadd.xlane.f32.xlu0 %v7159
  %v7161 = vpop.xlane.xlu0 %7160
  %v7162 = vsel %vm780, %v7148, 0.0
  %7163 = vadd.xlane.f32.xlu0 %v7162
  %v7164 = vpop.xlane.xlu0 %7163
  %v7165 = vsel %vm780, %v7150, 0.0
  %7166 = vadd.xlane.f32.xlu0 %v7165
  %v7167 = vpop.xlane.xlu0 %7166
  %v7168 = vsel %vm780, %v7152, 0.0
  %7169 = vadd.xlane.f32.xlu0 %v7168
  %v7170 = vpop.xlane.xlu0 %7169
  %v7171 = vrcp.pop %v7155
  %v7172 = vmul.f32 %v7142, %v7171
  %v7173 = vrcp.pop %v7158
  %v7174 = vmul.f32 %v7144, %v7173
  %v7175 = vrcp.pop %v7161
  %v7176 = vmul.f32 %v7146, %v7175
  %v7177 = vrcp.pop %v7164
  %v7178 = vmul.f32 %v7148, %v7177
  %v7179 = vrcp.pop %v7167
  %v7180 = vmul.f32 %v7150, %v7179
  %v7181 = vrcp.pop %v7170
  %v7182 = vmul.f32 %v7152, %v7181
  %v7183 = vpack.c.bf16 %v7174, %v7172
  %v7184 = vpack.c.bf16 %v7178, %v7176
  %v7185 = vpack.c.bf16 %v7182, %v7180
  %v7186 = vpack.c.bf16 %v6693, %v6690
  %v7187 = vpack.c.bf16 %v6701, %v6698
  %v7188 = vpack.c.bf16 %v6709, %v6706
  %v7190 = vsel %vm780, %v7183, 0
  %v7193 = vsel %vm780, %v7184, 0
  %v7196 = vsel %vm780, %v7185, 0
  %7198 = vmatprep.subr.bf16.mxu0 0
  %7199 = vmatpush1.bf16.msra.mxu0 %v7186
  %7200 = vmatprep.subr.bf16.mxu0 0
  %7201 = vmatpush1.bf16.msra.mxu0 %v7187
  %7202 = vmatprep.subr.bf16.mxu0 0
  %7203 = vmatpush1.bf16.msra.mxu0 %v7188
  %7204 = vmatprep.subr.bf16.mxu0 0
  %7205 = vmatpush1.bf16.msra.mxu0 0
  %7206 = vmatprep.subr.bf16.mxu0 0
  %7207 = vmatpush1.bf16.msra.mxu0 0
  %7208 = vmatprep.subr.bf16.mxu0 0
  %7209 = vmatpush1.bf16.msra.mxu0 0
  %7210 = vmatprep.subr.bf16.mxu0 0
  %7211 = vmatpush1.bf16.msra.mxu0 0
  %7212 = vmatprep.subr.bf16.mxu0 0
  %7213 = vmatpush1.bf16.msra.mxu0 0
  %7214 = vmatprep.subr.bf16.mxu0 0
  %7215 = vmatpush1.bf16.msra.mxu0 0
  %7216 = vmatprep.subr.bf16.mxu0 0
  %7217 = vmatpush1.bf16.msra.mxu0 0
  %7218 = vmatprep.subr.bf16.mxu0 0
  %7219 = vmatpush1.bf16.msra.mxu0 0
  %7220 = vmatprep.subr.bf16.mxu0 0
  %7221 = vmatpush1.bf16.msra.mxu0 0
  %7222 = vmatprep.subr.bf16.mxu0 0
  %7223 = vmatpush1.bf16.msra.mxu0 0
  %7224 = vmatprep.subr.bf16.mxu0 0
  %7225 = vmatpush1.bf16.msra.mxu0 0
  %7226 = vmatprep.subr.bf16.mxu0 0
  %7227 = vmatpush1.bf16.msra.mxu0 0
  %7228 = vmatprep.subr.bf16.mxu0 0
  %7229 = vmatpush1.bf16.msra.mxu0 0
  %7230 = vmatprep.mubr.bf16.mxu0 0
  %7231 = vmatmul.mubr.bf16.gmra.mrb[0].mxu0 %v7190
  %v7232 = vpop.f32.mrb[0].mxu0
  %v7233 = vadd.f32 0.0, %v7232
  %v7234 = vpop.f32.mrb[0].mxu0
  %v7235 = vpop.f32.mrb[0].mxu0
  %v7236 = vadd.f32 0.0, %v7235
  %v7237 = vpop.f32.mrb[0].mxu0
  %7238 = vmatprep.mubr.bf16.mxu0 0
  %7239 = vmatmul.mubr.bf16.gmra.mrb[0].mxu0 %v7193
  %v7240 = vpop.f32.mrb[0].mxu0
  %v7241 = vadd.f32 0.0, %v7240
  %v7242 = vpop.f32.mrb[0].mxu0
  %v7243 = vpop.f32.mrb[0].mxu0
  %v7244 = vadd.f32 0.0, %v7243
  %v7245 = vpop.f32.mrb[0].mxu0
  %7246 = vmatprep.mubr.bf16.mxu0 0
  %7247 = vmatmul.mubr.bf16.gmra.mrb[0].mxu0 %v7196
  %v7248 = vpop.f32.mrb[0].mxu0
  %v7249 = vadd.f32 0.0, %v7248
  %v7250 = vpop.f32.mrb[0].mxu0
  %v7251 = vpop.f32.mrb[0].mxu0
  %v7252 = vadd.f32 0.0, %v7251
  %v7253 = vpop.f32.mrb[0].mxu0
  %7254 = vdwg.mxu0
  %v7255 = vpack.c.bf16 %v7236, %v7233
  %v7256 = vpack.c.bf16 %v7244, %v7241
  %v7257 = vpack.c.bf16 %v7252, %v7249
  %s7258 = scalar_lea.vmem %s4, 28
  %v7259 = vld [vmem:[%s7258] sm:$0xf]
  %v7261 = vsel %vm380, %v7255, 0
  %v7264 = vsel %vm380, %v7256, 0
  %v7267 = vsel %vm380, %v7257, 0
  %v7270 = vsel %vm1702, %v7259, 0
  %7272 = vmatprep.subr.bf16.mxu0 0
  %7273 = vmatpush1.bf16.msra.mxu0 %v7270
  %7274 = vmatprep.subr.bf16.mxu0 0
  %7275 = vmatpush1.bf16.msra.mxu0 0
  %7276 = vmatprep.subr.bf16.mxu0 0
  %7277 = vmatpush1.bf16.msra.mxu0 0
  %7278 = vmatprep.subr.bf16.mxu0 0
  %7279 = vmatpush1.bf16.msra.mxu0 0
  %7280 = vmatprep.subr.bf16.mxu0 0
  %7281 = vmatpush1.bf16.msra.mxu0 0
  %7282 = vmatprep.subr.bf16.mxu0 0
  %7283 = vmatpush1.bf16.msra.mxu0 0
  %7284 = vmatprep.subr.bf16.mxu0 0
  %7285 = vmatpush1.bf16.msra.mxu0 0
  %7286 = vmatprep.subr.bf16.mxu0 0
  %7287 = vmatpush1.bf16.msra.mxu0 0
  %7288 = vmatprep.subr.bf16.mxu0 0
  %7289 = vmatpush1.bf16.msra.mxu0 0
  %7290 = vmatprep.subr.bf16.mxu0 0
  %7291 = vmatpush1.bf16.msra.mxu0 0
  %7292 = vmatprep.subr.bf16.mxu0 0
  %7293 = vmatpush1.bf16.msra.mxu0 0
  %7294 = vmatprep.subr.bf16.mxu0 0
  %7295 = vmatpush1.bf16.msra.mxu0 0
  %7296 = vmatprep.subr.bf16.mxu0 0
  %7297 = vmatpush1.bf16.msra.mxu0 0
  %7298 = vmatprep.subr.bf16.mxu0 0
  %7299 = vmatpush1.bf16.msra.mxu0 0
  %7300 = vmatprep.subr.bf16.mxu0 0
  %7301 = vmatpush1.bf16.msra.mxu0 0
  %7302 = vmatprep.subr.bf16.mxu0 0
  %7303 = vmatpush1.bf16.msra.mxu0 0
  %7304 = vmatprep.mubr.bf16.mxu0 0
  %7305 = vmatmul.mubr.bf16.gmra.mrb[0].mxu0 %v7261
  %v7306 = vpop.f32.mrb[0].mxu0
  %v7307 = vadd.f32 0.0, %v7306
  %v7308 = vpop.f32.mrb[0].mxu0
  %v7309 = vpop.f32.mrb[0].mxu0
  %v7310 = vadd.f32 0.0, %v7309
  %v7311 = vpop.f32.mrb[0].mxu0
  %7312 = vmatprep.mubr.bf16.mxu0 0
  %7313 = vmatmul.mubr.bf16.gmra.mrb[0].mxu0 %v7264
  %v7314 = vpop.f32.mrb[0].mxu0
  %v7315 = vadd.f32 0.0, %v7314
  %v7316 = vpop.f32.mrb[0].mxu0
  %v7317 = vpop.f32.mrb[0].mxu0
  %v7318 = vadd.f32 0.0, %v7317
  %v7319 = vpop.f32.mrb[0].mxu0
  %7320 = vmatprep.mubr.bf16.mxu0 0
  %7321 = vmatmul.mubr.bf16.gmra.mrb[0].mxu0 %v7267
  %v7322 = vpop.f32.mrb[0].mxu0
  %v7323 = vadd.f32 0.0, %v7322
  %v7324 = vpop.f32.mrb[0].mxu0
  %v7325 = vpop.f32.mrb[0].mxu0
  %v7326 = vadd.f32 0.0, %v7325
  %v7327 = vpop.f32.mrb[0].mxu0
  %7328 = vdwg.mxu0
  %v7329 = vadd.f32 %v6484, %v7307
  %v7330 = vadd.f32 %v6485, %v7310
  %v7331 = vadd.f32 %v6486, %v7315
  %v7332 = vadd.f32 %v6487, %v7318
  %v7333 = vadd.f32 %v6488, %v7323
  %v7334 = vadd.f32 %v6489, %v7326
  %v7335 = vadd.f32 %v3889, %v7329
  %v7336 = vadd.f32 %v3890, %v7330
  %v7337 = vadd.f32 %v3891, %v7331
  %v7338 = vadd.f32 %v3892, %v7332
  %v7339 = vadd.f32 %v3893, %v7333
  %v7340 = vadd.f32 %v3894, %v7334
  %s7341 = scalar_lea.vmem %s9, 1
  %v7342 = vld [vmem:[%s7341] sm:$0x1]
  %v7343 = vmul.f32 %v7335, %v7335
  %v7344 = vmul.f32 %v7336, %v7336
  %v7345 = vmul.f32 %v7337, %v7337
  %v7346 = vmul.f32 %v7338, %v7338
  %v7347 = vmul.f32 %v7339, %v7339
  %v7348 = vmul.f32 %v7340, %v7340
  %v7349 = vsel %vm89, %v7343, 0.0
  %7350 = vadd.xlane.f32.xlu0 %v7349
  %v7351 = vpop.xlane.xlu0 %7350
  %v7352 = vsel %vm89, %v7344, 0.0
  %7353 = vadd.xlane.f32.xlu0 %v7352
  %v7354 = vpop.xlane.xlu0 %7353
  %v7355 = vsel %vm89, %v7345, 0.0
  %7356 = vadd.xlane.f32.xlu0 %v7355
  %v7357 = vpop.xlane.xlu0 %7356
  %v7358 = vsel %vm89, %v7346, 0.0
  %7359 = vadd.xlane.f32.xlu0 %v7358
  %v7360 = vpop.xlane.xlu0 %7359
  %v7361 = vsel %vm89, %v7347, 0.0
  %7362 = vadd.xlane.f32.xlu0 %v7361
  %v7363 = vpop.xlane.xlu0 %7362
  %v7364 = vsel %vm89, %v7348, 0.0
  %7365 = vadd.xlane.f32.xlu0 %v7364
  %v7366 = vpop.xlane.xlu0 %7365
  %v7367 = vmul.f32 %v7351, %v108
  %v7368 = vmul.f32 %v7354, %v108
  %v7369 = vmul.f32 %v7357, %v108
  %v7370 = vmul.f32 %v7360, %v108
  %v7371 = vmul.f32 %v7363, %v108
  %v7372 = vmul.f32 %v7366, %v108
  %v7373 = vadd.f32 %v7367, 1e-06
  %v7374 = vadd.f32 %v7368, 1e-06
  %v7375 = vadd.f32 %v7369, 1e-06
  %v7376 = vadd.f32 %v7370, 1e-06
  %v7377 = vadd.f32 %v7371, 1e-06
  %v7378 = vadd.f32 %v7372, 1e-06
  %v7379 = vrsqrt.pop %v7373
  %v7380 = vrsqrt.pop %v7374
  %v7381 = vrsqrt.pop %v7375
  %v7382 = vrsqrt.pop %v7376
  %v7383 = vrsqrt.pop %v7377
  %v7384 = vrsqrt.pop %v7378
  %v7385 = vmul.f32 %v7335, %v7379
  %v7386 = vmul.f32 %v7336, %v7380
  %v7387 = vmul.f32 %v7337, %v7381
  %v7388 = vmul.f32 %v7338, %v7382
  %v7389 = vmul.f32 %v7339, %v7383
  %v7390 = vmul.f32 %v7340, %v7384
  %v7391 = vpack.c.bf16 %v7386, %v7385
  %v7392 = vpack.c.bf16 %v7388, %v7387
  %v7393 = vpack.c.bf16 %v7390, %v7389
  %v7395 = vpack.i.b16 %v7342, %v7342
  %v7397 = vlaneseq
  %v7398 = vshrl.u32 %v7397, 7
  %v7399 = vsub.s32 0, %v7398
  %v7400 = vrot.slane %v7395, %v7399
  %v7401 = vmul.bf16 %v7391, %v7400
  %v7402 = vmul.bf16 %v7392, %v7400
  %v7403 = vmul.bf16 %v7393, %v7400
  %s7404 = scalar_lea.vmem %s5, 16
  %v7405 = vld [vmem:[%s7404] sm:$0xf]
  %v7406 = vld [vmem:[%s7404 + $0x4] sm:$0xf]
  %v7407 = vld [vmem:[%s7404 + $0x8] sm:$0xf]
  %v7408 = vld [vmem:[%s7404 + $0xc] sm:$0xf]
  %v7413 = vunpack.c.l.b16 %v7405
  %v7414 = vunpack.c.l.b16 %v7406
  %v7415 = vunpack.c.l.b16 %v7407
  %v7416 = vunpack.c.l.b16 %v7408
  %v7417 = vpack.c.b16 %v7414, %v7413
  %v7418 = vpack.c.b16 %v7416, %v7415
  %v7422 = vsel %vm89, %v7401, 0
  %v7425 = vsel %vm89, %v7402, 0
  %v7428 = vsel %vm89, %v7403, 0
  %7430 = vmatprep.subr.bf16.mxu0 0
  %7431 = vmatpush1.bf16.msra.mxu0 %v7417
  %7432 = vmatprep.subr.bf16.mxu0 0
  %7433 = vmatpush1.bf16.msra.mxu0 %v7418
  %7434 = vmatprep.subr.bf16.mxu0 0
  %7435 = vmatpush1.bf16.msra.mxu0 0
  %7436 = vmatprep.subr.bf16.mxu0 0
  %7437 = vmatpush1.bf16.msra.mxu0 0
  %7438 = vmatprep.subr.bf16.mxu0 0
  %7439 = vmatpush1.bf16.msra.mxu0 0
  %7440 = vmatprep.subr.bf16.mxu0 0
  %7441 = vmatpush1.bf16.msra.mxu0 0
  %7442 = vmatprep.subr.bf16.mxu0 0
  %7443 = vmatpush1.bf16.msra.mxu0 0
  %7444 = vmatprep.subr.bf16.mxu0 0
  %7445 = vmatpush1.bf16.msra.mxu0 0
  %7446 = vmatprep.subr.bf16.mxu0 0
  %7447 = vmatpush1.bf16.msra.mxu0 0
  %7448 = vmatprep.subr.bf16.mxu0 0
  %7449 = vmatpush1.bf16.msra.mxu0 0
  %7450 = vmatprep.subr.bf16.mxu0 0
  %7451 = vmatpush1.bf16.msra.mxu0 0
  %7452 = vmatprep.subr.bf16.mxu0 0
  %7453 = vmatpush1.bf16.msra.mxu0 0
  %7454 = vmatprep.subr.bf16.mxu0 0
  %7455 = vmatpush1.bf16.msra.mxu0 0
  %7456 = vmatprep.subr.bf16.mxu0 0
  %7457 = vmatpush1.bf16.msra.mxu0 0
  %7458 = vmatprep.subr.bf16.mxu0 0
  %7459 = vmatpush1.bf16.msra.mxu0 0
  %7460 = vmatprep.subr.bf16.mxu0 0
  %7461 = vmatpush1.bf16.msra.mxu0 0
  %7462 = vmatprep.mubr.bf16.mxu0 0
  %7463 = vmatmul.mubr.bf16.gmra.mrb[0].mxu0 %v7422
  %v7464 = vpop.f32.mrb[0].mxu0
  %v7465 = vadd.f32 0.0, %v7464
  %v7466 = vpop.f32.mrb[0].mxu0
  %v7467 = vpop.f32.mrb[0].mxu0
  %v7468 = vadd.f32 0.0, %v7467
  %v7469 = vpop.f32.mrb[0].mxu0
  %7470 = vmatprep.mubr.bf16.mxu0 0
  %7471 = vmatmul.mubr.bf16.gmra.mrb[0].mxu0 %v7425
  %v7472 = vpop.f32.mrb[0].mxu0
  %v7473 = vadd.f32 0.0, %v7472
  %v7474 = vpop.f32.mrb[0].mxu0
  %v7475 = vpop.f32.mrb[0].mxu0
  %v7476 = vadd.f32 0.0, %v7475
  %v7477 = vpop.f32.mrb[0].mxu0
  %7478 = vmatprep.mubr.bf16.mxu0 0
  %7479 = vmatmul.mubr.bf16.gmra.mrb[0].mxu0 %v7428
  %v7480 = vpop.f32.mrb[0].mxu0
  %v7481 = vadd.f32 0.0, %v7480
  %v7482 = vpop.f32.mrb[0].mxu0
  %v7483 = vpop.f32.mrb[0].mxu0
  %v7484 = vadd.f32 0.0, %v7483
  %v7485 = vpop.f32.mrb[0].mxu0
  %7486 = vdwg.mxu0
  %s7487 = scalar_lea.vmem %s6, 16
  %v7488 = vld [vmem:[%s7487] sm:$0xf]
  %v7489 = vld [vmem:[%s7487 + $0x4] sm:$0xf]
  %v7490 = vld [vmem:[%s7487 + $0x8] sm:$0xf]
  %v7491 = vld [vmem:[%s7487 + $0xc] sm:$0xf]
  %v7496 = vunpack.c.l.b16 %v7488
  %v7497 = vunpack.c.l.b16 %v7489
  %v7498 = vunpack.c.l.b16 %v7490
  %v7499 = vunpack.c.l.b16 %v7491
  %v7500 = vpack.c.b16 %v7497, %v7496
  %v7501 = vpack.c.b16 %v7499, %v7498
  %7504 = vmatprep.subr.bf16.mxu0 0
  %7505 = vmatpush1.bf16.msra.mxu0 %v7500
  %7506 = vmatprep.subr.bf16.mxu0 0
  %7507 = vmatpush1.bf16.msra.mxu0 %v7501
  %7508 = vmatprep.subr.bf16.mxu0 0
  %7509 = vmatpush1.bf16.msra.mxu0 0
  %7510 = vmatprep.subr.bf16.mxu0 0
  %7511 = vmatpush1.bf16.msra.mxu0 0
  %7512 = vmatprep.subr.bf16.mxu0 0
  %7513 = vmatpush1.bf16.msra.mxu0 0
  %7514 = vmatprep.subr.bf16.mxu0 0
  %7515 = vmatpush1.bf16.msra.mxu0 0
  %7516 = vmatprep.subr.bf16.mxu0 0
  %7517 = vmatpush1.bf16.msra.mxu0 0
  %7518 = vmatprep.subr.bf16.mxu0 0
  %7519 = vmatpush1.bf16.msra.mxu0 0
  %7520 = vmatprep.subr.bf16.mxu0 0
  %7521 = vmatpush1.bf16.msra.mxu0 0
  %7522 = vmatprep.subr.bf16.mxu0 0
  %7523 = vmatpush1.bf16.msra.mxu0 0
  %7524 = vmatprep.subr.bf16.mxu0 0
  %7525 = vmatpush1.bf16.msra.mxu0 0
  %7526 = vmatprep.subr.bf16.mxu0 0
  %7527 = vmatpush1.bf16.msra.mxu0 0
  %7528 = vmatprep.subr.bf16.mxu0 0
  %7529 = vmatpush1.bf16.msra.mxu0 0
  %7530 = vmatprep.subr.bf16.mxu0 0
  %7531 = vmatpush1.bf16.msra.mxu0 0
  %7532 = vmatprep.subr.bf16.mxu0 0
  %7533 = vmatpush1.bf16.msra.mxu0 0
  %7534 = vmatprep.subr.bf16.mxu0 0
  %7535 = vmatpush1.bf16.msra.mxu0 0
  %7536 = vmatprep.mubr.bf16.mxu0 0
  %7537 = vmatmul.mubr.bf16.gmra.mrb[0].mxu0 %v7422
  %v7538 = vpop.f32.mrb[0].mxu0
  %v7539 = vadd.f32 0.0, %v7538
  %v7540 = vpop.f32.mrb[0].mxu0
  %v7541 = vpop.f32.mrb[0].mxu0
  %v7542 = vadd.f32 0.0, %v7541
  %v7543 = vpop.f32.mrb[0].mxu0
  %7544 = vmatprep.mubr.bf16.mxu0 0
  %7545 = vmatmul.mubr.bf16.gmra.mrb[0].mxu0 %v7425
  %v7546 = vpop.f32.mrb[0].mxu0
  %v7547 = vadd.f32 0.0, %v7546
  %v7548 = vpop.f32.mrb[0].mxu0
  %v7549 = vpop.f32.mrb[0].mxu0
  %v7550 = vadd.f32 0.0, %v7549
  %v7551 = vpop.f32.mrb[0].mxu0
  %7552 = vmatprep.mubr.bf16.mxu0 0
  %7553 = vmatmul.mubr.bf16.gmra.mrb[0].mxu0 %v7428
  %v7554 = vpop.f32.mrb[0].mxu0
  %v7555 = vadd.f32 0.0, %v7554
  %v7556 = vpop.f32.mrb[0].mxu0
  %v7557 = vpop.f32.mrb[0].mxu0
  %v7558 = vadd.f32 0.0, %v7557
  %v7559 = vpop.f32.mrb[0].mxu0
  %7560 = vdwg.mxu0
  %v7561 = vsub.f32 0.0, %v7465
  %v7562 = vsub.f32 0.0, %v7468
  %v7563 = vsub.f32 0.0, %v7473
  %v7564 = vsub.f32 0.0, %v7476
  %v7565 = vsub.f32 0.0, %v7481
  %v7566 = vsub.f32 0.0, %v7484
  %v7567 = vmul.f32 %v7561, 1.442695
  %v7568 = vpow.pop %v7567
  %v7569 = vmul.f32 %v7562, 1.442695
  %v7570 = vpow.pop %v7569
  %v7571 = vmul.f32 %v7563, 1.442695
  %v7572 = vpow.pop %v7571
  %v7573 = vmul.f32 %v7564, 1.442695
  %v7574 = vpow.pop %v7573
  %v7575 = vmul.f32 %v7565, 1.442695
  %v7576 = vpow.pop %v7575
  %v7577 = vmul.f32 %v7566, 1.442695
  %v7578 = vpow.pop %v7577
  %v7579 = vadd.f32 %v7568, 1.0
  %v7580 = vadd.f32 %v7570, 1.0
  %v7581 = vadd.f32 %v7572, 1.0
  %v7582 = vadd.f32 %v7574, 1.0
  %v7583 = vadd.f32 %v7576, 1.0
  %v7584 = vadd.f32 %v7578, 1.0
  %v7585 = vrcp.pop %v7579
  %v7586 = vmul.f32 %v7465, %v7585
  %v7587 = vrcp.pop %v7580
  %v7588 = vmul.f32 %v7468, %v7587
  %v7589 = vrcp.pop %v7581
  %v7590 = vmul.f32 %v7473, %v7589
  %v7591 = vrcp.pop %v7582
  %v7592 = vmul.f32 %v7476, %v7591
  %v7593 = vrcp.pop %v7583
  %v7594 = vmul.f32 %v7481, %v7593
  %v7595 = vrcp.pop %v7584
  %v7596 = vmul.f32 %v7484, %v7595
  %v7597 = vmul.f32 %v7586, %v7539
  %v7598 = vmul.f32 %v7588, %v7542
  %v7599 = vmul.f32 %v7590, %v7547
  %v7600 = vmul.f32 %v7592, %v7550
  %v7601 = vmul.f32 %v7594, %v7555
  %v7602 = vmul.f32 %v7596, %v7558
  %v7603 = vpack.c.bf16 %v7598, %v7597
  %v7604 = vpack.c.bf16 %v7600, %v7599
  %v7605 = vpack.c.bf16 %v7602, %v7601
  %s7606 = scalar_lea.vmem %s7, 32
  %v7607 = vld [vmem:[%s7606] sm:$0xf]
  %v7608 = vld [vmem:[%s7606 + $0x4] sm:$0xf]
  %v7609 = vld [vmem:[%s7606 + $0x8] sm:$0xf]
  %v7610 = vld [vmem:[%s7606 + $0xc] sm:$0xf]
  %v7611 = vld [vmem:[%s7606 + $0x10] sm:$0xf]
  %v7612 = vld [vmem:[%s7606 + $0x14] sm:$0xf]
  %v7613 = vld [vmem:[%s7606 + $0x18] sm:$0xf]
  %v7614 = vld [vmem:[%s7606 + $0x1c] sm:$0xf]
  %v7623 = vunpack.c.l.b16 %v7607
  %v7624 = vunpack.c.l.b16 %v7608
  %v7625 = vunpack.c.l.b16 %v7609
  %v7626 = vunpack.c.l.b16 %v7610
  %v7627 = vunpack.c.l.b16 %v7611
  %v7628 = vunpack.c.l.b16 %v7612
  %v7629 = vunpack.c.l.b16 %v7613
  %v7630 = vunpack.c.l.b16 %v7614
  %v7631 = vpack.c.b16 %v7624, %v7623
  %v7632 = vpack.c.b16 %v7626, %v7625
  %v7633 = vpack.c.b16 %v7628, %v7627
  %v7634 = vpack.c.b16 %v7630, %v7629
  %v7640 = vsel %vm3822, %v7603, 0
  %v7643 = vsel %vm3822, %v7604, 0
  %v7646 = vsel %vm3822, %v7605, 0
  %7648 = vmatprep.subr.bf16.mxu0 0
  %7649 = vmatpush1.bf16.msra.mxu0 %v7631
  %7650 = vmatprep.subr.bf16.mxu0 0
  %7651 = vmatpush1.bf16.msra.mxu0 %v7632
  %7652 = vmatprep.subr.bf16.mxu0 0
  %7653 = vmatpush1.bf16.msra.mxu0 %v7633
  %7654 = vmatprep.subr.bf16.mxu0 0
  %7655 = vmatpush1.bf16.msra.mxu0 %v7634
  %7656 = vmatprep.subr.bf16.mxu0 0
  %7657 = vmatpush1.bf16.msra.mxu0 0
  %7658 = vmatprep.subr.bf16.mxu0 0
  %7659 = vmatpush1.bf16.msra.mxu0 0
  %7660 = vmatprep.subr.bf16.mxu0 0
  %7661 = vmatpush1.bf16.msra.mxu0 0
  %7662 = vmatprep.subr.bf16.mxu0 0
  %7663 = vmatpush1.bf16.msra.mxu0 0
  %7664 = vmatprep.subr.bf16.mxu0 0
  %7665 = vmatpush1.bf16.msra.mxu0 0
  %7666 = vmatprep.subr.bf16.mxu0 0
  %7667 = vmatpush1.bf16.msra.mxu0 0
  %7668 = vmatprep.subr.bf16.mxu0 0
  %7669 = vmatpush1.bf16.msra.mxu0 0
  %7670 = vmatprep.subr.bf16.mxu0 0
  %7671 = vmatpush1.bf16.msra.mxu0 0
  %7672 = vmatprep.subr.bf16.mxu0 0
  %7673 = vmatpush1.bf16.msra.mxu0 0
  %7674 = vmatprep.subr.bf16.mxu0 0
  %7675 = vmatpush1.bf16.msra.mxu0 0
  %7676 = vmatprep.subr.bf16.mxu0 0
  %7677 = vmatpush1.bf16.msra.mxu0 0
  %7678 = vmatprep.subr.bf16.mxu0 0
  %7679 = vmatpush1.bf16.msra.mxu0 0
  %7680 = vmatprep.mubr.bf16.mxu0 0
  %7681 = vmatmul.mubr.bf16.gmra.mrb[0].mxu0 %v7640
  %v7682 = vpop.f32.mrb[0].mxu0
  %v7683 = vadd.f32 0.0, %v7682
  %v7684 = vpop.f32.mrb[0].mxu0
  %v7685 = vpop.f32.mrb[0].mxu0
  %v7686 = vadd.f32 0.0, %v7685
  %v7687 = vpop.f32.mrb[0].mxu0
  %7688 = vmatprep.mubr.bf16.mxu0 0
  %7689 = vmatmul.mubr.bf16.gmra.mrb[0].mxu0 %v7643
  %v7690 = vpop.f32.mrb[0].mxu0
  %v7691 = vadd.f32 0.0, %v7690
  %v7692 = vpop.f32.mrb[0].mxu0
  %v7693 = vpop.f32.mrb[0].mxu0
  %v7694 = vadd.f32 0.0, %v7693
  %v7695 = vpop.f32.mrb[0].mxu0
  %7696 = vmatprep.mubr.bf16.mxu0 0
  %7697 = vmatmul.mubr.bf16.gmra.mrb[0].mxu0 %v7646
  %v7698 = vpop.f32.mrb[0].mxu0
  %v7699 = vadd.f32 0.0, %v7698
  %v7700 = vpop.f32.mrb[0].mxu0
  %v7701 = vpop.f32.mrb[0].mxu0
  %v7702 = vadd.f32 0.0, %v7701
  %v7703 = vpop.f32.mrb[0].mxu0
  %7704 = vdwg.mxu0
  %v7705 = vadd.f32 %v7335, %v7683
  %v7706 = vadd.f32 %v7336, %v7686
  %v7707 = vadd.f32 %v7337, %v7691
  %v7708 = vadd.f32 %v7338, %v7694
  %v7709 = vadd.f32 %v7339, %v7699
  %v7710 = vadd.f32 %v7340, %v7702
  %v7711 = vmul.f32 %v7705, %v7705
  %v7712 = vmul.f32 %v7706, %v7706
  %v7713 = vmul.f32 %v7707, %v7707
  %v7714 = vmul.f32 %v7708, %v7708
  %v7715 = vmul.f32 %v7709, %v7709
  %v7716 = vmul.f32 %v7710, %v7710
  %v7717 = vsel %vm89, %v7711, 0.0
  %7718 = vadd.xlane.f32.xlu0 %v7717
  %v7719 = vpop.xlane.xlu0 %7718
  %v7720 = vsel %vm89, %v7712, 0.0
  %7721 = vadd.xlane.f32.xlu0 %v7720
  %v7722 = vpop.xlane.xlu0 %7721
  %v7723 = vsel %vm89, %v7713, 0.0
  %7724 = vadd.xlane.f32.xlu0 %v7723
  %v7725 = vpop.xlane.xlu0 %7724
  %v7726 = vsel %vm89, %v7714, 0.0
  %7727 = vadd.xlane.f32.xlu0 %v7726
  %v7728 = vpop.xlane.xlu0 %7727
  %v7729 = vsel %vm89, %v7715, 0.0
  %7730 = vadd.xlane.f32.xlu0 %v7729
  %v7731 = vpop.xlane.xlu0 %7730
  %v7732 = vsel %vm89, %v7716, 0.0
  %7733 = vadd.xlane.f32.xlu0 %v7732
  %v7734 = vpop.xlane.xlu0 %7733
  %v7735 = vmul.f32 %v7719, %v108
  %v7736 = vmul.f32 %v7722, %v108
  %v7737 = vmul.f32 %v7725, %v108
  %v7738 = vmul.f32 %v7728, %v108
  %v7739 = vmul.f32 %v7731, %v108
  %v7740 = vmul.f32 %v7734, %v108
  %v7741 = vadd.f32 %v7735, 1e-06
  %v7742 = vadd.f32 %v7736, 1e-06
  %v7743 = vadd.f32 %v7737, 1e-06
  %v7744 = vadd.f32 %v7738, 1e-06
  %v7745 = vadd.f32 %v7739, 1e-06
  %v7746 = vadd.f32 %v7740, 1e-06
  %v7747 = vrsqrt.pop %v7741
  %v7748 = vrsqrt.pop %v7742
  %v7749 = vrsqrt.pop %v7743
  %v7750 = vrsqrt.pop %v7744
  %v7751 = vrsqrt.pop %v7745
  %v7752 = vrsqrt.pop %v7746
  %v7753 = vmul.f32 %v7705, %v7747
  %v7754 = vmul.f32 %v7706, %v7748
  %v7755 = vmul.f32 %v7707, %v7749
  %v7756 = vmul.f32 %v7708, %v7750
  %v7757 = vmul.f32 %v7709, %v7751
  %v7758 = vmul.f32 %v7710, %v7752
  %v7759 = vpack.c.bf16 %v7754, %v7753
  %v7760 = vpack.c.bf16 %v7756, %v7755
  %v7761 = vpack.c.bf16 %v7758, %v7757
  %v7762 = vld [vmem:[%s10] sm:$0x1]
  %v7764 = vpack.i.b16 %v7762, %v7762
  %v7766 = vlaneseq
  %v7767 = vshrl.u32 %v7766, 7
  %v7768 = vsub.s32 0, %v7767
  %v7769 = vrot.slane %v7764, %v7768
  %v7770 = vmul.bf16 %v7759, %v7769
  %v7771 = vmul.bf16 %v7760, %v7769
  %v7772 = vmul.bf16 %v7761, %v7769
  %v7776 = vunpack.c.l.b16 %v7770
  %v7777 = vunpack.c.h.b16 %v7770
  %v7778 = vunpack.c.l.b16 %v7771
  %v7779 = vunpack.c.h.b16 %v7771
  %v7780 = vunpack.c.l.b16 %v7772
  %v7781 = vunpack.c.h.b16 %v7772
  %v7782 = vpack.c.b16 %v7776, %v7776
  %v7783 = vpack.c.b16 %v7777, %v7777
  %v7784 = vpack.c.b16 %v7778, %v7778
  %v7785 = vpack.c.b16 %v7779, %v7779
  %v7786 = vpack.c.b16 %v7780, %v7780
  %v7787 = vpack.c.b16 %v7781, %v7781
  %vm7794 = vcmask 257024
  %7795 = vst.msk [vmem:[%s15] sm:$0xf] %vm7794, %v7782
  %7796 = vst.msk [vmem:[%s15 + $0x4] sm:$0xf] %vm7794, %v7783
  %7797 = vst.msk [vmem:[%s15 + $0x8] sm:$0xf] %vm7794, %v7784
  %7798 = vst.msk [vmem:[%s15 + $0xc] sm:$0xf] %vm7794, %v7785
  %7799 = vst.msk [vmem:[%s15 + $0x10] sm:$0xf] %vm7794, %v7786
  %7800 = vst.msk [vmem:[%s15 + $0x14] sm:$0xf] %vm7794, %v7787
  // Predicated region
  $region62: #{forward.2} parent=0 // pred_check
    _
  $region63: #{forward.2} parent=0 // pred_check_branch
    %7802 = sbr.rel (0) target = $region65
  $region64: #{forward.2} parent=0 // pred_region
    _
  $region65: #{forward.2} parent=0 // pred_fallthru
    _
  // Predicated region
  $region66: #{forward.2} parent=0 // pred_check
    _
  $region67: #{forward.2} parent=0 // pred_check_branch
    %7804 = sbr.rel (0) target = $region69
  $region68: #{forward.2} parent=0 // pred_region
    _
  $region69: #{forward.2} parent=0 // pred_fallthru
    _

</llo_original>
